<compile_context>
chip_gen: v5e
topology: v5e:2x2
jax: 0.10.0
libtpu: 0.0.40
codegen_flags: <defaults>
</compile_context>

<pallas_src>
import math

import jax
import jax.numpy as jnp
from jax import lax
from jax.experimental import pallas as pl
from jax.experimental.pallas import tpu as pltpu

N_FEATURES = 3
LEAKY_SLOPE = 0.2
K = 9            # kernel size of every non-pointwise conv in Disc
PAD = 4          # padding of every non-pointwise conv in Disc
CP = 128         # lane-dense channel padding
N_CONV9 = 11     # res1(2) + conv1 + res2(2) + conv2 + res3(2) + conv3 + res4(2)
OFF = 8          # sublane-aligned first data row inside the activation scratch
RPAD = 8         # right pad rows in the scratch (>= PAD)


# ------------------------------ fused kernel --------------------------------

def _fused_disc_kernel(x_ref, w0_ref, b0_ref, cw_hbm, cb_ref, lw_ref, lb_ref,
                       o_ref, act_a, act_b, cw_vmem, cw_sem):
    BC, L, _ = x_ref.shape          # batch-chunk, seq_len, 128
    M = BC * L                      # batch folded into the matmul M dimension
    f32, bf16 = jnp.float32, jnp.bfloat16

    # Single-buffered conv-weight load (grid-invariant, so no BlockSpec
    # double-buffer); overlapped with pad zeroing and the stage-0 matmul.
    wcopy = pltpu.make_async_copy(cw_hbm, cw_vmem, cw_sem)
    wcopy.start()

    # Zero ONLY the sequence-pad rows.  Interior rows and padded channel
    # lanes are fully rewritten by every layer's matmul (zero-padded weights
    # and bias keep dead lanes at exactly 0).  Runs every grid step on
    # purpose: under a parallel-sharded grid each core owns its own scratch.
    zpad = jnp.zeros((BC, OFF, CP), f32)            # OFF == RPAD == 8
    act_a[:, :OFF, :] = zpad
    act_a[:, OFF + L:OFF + L + RPAD, :] = zpad
    act_b[:, :OFF, :] = zpad
    act_b[:, OFF + L:OFF + L + RPAD, :] = zpad

    def leaky(v):
        return jnp.maximum(v, LEAKY_SLOPE * v)     # valid for 0 < slope < 1

    # ---- stage 0: convp + convw + torch.cat fused into one pointwise matmul
    y0 = jnp.dot(x_ref[...].reshape(M, CP).astype(bf16), w0_ref[...],
                 preferred_element_type=f32) + b0_ref[...]
    act_a[:, OFF:OFF + L, :] = y0.reshape(BC, L, CP)

    wcopy.wait()                    # conv weights resident from here on

    # ---- Conv1d(K=9, pad=4): 4 two-tap groups (contraction 256) + tail tap
    def conv9(src, li, act, res_src=None):
        acc = jnp.zeros((M, CP), f32)
        for g in range(4):
            k = 2 * g
            cols = jnp.concatenate(
                [src[:, OFF - PAD + k:OFF - PAD + k + L, :].astype(bf16),
                 src[:, OFF - PAD + k + 1:OFF - PAD + k + 1 + L, :].astype(bf16)],
                axis=-1).reshape(M, 2 * CP)
            w = cw_vmem[li, k:k + 2].reshape(2 * CP, CP)          # bf16
            acc = acc + jnp.dot(cols, w, preferred_element_type=f32)
        tail = src[:, OFF - PAD + 8:OFF - PAD + 8 + L, :].reshape(M, CP).astype(bf16)
        acc = acc + jnp.dot(tail, cw_vmem[li, 8], preferred_element_type=f32)
        y = acc + cb_ref[li]
        if res_src is not None:
            y = y + res_src[:, OFF:OFF + L, :].reshape(M, CP)
        if act:
            y = leaky(y)
        return y.reshape(BC, L, CP)

    # res1, conv1, res2, conv2, res3, conv3, res4  (ping-pong between buffers)
    cur, oth = act_a, act_b
    li = 0
    for stage in range(4):
        # Res block: y = leaky(conv0(x)); out = leaky(x + conv1(y))
        oth[:, OFF:OFF + L, :] = conv9(cur, li, act=True)
        li += 1
        cur[:, OFF:OFF + L, :] = conv9(oth, li, act=True, res_src=cur)
        li += 1
        if stage < 3:
            # plain down-conv (no activation in the torch forward)
            oth[:, OFF:OFF + L, :] = conv9(cur, li, act=False)
            li += 1
            cur, oth = oth, cur

    # ---- final Linear: lin0 weights pre-permuted to (l, c) layout -----------
    prod = cur[:, OFF:OFF + L, :] * lw_ref[...]                  # (BC, L, CP)
    s = jnp.sum(jnp.sum(prod, axis=2), axis=1, keepdims=True)    # (BC, 1)
    o_ref[...] = (s + lb_ref[...]).astype(o_ref.dtype)


# ------------------------------ wrapper --------------------------------------

def _choose_bc(B, L):
    """Batch-chunk size: fill the MXU (BC*L >= ~256), respect a VMEM budget,
    keep the (BC, 1) output block legal (BC == B or BC % 8 == 0), and leave
    >= 2 grid steps for v7x's two TensorCores when that doesn't starve the MXU."""
    Lp = OFF + L + RPAD
    # rough per-sample VMEM: 2 f32 ping-pong buffers + a few (L, 256) temps
    bytes_per_b = 2 * Lp * CP * 4 + 4 * L * 2 * CP * 4
    bc_cap = max(1, (12 * 1024 * 1024) // bytes_per_b)
    valid = [d for d in range(1, B + 1) if B % d == 0 and (d == B or d % 8 == 0)]
    target = -(-256 // L)                     # ceil(256 / L)
    cands = [d for d in valid if target <= d <= bc_cap]
    if cands:
        bc = min(cands)
    else:
        fit = [d for d in valid if d <= bc_cap]
        bc = max(fit) if fit else min(valid)
    if B // bc == 1:
        smaller = [d for d in valid if d < bc and d * L >= 256]
        if smaller:
            bc = max(smaller)                 # split across 2+ cores, M still >= 256
    return bc


def disc_forward(packed, x_ncl):
    """Fused Pallas forward. Input is PyTorch-style NCL (B, 3+encoded_dim, L)."""
    B, Ctot, L = x_ncl.shape
    assert Ctot <= CP
    Lp = OFF + L + RPAD

    # tiny one-time input prep: channels-last + lane-dense channel pad
    x = jnp.transpose(x_ncl, (0, 2, 1)).astype(jnp.float32)
    x = jnp.pad(x, ((0, 0), (0, 0), (0, CP - Ctot)))

    BC = _choose_bc(B, L)
    n_steps = B // BC
    grid = (n_steps,)

    flops = 2 * B * L * CP * CP * (1 + N_CONV9 * K) + 2 * B * L * CP
    bytes_accessed = (B * L * CP * 4 + n_steps * packed["cw"].size * 2 +
                      packed["w0"].size * 2 + packed["cb"].size * 4 +
                      packed["lw"].size * 4 + B * 4)

    return pl.pallas_call(
        _fused_disc_kernel,
        out_shape=jax.ShapeDtypeStruct((B, 1), jnp.float32),
        grid=grid,
        in_specs=[
            pl.BlockSpec((BC, L, CP), lambda i: (i, 0, 0)),          # x
            pl.BlockSpec((CP, CP), lambda i: (0, 0)),                # fused convp/convw (bf16)
            pl.BlockSpec((1, CP), lambda i: (0, 0)),                 # its bias (f32)
            pl.BlockSpec(memory_space=pl.ANY),                       # conv weights stay in HBM
            pl.BlockSpec((N_CONV9, 1, CP), lambda i: (0, 0, 0)),     # conv biases (f32)
            pl.BlockSpec((L, CP), lambda i: (0, 0)),                 # lin0 weight (l, c)
            pl.BlockSpec((1, 1), lambda i: (0, 0)),                  # lin0 bias
        ],
        out_specs=pl.BlockSpec((BC, 1), lambda i: (i, 0)),
        scratch_shapes=[
            pltpu.VMEM((BC, Lp, CP), jnp.float32),                   # ping
            pltpu.VMEM((BC, Lp, CP), jnp.float32),                   # pong
            pltpu.VMEM((N_CONV9, K, CP, CP), jnp.bfloat16),          # conv weights (1 buffer)
            pltpu.SemaphoreType.DMA,                                 # weight-DMA semaphore
        ],
        compiler_params=pltpu.CompilerParams(
            dimension_semantics=("parallel",),
            vmem_limit_bytes=32 * 1024 * 1024,
        ),
        cost_estimate=pl.CostEstimate(flops=flops, transcendentals=0,
                                      bytes_accessed=bytes_accessed),
    )(x, packed["w0"], packed["b0"], packed["cw"], packed["cb"],
      packed["lw"], packed["lb"])


# --------------------------- parameter construction -------------------------

def init_params(key, ndf, seq_len, encoded_dim):
    """Raw params in torch-like layout: conv weight (K, Cin, Cout), bias (Cout,)."""
    keys = iter(jax.random.split(key, 64))

    def conv_p(cin, cout, k):
        scale = 1.0 / math.sqrt(cin * k)
        w = jax.random.uniform(next(keys), (k, cin, cout), jnp.float32, -scale, scale)
        b = jax.random.uniform(next(keys), (cout,), jnp.float32, -scale, scale)
        return w, b

    def res_p(c):
        w0, b0 = conv_p(c, c, 9)
        w1, b1 = conv_p(c, c, 9)
        return dict(w0=w0, b0=b0, w1=w1, b1=b1)

    p = {}
    p["convw_w"], p["convw_b"] = conv_p(encoded_dim, ndf, 1)
    p["convp_w"], p["convp_b"] = conv_p(N_FEATURES, ndf, 1)
    p["res1"] = res_p(ndf * 2)
    p["conv1_w"], p["conv1_b"] = conv_p(ndf * 2, ndf * 4, 9)
    p["res2"] = res_p(ndf * 4)
    p["conv2_w"], p["conv2_b"] = conv_p(ndf * 4, ndf * 6, 9)
    p["res3"] = res_p(ndf * 6)
    p["conv3_w"], p["conv3_b"] = conv_p(ndf * 6, ndf * 8, 9)
    p["res4"] = res_p(ndf * 8)
    F = ndf * 8 * seq_len
    scale = 1.0 / math.sqrt(F)
    # stored in torch flatten(1,2) order: row index = c*seq_len + l
    p["lin0_w"] = jax.random.uniform(next(keys), (F, 1), jnp.float32, -scale, scale)
    p["lin0_b"] = jax.random.uniform(next(keys), (1,), jnp.float32, -scale, scale)
    return p


def pack_params(params, ndf, seq_len, encoded_dim):
    """One-time repack into the fused kernel's lane-dense bf16 layout."""
    assert ndf * 8 <= CP and N_FEATURES + encoded_dim <= CP
    f32, bf16 = jnp.float32, jnp.bfloat16

    def pack_conv(w, b):
        kk, cin, cout = w.shape
        wp = jnp.zeros((kk, CP, CP), f32).at[:, :cin, :cout].set(w)
        bp = jnp.zeros((1, CP), f32).at[0, :cout].set(b)
        return wp.astype(bf16), bp

    # stage 0: block-diagonal fusion of convp (3->ndf) and convw (enc->ndf);
    # output channels [0:ndf]=p, [ndf:2ndf]=w  (matches torch.cat([p, w], dim=1))
    w0 = jnp.zeros((CP, CP), f32)
    w0 = w0.at[:N_FEATURES, :ndf].set(params["convp_w"][0])
    w0 = w0.at[N_FEATURES:N_FEATURES + encoded_dim, ndf:2 * ndf].set(params["convw_w"][0])
    b0 = jnp.zeros((1, CP), f32)
    b0 = b0.at[0, :ndf].set(params["convp_b"])
    b0 = b0.at[0, ndf:2 * ndf].set(params["convw_b"])

    convs = [
        (params["res1"]["w0"], params["res1"]["b0"]),
        (params["res1"]["w1"], params["res1"]["b1"]),
        (params["conv1_w"], params["conv1_b"]),
        (params["res2"]["w0"], params["res2"]["b0"]),
        (params["res2"]["w1"], params["res2"]["b1"]),
        (params["conv2_w"], params["conv2_b"]),
        (params["res3"]["w0"], params["res3"]["b0"]),
        (params["res3"]["w1"], params["res3"]["b1"]),
        (params["conv3_w"], params["conv3_b"]),
        (params["res4"]["w0"], params["res4"]["b0"]),
        (params["res4"]["w1"], params["res4"]["b1"]),
    ]
    packed = [pack_conv(w, b) for w, b in convs]
    cw = jnp.stack([w for w, _ in packed])          # (11, 9, CP, CP) bf16
    cb = jnp.stack([b for _, b in packed])          # (11, 1, CP) f32

    # final linear: permute rows from torch flatten(1,2) order (c*L + l) to the
    # kernel's channels-last (l, c) layout and zero-pad channels to CP.
    c8 = ndf * 8
    wlin = params["lin0_w"].reshape(c8, seq_len)    # [c, l]
    lw = jnp.zeros((seq_len, CP), f32).at[:, :c8].set(wlin.T)
    lb = params["lin0_b"].reshape(1, 1)

    return dict(w0=w0.astype(bf16), b0=b0, cw=cw, cb=cb, lw=lw, lb=lb)


# --------------------------- pure-JAX reference ------------------------------

def _conv1d_ref(x_ncl, w_kio, b, pad):
    w_oik = jnp.transpose(w_kio, (2, 1, 0))         # (Cout, Cin, K)
    y = lax.conv_general_dilated(x_ncl, w_oik, window_strides=(1,),
                                 padding=[(pad, pad)],
                                 dimension_numbers=("NCH", "OIH", "NCH"))
    return y + b[None, :, None]


def disc_forward_ref(params, x_ncl):
    """Pure-JAX f32 reference mirroring the PyTorch forward (NCL layout)."""
    act = lambda v: jnp.where(v >= 0, v, LEAKY_SLOPE * v)
    p_ = x_ncl[:, :N_FEATURES, :]
    w_ = x_ncl[:, N_FEATURES:, :]
    w = _conv1d_ref(w_, params["convw_w"], params["convw_b"], 0)
    p = _conv1d_ref(p_, params["convp_w"], params["convp_b"], 0)
    x = jnp.concatenate([p, w], axis=1)

    def res(x, pw):
        y = act(_conv1d_ref(x, pw["w0"], pw["b0"], 4))
        y = _conv1d_ref(y, pw["w1"], pw["b1"], 4)
        return act(x + y)

    x = res(x, params["res1"])
    x = _conv1d_ref(x, params["conv1_w"], params["conv1_b"], 4)
    x = res(x, params["res2"])
    x = _conv1d_ref(x, params["conv2_w"], params["conv2_b"], 4)
    x = res(x, params["res3"])
    x = _conv1d_ref(x, params["conv3_w"], params["conv3_b"], 4)
    x = res(x, params["res4"])
    flat = x.reshape(x.shape[0], -1)                 # torch flatten(1,2)
    return flat @ params["lin0_w"] + params["lin0_b"]


# ----------------------------------- main ------------------------------------

if __name__ == "__main__":
    ndf, seq_len, encoded_dim, batch = 8, 8, 4, 2

    key = jax.random.PRNGKey(0)
    k_param, k_x = jax.random.split(key)
    params = init_params(k_param, ndf, seq_len, encoded_dim)
    packed = pack_params(params, ndf, seq_len, encoded_dim)   # one-time repack

    # input: (B, n_features + encoded_dim, seq_len)  (PyTorch NCL)
    x = jax.random.normal(k_x, (batch, N_FEATURES + encoded_dim, seq_len),
                          jnp.float32)

    out = jax.jit(disc_forward)(packed, x)
    out = jax.block_until_ready(out)

    ref = disc_forward_ref(params, x)
    assert out.shape == (batch, 1), out.shape
    # bf16 MXU operands (f32 accumulation) => tolerance relaxed vs. pure-f32 ref
    assert jnp.allclose(out, ref, rtol=5e-2, atol=5e-2), (out, ref)

    print("KERNEL_OK")
</pallas_src>

<mosaic_0001>
module attributes {stable_mosaic.version = 11 : i64} {
  func.func @_fused_disc_kernel(%arg0: i32, %arg1: memref<2x8x128xf32, #tpu.memory_space<vmem>>, %arg2: memref<128x128xbf16, #tpu.memory_space<vmem>>, %arg3: memref<1x128xf32, #tpu.memory_space<vmem>>, %arg4: memref<11x9x128x128xbf16, #tpu.memory_space<any>>, %arg5: memref<11x1x128xf32, #tpu.memory_space<vmem>>, %arg6: memref<8x128xf32, #tpu.memory_space<vmem>>, %arg7: memref<1x1xf32, #tpu.memory_space<vmem>>, %arg8: memref<2x1xf32, #tpu.memory_space<vmem>>, %arg9: memref<2x24x128xf32, #tpu.memory_space<vmem>>, %arg10: memref<2x24x128xf32, #tpu.memory_space<vmem>>, %arg11: memref<11x9x128x128xbf16, #tpu.memory_space<vmem>>, %arg12: memref<!tpu.dma_semaphore, #tpu.memory_space<semaphore_mem>>) attributes {dimension_semantics = [#tpu.dimension_semantics<parallel>], iteration_bounds = array<i64: 1>, scalar_prefetch = 0 : i64, scratch_operands = 4 : i64, tpu.core_type = #tpu.core_type<tc>, window_params = [{transform_indices = @transform_0, window_bounds = array<i64: 2, 8, 128>}, {pipeline_mode = #tpu.pipeline_mode<synchronous>, transform_indices = @transform_1, window_bounds = array<i64: 128, 128>}, {pipeline_mode = #tpu.pipeline_mode<synchronous>, transform_indices = @transform_2, window_bounds = array<i64: 1, 128>}, {}, {pipeline_mode = #tpu.pipeline_mode<synchronous>, transform_indices = @transform_4, window_bounds = array<i64: 11, 1, 128>}, {pipeline_mode = #tpu.pipeline_mode<synchronous>, transform_indices = @transform_5, window_bounds = array<i64: 8, 128>}, {pipeline_mode = #tpu.pipeline_mode<synchronous>, transform_indices = @transform_6, window_bounds = array<i64: 1, 1>}, {transform_indices = @transform_7, window_bounds = array<i64: 2, 1>}]} {
    tpu.enqueue_dma source(%arg4 : memref<11x9x128x128xbf16, #tpu.memory_space<any>>) target(%arg11 : memref<11x9x128x128xbf16, #tpu.memory_space<vmem>>) target_semaphore(%arg12 : memref<!tpu.dma_semaphore, #tpu.memory_space<semaphore_mem>>)
    %cst = arith.constant 0.000000e+00 : f32
    %0 = vector.broadcast %cst : f32 to vector<2x8x128xf32>
    %c0 = arith.constant 0 : index
    %c0_0 = arith.constant 0 : index
    %c0_1 = arith.constant 0 : index
    %1 = vector.load %arg9[%c0, %c0_0, %c0_1] : memref<2x24x128xf32, #tpu.memory_space<vmem>>, vector<2x8x128xf32>
    tpu.vector_store %arg9[%c0, %c0_0, %c0_1], %0 {strides = array<i32>} : memref<2x24x128xf32, #tpu.memory_space<vmem>>, vector<2x8x128xf32>,
    %c0_2 = arith.constant 0 : index
    %c16 = arith.constant 16 : index
    %c0_3 = arith.constant 0 : index
    %2 = vector.load %arg9[%c0_2, %c16, %c0_3] : memref<2x24x128xf32, #tpu.memory_space<vmem>>, vector<2x8x128xf32>
    tpu.vector_store %arg9[%c0_2, %c16, %c0_3], %0 {strides = array<i32>} : memref<2x24x128xf32, #tpu.memory_space<vmem>>, vector<2x8x128xf32>,
    %c0_4 = arith.constant 0 : index
    %c0_5 = arith.constant 0 : index
    %c0_6 = arith.constant 0 : index
    %3 = vector.load %arg10[%c0_4, %c0_5, %c0_6] : memref<2x24x128xf32, #tpu.memory_space<vmem>>, vector<2x8x128xf32>
    tpu.vector_store %arg10[%c0_4, %c0_5, %c0_6], %0 {strides = array<i32>} : memref<2x24x128xf32, #tpu.memory_space<vmem>>, vector<2x8x128xf32>,
    %c0_7 = arith.constant 0 : index
    %c16_8 = arith.constant 16 : index
    %c0_9 = arith.constant 0 : index
    %4 = vector.load %arg10[%c0_7, %c16_8, %c0_9] : memref<2x24x128xf32, #tpu.memory_space<vmem>>, vector<2x8x128xf32>
    tpu.vector_store %arg10[%c0_7, %c16_8, %c0_9], %0 {strides = array<i32>} : memref<2x24x128xf32, #tpu.memory_space<vmem>>, vector<2x8x128xf32>,
    %c0_10 = arith.constant 0 : index
    %c0_11 = arith.constant 0 : index
    %c0_12 = arith.constant 0 : index
    %5 = vector.load %arg1[%c0_10, %c0_11, %c0_12] : memref<2x8x128xf32, #tpu.memory_space<vmem>>, vector<2x8x128xf32>
    %6 = vector.shape_cast %5 : vector<2x8x128xf32> to vector<16x128xf32>
    %7 = arith.truncf %6 : vector<16x128xf32> to vector<16x128xbf16>
    %c0_13 = arith.constant 0 : index
    %c0_14 = arith.constant 0 : index
    %8 = vector.load %arg2[%c0_13, %c0_14] : memref<128x128xbf16, #tpu.memory_space<vmem>>, vector<128x128xbf16>
    %cst_15 = arith.constant dense<0.000000e+00> : vector<16x128xf32>
    %9 = tpu.matmul %7, %8, %cst_15 {dimension_numbers = #tpu.dot_dimension_numbers<[1], [0], [0], [1], [0, 0, 1, 1], [], []>} : vector<16x128xbf16>, vector<128x128xbf16>, vector<16x128xf32> -> vector<16x128xf32>
    %c0_16 = arith.constant 0 : index
    %c0_17 = arith.constant 0 : index
    %10 = vector.load %arg3[%c0_16, %c0_17] : memref<1x128xf32, #tpu.memory_space<vmem>>, vector<1x128xf32>
    %11 = vector.broadcast %10 : vector<1x128xf32> to vector<16x128xf32>
    %12 = arith.addf %9, %11 : vector<16x128xf32>
    %13 = vector.shape_cast %12 : vector<16x128xf32> to vector<2x8x128xf32>
    %c0_18 = arith.constant 0 : index
    %c8 = arith.constant 8 : index
    %c0_19 = arith.constant 0 : index
    %14 = vector.load %arg9[%c0_18, %c8, %c0_19] : memref<2x24x128xf32, #tpu.memory_space<vmem>>, vector<2x8x128xf32>
    tpu.vector_store %arg9[%c0_18, %c8, %c0_19], %13 {strides = array<i32>} : memref<2x24x128xf32, #tpu.memory_space<vmem>>, vector<2x8x128xf32>,
    tpu.wait_dma2 semaphore(%arg12 : memref<!tpu.dma_semaphore, #tpu.memory_space<semaphore_mem>>) src(%arg4 : memref<11x9x128x128xbf16, #tpu.memory_space<any>>) dst(%arg11 : memref<11x9x128x128xbf16, #tpu.memory_space<vmem>>)
    %cst_20 = arith.constant 0.000000e+00 : f32
    %15 = vector.broadcast %cst_20 : f32 to vector<16x128xf32>
    %c0_21 = arith.constant 0 : index
    %c4 = arith.constant 4 : index
    %c0_22 = arith.constant 0 : index
    %16 = vector.load %arg9[%c0_21, %c4, %c0_22] : memref<2x24x128xf32, #tpu.memory_space<vmem>>, vector<2x8x128xf32>
    %17 = arith.truncf %16 : vector<2x8x128xf32> to vector<2x8x128xbf16>
    %c0_23 = arith.constant 0 : index
    %c5 = arith.constant 5 : index
    %c0_24 = arith.constant 0 : index
    %18 = vector.load %arg9[%c0_23, %c5, %c0_24] : memref<2x24x128xf32, #tpu.memory_space<vmem>>, vector<2x8x128xf32>
    %19 = arith.truncf %18 : vector<2x8x128xf32> to vector<2x8x128xbf16>
    %20 = tpu.concatenate %17, %19 in 2 : vector<2x8x128xbf16>, vector<2x8x128xbf16> -> vector<2x8x256xbf16>
    %21 = vector.shape_cast %20 : vector<2x8x256xbf16> to vector<16x256xbf16>
    %c0_25 = arith.constant 0 : index
    %c0_26 = arith.constant 0 : index
    %c0_27 = arith.constant 0 : index
    %c0_28 = arith.constant 0 : index
    %22 = vector.load %arg11[%c0_25, %c0_26, %c0_27, %c0_28] : memref<11x9x128x128xbf16, #tpu.memory_space<vmem>>, vector<1x2x128x128xbf16>
    %23 = vector.shape_cast %22 : vector<1x2x128x128xbf16> to vector<2x128x128xbf16>
    %24 = vector.shape_cast %23 : vector<2x128x128xbf16> to vector<256x128xbf16>
    %cst_29 = arith.constant dense<0.000000e+00> : vector<16x128xf32>
    %25 = tpu.matmul %21, %24, %cst_29 {dimension_numbers = #tpu.dot_dimension_numbers<[1], [0], [0], [1], [0, 0, 1, 1], [], []>} : vector<16x256xbf16>, vector<256x128xbf16>, vector<16x128xf32> -> vector<16x128xf32>
    %26 = arith.addf %15, %25 : vector<16x128xf32>
    %c0_30 = arith.constant 0 : index
    %c6 = arith.constant 6 : index
    %c0_31 = arith.constant 0 : index
    %27 = vector.load %arg9[%c0_30, %c6, %c0_31] : memref<2x24x128xf32, #tpu.memory_space<vmem>>, vector<2x8x128xf32>
    %28 = arith.truncf %27 : vector<2x8x128xf32> to vector<2x8x128xbf16>
    %c0_32 = arith.constant 0 : index
    %c7 = arith.constant 7 : index
    %c0_33 = arith.constant 0 : index
    %29 = vector.load %arg9[%c0_32, %c7, %c0_33] : memref<2x24x128xf32, #tpu.memory_space<vmem>>, vector<2x8x128xf32>
    %30 = arith.truncf %29 : vector<2x8x128xf32> to vector<2x8x128xbf16>
    %31 = tpu.concatenate %28, %30 in 2 : vector<2x8x128xbf16>, vector<2x8x128xbf16> -> vector<2x8x256xbf16>
    %32 = vector.shape_cast %31 : vector<2x8x256xbf16> to vector<16x256xbf16>
    %c0_34 = arith.constant 0 : index
    %c2 = arith.constant 2 : index
    %c0_35 = arith.constant 0 : index
    %c0_36 = arith.constant 0 : index
    %33 = vector.load %arg11[%c0_34, %c2, %c0_35, %c0_36] : memref<11x9x128x128xbf16, #tpu.memory_space<vmem>>, vector<1x2x128x128xbf16>
    %34 = vector.shape_cast %33 : vector<1x2x128x128xbf16> to vector<2x128x128xbf16>
    %35 = vector.shape_cast %34 : vector<2x128x128xbf16> to vector<256x128xbf16>
    %cst_37 = arith.constant dense<0.000000e+00> : vector<16x128xf32>
    %36 = tpu.matmul %32, %35, %cst_37 {dimension_numbers = #tpu.dot_dimension_numbers<[1], [0], [0], [1], [0, 0, 1, 1], [], []>} : vector<16x256xbf16>, vector<256x128xbf16>, vector<16x128xf32> -> vector<16x128xf32>
    %37 = arith.addf %26, %36 : vector<16x128xf32>
    %c0_38 = arith.constant 0 : index
    %c8_39 = arith.constant 8 : index
    %c0_40 = arith.constant 0 : index
    %38 = vector.load %arg9[%c0_38, %c8_39, %c0_40] : memref<2x24x128xf32, #tpu.memory_space<vmem>>, vector<2x8x128xf32>
    %39 = arith.truncf %38 : vector<2x8x128xf32> to vector<2x8x128xbf16>
    %c0_41 = arith.constant 0 : index
    %c9 = arith.constant 9 : index
    %c0_42 = arith.constant 0 : index
    %40 = vector.load %arg9[%c0_41, %c9, %c0_42] : memref<2x24x128xf32, #tpu.memory_space<vmem>>, vector<2x8x128xf32>
    %41 = arith.truncf %40 : vector<2x8x128xf32> to vector<2x8x128xbf16>
    %42 = tpu.concatenate %39, %41 in 2 : vector<2x8x128xbf16>, vector<2x8x128xbf16> -> vector<2x8x256xbf16>
    %43 = vector.shape_cast %42 : vector<2x8x256xbf16> to vector<16x256xbf16>
    %c0_43 = arith.constant 0 : index
    %c4_44 = arith.constant 4 : index
    %c0_45 = arith.constant 0 : index
    %c0_46 = arith.constant 0 : index
    %44 = vector.load %arg11[%c0_43, %c4_44, %c0_45, %c0_46] : memref<11x9x128x128xbf16, #tpu.memory_space<vmem>>, vector<1x2x128x128xbf16>
    %45 = vector.shape_cast %44 : vector<1x2x128x128xbf16> to vector<2x128x128xbf16>
    %46 = vector.shape_cast %45 : vector<2x128x128xbf16> to vector<256x128xbf16>
    %cst_47 = arith.constant dense<0.000000e+00> : vector<16x128xf32>
    %47 = tpu.matmul %43, %46, %cst_47 {dimension_numbers = #tpu.dot_dimension_numbers<[1], [0], [0], [1], [0, 0, 1, 1], [], []>} : vector<16x256xbf16>, vector<256x128xbf16>, vector<16x128xf32> -> vector<16x128xf32>
    %48 = arith.addf %37, %47 : vector<16x128xf32>
    %c0_48 = arith.constant 0 : index
    %c10 = arith.constant 10 : index
    %c0_49 = arith.constant 0 : index
    %49 = vector.load %arg9[%c0_48, %c10, %c0_49] : memref<2x24x128xf32, #tpu.memory_space<vmem>>, vector<2x8x128xf32>
    %50 = arith.truncf %49 : vector<2x8x128xf32> to vector<2x8x128xbf16>
    %c0_50 = arith.constant 0 : index
    %c11 = arith.constant 11 : index
    %c0_51 = arith.constant 0 : index
    %51 = vector.load %arg9[%c0_50, %c11, %c0_51] : memref<2x24x128xf32, #tpu.memory_space<vmem>>, vector<2x8x128xf32>
    %52 = arith.truncf %51 : vector<2x8x128xf32> to vector<2x8x128xbf16>
    %53 = tpu.concatenate %50, %52 in 2 : vector<2x8x128xbf16>, vector<2x8x128xbf16> -> vector<2x8x256xbf16>
    %54 = vector.shape_cast %53 : vector<2x8x256xbf16> to vector<16x256xbf16>
    %c0_52 = arith.constant 0 : index
    %c6_53 = arith.constant 6 : index
    %c0_54 = arith.constant 0 : index
    %c0_55 = arith.constant 0 : index
    %55 = vector.load %arg11[%c0_52, %c6_53, %c0_54, %c0_55] : memref<11x9x128x128xbf16, #tpu.memory_space<vmem>>, vector<1x2x128x128xbf16>
    %56 = vector.shape_cast %55 : vector<1x2x128x128xbf16> to vector<2x128x128xbf16>
    %57 = vector.shape_cast %56 : vector<2x128x128xbf16> to vector<256x128xbf16>
    %cst_56 = arith.constant dense<0.000000e+00> : vector<16x128xf32>
    %58 = tpu.matmul %54, %57, %cst_56 {dimension_numbers = #tpu.dot_dimension_numbers<[1], [0], [0], [1], [0, 0, 1, 1], [], []>} : vector<16x256xbf16>, vector<256x128xbf16>, vector<16x128xf32> -> vector<16x128xf32>
    %59 = arith.addf %48, %58 : vector<16x128xf32>
    %c0_57 = arith.constant 0 : index
    %c12 = arith.constant 12 : index
    %c0_58 = arith.constant 0 : index
    %60 = vector.load %arg9[%c0_57, %c12, %c0_58] : memref<2x24x128xf32, #tpu.memory_space<vmem>>, vector<2x8x128xf32>
    %61 = vector.shape_cast %60 : vector<2x8x128xf32> to vector<16x128xf32>
    %62 = arith.truncf %61 : vector<16x128xf32> to vector<16x128xbf16>
    %c0_59 = arith.constant 0 : index
    %c8_60 = arith.constant 8 : index
    %c0_61 = arith.constant 0 : index
    %c0_62 = arith.constant 0 : index
    %63 = vector.load %arg11[%c0_59, %c8_60, %c0_61, %c0_62] : memref<11x9x128x128xbf16, #tpu.memory_space<vmem>>, vector<1x1x128x128xbf16>
    %64 = vector.shape_cast %63 : vector<1x1x128x128xbf16> to vector<128x128xbf16>
    %cst_63 = arith.constant dense<0.000000e+00> : vector<16x128xf32>
    %65 = tpu.matmul %62, %64, %cst_63 {dimension_numbers = #tpu.dot_dimension_numbers<[1], [0], [0], [1], [0, 0, 1, 1], [], []>} : vector<16x128xbf16>, vector<128x128xbf16>, vector<16x128xf32> -> vector<16x128xf32>
    %66 = arith.addf %59, %65 : vector<16x128xf32>
    %c0_64 = arith.constant 0 : index
    %c0_65 = arith.constant 0 : index
    %c0_66 = arith.constant 0 : index
    %67 = vector.load %arg5[%c0_64, %c0_65, %c0_66] : memref<11x1x128xf32, #tpu.memory_space<vmem>>, vector<1x1x128xf32>
    %68 = vector.shape_cast %67 : vector<1x1x128xf32> to vector<1x128xf32>
    %69 = vector.broadcast %68 : vector<1x128xf32> to vector<16x128xf32>
    %70 = arith.addf %66, %69 : vector<16x128xf32>
    %cst_67 = arith.constant 2.000000e-01 : f32
    %71 = vector.broadcast %cst_67 : f32 to vector<16x128xf32>
    %72 = arith.mulf %71, %70 : vector<16x128xf32>
    %73 = arith.maximumf %70, %72 : vector<16x128xf32>
    %74 = vector.shape_cast %73 : vector<16x128xf32> to vector<2x8x128xf32>
    %c0_68 = arith.constant 0 : index
    %c8_69 = arith.constant 8 : index
    %c0_70 = arith.constant 0 : index
    %75 = vector.load %arg10[%c0_68, %c8_69, %c0_70] : memref<2x24x128xf32, #tpu.memory_space<vmem>>, vector<2x8x128xf32>
    tpu.vector_store %arg10[%c0_68, %c8_69, %c0_70], %74 {strides = array<i32>} : memref<2x24x128xf32, #tpu.memory_space<vmem>>, vector<2x8x128xf32>,
    %cst_71 = arith.constant 0.000000e+00 : f32
    %76 = vector.broadcast %cst_71 : f32 to vector<16x128xf32>
    %c0_72 = arith.constant 0 : index
    %c4_73 = arith.constant 4 : index
    %c0_74 = arith.constant 0 : index
    %77 = vector.load %arg10[%c0_72, %c4_73, %c0_74] : memref<2x24x128xf32, #tpu.memory_space<vmem>>, vector<2x8x128xf32>
    %78 = arith.truncf %77 : vector<2x8x128xf32> to vector<2x8x128xbf16>
    %c0_75 = arith.constant 0 : index
    %c5_76 = arith.constant 5 : index
    %c0_77 = arith.constant 0 : index
    %79 = vector.load %arg10[%c0_75, %c5_76, %c0_77] : memref<2x24x128xf32, #tpu.memory_space<vmem>>, vector<2x8x128xf32>
    %80 = arith.truncf %79 : vector<2x8x128xf32> to vector<2x8x128xbf16>
    %81 = tpu.concatenate %78, %80 in 2 : vector<2x8x128xbf16>, vector<2x8x128xbf16> -> vector<2x8x256xbf16>
    %82 = vector.shape_cast %81 : vector<2x8x256xbf16> to vector<16x256xbf16>
    %c1 = arith.constant 1 : index
    %c0_78 = arith.constant 0 : index
    %c0_79 = arith.constant 0 : index
    %c0_80 = arith.constant 0 : index
    %83 = vector.load %arg11[%c1, %c0_78, %c0_79, %c0_80] : memref<11x9x128x128xbf16, #tpu.memory_space<vmem>>, vector<1x2x128x128xbf16>
    %84 = vector.shape_cast %83 : vector<1x2x128x128xbf16> to vector<2x128x128xbf16>
    %85 = vector.shape_cast %84 : vector<2x128x128xbf16> to vector<256x128xbf16>
    %cst_81 = arith.constant dense<0.000000e+00> : vector<16x128xf32>
    %86 = tpu.matmul %82, %85, %cst_81 {dimension_numbers = #tpu.dot_dimension_numbers<[1], [0], [0], [1], [0, 0, 1, 1], [], []>} : vector<16x256xbf16>, vector<256x128xbf16>, vector<16x128xf32> -> vector<16x128xf32>
    %87 = arith.addf %76, %86 : vector<16x128xf32>
    %c0_82 = arith.constant 0 : index
    %c6_83 = arith.constant 6 : index
    %c0_84 = arith.constant 0 : index
    %88 = vector.load %arg10[%c0_82, %c6_83, %c0_84] : memref<2x24x128xf32, #tpu.memory_space<vmem>>, vector<2x8x128xf32>
    %89 = arith.truncf %88 : vector<2x8x128xf32> to vector<2x8x128xbf16>
    %c0_85 = arith.constant 0 : index
    %c7_86 = arith.constant 7 : index
    %c0_87 = arith.constant 0 : index
    %90 = vector.load %arg10[%c0_85, %c7_86, %c0_87] : memref<2x24x128xf32, #tpu.memory_space<vmem>>, vector<2x8x128xf32>
    %91 = arith.truncf %90 : vector<2x8x128xf32> to vector<2x8x128xbf16>
    %92 = tpu.concatenate %89, %91 in 2 : vector<2x8x128xbf16>, vector<2x8x128xbf16> -> vector<2x8x256xbf16>
    %93 = vector.shape_cast %92 : vector<2x8x256xbf16> to vector<16x256xbf16>
    %c1_88 = arith.constant 1 : index
    %c2_89 = arith.constant 2 : index
    %c0_90 = arith.constant 0 : index
    %c0_91 = arith.constant 0 : index
    %94 = vector.load %arg11[%c1_88, %c2_89, %c0_90, %c0_91] : memref<11x9x128x128xbf16, #tpu.memory_space<vmem>>, vector<1x2x128x128xbf16>
    %95 = vector.shape_cast %94 : vector<1x2x128x128xbf16> to vector<2x128x128xbf16>
    %96 = vector.shape_cast %95 : vector<2x128x128xbf16> to vector<256x128xbf16>
    %cst_92 = arith.constant dense<0.000000e+00> : vector<16x128xf32>
    %97 = tpu.matmul %93, %96, %cst_92 {dimension_numbers = #tpu.dot_dimension_numbers<[1], [0], [0], [1], [0, 0, 1, 1], [], []>} : vector<16x256xbf16>, vector<256x128xbf16>, vector<16x128xf32> -> vector<16x128xf32>
    %98 = arith.addf %87, %97 : vector<16x128xf32>
    %c0_93 = arith.constant 0 : index
    %c8_94 = arith.constant 8 : index
    %c0_95 = arith.constant 0 : index
    %99 = vector.load %arg10[%c0_93, %c8_94, %c0_95] : memref<2x24x128xf32, #tpu.memory_space<vmem>>, vector<2x8x128xf32>
    %100 = arith.truncf %99 : vector<2x8x128xf32> to vector<2x8x128xbf16>
    %c0_96 = arith.constant 0 : index
    %c9_97 = arith.constant 9 : index
    %c0_98 = arith.constant 0 : index
    %101 = vector.load %arg10[%c0_96, %c9_97, %c0_98] : memref<2x24x128xf32, #tpu.memory_space<vmem>>, vector<2x8x128xf32>
    %102 = arith.truncf %101 : vector<2x8x128xf32> to vector<2x8x128xbf16>
    %103 = tpu.concatenate %100, %102 in 2 : vector<2x8x128xbf16>, vector<2x8x128xbf16> -> vector<2x8x256xbf16>
    %104 = vector.shape_cast %103 : vector<2x8x256xbf16> to vector<16x256xbf16>
    %c1_99 = arith.constant 1 : index
    %c4_100 = arith.constant 4 : index
    %c0_101 = arith.constant 0 : index
    %c0_102 = arith.constant 0 : index
    %105 = vector.load %arg11[%c1_99, %c4_100, %c0_101, %c0_102] : memref<11x9x128x128xbf16, #tpu.memory_space<vmem>>, vector<1x2x128x128xbf16>
    %106 = vector.shape_cast %105 : vector<1x2x128x128xbf16> to vector<2x128x128xbf16>
    %107 = vector.shape_cast %106 : vector<2x128x128xbf16> to vector<256x128xbf16>
    %cst_103 = arith.constant dense<0.000000e+00> : vector<16x128xf32>
    %108 = tpu.matmul %104, %107, %cst_103 {dimension_numbers = #tpu.dot_dimension_numbers<[1], [0], [0], [1], [0, 0, 1, 1], [], []>} : vector<16x256xbf16>, vector<256x128xbf16>, vector<16x128xf32> -> vector<16x128xf32>
    %109 = arith.addf %98, %108 : vector<16x128xf32>
    %c0_104 = arith.constant 0 : index
    %c10_105 = arith.constant 10 : index
    %c0_106 = arith.constant 0 : index
    %110 = vector.load %arg10[%c0_104, %c10_105, %c0_106] : memref<2x24x128xf32, #tpu.memory_space<vmem>>, vector<2x8x128xf32>
    %111 = arith.truncf %110 : vector<2x8x128xf32> to vector<2x8x128xbf16>
    %c0_107 = arith.constant 0 : index
    %c11_108 = arith.constant 11 : index
    %c0_109 = arith.constant 0 : index
    %112 = vector.load %arg10[%c0_107, %c11_108, %c0_109] : memref<2x24x128xf32, #tpu.memory_space<vmem>>, vector<2x8x128xf32>
    %113 = arith.truncf %112 : vector<2x8x128xf32> to vector<2x8x128xbf16>
    %114 = tpu.concatenate %111, %113 in 2 : vector<2x8x128xbf16>, vector<2x8x128xbf16> -> vector<2x8x256xbf16>
    %115 = vector.shape_cast %114 : vector<2x8x256xbf16> to vector<16x256xbf16>
    %c1_110 = arith.constant 1 : index
    %c6_111 = arith.constant 6 : index
    %c0_112 = arith.constant 0 : index
    %c0_113 = arith.constant 0 : index
    %116 = vector.load %arg11[%c1_110, %c6_111, %c0_112, %c0_113] : memref<11x9x128x128xbf16, #tpu.memory_space<vmem>>, vector<1x2x128x128xbf16>
    %117 = vector.shape_cast %116 : vector<1x2x128x128xbf16> to vector<2x128x128xbf16>
    %118 = vector.shape_cast %117 : vector<2x128x128xbf16> to vector<256x128xbf16>
    %cst_114 = arith.constant dense<0.000000e+00> : vector<16x128xf32>
    %119 = tpu.matmul %115, %118, %cst_114 {dimension_numbers = #tpu.dot_dimension_numbers<[1], [0], [0], [1], [0, 0, 1, 1], [], []>} : vector<16x256xbf16>, vector<256x128xbf16>, vector<16x128xf32> -> vector<16x128xf32>
    %120 = arith.addf %109, %119 : vector<16x128xf32>
    %c0_115 = arith.constant 0 : index
    %c12_116 = arith.constant 12 : index
    %c0_117 = arith.constant 0 : index
    %121 = vector.load %arg10[%c0_115, %c12_116, %c0_117] : memref<2x24x128xf32, #tpu.memory_space<vmem>>, vector<2x8x128xf32>
    %122 = vector.shape_cast %121 : vector<2x8x128xf32> to vector<16x128xf32>
    %123 = arith.truncf %122 : vector<16x128xf32> to vector<16x128xbf16>
    %c1_118 = arith.constant 1 : index
    %c8_119 = arith.constant 8 : index
    %c0_120 = arith.constant 0 : index
    %c0_121 = arith.constant 0 : index
    %124 = vector.load %arg11[%c1_118, %c8_119, %c0_120, %c0_121] : memref<11x9x128x128xbf16, #tpu.memory_space<vmem>>, vector<1x1x128x128xbf16>
    %125 = vector.shape_cast %124 : vector<1x1x128x128xbf16> to vector<128x128xbf16>
    %cst_122 = arith.constant dense<0.000000e+00> : vector<16x128xf32>
    %126 = tpu.matmul %123, %125, %cst_122 {dimension_numbers = #tpu.dot_dimension_numbers<[1], [0], [0], [1], [0, 0, 1, 1], [], []>} : vector<16x128xbf16>, vector<128x128xbf16>, vector<16x128xf32> -> vector<16x128xf32>
    %127 = arith.addf %120, %126 : vector<16x128xf32>
    %c1_123 = arith.constant 1 : index
    %c0_124 = arith.constant 0 : index
    %c0_125 = arith.constant 0 : index
    %128 = vector.load %arg5[%c1_123, %c0_124, %c0_125] : memref<11x1x128xf32, #tpu.memory_space<vmem>>, vector<1x1x128xf32>
    %129 = vector.shape_cast %128 : vector<1x1x128xf32> to vector<1x128xf32>
    %130 = vector.broadcast %129 : vector<1x128xf32> to vector<16x128xf32>
    %131 = arith.addf %127, %130 : vector<16x128xf32>
    %c0_126 = arith.constant 0 : index
    %c8_127 = arith.constant 8 : index
    %c0_128 = arith.constant 0 : index
    %132 = vector.load %arg9[%c0_126, %c8_127, %c0_128] : memref<2x24x128xf32, #tpu.memory_space<vmem>>, vector<2x8x128xf32>
    %133 = vector.shape_cast %132 : vector<2x8x128xf32> to vector<16x128xf32>
    %134 = arith.addf %131, %133 : vector<16x128xf32>
    %cst_129 = arith.constant 2.000000e-01 : f32
    %135 = vector.broadcast %cst_129 : f32 to vector<16x128xf32>
    %136 = arith.mulf %135, %134 : vector<16x128xf32>
    %137 = arith.maximumf %134, %136 : vector<16x128xf32>
    %138 = vector.shape_cast %137 : vector<16x128xf32> to vector<2x8x128xf32>
    %c0_130 = arith.constant 0 : index
    %c8_131 = arith.constant 8 : index
    %c0_132 = arith.constant 0 : index
    %139 = vector.load %arg9[%c0_130, %c8_131, %c0_132] : memref<2x24x128xf32, #tpu.memory_space<vmem>>, vector<2x8x128xf32>
    tpu.vector_store %arg9[%c0_130, %c8_131, %c0_132], %138 {strides = array<i32>} : memref<2x24x128xf32, #tpu.memory_space<vmem>>, vector<2x8x128xf32>,
    %cst_133 = arith.constant 0.000000e+00 : f32
    %140 = vector.broadcast %cst_133 : f32 to vector<16x128xf32>
    %c0_134 = arith.constant 0 : index
    %c4_135 = arith.constant 4 : index
    %c0_136 = arith.constant 0 : index
    %141 = vector.load %arg9[%c0_134, %c4_135, %c0_136] : memref<2x24x128xf32, #tpu.memory_space<vmem>>, vector<2x8x128xf32>
    %142 = arith.truncf %141 : vector<2x8x128xf32> to vector<2x8x128xbf16>
    %c0_137 = arith.constant 0 : index
    %c5_138 = arith.constant 5 : index
    %c0_139 = arith.constant 0 : index
    %143 = vector.load %arg9[%c0_137, %c5_138, %c0_139] : memref<2x24x128xf32, #tpu.memory_space<vmem>>, vector<2x8x128xf32>
    %144 = arith.truncf %143 : vector<2x8x128xf32> to vector<2x8x128xbf16>
    %145 = tpu.concatenate %142, %144 in 2 : vector<2x8x128xbf16>, vector<2x8x128xbf16> -> vector<2x8x256xbf16>
    %146 = vector.shape_cast %145 : vector<2x8x256xbf16> to vector<16x256xbf16>
    %c2_140 = arith.constant 2 : index
    %c0_141 = arith.constant 0 : index
    %c0_142 = arith.constant 0 : index
    %c0_143 = arith.constant 0 : index
    %147 = vector.load %arg11[%c2_140, %c0_141, %c0_142, %c0_143] : memref<11x9x128x128xbf16, #tpu.memory_space<vmem>>, vector<1x2x128x128xbf16>
    %148 = vector.shape_cast %147 : vector<1x2x128x128xbf16> to vector<2x128x128xbf16>
    %149 = vector.shape_cast %148 : vector<2x128x128xbf16> to vector<256x128xbf16>
    %cst_144 = arith.constant dense<0.000000e+00> : vector<16x128xf32>
    %150 = tpu.matmul %146, %149, %cst_144 {dimension_numbers = #tpu.dot_dimension_numbers<[1], [0], [0], [1], [0, 0, 1, 1], [], []>} : vector<16x256xbf16>, vector<256x128xbf16>, vector<16x128xf32> -> vector<16x128xf32>
    %151 = arith.addf %140, %150 : vector<16x128xf32>
    %c0_145 = arith.constant 0 : index
    %c6_146 = arith.constant 6 : index
    %c0_147 = arith.constant 0 : index
    %152 = vector.load %arg9[%c0_145, %c6_146, %c0_147] : memref<2x24x128xf32, #tpu.memory_space<vmem>>, vector<2x8x128xf32>
    %153 = arith.truncf %152 : vector<2x8x128xf32> to vector<2x8x128xbf16>
    %c0_148 = arith.constant 0 : index
    %c7_149 = arith.constant 7 : index
    %c0_150 = arith.constant 0 : index
    %154 = vector.load %arg9[%c0_148, %c7_149, %c0_150] : memref<2x24x128xf32, #tpu.memory_space<vmem>>, vector<2x8x128xf32>
    %155 = arith.truncf %154 : vector<2x8x128xf32> to vector<2x8x128xbf16>
    %156 = tpu.concatenate %153, %155 in 2 : vector<2x8x128xbf16>, vector<2x8x128xbf16> -> vector<2x8x256xbf16>
    %157 = vector.shape_cast %156 : vector<2x8x256xbf16> to vector<16x256xbf16>
    %c2_151 = arith.constant 2 : index
    %c2_152 = arith.constant 2 : index
    %c0_153 = arith.constant 0 : index
    %c0_154 = arith.constant 0 : index
    %158 = vector.load %arg11[%c2_151, %c2_152, %c0_153, %c0_154] : memref<11x9x128x128xbf16, #tpu.memory_space<vmem>>, vector<1x2x128x128xbf16>
    %159 = vector.shape_cast %158 : vector<1x2x128x128xbf16> to vector<2x128x128xbf16>
    %160 = vector.shape_cast %159 : vector<2x128x128xbf16> to vector<256x128xbf16>
    %cst_155 = arith.constant dense<0.000000e+00> : vector<16x128xf32>
    %161 = tpu.matmul %157, %160, %cst_155 {dimension_numbers = #tpu.dot_dimension_numbers<[1], [0], [0], [1], [0, 0, 1, 1], [], []>} : vector<16x256xbf16>, vector<256x128xbf16>, vector<16x128xf32> -> vector<16x128xf32>
    %162 = arith.addf %151, %161 : vector<16x128xf32>
    %c0_156 = arith.constant 0 : index
    %c8_157 = arith.constant 8 : index
    %c0_158 = arith.constant 0 : index
    %163 = vector.load %arg9[%c0_156, %c8_157, %c0_158] : memref<2x24x128xf32, #tpu.memory_space<vmem>>, vector<2x8x128xf32>
    %164 = arith.truncf %163 : vector<2x8x128xf32> to vector<2x8x128xbf16>
    %c0_159 = arith.constant 0 : index
    %c9_160 = arith.constant 9 : index
    %c0_161 = arith.constant 0 : index
    %165 = vector.load %arg9[%c0_159, %c9_160, %c0_161] : memref<2x24x128xf32, #tpu.memory_space<vmem>>, vector<2x8x128xf32>
    %166 = arith.truncf %165 : vector<2x8x128xf32> to vector<2x8x128xbf16>
    %167 = tpu.concatenate %164, %166 in 2 : vector<2x8x128xbf16>, vector<2x8x128xbf16> -> vector<2x8x256xbf16>
    %168 = vector.shape_cast %167 : vector<2x8x256xbf16> to vector<16x256xbf16>
    %c2_162 = arith.constant 2 : index
    %c4_163 = arith.constant 4 : index
    %c0_164 = arith.constant 0 : index
    %c0_165 = arith.constant 0 : index
    %169 = vector.load %arg11[%c2_162, %c4_163, %c0_164, %c0_165] : memref<11x9x128x128xbf16, #tpu.memory_space<vmem>>, vector<1x2x128x128xbf16>
    %170 = vector.shape_cast %169 : vector<1x2x128x128xbf16> to vector<2x128x128xbf16>
    %171 = vector.shape_cast %170 : vector<2x128x128xbf16> to vector<256x128xbf16>
    %cst_166 = arith.constant dense<0.000000e+00> : vector<16x128xf32>
    %172 = tpu.matmul %168, %171, %cst_166 {dimension_numbers = #tpu.dot_dimension_numbers<[1], [0], [0], [1], [0, 0, 1, 1], [], []>} : vector<16x256xbf16>, vector<256x128xbf16>, vector<16x128xf32> -> vector<16x128xf32>
    %173 = arith.addf %162, %172 : vector<16x128xf32>
    %c0_167 = arith.constant 0 : index
    %c10_168 = arith.constant 10 : index
    %c0_169 = arith.constant 0 : index
    %174 = vector.load %arg9[%c0_167, %c10_168, %c0_169] : memref<2x24x128xf32, #tpu.memory_space<vmem>>, vector<2x8x128xf32>
    %175 = arith.truncf %174 : vector<2x8x128xf32> to vector<2x8x128xbf16>
    %c0_170 = arith.constant 0 : index
    %c11_171 = arith.constant 11 : index
    %c0_172 = arith.constant 0 : index
    %176 = vector.load %arg9[%c0_170, %c11_171, %c0_172] : memref<2x24x128xf32, #tpu.memory_space<vmem>>, vector<2x8x128xf32>
    %177 = arith.truncf %176 : vector<2x8x128xf32> to vector<2x8x128xbf16>
    %178 = tpu.concatenate %175, %177 in 2 : vector<2x8x128xbf16>, vector<2x8x128xbf16> -> vector<2x8x256xbf16>
    %179 = vector.shape_cast %178 : vector<2x8x256xbf16> to vector<16x256xbf16>
    %c2_173 = arith.constant 2 : index
    %c6_174 = arith.constant 6 : index
    %c0_175 = arith.constant 0 : index
    %c0_176 = arith.constant 0 : index
    %180 = vector.load %arg11[%c2_173, %c6_174, %c0_175, %c0_176] : memref<11x9x128x128xbf16, #tpu.memory_space<vmem>>, vector<1x2x128x128xbf16>
    %181 = vector.shape_cast %180 : vector<1x2x128x128xbf16> to vector<2x128x128xbf16>
    %182 = vector.shape_cast %181 : vector<2x128x128xbf16> to vector<256x128xbf16>
    %cst_177 = arith.constant dense<0.000000e+00> : vector<16x128xf32>
    %183 = tpu.matmul %179, %182, %cst_177 {dimension_numbers = #tpu.dot_dimension_numbers<[1], [0], [0], [1], [0, 0, 1, 1], [], []>} : vector<16x256xbf16>, vector<256x128xbf16>, vector<16x128xf32> -> vector<16x128xf32>
    %184 = arith.addf %173, %183 : vector<16x128xf32>
    %c0_178 = arith.constant 0 : index
    %c12_179 = arith.constant 12 : index
    %c0_180 = arith.constant 0 : index
    %185 = vector.load %arg9[%c0_178, %c12_179, %c0_180] : memref<2x24x128xf32, #tpu.memory_space<vmem>>, vector<2x8x128xf32>
    %186 = vector.shape_cast %185 : vector<2x8x128xf32> to vector<16x128xf32>
    %187 = arith.truncf %186 : vector<16x128xf32> to vector<16x128xbf16>
    %c2_181 = arith.constant 2 : index
    %c8_182 = arith.constant 8 : index
    %c0_183 = arith.constant 0 : index
    %c0_184 = arith.constant 0 : index
    %188 = vector.load %arg11[%c2_181, %c8_182, %c0_183, %c0_184] : memref<11x9x128x128xbf16, #tpu.memory_space<vmem>>, vector<1x1x128x128xbf16>
    %189 = vector.shape_cast %188 : vector<1x1x128x128xbf16> to vector<128x128xbf16>
    %cst_185 = arith.constant dense<0.000000e+00> : vector<16x128xf32>
    %190 = tpu.matmul %187, %189, %cst_185 {dimension_numbers = #tpu.dot_dimension_numbers<[1], [0], [0], [1], [0, 0, 1, 1], [], []>} : vector<16x128xbf16>, vector<128x128xbf16>, vector<16x128xf32> -> vector<16x128xf32>
    %191 = arith.addf %184, %190 : vector<16x128xf32>
    %c2_186 = arith.constant 2 : index
    %c0_187 = arith.constant 0 : index
    %c0_188 = arith.constant 0 : index
    %192 = vector.load %arg5[%c2_186, %c0_187, %c0_188] : memref<11x1x128xf32, #tpu.memory_space<vmem>>, vector<1x1x128xf32>
    %193 = vector.shape_cast %192 : vector<1x1x128xf32> to vector<1x128xf32>
    %194 = vector.broadcast %193 : vector<1x128xf32> to vector<16x128xf32>
    %195 = arith.addf %191, %194 : vector<16x128xf32>
    %196 = vector.shape_cast %195 : vector<16x128xf32> to vector<2x8x128xf32>
    %c0_189 = arith.constant 0 : index
    %c8_190 = arith.constant 8 : index
    %c0_191 = arith.constant 0 : index
    %197 = vector.load %arg10[%c0_189, %c8_190, %c0_191] : memref<2x24x128xf32, #tpu.memory_space<vmem>>, vector<2x8x128xf32>
    tpu.vector_store %arg10[%c0_189, %c8_190, %c0_191], %196 {strides = array<i32>} : memref<2x24x128xf32, #tpu.memory_space<vmem>>, vector<2x8x128xf32>,
    %cst_192 = arith.constant 0.000000e+00 : f32
    %198 = vector.broadcast %cst_192 : f32 to vector<16x128xf32>
    %c0_193 = arith.constant 0 : index
    %c4_194 = arith.constant 4 : index
    %c0_195 = arith.constant 0 : index
    %199 = vector.load %arg10[%c0_193, %c4_194, %c0_195] : memref<2x24x128xf32, #tpu.memory_space<vmem>>, vector<2x8x128xf32>
    %200 = arith.truncf %199 : vector<2x8x128xf32> to vector<2x8x128xbf16>
    %c0_196 = arith.constant 0 : index
    %c5_197 = arith.constant 5 : index
    %c0_198 = arith.constant 0 : index
    %201 = vector.load %arg10[%c0_196, %c5_197, %c0_198] : memref<2x24x128xf32, #tpu.memory_space<vmem>>, vector<2x8x128xf32>
    %202 = arith.truncf %201 : vector<2x8x128xf32> to vector<2x8x128xbf16>
    %203 = tpu.concatenate %200, %202 in 2 : vector<2x8x128xbf16>, vector<2x8x128xbf16> -> vector<2x8x256xbf16>
    %204 = vector.shape_cast %203 : vector<2x8x256xbf16> to vector<16x256xbf16>
    %c3 = arith.constant 3 : index
    %c0_199 = arith.constant 0 : index
    %c0_200 = arith.constant 0 : index
    %c0_201 = arith.constant 0 : index
    %205 = vector.load %arg11[%c3, %c0_199, %c0_200, %c0_201] : memref<11x9x128x128xbf16, #tpu.memory_space<vmem>>, vector<1x2x128x128xbf16>
    %206 = vector.shape_cast %205 : vector<1x2x128x128xbf16> to vector<2x128x128xbf16>
    %207 = vector.shape_cast %206 : vector<2x128x128xbf16> to vector<256x128xbf16>
    %cst_202 = arith.constant dense<0.000000e+00> : vector<16x128xf32>
    %208 = tpu.matmul %204, %207, %cst_202 {dimension_numbers = #tpu.dot_dimension_numbers<[1], [0], [0], [1], [0, 0, 1, 1], [], []>} : vector<16x256xbf16>, vector<256x128xbf16>, vector<16x128xf32> -> vector<16x128xf32>
    %209 = arith.addf %198, %208 : vector<16x128xf32>
    %c0_203 = arith.constant 0 : index
    %c6_204 = arith.constant 6 : index
    %c0_205 = arith.constant 0 : index
    %210 = vector.load %arg10[%c0_203, %c6_204, %c0_205] : memref<2x24x128xf32, #tpu.memory_space<vmem>>, vector<2x8x128xf32>
    %211 = arith.truncf %210 : vector<2x8x128xf32> to vector<2x8x128xbf16>
    %c0_206 = arith.constant 0 : index
    %c7_207 = arith.constant 7 : index
    %c0_208 = arith.constant 0 : index
    %212 = vector.load %arg10[%c0_206, %c7_207, %c0_208] : memref<2x24x128xf32, #tpu.memory_space<vmem>>, vector<2x8x128xf32>
    %213 = arith.truncf %212 : vector<2x8x128xf32> to vector<2x8x128xbf16>
    %214 = tpu.concatenate %211, %213 in 2 : vector<2x8x128xbf16>, vector<2x8x128xbf16> -> vector<2x8x256xbf16>
    %215 = vector.shape_cast %214 : vector<2x8x256xbf16> to vector<16x256xbf16>
    %c3_209 = arith.constant 3 : index
    %c2_210 = arith.constant 2 : index
    %c0_211 = arith.constant 0 : index
    %c0_212 = arith.constant 0 : index
    %216 = vector.load %arg11[%c3_209, %c2_210, %c0_211, %c0_212] : memref<11x9x128x128xbf16, #tpu.memory_space<vmem>>, vector<1x2x128x128xbf16>
    %217 = vector.shape_cast %216 : vector<1x2x128x128xbf16> to vector<2x128x128xbf16>
    %218 = vector.shape_cast %217 : vector<2x128x128xbf16> to vector<256x128xbf16>
    %cst_213 = arith.constant dense<0.000000e+00> : vector<16x128xf32>
    %219 = tpu.matmul %215, %218, %cst_213 {dimension_numbers = #tpu.dot_dimension_numbers<[1], [0], [0], [1], [0, 0, 1, 1], [], []>} : vector<16x256xbf16>, vector<256x128xbf16>, vector<16x128xf32> -> vector<16x128xf32>
    %220 = arith.addf %209, %219 : vector<16x128xf32>
    %c0_214 = arith.constant 0 : index
    %c8_215 = arith.constant 8 : index
    %c0_216 = arith.constant 0 : index
    %221 = vector.load %arg10[%c0_214, %c8_215, %c0_216] : memref<2x24x128xf32, #tpu.memory_space<vmem>>, vector<2x8x128xf32>
    %222 = arith.truncf %221 : vector<2x8x128xf32> to vector<2x8x128xbf16>
    %c0_217 = arith.constant 0 : index
    %c9_218 = arith.constant 9 : index
    %c0_219 = arith.constant 0 : index
    %223 = vector.load %arg10[%c0_217, %c9_218, %c0_219] : memref<2x24x128xf32, #tpu.memory_space<vmem>>, vector<2x8x128xf32>
    %224 = arith.truncf %223 : vector<2x8x128xf32> to vector<2x8x128xbf16>
    %225 = tpu.concatenate %222, %224 in 2 : vector<2x8x128xbf16>, vector<2x8x128xbf16> -> vector<2x8x256xbf16>
    %226 = vector.shape_cast %225 : vector<2x8x256xbf16> to vector<16x256xbf16>
    %c3_220 = arith.constant 3 : index
    %c4_221 = arith.constant 4 : index
    %c0_222 = arith.constant 0 : index
    %c0_223 = arith.constant 0 : index
    %227 = vector.load %arg11[%c3_220, %c4_221, %c0_222, %c0_223] : memref<11x9x128x128xbf16, #tpu.memory_space<vmem>>, vector<1x2x128x128xbf16>
    %228 = vector.shape_cast %227 : vector<1x2x128x128xbf16> to vector<2x128x128xbf16>
    %229 = vector.shape_cast %228 : vector<2x128x128xbf16> to vector<256x128xbf16>
    %cst_224 = arith.constant dense<0.000000e+00> : vector<16x128xf32>
    %230 = tpu.matmul %226, %229, %cst_224 {dimension_numbers = #tpu.dot_dimension_numbers<[1], [0], [0], [1], [0, 0, 1, 1], [], []>} : vector<16x256xbf16>, vector<256x128xbf16>, vector<16x128xf32> -> vector<16x128xf32>
    %231 = arith.addf %220, %230 : vector<16x128xf32>
    %c0_225 = arith.constant 0 : index
    %c10_226 = arith.constant 10 : index
    %c0_227 = arith.constant 0 : index
    %232 = vector.load %arg10[%c0_225, %c10_226, %c0_227] : memref<2x24x128xf32, #tpu.memory_space<vmem>>, vector<2x8x128xf32>
    %233 = arith.truncf %232 : vector<2x8x128xf32> to vector<2x8x128xbf16>
    %c0_228 = arith.constant 0 : index
    %c11_229 = arith.constant 11 : index
    %c0_230 = arith.constant 0 : index
    %234 = vector.load %arg10[%c0_228, %c11_229, %c0_230] : memref<2x24x128xf32, #tpu.memory_space<vmem>>, vector<2x8x128xf32>
    %235 = arith.truncf %234 : vector<2x8x128xf32> to vector<2x8x128xbf16>
    %236 = tpu.concatenate %233, %235 in 2 : vector<2x8x128xbf16>, vector<2x8x128xbf16> -> vector<2x8x256xbf16>
    %237 = vector.shape_cast %236 : vector<2x8x256xbf16> to vector<16x256xbf16>
    %c3_231 = arith.constant 3 : index
    %c6_232 = arith.constant 6 : index
    %c0_233 = arith.constant 0 : index
    %c0_234 = arith.constant 0 : index
    %238 = vector.load %arg11[%c3_231, %c6_232, %c0_233, %c0_234] : memref<11x9x128x128xbf16, #tpu.memory_space<vmem>>, vector<1x2x128x128xbf16>
    %239 = vector.shape_cast %238 : vector<1x2x128x128xbf16> to vector<2x128x128xbf16>
    %240 = vector.shape_cast %239 : vector<2x128x128xbf16> to vector<256x128xbf16>
    %cst_235 = arith.constant dense<0.000000e+00> : vector<16x128xf32>
    %241 = tpu.matmul %237, %240, %cst_235 {dimension_numbers = #tpu.dot_dimension_numbers<[1], [0], [0], [1], [0, 0, 1, 1], [], []>} : vector<16x256xbf16>, vector<256x128xbf16>, vector<16x128xf32> -> vector<16x128xf32>
    %242 = arith.addf %231, %241 : vector<16x128xf32>
    %c0_236 = arith.constant 0 : index
    %c12_237 = arith.constant 12 : index
    %c0_238 = arith.constant 0 : index
    %243 = vector.load %arg10[%c0_236, %c12_237, %c0_238] : memref<2x24x128xf32, #tpu.memory_space<vmem>>, vector<2x8x128xf32>
    %244 = vector.shape_cast %243 : vector<2x8x128xf32> to vector<16x128xf32>
    %245 = arith.truncf %244 : vector<16x128xf32> to vector<16x128xbf16>
    %c3_239 = arith.constant 3 : index
    %c8_240 = arith.constant 8 : index
    %c0_241 = arith.constant 0 : index
    %c0_242 = arith.constant 0 : index
    %246 = vector.load %arg11[%c3_239, %c8_240, %c0_241, %c0_242] : memref<11x9x128x128xbf16, #tpu.memory_space<vmem>>, vector<1x1x128x128xbf16>
    %247 = vector.shape_cast %246 : vector<1x1x128x128xbf16> to vector<128x128xbf16>
    %cst_243 = arith.constant dense<0.000000e+00> : vector<16x128xf32>
    %248 = tpu.matmul %245, %247, %cst_243 {dimension_numbers = #tpu.dot_dimension_numbers<[1], [0], [0], [1], [0, 0, 1, 1], [], []>} : vector<16x128xbf16>, vector<128x128xbf16>, vector<16x128xf32> -> vector<16x128xf32>
    %249 = arith.addf %242, %248 : vector<16x128xf32>
    %c3_244 = arith.constant 3 : index
    %c0_245 = arith.constant 0 : index
    %c0_246 = arith.constant 0 : index
    %250 = vector.load %arg5[%c3_244, %c0_245, %c0_246] : memref<11x1x128xf32, #tpu.memory_space<vmem>>, vector<1x1x128xf32>
    %251 = vector.shape_cast %250 : vector<1x1x128xf32> to vector<1x128xf32>
    %252 = vector.broadcast %251 : vector<1x128xf32> to vector<16x128xf32>
    %253 = arith.addf %249, %252 : vector<16x128xf32>
    %cst_247 = arith.constant 2.000000e-01 : f32
    %254 = vector.broadcast %cst_247 : f32 to vector<16x128xf32>
    %255 = arith.mulf %254, %253 : vector<16x128xf32>
    %256 = arith.maximumf %253, %255 : vector<16x128xf32>
    %257 = vector.shape_cast %256 : vector<16x128xf32> to vector<2x8x128xf32>
    %c0_248 = arith.constant 0 : index
    %c8_249 = arith.constant 8 : index
    %c0_250 = arith.constant 0 : index
    %258 = vector.load %arg9[%c0_248, %c8_249, %c0_250] : memref<2x24x128xf32, #tpu.memory_space<vmem>>, vector<2x8x128xf32>
    tpu.vector_store %arg9[%c0_248, %c8_249, %c0_250], %257 {strides = array<i32>} : memref<2x24x128xf32, #tpu.memory_space<vmem>>, vector<2x8x128xf32>,
    %cst_251 = arith.constant 0.000000e+00 : f32
    %259 = vector.broadcast %cst_251 : f32 to vector<16x128xf32>
    %c0_252 = arith.constant 0 : index
    %c4_253 = arith.constant 4 : index
    %c0_254 = arith.constant 0 : index
    %260 = vector.load %arg9[%c0_252, %c4_253, %c0_254] : memref<2x24x128xf32, #tpu.memory_space<vmem>>, vector<2x8x128xf32>
    %261 = arith.truncf %260 : vector<2x8x128xf32> to vector<2x8x128xbf16>
    %c0_255 = arith.constant 0 : index
    %c5_256 = arith.constant 5 : index
    %c0_257 = arith.constant 0 : index
    %262 = vector.load %arg9[%c0_255, %c5_256, %c0_257] : memref<2x24x128xf32, #tpu.memory_space<vmem>>, vector<2x8x128xf32>
    %263 = arith.truncf %262 : vector<2x8x128xf32> to vector<2x8x128xbf16>
    %264 = tpu.concatenate %261, %263 in 2 : vector<2x8x128xbf16>, vector<2x8x128xbf16> -> vector<2x8x256xbf16>
    %265 = vector.shape_cast %264 : vector<2x8x256xbf16> to vector<16x256xbf16>
    %c4_258 = arith.constant 4 : index
    %c0_259 = arith.constant 0 : index
    %c0_260 = arith.constant 0 : index
    %c0_261 = arith.constant 0 : index
    %266 = vector.load %arg11[%c4_258, %c0_259, %c0_260, %c0_261] : memref<11x9x128x128xbf16, #tpu.memory_space<vmem>>, vector<1x2x128x128xbf16>
    %267 = vector.shape_cast %266 : vector<1x2x128x128xbf16> to vector<2x128x128xbf16>
    %268 = vector.shape_cast %267 : vector<2x128x128xbf16> to vector<256x128xbf16>
    %cst_262 = arith.constant dense<0.000000e+00> : vector<16x128xf32>
    %269 = tpu.matmul %265, %268, %cst_262 {dimension_numbers = #tpu.dot_dimension_numbers<[1], [0], [0], [1], [0, 0, 1, 1], [], []>} : vector<16x256xbf16>, vector<256x128xbf16>, vector<16x128xf32> -> vector<16x128xf32>
    %270 = arith.addf %259, %269 : vector<16x128xf32>
    %c0_263 = arith.constant 0 : index
    %c6_264 = arith.constant 6 : index
    %c0_265 = arith.constant 0 : index
    %271 = vector.load %arg9[%c0_263, %c6_264, %c0_265] : memref<2x24x128xf32, #tpu.memory_space<vmem>>, vector<2x8x128xf32>
    %272 = arith.truncf %271 : vector<2x8x128xf32> to vector<2x8x128xbf16>
    %c0_266 = arith.constant 0 : index
    %c7_267 = arith.constant 7 : index
    %c0_268 = arith.constant 0 : index
    %273 = vector.load %arg9[%c0_266, %c7_267, %c0_268] : memref<2x24x128xf32, #tpu.memory_space<vmem>>, vector<2x8x128xf32>
    %274 = arith.truncf %273 : vector<2x8x128xf32> to vector<2x8x128xbf16>
    %275 = tpu.concatenate %272, %274 in 2 : vector<2x8x128xbf16>, vector<2x8x128xbf16> -> vector<2x8x256xbf16>
    %276 = vector.shape_cast %275 : vector<2x8x256xbf16> to vector<16x256xbf16>
    %c4_269 = arith.constant 4 : index
    %c2_270 = arith.constant 2 : index
    %c0_271 = arith.constant 0 : index
    %c0_272 = arith.constant 0 : index
    %277 = vector.load %arg11[%c4_269, %c2_270, %c0_271, %c0_272] : memref<11x9x128x128xbf16, #tpu.memory_space<vmem>>, vector<1x2x128x128xbf16>
    %278 = vector.shape_cast %277 : vector<1x2x128x128xbf16> to vector<2x128x128xbf16>
    %279 = vector.shape_cast %278 : vector<2x128x128xbf16> to vector<256x128xbf16>
    %cst_273 = arith.constant dense<0.000000e+00> : vector<16x128xf32>
    %280 = tpu.matmul %276, %279, %cst_273 {dimension_numbers = #tpu.dot_dimension_numbers<[1], [0], [0], [1], [0, 0, 1, 1], [], []>} : vector<16x256xbf16>, vector<256x128xbf16>, vector<16x128xf32> -> vector<16x128xf32>
    %281 = arith.addf %270, %280 : vector<16x128xf32>
    %c0_274 = arith.constant 0 : index
    %c8_275 = arith.constant 8 : index
    %c0_276 = arith.constant 0 : index
    %282 = vector.load %arg9[%c0_274, %c8_275, %c0_276] : memref<2x24x128xf32, #tpu.memory_space<vmem>>, vector<2x8x128xf32>
    %283 = arith.truncf %282 : vector<2x8x128xf32> to vector<2x8x128xbf16>
    %c0_277 = arith.constant 0 : index
    %c9_278 = arith.constant 9 : index
    %c0_279 = arith.constant 0 : index
    %284 = vector.load %arg9[%c0_277, %c9_278, %c0_279] : memref<2x24x128xf32, #tpu.memory_space<vmem>>, vector<2x8x128xf32>
    %285 = arith.truncf %284 : vector<2x8x128xf32> to vector<2x8x128xbf16>
    %286 = tpu.concatenate %283, %285 in 2 : vector<2x8x128xbf16>, vector<2x8x128xbf16> -> vector<2x8x256xbf16>
    %287 = vector.shape_cast %286 : vector<2x8x256xbf16> to vector<16x256xbf16>
    %c4_280 = arith.constant 4 : index
    %c4_281 = arith.constant 4 : index
    %c0_282 = arith.constant 0 : index
    %c0_283 = arith.constant 0 : index
    %288 = vector.load %arg11[%c4_280, %c4_281, %c0_282, %c0_283] : memref<11x9x128x128xbf16, #tpu.memory_space<vmem>>, vector<1x2x128x128xbf16>
    %289 = vector.shape_cast %288 : vector<1x2x128x128xbf16> to vector<2x128x128xbf16>
    %290 = vector.shape_cast %289 : vector<2x128x128xbf16> to vector<256x128xbf16>
    %cst_284 = arith.constant dense<0.000000e+00> : vector<16x128xf32>
    %291 = tpu.matmul %287, %290, %cst_284 {dimension_numbers = #tpu.dot_dimension_numbers<[1], [0], [0], [1], [0, 0, 1, 1], [], []>} : vector<16x256xbf16>, vector<256x128xbf16>, vector<16x128xf32> -> vector<16x128xf32>
    %292 = arith.addf %281, %291 : vector<16x128xf32>
    %c0_285 = arith.constant 0 : index
    %c10_286 = arith.constant 10 : index
    %c0_287 = arith.constant 0 : index
    %293 = vector.load %arg9[%c0_285, %c10_286, %c0_287] : memref<2x24x128xf32, #tpu.memory_space<vmem>>, vector<2x8x128xf32>
    %294 = arith.truncf %293 : vector<2x8x128xf32> to vector<2x8x128xbf16>
    %c0_288 = arith.constant 0 : index
    %c11_289 = arith.constant 11 : index
    %c0_290 = arith.constant 0 : index
    %295 = vector.load %arg9[%c0_288, %c11_289, %c0_290] : memref<2x24x128xf32, #tpu.memory_space<vmem>>, vector<2x8x128xf32>
    %296 = arith.truncf %295 : vector<2x8x128xf32> to vector<2x8x128xbf16>
    %297 = tpu.concatenate %294, %296 in 2 : vector<2x8x128xbf16>, vector<2x8x128xbf16> -> vector<2x8x256xbf16>
    %298 = vector.shape_cast %297 : vector<2x8x256xbf16> to vector<16x256xbf16>
    %c4_291 = arith.constant 4 : index
    %c6_292 = arith.constant 6 : index
    %c0_293 = arith.constant 0 : index
    %c0_294 = arith.constant 0 : index
    %299 = vector.load %arg11[%c4_291, %c6_292, %c0_293, %c0_294] : memref<11x9x128x128xbf16, #tpu.memory_space<vmem>>, vector<1x2x128x128xbf16>
    %300 = vector.shape_cast %299 : vector<1x2x128x128xbf16> to vector<2x128x128xbf16>
    %301 = vector.shape_cast %300 : vector<2x128x128xbf16> to vector<256x128xbf16>
    %cst_295 = arith.constant dense<0.000000e+00> : vector<16x128xf32>
    %302 = tpu.matmul %298, %301, %cst_295 {dimension_numbers = #tpu.dot_dimension_numbers<[1], [0], [0], [1], [0, 0, 1, 1], [], []>} : vector<16x256xbf16>, vector<256x128xbf16>, vector<16x128xf32> -> vector<16x128xf32>
    %303 = arith.addf %292, %302 : vector<16x128xf32>
    %c0_296 = arith.constant 0 : index
    %c12_297 = arith.constant 12 : index
    %c0_298 = arith.constant 0 : index
    %304 = vector.load %arg9[%c0_296, %c12_297, %c0_298] : memref<2x24x128xf32, #tpu.memory_space<vmem>>, vector<2x8x128xf32>
    %305 = vector.shape_cast %304 : vector<2x8x128xf32> to vector<16x128xf32>
    %306 = arith.truncf %305 : vector<16x128xf32> to vector<16x128xbf16>
    %c4_299 = arith.constant 4 : index
    %c8_300 = arith.constant 8 : index
    %c0_301 = arith.constant 0 : index
    %c0_302 = arith.constant 0 : index
    %307 = vector.load %arg11[%c4_299, %c8_300, %c0_301, %c0_302] : memref<11x9x128x128xbf16, #tpu.memory_space<vmem>>, vector<1x1x128x128xbf16>
    %308 = vector.shape_cast %307 : vector<1x1x128x128xbf16> to vector<128x128xbf16>
    %cst_303 = arith.constant dense<0.000000e+00> : vector<16x128xf32>
    %309 = tpu.matmul %306, %308, %cst_303 {dimension_numbers = #tpu.dot_dimension_numbers<[1], [0], [0], [1], [0, 0, 1, 1], [], []>} : vector<16x128xbf16>, vector<128x128xbf16>, vector<16x128xf32> -> vector<16x128xf32>
    %310 = arith.addf %303, %309 : vector<16x128xf32>
    %c4_304 = arith.constant 4 : index
    %c0_305 = arith.constant 0 : index
    %c0_306 = arith.constant 0 : index
    %311 = vector.load %arg5[%c4_304, %c0_305, %c0_306] : memref<11x1x128xf32, #tpu.memory_space<vmem>>, vector<1x1x128xf32>
    %312 = vector.shape_cast %311 : vector<1x1x128xf32> to vector<1x128xf32>
    %313 = vector.broadcast %312 : vector<1x128xf32> to vector<16x128xf32>
    %314 = arith.addf %310, %313 : vector<16x128xf32>
    %c0_307 = arith.constant 0 : index
    %c8_308 = arith.constant 8 : index
    %c0_309 = arith.constant 0 : index
    %315 = vector.load %arg10[%c0_307, %c8_308, %c0_309] : memref<2x24x128xf32, #tpu.memory_space<vmem>>, vector<2x8x128xf32>
    %316 = vector.shape_cast %315 : vector<2x8x128xf32> to vector<16x128xf32>
    %317 = arith.addf %314, %316 : vector<16x128xf32>
    %cst_310 = arith.constant 2.000000e-01 : f32
    %318 = vector.broadcast %cst_310 : f32 to vector<16x128xf32>
    %319 = arith.mulf %318, %317 : vector<16x128xf32>
    %320 = arith.maximumf %317, %319 : vector<16x128xf32>
    %321 = vector.shape_cast %320 : vector<16x128xf32> to vector<2x8x128xf32>
    %c0_311 = arith.constant 0 : index
    %c8_312 = arith.constant 8 : index
    %c0_313 = arith.constant 0 : index
    %322 = vector.load %arg10[%c0_311, %c8_312, %c0_313] : memref<2x24x128xf32, #tpu.memory_space<vmem>>, vector<2x8x128xf32>
    tpu.vector_store %arg10[%c0_311, %c8_312, %c0_313], %321 {strides = array<i32>} : memref<2x24x128xf32, #tpu.memory_space<vmem>>, vector<2x8x128xf32>,
    %cst_314 = arith.constant 0.000000e+00 : f32
    %323 = vector.broadcast %cst_314 : f32 to vector<16x128xf32>
    %c0_315 = arith.constant 0 : index
    %c4_316 = arith.constant 4 : index
    %c0_317 = arith.constant 0 : index
    %324 = vector.load %arg10[%c0_315, %c4_316, %c0_317] : memref<2x24x128xf32, #tpu.memory_space<vmem>>, vector<2x8x128xf32>
    %325 = arith.truncf %324 : vector<2x8x128xf32> to vector<2x8x128xbf16>
    %c0_318 = arith.constant 0 : index
    %c5_319 = arith.constant 5 : index
    %c0_320 = arith.constant 0 : index
    %326 = vector.load %arg10[%c0_318, %c5_319, %c0_320] : memref<2x24x128xf32, #tpu.memory_space<vmem>>, vector<2x8x128xf32>
    %327 = arith.truncf %326 : vector<2x8x128xf32> to vector<2x8x128xbf16>
    %328 = tpu.concatenate %325, %327 in 2 : vector<2x8x128xbf16>, vector<2x8x128xbf16> -> vector<2x8x256xbf16>
    %329 = vector.shape_cast %328 : vector<2x8x256xbf16> to vector<16x256xbf16>
    %c5_321 = arith.constant 5 : index
    %c0_322 = arith.constant 0 : index
    %c0_323 = arith.constant 0 : index
    %c0_324 = arith.constant 0 : index
    %330 = vector.load %arg11[%c5_321, %c0_322, %c0_323, %c0_324] : memref<11x9x128x128xbf16, #tpu.memory_space<vmem>>, vector<1x2x128x128xbf16>
    %331 = vector.shape_cast %330 : vector<1x2x128x128xbf16> to vector<2x128x128xbf16>
    %332 = vector.shape_cast %331 : vector<2x128x128xbf16> to vector<256x128xbf16>
    %cst_325 = arith.constant dense<0.000000e+00> : vector<16x128xf32>
    %333 = tpu.matmul %329, %332, %cst_325 {dimension_numbers = #tpu.dot_dimension_numbers<[1], [0], [0], [1], [0, 0, 1, 1], [], []>} : vector<16x256xbf16>, vector<256x128xbf16>, vector<16x128xf32> -> vector<16x128xf32>
    %334 = arith.addf %323, %333 : vector<16x128xf32>
    %c0_326 = arith.constant 0 : index
    %c6_327 = arith.constant 6 : index
    %c0_328 = arith.constant 0 : index
    %335 = vector.load %arg10[%c0_326, %c6_327, %c0_328] : memref<2x24x128xf32, #tpu.memory_space<vmem>>, vector<2x8x128xf32>
    %336 = arith.truncf %335 : vector<2x8x128xf32> to vector<2x8x128xbf16>
    %c0_329 = arith.constant 0 : index
    %c7_330 = arith.constant 7 : index
    %c0_331 = arith.constant 0 : index
    %337 = vector.load %arg10[%c0_329, %c7_330, %c0_331] : memref<2x24x128xf32, #tpu.memory_space<vmem>>, vector<2x8x128xf32>
    %338 = arith.truncf %337 : vector<2x8x128xf32> to vector<2x8x128xbf16>
    %339 = tpu.concatenate %336, %338 in 2 : vector<2x8x128xbf16>, vector<2x8x128xbf16> -> vector<2x8x256xbf16>
    %340 = vector.shape_cast %339 : vector<2x8x256xbf16> to vector<16x256xbf16>
    %c5_332 = arith.constant 5 : index
    %c2_333 = arith.constant 2 : index
    %c0_334 = arith.constant 0 : index
    %c0_335 = arith.constant 0 : index
    %341 = vector.load %arg11[%c5_332, %c2_333, %c0_334, %c0_335] : memref<11x9x128x128xbf16, #tpu.memory_space<vmem>>, vector<1x2x128x128xbf16>
    %342 = vector.shape_cast %341 : vector<1x2x128x128xbf16> to vector<2x128x128xbf16>
    %343 = vector.shape_cast %342 : vector<2x128x128xbf16> to vector<256x128xbf16>
    %cst_336 = arith.constant dense<0.000000e+00> : vector<16x128xf32>
    %344 = tpu.matmul %340, %343, %cst_336 {dimension_numbers = #tpu.dot_dimension_numbers<[1], [0], [0], [1], [0, 0, 1, 1], [], []>} : vector<16x256xbf16>, vector<256x128xbf16>, vector<16x128xf32> -> vector<16x128xf32>
    %345 = arith.addf %334, %344 : vector<16x128xf32>
    %c0_337 = arith.constant 0 : index
    %c8_338 = arith.constant 8 : index
    %c0_339 = arith.constant 0 : index
    %346 = vector.load %arg10[%c0_337, %c8_338, %c0_339] : memref<2x24x128xf32, #tpu.memory_space<vmem>>, vector<2x8x128xf32>
    %347 = arith.truncf %346 : vector<2x8x128xf32> to vector<2x8x128xbf16>
    %c0_340 = arith.constant 0 : index
    %c9_341 = arith.constant 9 : index
    %c0_342 = arith.constant 0 : index
    %348 = vector.load %arg10[%c0_340, %c9_341, %c0_342] : memref<2x24x128xf32, #tpu.memory_space<vmem>>, vector<2x8x128xf32>
    %349 = arith.truncf %348 : vector<2x8x128xf32> to vector<2x8x128xbf16>
    %350 = tpu.concatenate %347, %349 in 2 : vector<2x8x128xbf16>, vector<2x8x128xbf16> -> vector<2x8x256xbf16>
    %351 = vector.shape_cast %350 : vector<2x8x256xbf16> to vector<16x256xbf16>
    %c5_343 = arith.constant 5 : index
    %c4_344 = arith.constant 4 : index
    %c0_345 = arith.constant 0 : index
    %c0_346 = arith.constant 0 : index
    %352 = vector.load %arg11[%c5_343, %c4_344, %c0_345, %c0_346] : memref<11x9x128x128xbf16, #tpu.memory_space<vmem>>, vector<1x2x128x128xbf16>
    %353 = vector.shape_cast %352 : vector<1x2x128x128xbf16> to vector<2x128x128xbf16>
    %354 = vector.shape_cast %353 : vector<2x128x128xbf16> to vector<256x128xbf16>
    %cst_347 = arith.constant dense<0.000000e+00> : vector<16x128xf32>
    %355 = tpu.matmul %351, %354, %cst_347 {dimension_numbers = #tpu.dot_dimension_numbers<[1], [0], [0], [1], [0, 0, 1, 1], [], []>} : vector<16x256xbf16>, vector<256x128xbf16>, vector<16x128xf32> -> vector<16x128xf32>
    %356 = arith.addf %345, %355 : vector<16x128xf32>
    %c0_348 = arith.constant 0 : index
    %c10_349 = arith.constant 10 : index
    %c0_350 = arith.constant 0 : index
    %357 = vector.load %arg10[%c0_348, %c10_349, %c0_350] : memref<2x24x128xf32, #tpu.memory_space<vmem>>, vector<2x8x128xf32>
    %358 = arith.truncf %357 : vector<2x8x128xf32> to vector<2x8x128xbf16>
    %c0_351 = arith.constant 0 : index
    %c11_352 = arith.constant 11 : index
    %c0_353 = arith.constant 0 : index
    %359 = vector.load %arg10[%c0_351, %c11_352, %c0_353] : memref<2x24x128xf32, #tpu.memory_space<vmem>>, vector<2x8x128xf32>
    %360 = arith.truncf %359 : vector<2x8x128xf32> to vector<2x8x128xbf16>
    %361 = tpu.concatenate %358, %360 in 2 : vector<2x8x128xbf16>, vector<2x8x128xbf16> -> vector<2x8x256xbf16>
    %362 = vector.shape_cast %361 : vector<2x8x256xbf16> to vector<16x256xbf16>
    %c5_354 = arith.constant 5 : index
    %c6_355 = arith.constant 6 : index
    %c0_356 = arith.constant 0 : index
    %c0_357 = arith.constant 0 : index
    %363 = vector.load %arg11[%c5_354, %c6_355, %c0_356, %c0_357] : memref<11x9x128x128xbf16, #tpu.memory_space<vmem>>, vector<1x2x128x128xbf16>
    %364 = vector.shape_cast %363 : vector<1x2x128x128xbf16> to vector<2x128x128xbf16>
    %365 = vector.shape_cast %364 : vector<2x128x128xbf16> to vector<256x128xbf16>
    %cst_358 = arith.constant dense<0.000000e+00> : vector<16x128xf32>
    %366 = tpu.matmul %362, %365, %cst_358 {dimension_numbers = #tpu.dot_dimension_numbers<[1], [0], [0], [1], [0, 0, 1, 1], [], []>} : vector<16x256xbf16>, vector<256x128xbf16>, vector<16x128xf32> -> vector<16x128xf32>
    %367 = arith.addf %356, %366 : vector<16x128xf32>
    %c0_359 = arith.constant 0 : index
    %c12_360 = arith.constant 12 : index
    %c0_361 = arith.constant 0 : index
    %368 = vector.load %arg10[%c0_359, %c12_360, %c0_361] : memref<2x24x128xf32, #tpu.memory_space<vmem>>, vector<2x8x128xf32>
    %369 = vector.shape_cast %368 : vector<2x8x128xf32> to vector<16x128xf32>
    %370 = arith.truncf %369 : vector<16x128xf32> to vector<16x128xbf16>
    %c5_362 = arith.constant 5 : index
    %c8_363 = arith.constant 8 : index
    %c0_364 = arith.constant 0 : index
    %c0_365 = arith.constant 0 : index
    %371 = vector.load %arg11[%c5_362, %c8_363, %c0_364, %c0_365] : memref<11x9x128x128xbf16, #tpu.memory_space<vmem>>, vector<1x1x128x128xbf16>
    %372 = vector.shape_cast %371 : vector<1x1x128x128xbf16> to vector<128x128xbf16>
    %cst_366 = arith.constant dense<0.000000e+00> : vector<16x128xf32>
    %373 = tpu.matmul %370, %372, %cst_366 {dimension_numbers = #tpu.dot_dimension_numbers<[1], [0], [0], [1], [0, 0, 1, 1], [], []>} : vector<16x128xbf16>, vector<128x128xbf16>, vector<16x128xf32> -> vector<16x128xf32>
    %374 = arith.addf %367, %373 : vector<16x128xf32>
    %c5_367 = arith.constant 5 : index
    %c0_368 = arith.constant 0 : index
    %c0_369 = arith.constant 0 : index
    %375 = vector.load %arg5[%c5_367, %c0_368, %c0_369] : memref<11x1x128xf32, #tpu.memory_space<vmem>>, vector<1x1x128xf32>
    %376 = vector.shape_cast %375 : vector<1x1x128xf32> to vector<1x128xf32>
    %377 = vector.broadcast %376 : vector<1x128xf32> to vector<16x128xf32>
    %378 = arith.addf %374, %377 : vector<16x128xf32>
    %379 = vector.shape_cast %378 : vector<16x128xf32> to vector<2x8x128xf32>
    %c0_370 = arith.constant 0 : index
    %c8_371 = arith.constant 8 : index
    %c0_372 = arith.constant 0 : index
    %380 = vector.load %arg9[%c0_370, %c8_371, %c0_372] : memref<2x24x128xf32, #tpu.memory_space<vmem>>, vector<2x8x128xf32>
    tpu.vector_store %arg9[%c0_370, %c8_371, %c0_372], %379 {strides = array<i32>} : memref<2x24x128xf32, #tpu.memory_space<vmem>>, vector<2x8x128xf32>,
    %cst_373 = arith.constant 0.000000e+00 : f32
    %381 = vector.broadcast %cst_373 : f32 to vector<16x128xf32>
    %c0_374 = arith.constant 0 : index
    %c4_375 = arith.constant 4 : index
    %c0_376 = arith.constant 0 : index
    %382 = vector.load %arg9[%c0_374, %c4_375, %c0_376] : memref<2x24x128xf32, #tpu.memory_space<vmem>>, vector<2x8x128xf32>
    %383 = arith.truncf %382 : vector<2x8x128xf32> to vector<2x8x128xbf16>
    %c0_377 = arith.constant 0 : index
    %c5_378 = arith.constant 5 : index
    %c0_379 = arith.constant 0 : index
    %384 = vector.load %arg9[%c0_377, %c5_378, %c0_379] : memref<2x24x128xf32, #tpu.memory_space<vmem>>, vector<2x8x128xf32>
    %385 = arith.truncf %384 : vector<2x8x128xf32> to vector<2x8x128xbf16>
    %386 = tpu.concatenate %383, %385 in 2 : vector<2x8x128xbf16>, vector<2x8x128xbf16> -> vector<2x8x256xbf16>
    %387 = vector.shape_cast %386 : vector<2x8x256xbf16> to vector<16x256xbf16>
    %c6_380 = arith.constant 6 : index
    %c0_381 = arith.constant 0 : index
    %c0_382 = arith.constant 0 : index
    %c0_383 = arith.constant 0 : index
    %388 = vector.load %arg11[%c6_380, %c0_381, %c0_382, %c0_383] : memref<11x9x128x128xbf16, #tpu.memory_space<vmem>>, vector<1x2x128x128xbf16>
    %389 = vector.shape_cast %388 : vector<1x2x128x128xbf16> to vector<2x128x128xbf16>
    %390 = vector.shape_cast %389 : vector<2x128x128xbf16> to vector<256x128xbf16>
    %cst_384 = arith.constant dense<0.000000e+00> : vector<16x128xf32>
    %391 = tpu.matmul %387, %390, %cst_384 {dimension_numbers = #tpu.dot_dimension_numbers<[1], [0], [0], [1], [0, 0, 1, 1], [], []>} : vector<16x256xbf16>, vector<256x128xbf16>, vector<16x128xf32> -> vector<16x128xf32>
    %392 = arith.addf %381, %391 : vector<16x128xf32>
    %c0_385 = arith.constant 0 : index
    %c6_386 = arith.constant 6 : index
    %c0_387 = arith.constant 0 : index
    %393 = vector.load %arg9[%c0_385, %c6_386, %c0_387] : memref<2x24x128xf32, #tpu.memory_space<vmem>>, vector<2x8x128xf32>
    %394 = arith.truncf %393 : vector<2x8x128xf32> to vector<2x8x128xbf16>
    %c0_388 = arith.constant 0 : index
    %c7_389 = arith.constant 7 : index
    %c0_390 = arith.constant 0 : index
    %395 = vector.load %arg9[%c0_388, %c7_389, %c0_390] : memref<2x24x128xf32, #tpu.memory_space<vmem>>, vector<2x8x128xf32>
    %396 = arith.truncf %395 : vector<2x8x128xf32> to vector<2x8x128xbf16>
    %397 = tpu.concatenate %394, %396 in 2 : vector<2x8x128xbf16>, vector<2x8x128xbf16> -> vector<2x8x256xbf16>
    %398 = vector.shape_cast %397 : vector<2x8x256xbf16> to vector<16x256xbf16>
    %c6_391 = arith.constant 6 : index
    %c2_392 = arith.constant 2 : index
    %c0_393 = arith.constant 0 : index
    %c0_394 = arith.constant 0 : index
    %399 = vector.load %arg11[%c6_391, %c2_392, %c0_393, %c0_394] : memref<11x9x128x128xbf16, #tpu.memory_space<vmem>>, vector<1x2x128x128xbf16>
    %400 = vector.shape_cast %399 : vector<1x2x128x128xbf16> to vector<2x128x128xbf16>
    %401 = vector.shape_cast %400 : vector<2x128x128xbf16> to vector<256x128xbf16>
    %cst_395 = arith.constant dense<0.000000e+00> : vector<16x128xf32>
    %402 = tpu.matmul %398, %401, %cst_395 {dimension_numbers = #tpu.dot_dimension_numbers<[1], [0], [0], [1], [0, 0, 1, 1], [], []>} : vector<16x256xbf16>, vector<256x128xbf16>, vector<16x128xf32> -> vector<16x128xf32>
    %403 = arith.addf %392, %402 : vector<16x128xf32>
    %c0_396 = arith.constant 0 : index
    %c8_397 = arith.constant 8 : index
    %c0_398 = arith.constant 0 : index
    %404 = vector.load %arg9[%c0_396, %c8_397, %c0_398] : memref<2x24x128xf32, #tpu.memory_space<vmem>>, vector<2x8x128xf32>
    %405 = arith.truncf %404 : vector<2x8x128xf32> to vector<2x8x128xbf16>
    %c0_399 = arith.constant 0 : index
    %c9_400 = arith.constant 9 : index
    %c0_401 = arith.constant 0 : index
    %406 = vector.load %arg9[%c0_399, %c9_400, %c0_401] : memref<2x24x128xf32, #tpu.memory_space<vmem>>, vector<2x8x128xf32>
    %407 = arith.truncf %406 : vector<2x8x128xf32> to vector<2x8x128xbf16>
    %408 = tpu.concatenate %405, %407 in 2 : vector<2x8x128xbf16>, vector<2x8x128xbf16> -> vector<2x8x256xbf16>
    %409 = vector.shape_cast %408 : vector<2x8x256xbf16> to vector<16x256xbf16>
    %c6_402 = arith.constant 6 : index
    %c4_403 = arith.constant 4 : index
    %c0_404 = arith.constant 0 : index
    %c0_405 = arith.constant 0 : index
    %410 = vector.load %arg11[%c6_402, %c4_403, %c0_404, %c0_405] : memref<11x9x128x128xbf16, #tpu.memory_space<vmem>>, vector<1x2x128x128xbf16>
    %411 = vector.shape_cast %410 : vector<1x2x128x128xbf16> to vector<2x128x128xbf16>
    %412 = vector.shape_cast %411 : vector<2x128x128xbf16> to vector<256x128xbf16>
    %cst_406 = arith.constant dense<0.000000e+00> : vector<16x128xf32>
    %413 = tpu.matmul %409, %412, %cst_406 {dimension_numbers = #tpu.dot_dimension_numbers<[1], [0], [0], [1], [0, 0, 1, 1], [], []>} : vector<16x256xbf16>, vector<256x128xbf16>, vector<16x128xf32> -> vector<16x128xf32>
    %414 = arith.addf %403, %413 : vector<16x128xf32>
    %c0_407 = arith.constant 0 : index
    %c10_408 = arith.constant 10 : index
    %c0_409 = arith.constant 0 : index
    %415 = vector.load %arg9[%c0_407, %c10_408, %c0_409] : memref<2x24x128xf32, #tpu.memory_space<vmem>>, vector<2x8x128xf32>
    %416 = arith.truncf %415 : vector<2x8x128xf32> to vector<2x8x128xbf16>
    %c0_410 = arith.constant 0 : index
    %c11_411 = arith.constant 11 : index
    %c0_412 = arith.constant 0 : index
    %417 = vector.load %arg9[%c0_410, %c11_411, %c0_412] : memref<2x24x128xf32, #tpu.memory_space<vmem>>, vector<2x8x128xf32>
    %418 = arith.truncf %417 : vector<2x8x128xf32> to vector<2x8x128xbf16>
    %419 = tpu.concatenate %416, %418 in 2 : vector<2x8x128xbf16>, vector<2x8x128xbf16> -> vector<2x8x256xbf16>
    %420 = vector.shape_cast %419 : vector<2x8x256xbf16> to vector<16x256xbf16>
    %c6_413 = arith.constant 6 : index
    %c6_414 = arith.constant 6 : index
    %c0_415 = arith.constant 0 : index
    %c0_416 = arith.constant 0 : index
    %421 = vector.load %arg11[%c6_413, %c6_414, %c0_415, %c0_416] : memref<11x9x128x128xbf16, #tpu.memory_space<vmem>>, vector<1x2x128x128xbf16>
    %422 = vector.shape_cast %421 : vector<1x2x128x128xbf16> to vector<2x128x128xbf16>
    %423 = vector.shape_cast %422 : vector<2x128x128xbf16> to vector<256x128xbf16>
    %cst_417 = arith.constant dense<0.000000e+00> : vector<16x128xf32>
    %424 = tpu.matmul %420, %423, %cst_417 {dimension_numbers = #tpu.dot_dimension_numbers<[1], [0], [0], [1], [0, 0, 1, 1], [], []>} : vector<16x256xbf16>, vector<256x128xbf16>, vector<16x128xf32> -> vector<16x128xf32>
    %425 = arith.addf %414, %424 : vector<16x128xf32>
    %c0_418 = arith.constant 0 : index
    %c12_419 = arith.constant 12 : index
    %c0_420 = arith.constant 0 : index
    %426 = vector.load %arg9[%c0_418, %c12_419, %c0_420] : memref<2x24x128xf32, #tpu.memory_space<vmem>>, vector<2x8x128xf32>
    %427 = vector.shape_cast %426 : vector<2x8x128xf32> to vector<16x128xf32>
    %428 = arith.truncf %427 : vector<16x128xf32> to vector<16x128xbf16>
    %c6_421 = arith.constant 6 : index
    %c8_422 = arith.constant 8 : index
    %c0_423 = arith.constant 0 : index
    %c0_424 = arith.constant 0 : index
    %429 = vector.load %arg11[%c6_421, %c8_422, %c0_423, %c0_424] : memref<11x9x128x128xbf16, #tpu.memory_space<vmem>>, vector<1x1x128x128xbf16>
    %430 = vector.shape_cast %429 : vector<1x1x128x128xbf16> to vector<128x128xbf16>
    %cst_425 = arith.constant dense<0.000000e+00> : vector<16x128xf32>
    %431 = tpu.matmul %428, %430, %cst_425 {dimension_numbers = #tpu.dot_dimension_numbers<[1], [0], [0], [1], [0, 0, 1, 1], [], []>} : vector<16x128xbf16>, vector<128x128xbf16>, vector<16x128xf32> -> vector<16x128xf32>
    %432 = arith.addf %425, %431 : vector<16x128xf32>
    %c6_426 = arith.constant 6 : index
    %c0_427 = arith.constant 0 : index
    %c0_428 = arith.constant 0 : index
    %433 = vector.load %arg5[%c6_426, %c0_427, %c0_428] : memref<11x1x128xf32, #tpu.memory_space<vmem>>, vector<1x1x128xf32>
    %434 = vector.shape_cast %433 : vector<1x1x128xf32> to vector<1x128xf32>
    %435 = vector.broadcast %434 : vector<1x128xf32> to vector<16x128xf32>
    %436 = arith.addf %432, %435 : vector<16x128xf32>
    %cst_429 = arith.constant 2.000000e-01 : f32
    %437 = vector.broadcast %cst_429 : f32 to vector<16x128xf32>
    %438 = arith.mulf %437, %436 : vector<16x128xf32>
    %439 = arith.maximumf %436, %438 : vector<16x128xf32>
    %440 = vector.shape_cast %439 : vector<16x128xf32> to vector<2x8x128xf32>
    %c0_430 = arith.constant 0 : index
    %c8_431 = arith.constant 8 : index
    %c0_432 = arith.constant 0 : index
    %441 = vector.load %arg10[%c0_430, %c8_431, %c0_432] : memref<2x24x128xf32, #tpu.memory_space<vmem>>, vector<2x8x128xf32>
    tpu.vector_store %arg10[%c0_430, %c8_431, %c0_432], %440 {strides = array<i32>} : memref<2x24x128xf32, #tpu.memory_space<vmem>>, vector<2x8x128xf32>,
    %cst_433 = arith.constant 0.000000e+00 : f32
    %442 = vector.broadcast %cst_433 : f32 to vector<16x128xf32>
    %c0_434 = arith.constant 0 : index
    %c4_435 = arith.constant 4 : index
    %c0_436 = arith.constant 0 : index
    %443 = vector.load %arg10[%c0_434, %c4_435, %c0_436] : memref<2x24x128xf32, #tpu.memory_space<vmem>>, vector<2x8x128xf32>
    %444 = arith.truncf %443 : vector<2x8x128xf32> to vector<2x8x128xbf16>
    %c0_437 = arith.constant 0 : index
    %c5_438 = arith.constant 5 : index
    %c0_439 = arith.constant 0 : index
    %445 = vector.load %arg10[%c0_437, %c5_438, %c0_439] : memref<2x24x128xf32, #tpu.memory_space<vmem>>, vector<2x8x128xf32>
    %446 = arith.truncf %445 : vector<2x8x128xf32> to vector<2x8x128xbf16>
    %447 = tpu.concatenate %444, %446 in 2 : vector<2x8x128xbf16>, vector<2x8x128xbf16> -> vector<2x8x256xbf16>
    %448 = vector.shape_cast %447 : vector<2x8x256xbf16> to vector<16x256xbf16>
    %c7_440 = arith.constant 7 : index
    %c0_441 = arith.constant 0 : index
    %c0_442 = arith.constant 0 : index
    %c0_443 = arith.constant 0 : index
    %449 = vector.load %arg11[%c7_440, %c0_441, %c0_442, %c0_443] : memref<11x9x128x128xbf16, #tpu.memory_space<vmem>>, vector<1x2x128x128xbf16>
    %450 = vector.shape_cast %449 : vector<1x2x128x128xbf16> to vector<2x128x128xbf16>
    %451 = vector.shape_cast %450 : vector<2x128x128xbf16> to vector<256x128xbf16>
    %cst_444 = arith.constant dense<0.000000e+00> : vector<16x128xf32>
    %452 = tpu.matmul %448, %451, %cst_444 {dimension_numbers = #tpu.dot_dimension_numbers<[1], [0], [0], [1], [0, 0, 1, 1], [], []>} : vector<16x256xbf16>, vector<256x128xbf16>, vector<16x128xf32> -> vector<16x128xf32>
    %453 = arith.addf %442, %452 : vector<16x128xf32>
    %c0_445 = arith.constant 0 : index
    %c6_446 = arith.constant 6 : index
    %c0_447 = arith.constant 0 : index
    %454 = vector.load %arg10[%c0_445, %c6_446, %c0_447] : memref<2x24x128xf32, #tpu.memory_space<vmem>>, vector<2x8x128xf32>
    %455 = arith.truncf %454 : vector<2x8x128xf32> to vector<2x8x128xbf16>
    %c0_448 = arith.constant 0 : index
    %c7_449 = arith.constant 7 : index
    %c0_450 = arith.constant 0 : index
    %456 = vector.load %arg10[%c0_448, %c7_449, %c0_450] : memref<2x24x128xf32, #tpu.memory_space<vmem>>, vector<2x8x128xf32>
    %457 = arith.truncf %456 : vector<2x8x128xf32> to vector<2x8x128xbf16>
    %458 = tpu.concatenate %455, %457 in 2 : vector<2x8x128xbf16>, vector<2x8x128xbf16> -> vector<2x8x256xbf16>
    %459 = vector.shape_cast %458 : vector<2x8x256xbf16> to vector<16x256xbf16>
    %c7_451 = arith.constant 7 : index
    %c2_452 = arith.constant 2 : index
    %c0_453 = arith.constant 0 : index
    %c0_454 = arith.constant 0 : index
    %460 = vector.load %arg11[%c7_451, %c2_452, %c0_453, %c0_454] : memref<11x9x128x128xbf16, #tpu.memory_space<vmem>>, vector<1x2x128x128xbf16>
    %461 = vector.shape_cast %460 : vector<1x2x128x128xbf16> to vector<2x128x128xbf16>
    %462 = vector.shape_cast %461 : vector<2x128x128xbf16> to vector<256x128xbf16>
    %cst_455 = arith.constant dense<0.000000e+00> : vector<16x128xf32>
    %463 = tpu.matmul %459, %462, %cst_455 {dimension_numbers = #tpu.dot_dimension_numbers<[1], [0], [0], [1], [0, 0, 1, 1], [], []>} : vector<16x256xbf16>, vector<256x128xbf16>, vector<16x128xf32> -> vector<16x128xf32>
    %464 = arith.addf %453, %463 : vector<16x128xf32>
    %c0_456 = arith.constant 0 : index
    %c8_457 = arith.constant 8 : index
    %c0_458 = arith.constant 0 : index
    %465 = vector.load %arg10[%c0_456, %c8_457, %c0_458] : memref<2x24x128xf32, #tpu.memory_space<vmem>>, vector<2x8x128xf32>
    %466 = arith.truncf %465 : vector<2x8x128xf32> to vector<2x8x128xbf16>
    %c0_459 = arith.constant 0 : index
    %c9_460 = arith.constant 9 : index
    %c0_461 = arith.constant 0 : index
    %467 = vector.load %arg10[%c0_459, %c9_460, %c0_461] : memref<2x24x128xf32, #tpu.memory_space<vmem>>, vector<2x8x128xf32>
    %468 = arith.truncf %467 : vector<2x8x128xf32> to vector<2x8x128xbf16>
    %469 = tpu.concatenate %466, %468 in 2 : vector<2x8x128xbf16>, vector<2x8x128xbf16> -> vector<2x8x256xbf16>
    %470 = vector.shape_cast %469 : vector<2x8x256xbf16> to vector<16x256xbf16>
    %c7_462 = arith.constant 7 : index
    %c4_463 = arith.constant 4 : index
    %c0_464 = arith.constant 0 : index
    %c0_465 = arith.constant 0 : index
    %471 = vector.load %arg11[%c7_462, %c4_463, %c0_464, %c0_465] : memref<11x9x128x128xbf16, #tpu.memory_space<vmem>>, vector<1x2x128x128xbf16>
    %472 = vector.shape_cast %471 : vector<1x2x128x128xbf16> to vector<2x128x128xbf16>
    %473 = vector.shape_cast %472 : vector<2x128x128xbf16> to vector<256x128xbf16>
    %cst_466 = arith.constant dense<0.000000e+00> : vector<16x128xf32>
    %474 = tpu.matmul %470, %473, %cst_466 {dimension_numbers = #tpu.dot_dimension_numbers<[1], [0], [0], [1], [0, 0, 1, 1], [], []>} : vector<16x256xbf16>, vector<256x128xbf16>, vector<16x128xf32> -> vector<16x128xf32>
    %475 = arith.addf %464, %474 : vector<16x128xf32>
    %c0_467 = arith.constant 0 : index
    %c10_468 = arith.constant 10 : index
    %c0_469 = arith.constant 0 : index
    %476 = vector.load %arg10[%c0_467, %c10_468, %c0_469] : memref<2x24x128xf32, #tpu.memory_space<vmem>>, vector<2x8x128xf32>
    %477 = arith.truncf %476 : vector<2x8x128xf32> to vector<2x8x128xbf16>
    %c0_470 = arith.constant 0 : index
    %c11_471 = arith.constant 11 : index
    %c0_472 = arith.constant 0 : index
    %478 = vector.load %arg10[%c0_470, %c11_471, %c0_472] : memref<2x24x128xf32, #tpu.memory_space<vmem>>, vector<2x8x128xf32>
    %479 = arith.truncf %478 : vector<2x8x128xf32> to vector<2x8x128xbf16>
    %480 = tpu.concatenate %477, %479 in 2 : vector<2x8x128xbf16>, vector<2x8x128xbf16> -> vector<2x8x256xbf16>
    %481 = vector.shape_cast %480 : vector<2x8x256xbf16> to vector<16x256xbf16>
    %c7_473 = arith.constant 7 : index
    %c6_474 = arith.constant 6 : index
    %c0_475 = arith.constant 0 : index
    %c0_476 = arith.constant 0 : index
    %482 = vector.load %arg11[%c7_473, %c6_474, %c0_475, %c0_476] : memref<11x9x128x128xbf16, #tpu.memory_space<vmem>>, vector<1x2x128x128xbf16>
    %483 = vector.shape_cast %482 : vector<1x2x128x128xbf16> to vector<2x128x128xbf16>
    %484 = vector.shape_cast %483 : vector<2x128x128xbf16> to vector<256x128xbf16>
    %cst_477 = arith.constant dense<0.000000e+00> : vector<16x128xf32>
    %485 = tpu.matmul %481, %484, %cst_477 {dimension_numbers = #tpu.dot_dimension_numbers<[1], [0], [0], [1], [0, 0, 1, 1], [], []>} : vector<16x256xbf16>, vector<256x128xbf16>, vector<16x128xf32> -> vector<16x128xf32>
    %486 = arith.addf %475, %485 : vector<16x128xf32>
    %c0_478 = arith.constant 0 : index
    %c12_479 = arith.constant 12 : index
    %c0_480 = arith.constant 0 : index
    %487 = vector.load %arg10[%c0_478, %c12_479, %c0_480] : memref<2x24x128xf32, #tpu.memory_space<vmem>>, vector<2x8x128xf32>
    %488 = vector.shape_cast %487 : vector<2x8x128xf32> to vector<16x128xf32>
    %489 = arith.truncf %488 : vector<16x128xf32> to vector<16x128xbf16>
    %c7_481 = arith.constant 7 : index
    %c8_482 = arith.constant 8 : index
    %c0_483 = arith.constant 0 : index
    %c0_484 = arith.constant 0 : index
    %490 = vector.load %arg11[%c7_481, %c8_482, %c0_483, %c0_484] : memref<11x9x128x128xbf16, #tpu.memory_space<vmem>>, vector<1x1x128x128xbf16>
    %491 = vector.shape_cast %490 : vector<1x1x128x128xbf16> to vector<128x128xbf16>
    %cst_485 = arith.constant dense<0.000000e+00> : vector<16x128xf32>
    %492 = tpu.matmul %489, %491, %cst_485 {dimension_numbers = #tpu.dot_dimension_numbers<[1], [0], [0], [1], [0, 0, 1, 1], [], []>} : vector<16x128xbf16>, vector<128x128xbf16>, vector<16x128xf32> -> vector<16x128xf32>
    %493 = arith.addf %486, %492 : vector<16x128xf32>
    %c7_486 = arith.constant 7 : index
    %c0_487 = arith.constant 0 : index
    %c0_488 = arith.constant 0 : index
    %494 = vector.load %arg5[%c7_486, %c0_487, %c0_488] : memref<11x1x128xf32, #tpu.memory_space<vmem>>, vector<1x1x128xf32>
    %495 = vector.shape_cast %494 : vector<1x1x128xf32> to vector<1x128xf32>
    %496 = vector.broadcast %495 : vector<1x128xf32> to vector<16x128xf32>
    %497 = arith.addf %493, %496 : vector<16x128xf32>
    %c0_489 = arith.constant 0 : index
    %c8_490 = arith.constant 8 : index
    %c0_491 = arith.constant 0 : index
    %498 = vector.load %arg9[%c0_489, %c8_490, %c0_491] : memref<2x24x128xf32, #tpu.memory_space<vmem>>, vector<2x8x128xf32>
    %499 = vector.shape_cast %498 : vector<2x8x128xf32> to vector<16x128xf32>
    %500 = arith.addf %497, %499 : vector<16x128xf32>
    %cst_492 = arith.constant 2.000000e-01 : f32
    %501 = vector.broadcast %cst_492 : f32 to vector<16x128xf32>
    %502 = arith.mulf %501, %500 : vector<16x128xf32>
    %503 = arith.maximumf %500, %502 : vector<16x128xf32>
    %504 = vector.shape_cast %503 : vector<16x128xf32> to vector<2x8x128xf32>
    %c0_493 = arith.constant 0 : index
    %c8_494 = arith.constant 8 : index
    %c0_495 = arith.constant 0 : index
    %505 = vector.load %arg9[%c0_493, %c8_494, %c0_495] : memref<2x24x128xf32, #tpu.memory_space<vmem>>, vector<2x8x128xf32>
    tpu.vector_store %arg9[%c0_493, %c8_494, %c0_495], %504 {strides = array<i32>} : memref<2x24x128xf32, #tpu.memory_space<vmem>>, vector<2x8x128xf32>,
    %cst_496 = arith.constant 0.000000e+00 : f32
    %506 = vector.broadcast %cst_496 : f32 to vector<16x128xf32>
    %c0_497 = arith.constant 0 : index
    %c4_498 = arith.constant 4 : index
    %c0_499 = arith.constant 0 : index
    %507 = vector.load %arg9[%c0_497, %c4_498, %c0_499] : memref<2x24x128xf32, #tpu.memory_space<vmem>>, vector<2x8x128xf32>
    %508 = arith.truncf %507 : vector<2x8x128xf32> to vector<2x8x128xbf16>
    %c0_500 = arith.constant 0 : index
    %c5_501 = arith.constant 5 : index
    %c0_502 = arith.constant 0 : index
    %509 = vector.load %arg9[%c0_500, %c5_501, %c0_502] : memref<2x24x128xf32, #tpu.memory_space<vmem>>, vector<2x8x128xf32>
    %510 = arith.truncf %509 : vector<2x8x128xf32> to vector<2x8x128xbf16>
    %511 = tpu.concatenate %508, %510 in 2 : vector<2x8x128xbf16>, vector<2x8x128xbf16> -> vector<2x8x256xbf16>
    %512 = vector.shape_cast %511 : vector<2x8x256xbf16> to vector<16x256xbf16>
    %c8_503 = arith.constant 8 : index
    %c0_504 = arith.constant 0 : index
    %c0_505 = arith.constant 0 : index
    %c0_506 = arith.constant 0 : index
    %513 = vector.load %arg11[%c8_503, %c0_504, %c0_505, %c0_506] : memref<11x9x128x128xbf16, #tpu.memory_space<vmem>>, vector<1x2x128x128xbf16>
    %514 = vector.shape_cast %513 : vector<1x2x128x128xbf16> to vector<2x128x128xbf16>
    %515 = vector.shape_cast %514 : vector<2x128x128xbf16> to vector<256x128xbf16>
    %cst_507 = arith.constant dense<0.000000e+00> : vector<16x128xf32>
    %516 = tpu.matmul %512, %515, %cst_507 {dimension_numbers = #tpu.dot_dimension_numbers<[1], [0], [0], [1], [0, 0, 1, 1], [], []>} : vector<16x256xbf16>, vector<256x128xbf16>, vector<16x128xf32> -> vector<16x128xf32>
    %517 = arith.addf %506, %516 : vector<16x128xf32>
    %c0_508 = arith.constant 0 : index
    %c6_509 = arith.constant 6 : index
    %c0_510 = arith.constant 0 : index
    %518 = vector.load %arg9[%c0_508, %c6_509, %c0_510] : memref<2x24x128xf32, #tpu.memory_space<vmem>>, vector<2x8x128xf32>
    %519 = arith.truncf %518 : vector<2x8x128xf32> to vector<2x8x128xbf16>
    %c0_511 = arith.constant 0 : index
    %c7_512 = arith.constant 7 : index
    %c0_513 = arith.constant 0 : index
    %520 = vector.load %arg9[%c0_511, %c7_512, %c0_513] : memref<2x24x128xf32, #tpu.memory_space<vmem>>, vector<2x8x128xf32>
    %521 = arith.truncf %520 : vector<2x8x128xf32> to vector<2x8x128xbf16>
    %522 = tpu.concatenate %519, %521 in 2 : vector<2x8x128xbf16>, vector<2x8x128xbf16> -> vector<2x8x256xbf16>
    %523 = vector.shape_cast %522 : vector<2x8x256xbf16> to vector<16x256xbf16>
    %c8_514 = arith.constant 8 : index
    %c2_515 = arith.constant 2 : index
    %c0_516 = arith.constant 0 : index
    %c0_517 = arith.constant 0 : index
    %524 = vector.load %arg11[%c8_514, %c2_515, %c0_516, %c0_517] : memref<11x9x128x128xbf16, #tpu.memory_space<vmem>>, vector<1x2x128x128xbf16>
    %525 = vector.shape_cast %524 : vector<1x2x128x128xbf16> to vector<2x128x128xbf16>
    %526 = vector.shape_cast %525 : vector<2x128x128xbf16> to vector<256x128xbf16>
    %cst_518 = arith.constant dense<0.000000e+00> : vector<16x128xf32>
    %527 = tpu.matmul %523, %526, %cst_518 {dimension_numbers = #tpu.dot_dimension_numbers<[1], [0], [0], [1], [0, 0, 1, 1], [], []>} : vector<16x256xbf16>, vector<256x128xbf16>, vector<16x128xf32> -> vector<16x128xf32>
    %528 = arith.addf %517, %527 : vector<16x128xf32>
    %c0_519 = arith.constant 0 : index
    %c8_520 = arith.constant 8 : index
    %c0_521 = arith.constant 0 : index
    %529 = vector.load %arg9[%c0_519, %c8_520, %c0_521] : memref<2x24x128xf32, #tpu.memory_space<vmem>>, vector<2x8x128xf32>
    %530 = arith.truncf %529 : vector<2x8x128xf32> to vector<2x8x128xbf16>
    %c0_522 = arith.constant 0 : index
    %c9_523 = arith.constant 9 : index
    %c0_524 = arith.constant 0 : index
    %531 = vector.load %arg9[%c0_522, %c9_523, %c0_524] : memref<2x24x128xf32, #tpu.memory_space<vmem>>, vector<2x8x128xf32>
    %532 = arith.truncf %531 : vector<2x8x128xf32> to vector<2x8x128xbf16>
    %533 = tpu.concatenate %530, %532 in 2 : vector<2x8x128xbf16>, vector<2x8x128xbf16> -> vector<2x8x256xbf16>
    %534 = vector.shape_cast %533 : vector<2x8x256xbf16> to vector<16x256xbf16>
    %c8_525 = arith.constant 8 : index
    %c4_526 = arith.constant 4 : index
    %c0_527 = arith.constant 0 : index
    %c0_528 = arith.constant 0 : index
    %535 = vector.load %arg11[%c8_525, %c4_526, %c0_527, %c0_528] : memref<11x9x128x128xbf16, #tpu.memory_space<vmem>>, vector<1x2x128x128xbf16>
    %536 = vector.shape_cast %535 : vector<1x2x128x128xbf16> to vector<2x128x128xbf16>
    %537 = vector.shape_cast %536 : vector<2x128x128xbf16> to vector<256x128xbf16>
    %cst_529 = arith.constant dense<0.000000e+00> : vector<16x128xf32>
    %538 = tpu.matmul %534, %537, %cst_529 {dimension_numbers = #tpu.dot_dimension_numbers<[1], [0], [0], [1], [0, 0, 1, 1], [], []>} : vector<16x256xbf16>, vector<256x128xbf16>, vector<16x128xf32> -> vector<16x128xf32>
    %539 = arith.addf %528, %538 : vector<16x128xf32>
    %c0_530 = arith.constant 0 : index
    %c10_531 = arith.constant 10 : index
    %c0_532 = arith.constant 0 : index
    %540 = vector.load %arg9[%c0_530, %c10_531, %c0_532] : memref<2x24x128xf32, #tpu.memory_space<vmem>>, vector<2x8x128xf32>
    %541 = arith.truncf %540 : vector<2x8x128xf32> to vector<2x8x128xbf16>
    %c0_533 = arith.constant 0 : index
    %c11_534 = arith.constant 11 : index
    %c0_535 = arith.constant 0 : index
    %542 = vector.load %arg9[%c0_533, %c11_534, %c0_535] : memref<2x24x128xf32, #tpu.memory_space<vmem>>, vector<2x8x128xf32>
    %543 = arith.truncf %542 : vector<2x8x128xf32> to vector<2x8x128xbf16>
    %544 = tpu.concatenate %541, %543 in 2 : vector<2x8x128xbf16>, vector<2x8x128xbf16> -> vector<2x8x256xbf16>
    %545 = vector.shape_cast %544 : vector<2x8x256xbf16> to vector<16x256xbf16>
    %c8_536 = arith.constant 8 : index
    %c6_537 = arith.constant 6 : index
    %c0_538 = arith.constant 0 : index
    %c0_539 = arith.constant 0 : index
    %546 = vector.load %arg11[%c8_536, %c6_537, %c0_538, %c0_539] : memref<11x9x128x128xbf16, #tpu.memory_space<vmem>>, vector<1x2x128x128xbf16>
    %547 = vector.shape_cast %546 : vector<1x2x128x128xbf16> to vector<2x128x128xbf16>
    %548 = vector.shape_cast %547 : vector<2x128x128xbf16> to vector<256x128xbf16>
    %cst_540 = arith.constant dense<0.000000e+00> : vector<16x128xf32>
    %549 = tpu.matmul %545, %548, %cst_540 {dimension_numbers = #tpu.dot_dimension_numbers<[1], [0], [0], [1], [0, 0, 1, 1], [], []>} : vector<16x256xbf16>, vector<256x128xbf16>, vector<16x128xf32> -> vector<16x128xf32>
    %550 = arith.addf %539, %549 : vector<16x128xf32>
    %c0_541 = arith.constant 0 : index
    %c12_542 = arith.constant 12 : index
    %c0_543 = arith.constant 0 : index
    %551 = vector.load %arg9[%c0_541, %c12_542, %c0_543] : memref<2x24x128xf32, #tpu.memory_space<vmem>>, vector<2x8x128xf32>
    %552 = vector.shape_cast %551 : vector<2x8x128xf32> to vector<16x128xf32>
    %553 = arith.truncf %552 : vector<16x128xf32> to vector<16x128xbf16>
    %c8_544 = arith.constant 8 : index
    %c8_545 = arith.constant 8 : index
    %c0_546 = arith.constant 0 : index
    %c0_547 = arith.constant 0 : index
    %554 = vector.load %arg11[%c8_544, %c8_545, %c0_546, %c0_547] : memref<11x9x128x128xbf16, #tpu.memory_space<vmem>>, vector<1x1x128x128xbf16>
    %555 = vector.shape_cast %554 : vector<1x1x128x128xbf16> to vector<128x128xbf16>
    %cst_548 = arith.constant dense<0.000000e+00> : vector<16x128xf32>
    %556 = tpu.matmul %553, %555, %cst_548 {dimension_numbers = #tpu.dot_dimension_numbers<[1], [0], [0], [1], [0, 0, 1, 1], [], []>} : vector<16x128xbf16>, vector<128x128xbf16>, vector<16x128xf32> -> vector<16x128xf32>
    %557 = arith.addf %550, %556 : vector<16x128xf32>
    %c8_549 = arith.constant 8 : index
    %c0_550 = arith.constant 0 : index
    %c0_551 = arith.constant 0 : index
    %558 = vector.load %arg5[%c8_549, %c0_550, %c0_551] : memref<11x1x128xf32, #tpu.memory_space<vmem>>, vector<1x1x128xf32>
    %559 = vector.shape_cast %558 : vector<1x1x128xf32> to vector<1x128xf32>
    %560 = vector.broadcast %559 : vector<1x128xf32> to vector<16x128xf32>
    %561 = arith.addf %557, %560 : vector<16x128xf32>
    %562 = vector.shape_cast %561 : vector<16x128xf32> to vector<2x8x128xf32>
    %c0_552 = arith.constant 0 : index
    %c8_553 = arith.constant 8 : index
    %c0_554 = arith.constant 0 : index
    %563 = vector.load %arg10[%c0_552, %c8_553, %c0_554] : memref<2x24x128xf32, #tpu.memory_space<vmem>>, vector<2x8x128xf32>
    tpu.vector_store %arg10[%c0_552, %c8_553, %c0_554], %562 {strides = array<i32>} : memref<2x24x128xf32, #tpu.memory_space<vmem>>, vector<2x8x128xf32>,
    %cst_555 = arith.constant 0.000000e+00 : f32
    %564 = vector.broadcast %cst_555 : f32 to vector<16x128xf32>
    %c0_556 = arith.constant 0 : index
    %c4_557 = arith.constant 4 : index
    %c0_558 = arith.constant 0 : index
    %565 = vector.load %arg10[%c0_556, %c4_557, %c0_558] : memref<2x24x128xf32, #tpu.memory_space<vmem>>, vector<2x8x128xf32>
    %566 = arith.truncf %565 : vector<2x8x128xf32> to vector<2x8x128xbf16>
    %c0_559 = arith.constant 0 : index
    %c5_560 = arith.constant 5 : index
    %c0_561 = arith.constant 0 : index
    %567 = vector.load %arg10[%c0_559, %c5_560, %c0_561] : memref<2x24x128xf32, #tpu.memory_space<vmem>>, vector<2x8x128xf32>
    %568 = arith.truncf %567 : vector<2x8x128xf32> to vector<2x8x128xbf16>
    %569 = tpu.concatenate %566, %568 in 2 : vector<2x8x128xbf16>, vector<2x8x128xbf16> -> vector<2x8x256xbf16>
    %570 = vector.shape_cast %569 : vector<2x8x256xbf16> to vector<16x256xbf16>
    %c9_562 = arith.constant 9 : index
    %c0_563 = arith.constant 0 : index
    %c0_564 = arith.constant 0 : index
    %c0_565 = arith.constant 0 : index
    %571 = vector.load %arg11[%c9_562, %c0_563, %c0_564, %c0_565] : memref<11x9x128x128xbf16, #tpu.memory_space<vmem>>, vector<1x2x128x128xbf16>
    %572 = vector.shape_cast %571 : vector<1x2x128x128xbf16> to vector<2x128x128xbf16>
    %573 = vector.shape_cast %572 : vector<2x128x128xbf16> to vector<256x128xbf16>
    %cst_566 = arith.constant dense<0.000000e+00> : vector<16x128xf32>
    %574 = tpu.matmul %570, %573, %cst_566 {dimension_numbers = #tpu.dot_dimension_numbers<[1], [0], [0], [1], [0, 0, 1, 1], [], []>} : vector<16x256xbf16>, vector<256x128xbf16>, vector<16x128xf32> -> vector<16x128xf32>
    %575 = arith.addf %564, %574 : vector<16x128xf32>
    %c0_567 = arith.constant 0 : index
    %c6_568 = arith.constant 6 : index
    %c0_569 = arith.constant 0 : index
    %576 = vector.load %arg10[%c0_567, %c6_568, %c0_569] : memref<2x24x128xf32, #tpu.memory_space<vmem>>, vector<2x8x128xf32>
    %577 = arith.truncf %576 : vector<2x8x128xf32> to vector<2x8x128xbf16>
    %c0_570 = arith.constant 0 : index
    %c7_571 = arith.constant 7 : index
    %c0_572 = arith.constant 0 : index
    %578 = vector.load %arg10[%c0_570, %c7_571, %c0_572] : memref<2x24x128xf32, #tpu.memory_space<vmem>>, vector<2x8x128xf32>
    %579 = arith.truncf %578 : vector<2x8x128xf32> to vector<2x8x128xbf16>
    %580 = tpu.concatenate %577, %579 in 2 : vector<2x8x128xbf16>, vector<2x8x128xbf16> -> vector<2x8x256xbf16>
    %581 = vector.shape_cast %580 : vector<2x8x256xbf16> to vector<16x256xbf16>
    %c9_573 = arith.constant 9 : index
    %c2_574 = arith.constant 2 : index
    %c0_575 = arith.constant 0 : index
    %c0_576 = arith.constant 0 : index
    %582 = vector.load %arg11[%c9_573, %c2_574, %c0_575, %c0_576] : memref<11x9x128x128xbf16, #tpu.memory_space<vmem>>, vector<1x2x128x128xbf16>
    %583 = vector.shape_cast %582 : vector<1x2x128x128xbf16> to vector<2x128x128xbf16>
    %584 = vector.shape_cast %583 : vector<2x128x128xbf16> to vector<256x128xbf16>
    %cst_577 = arith.constant dense<0.000000e+00> : vector<16x128xf32>
    %585 = tpu.matmul %581, %584, %cst_577 {dimension_numbers = #tpu.dot_dimension_numbers<[1], [0], [0], [1], [0, 0, 1, 1], [], []>} : vector<16x256xbf16>, vector<256x128xbf16>, vector<16x128xf32> -> vector<16x128xf32>
    %586 = arith.addf %575, %585 : vector<16x128xf32>
    %c0_578 = arith.constant 0 : index
    %c8_579 = arith.constant 8 : index
    %c0_580 = arith.constant 0 : index
    %587 = vector.load %arg10[%c0_578, %c8_579, %c0_580] : memref<2x24x128xf32, #tpu.memory_space<vmem>>, vector<2x8x128xf32>
    %588 = arith.truncf %587 : vector<2x8x128xf32> to vector<2x8x128xbf16>
    %c0_581 = arith.constant 0 : index
    %c9_582 = arith.constant 9 : index
    %c0_583 = arith.constant 0 : index
    %589 = vector.load %arg10[%c0_581, %c9_582, %c0_583] : memref<2x24x128xf32, #tpu.memory_space<vmem>>, vector<2x8x128xf32>
    %590 = arith.truncf %589 : vector<2x8x128xf32> to vector<2x8x128xbf16>
    %591 = tpu.concatenate %588, %590 in 2 : vector<2x8x128xbf16>, vector<2x8x128xbf16> -> vector<2x8x256xbf16>
    %592 = vector.shape_cast %591 : vector<2x8x256xbf16> to vector<16x256xbf16>
    %c9_584 = arith.constant 9 : index
    %c4_585 = arith.constant 4 : index
    %c0_586 = arith.constant 0 : index
    %c0_587 = arith.constant 0 : index
    %593 = vector.load %arg11[%c9_584, %c4_585, %c0_586, %c0_587] : memref<11x9x128x128xbf16, #tpu.memory_space<vmem>>, vector<1x2x128x128xbf16>
    %594 = vector.shape_cast %593 : vector<1x2x128x128xbf16> to vector<2x128x128xbf16>
    %595 = vector.shape_cast %594 : vector<2x128x128xbf16> to vector<256x128xbf16>
    %cst_588 = arith.constant dense<0.000000e+00> : vector<16x128xf32>
    %596 = tpu.matmul %592, %595, %cst_588 {dimension_numbers = #tpu.dot_dimension_numbers<[1], [0], [0], [1], [0, 0, 1, 1], [], []>} : vector<16x256xbf16>, vector<256x128xbf16>, vector<16x128xf32> -> vector<16x128xf32>
    %597 = arith.addf %586, %596 : vector<16x128xf32>
    %c0_589 = arith.constant 0 : index
    %c10_590 = arith.constant 10 : index
    %c0_591 = arith.constant 0 : index
    %598 = vector.load %arg10[%c0_589, %c10_590, %c0_591] : memref<2x24x128xf32, #tpu.memory_space<vmem>>, vector<2x8x128xf32>
    %599 = arith.truncf %598 : vector<2x8x128xf32> to vector<2x8x128xbf16>
    %c0_592 = arith.constant 0 : index
    %c11_593 = arith.constant 11 : index
    %c0_594 = arith.constant 0 : index
    %600 = vector.load %arg10[%c0_592, %c11_593, %c0_594] : memref<2x24x128xf32, #tpu.memory_space<vmem>>, vector<2x8x128xf32>
    %601 = arith.truncf %600 : vector<2x8x128xf32> to vector<2x8x128xbf16>
    %602 = tpu.concatenate %599, %601 in 2 : vector<2x8x128xbf16>, vector<2x8x128xbf16> -> vector<2x8x256xbf16>
    %603 = vector.shape_cast %602 : vector<2x8x256xbf16> to vector<16x256xbf16>
    %c9_595 = arith.constant 9 : index
    %c6_596 = arith.constant 6 : index
    %c0_597 = arith.constant 0 : index
    %c0_598 = arith.constant 0 : index
    %604 = vector.load %arg11[%c9_595, %c6_596, %c0_597, %c0_598] : memref<11x9x128x128xbf16, #tpu.memory_space<vmem>>, vector<1x2x128x128xbf16>
    %605 = vector.shape_cast %604 : vector<1x2x128x128xbf16> to vector<2x128x128xbf16>
    %606 = vector.shape_cast %605 : vector<2x128x128xbf16> to vector<256x128xbf16>
    %cst_599 = arith.constant dense<0.000000e+00> : vector<16x128xf32>
    %607 = tpu.matmul %603, %606, %cst_599 {dimension_numbers = #tpu.dot_dimension_numbers<[1], [0], [0], [1], [0, 0, 1, 1], [], []>} : vector<16x256xbf16>, vector<256x128xbf16>, vector<16x128xf32> -> vector<16x128xf32>
    %608 = arith.addf %597, %607 : vector<16x128xf32>
    %c0_600 = arith.constant 0 : index
    %c12_601 = arith.constant 12 : index
    %c0_602 = arith.constant 0 : index
    %609 = vector.load %arg10[%c0_600, %c12_601, %c0_602] : memref<2x24x128xf32, #tpu.memory_space<vmem>>, vector<2x8x128xf32>
    %610 = vector.shape_cast %609 : vector<2x8x128xf32> to vector<16x128xf32>
    %611 = arith.truncf %610 : vector<16x128xf32> to vector<16x128xbf16>
    %c9_603 = arith.constant 9 : index
    %c8_604 = arith.constant 8 : index
    %c0_605 = arith.constant 0 : index
    %c0_606 = arith.constant 0 : index
    %612 = vector.load %arg11[%c9_603, %c8_604, %c0_605, %c0_606] : memref<11x9x128x128xbf16, #tpu.memory_space<vmem>>, vector<1x1x128x128xbf16>
    %613 = vector.shape_cast %612 : vector<1x1x128x128xbf16> to vector<128x128xbf16>
    %cst_607 = arith.constant dense<0.000000e+00> : vector<16x128xf32>
    %614 = tpu.matmul %611, %613, %cst_607 {dimension_numbers = #tpu.dot_dimension_numbers<[1], [0], [0], [1], [0, 0, 1, 1], [], []>} : vector<16x128xbf16>, vector<128x128xbf16>, vector<16x128xf32> -> vector<16x128xf32>
    %615 = arith.addf %608, %614 : vector<16x128xf32>
    %c9_608 = arith.constant 9 : index
    %c0_609 = arith.constant 0 : index
    %c0_610 = arith.constant 0 : index
    %616 = vector.load %arg5[%c9_608, %c0_609, %c0_610] : memref<11x1x128xf32, #tpu.memory_space<vmem>>, vector<1x1x128xf32>
    %617 = vector.shape_cast %616 : vector<1x1x128xf32> to vector<1x128xf32>
    %618 = vector.broadcast %617 : vector<1x128xf32> to vector<16x128xf32>
    %619 = arith.addf %615, %618 : vector<16x128xf32>
    %cst_611 = arith.constant 2.000000e-01 : f32
    %620 = vector.broadcast %cst_611 : f32 to vector<16x128xf32>
    %621 = arith.mulf %620, %619 : vector<16x128xf32>
    %622 = arith.maximumf %619, %621 : vector<16x128xf32>
    %623 = vector.shape_cast %622 : vector<16x128xf32> to vector<2x8x128xf32>
    %c0_612 = arith.constant 0 : index
    %c8_613 = arith.constant 8 : index
    %c0_614 = arith.constant 0 : index
    %624 = vector.load %arg9[%c0_612, %c8_613, %c0_614] : memref<2x24x128xf32, #tpu.memory_space<vmem>>, vector<2x8x128xf32>
    tpu.vector_store %arg9[%c0_612, %c8_613, %c0_614], %623 {strides = array<i32>} : memref<2x24x128xf32, #tpu.memory_space<vmem>>, vector<2x8x128xf32>,
    %cst_615 = arith.constant 0.000000e+00 : f32
    %625 = vector.broadcast %cst_615 : f32 to vector<16x128xf32>
    %c0_616 = arith.constant 0 : index
    %c4_617 = arith.constant 4 : index
    %c0_618 = arith.constant 0 : index
    %626 = vector.load %arg9[%c0_616, %c4_617, %c0_618] : memref<2x24x128xf32, #tpu.memory_space<vmem>>, vector<2x8x128xf32>
    %627 = arith.truncf %626 : vector<2x8x128xf32> to vector<2x8x128xbf16>
    %c0_619 = arith.constant 0 : index
    %c5_620 = arith.constant 5 : index
    %c0_621 = arith.constant 0 : index
    %628 = vector.load %arg9[%c0_619, %c5_620, %c0_621] : memref<2x24x128xf32, #tpu.memory_space<vmem>>, vector<2x8x128xf32>
    %629 = arith.truncf %628 : vector<2x8x128xf32> to vector<2x8x128xbf16>
    %630 = tpu.concatenate %627, %629 in 2 : vector<2x8x128xbf16>, vector<2x8x128xbf16> -> vector<2x8x256xbf16>
    %631 = vector.shape_cast %630 : vector<2x8x256xbf16> to vector<16x256xbf16>
    %c10_622 = arith.constant 10 : index
    %c0_623 = arith.constant 0 : index
    %c0_624 = arith.constant 0 : index
    %c0_625 = arith.constant 0 : index
    %632 = vector.load %arg11[%c10_622, %c0_623, %c0_624, %c0_625] : memref<11x9x128x128xbf16, #tpu.memory_space<vmem>>, vector<1x2x128x128xbf16>
    %633 = vector.shape_cast %632 : vector<1x2x128x128xbf16> to vector<2x128x128xbf16>
    %634 = vector.shape_cast %633 : vector<2x128x128xbf16> to vector<256x128xbf16>
    %cst_626 = arith.constant dense<0.000000e+00> : vector<16x128xf32>
    %635 = tpu.matmul %631, %634, %cst_626 {dimension_numbers = #tpu.dot_dimension_numbers<[1], [0], [0], [1], [0, 0, 1, 1], [], []>} : vector<16x256xbf16>, vector<256x128xbf16>, vector<16x128xf32> -> vector<16x128xf32>
    %636 = arith.addf %625, %635 : vector<16x128xf32>
    %c0_627 = arith.constant 0 : index
    %c6_628 = arith.constant 6 : index
    %c0_629 = arith.constant 0 : index
    %637 = vector.load %arg9[%c0_627, %c6_628, %c0_629] : memref<2x24x128xf32, #tpu.memory_space<vmem>>, vector<2x8x128xf32>
    %638 = arith.truncf %637 : vector<2x8x128xf32> to vector<2x8x128xbf16>
    %c0_630 = arith.constant 0 : index
    %c7_631 = arith.constant 7 : index
    %c0_632 = arith.constant 0 : index
    %639 = vector.load %arg9[%c0_630, %c7_631, %c0_632] : memref<2x24x128xf32, #tpu.memory_space<vmem>>, vector<2x8x128xf32>
    %640 = arith.truncf %639 : vector<2x8x128xf32> to vector<2x8x128xbf16>
    %641 = tpu.concatenate %638, %640 in 2 : vector<2x8x128xbf16>, vector<2x8x128xbf16> -> vector<2x8x256xbf16>
    %642 = vector.shape_cast %641 : vector<2x8x256xbf16> to vector<16x256xbf16>
    %c10_633 = arith.constant 10 : index
    %c2_634 = arith.constant 2 : index
    %c0_635 = arith.constant 0 : index
    %c0_636 = arith.constant 0 : index
    %643 = vector.load %arg11[%c10_633, %c2_634, %c0_635, %c0_636] : memref<11x9x128x128xbf16, #tpu.memory_space<vmem>>, vector<1x2x128x128xbf16>
    %644 = vector.shape_cast %643 : vector<1x2x128x128xbf16> to vector<2x128x128xbf16>
    %645 = vector.shape_cast %644 : vector<2x128x128xbf16> to vector<256x128xbf16>
    %cst_637 = arith.constant dense<0.000000e+00> : vector<16x128xf32>
    %646 = tpu.matmul %642, %645, %cst_637 {dimension_numbers = #tpu.dot_dimension_numbers<[1], [0], [0], [1], [0, 0, 1, 1], [], []>} : vector<16x256xbf16>, vector<256x128xbf16>, vector<16x128xf32> -> vector<16x128xf32>
    %647 = arith.addf %636, %646 : vector<16x128xf32>
    %c0_638 = arith.constant 0 : index
    %c8_639 = arith.constant 8 : index
    %c0_640 = arith.constant 0 : index
    %648 = vector.load %arg9[%c0_638, %c8_639, %c0_640] : memref<2x24x128xf32, #tpu.memory_space<vmem>>, vector<2x8x128xf32>
    %649 = arith.truncf %648 : vector<2x8x128xf32> to vector<2x8x128xbf16>
    %c0_641 = arith.constant 0 : index
    %c9_642 = arith.constant 9 : index
    %c0_643 = arith.constant 0 : index
    %650 = vector.load %arg9[%c0_641, %c9_642, %c0_643] : memref<2x24x128xf32, #tpu.memory_space<vmem>>, vector<2x8x128xf32>
    %651 = arith.truncf %650 : vector<2x8x128xf32> to vector<2x8x128xbf16>
    %652 = tpu.concatenate %649, %651 in 2 : vector<2x8x128xbf16>, vector<2x8x128xbf16> -> vector<2x8x256xbf16>
    %653 = vector.shape_cast %652 : vector<2x8x256xbf16> to vector<16x256xbf16>
    %c10_644 = arith.constant 10 : index
    %c4_645 = arith.constant 4 : index
    %c0_646 = arith.constant 0 : index
    %c0_647 = arith.constant 0 : index
    %654 = vector.load %arg11[%c10_644, %c4_645, %c0_646, %c0_647] : memref<11x9x128x128xbf16, #tpu.memory_space<vmem>>, vector<1x2x128x128xbf16>
    %655 = vector.shape_cast %654 : vector<1x2x128x128xbf16> to vector<2x128x128xbf16>
    %656 = vector.shape_cast %655 : vector<2x128x128xbf16> to vector<256x128xbf16>
    %cst_648 = arith.constant dense<0.000000e+00> : vector<16x128xf32>
    %657 = tpu.matmul %653, %656, %cst_648 {dimension_numbers = #tpu.dot_dimension_numbers<[1], [0], [0], [1], [0, 0, 1, 1], [], []>} : vector<16x256xbf16>, vector<256x128xbf16>, vector<16x128xf32> -> vector<16x128xf32>
    %658 = arith.addf %647, %657 : vector<16x128xf32>
    %c0_649 = arith.constant 0 : index
    %c10_650 = arith.constant 10 : index
    %c0_651 = arith.constant 0 : index
    %659 = vector.load %arg9[%c0_649, %c10_650, %c0_651] : memref<2x24x128xf32, #tpu.memory_space<vmem>>, vector<2x8x128xf32>
    %660 = arith.truncf %659 : vector<2x8x128xf32> to vector<2x8x128xbf16>
    %c0_652 = arith.constant 0 : index
    %c11_653 = arith.constant 11 : index
    %c0_654 = arith.constant 0 : index
    %661 = vector.load %arg9[%c0_652, %c11_653, %c0_654] : memref<2x24x128xf32, #tpu.memory_space<vmem>>, vector<2x8x128xf32>
    %662 = arith.truncf %661 : vector<2x8x128xf32> to vector<2x8x128xbf16>
    %663 = tpu.concatenate %660, %662 in 2 : vector<2x8x128xbf16>, vector<2x8x128xbf16> -> vector<2x8x256xbf16>
    %664 = vector.shape_cast %663 : vector<2x8x256xbf16> to vector<16x256xbf16>
    %c10_655 = arith.constant 10 : index
    %c6_656 = arith.constant 6 : index
    %c0_657 = arith.constant 0 : index
    %c0_658 = arith.constant 0 : index
    %665 = vector.load %arg11[%c10_655, %c6_656, %c0_657, %c0_658] : memref<11x9x128x128xbf16, #tpu.memory_space<vmem>>, vector<1x2x128x128xbf16>
    %666 = vector.shape_cast %665 : vector<1x2x128x128xbf16> to vector<2x128x128xbf16>
    %667 = vector.shape_cast %666 : vector<2x128x128xbf16> to vector<256x128xbf16>
    %cst_659 = arith.constant dense<0.000000e+00> : vector<16x128xf32>
    %668 = tpu.matmul %664, %667, %cst_659 {dimension_numbers = #tpu.dot_dimension_numbers<[1], [0], [0], [1], [0, 0, 1, 1], [], []>} : vector<16x256xbf16>, vector<256x128xbf16>, vector<16x128xf32> -> vector<16x128xf32>
    %669 = arith.addf %658, %668 : vector<16x128xf32>
    %c0_660 = arith.constant 0 : index
    %c12_661 = arith.constant 12 : index
    %c0_662 = arith.constant 0 : index
    %670 = vector.load %arg9[%c0_660, %c12_661, %c0_662] : memref<2x24x128xf32, #tpu.memory_space<vmem>>, vector<2x8x128xf32>
    %671 = vector.shape_cast %670 : vector<2x8x128xf32> to vector<16x128xf32>
    %672 = arith.truncf %671 : vector<16x128xf32> to vector<16x128xbf16>
    %c10_663 = arith.constant 10 : index
    %c8_664 = arith.constant 8 : index
    %c0_665 = arith.constant 0 : index
    %c0_666 = arith.constant 0 : index
    %673 = vector.load %arg11[%c10_663, %c8_664, %c0_665, %c0_666] : memref<11x9x128x128xbf16, #tpu.memory_space<vmem>>, vector<1x1x128x128xbf16>
    %674 = vector.shape_cast %673 : vector<1x1x128x128xbf16> to vector<128x128xbf16>
    %cst_667 = arith.constant dense<0.000000e+00> : vector<16x128xf32>
    %675 = tpu.matmul %672, %674, %cst_667 {dimension_numbers = #tpu.dot_dimension_numbers<[1], [0], [0], [1], [0, 0, 1, 1], [], []>} : vector<16x128xbf16>, vector<128x128xbf16>, vector<16x128xf32> -> vector<16x128xf32>
    %676 = arith.addf %669, %675 : vector<16x128xf32>
    %c10_668 = arith.constant 10 : index
    %c0_669 = arith.constant 0 : index
    %c0_670 = arith.constant 0 : index
    %677 = vector.load %arg5[%c10_668, %c0_669, %c0_670] : memref<11x1x128xf32, #tpu.memory_space<vmem>>, vector<1x1x128xf32>
    %678 = vector.shape_cast %677 : vector<1x1x128xf32> to vector<1x128xf32>
    %679 = vector.broadcast %678 : vector<1x128xf32> to vector<16x128xf32>
    %680 = arith.addf %676, %679 : vector<16x128xf32>
    %c0_671 = arith.constant 0 : index
    %c8_672 = arith.constant 8 : index
    %c0_673 = arith.constant 0 : index
    %681 = vector.load %arg10[%c0_671, %c8_672, %c0_673] : memref<2x24x128xf32, #tpu.memory_space<vmem>>, vector<2x8x128xf32>
    %682 = vector.shape_cast %681 : vector<2x8x128xf32> to vector<16x128xf32>
    %683 = arith.addf %680, %682 : vector<16x128xf32>
    %cst_674 = arith.constant 2.000000e-01 : f32
    %684 = vector.broadcast %cst_674 : f32 to vector<16x128xf32>
    %685 = arith.mulf %684, %683 : vector<16x128xf32>
    %686 = arith.maximumf %683, %685 : vector<16x128xf32>
    %687 = vector.shape_cast %686 : vector<16x128xf32> to vector<2x8x128xf32>
    %c0_675 = arith.constant 0 : index
    %c8_676 = arith.constant 8 : index
    %c0_677 = arith.constant 0 : index
    %688 = vector.load %arg10[%c0_675, %c8_676, %c0_677] : memref<2x24x128xf32, #tpu.memory_space<vmem>>, vector<2x8x128xf32>
    tpu.vector_store %arg10[%c0_675, %c8_676, %c0_677], %687 {strides = array<i32>} : memref<2x24x128xf32, #tpu.memory_space<vmem>>, vector<2x8x128xf32>,
    %c0_678 = arith.constant 0 : index
    %c8_679 = arith.constant 8 : index
    %c0_680 = arith.constant 0 : index
    %689 = vector.load %arg10[%c0_678, %c8_679, %c0_680] : memref<2x24x128xf32, #tpu.memory_space<vmem>>, vector<2x8x128xf32>
    %c0_681 = arith.constant 0 : index
    %c0_682 = arith.constant 0 : index
    %690 = vector.load %arg6[%c0_681, %c0_682] : memref<8x128xf32, #tpu.memory_space<vmem>>, vector<8x128xf32>
    %691 = vector.shape_cast %690 : vector<8x128xf32> to vector<1x8x128xf32>
    %692 = vector.broadcast %691 : vector<1x8x128xf32> to vector<2x8x128xf32>
    %693 = arith.mulf %689, %692 : vector<2x8x128xf32>
    %cst_683 = arith.constant dense<0.000000e+00> : vector<2x8xf32>
    %694 = vector.multi_reduction <add>, %693, %cst_683 [2] : vector<2x8x128xf32> to vector<2x8xf32>
    %cst_684 = arith.constant dense<0.000000e+00> : vector<2xf32>
    %695 = vector.multi_reduction <add>, %694, %cst_684 [1] : vector<2x8xf32> to vector<2xf32>
    %696 = vector.shape_cast %695 : vector<2xf32> to vector<2x1xf32>
    %c0_685 = arith.constant 0 : index
    %c0_686 = arith.constant 0 : index
    %697 = vector.load %arg7[%c0_685, %c0_686] : memref<1x1xf32, #tpu.memory_space<vmem>>, vector<1x1xf32>
    %698 = vector.broadcast %697 : vector<1x1xf32> to vector<2x1xf32>
    %699 = arith.addf %696, %698 : vector<2x1xf32>
    %c0_687 = arith.constant 0 : index
    %c0_688 = arith.constant 0 : index
    %700 = vector.load %arg8[%c0_687, %c0_688] : memref<2x1xf32, #tpu.memory_space<vmem>>, vector<2x1xf32>
    tpu.vector_store %arg8[%c0_687, %c0_688], %699 {strides = array<i32>} : memref<2x1xf32, #tpu.memory_space<vmem>>, vector<2x1xf32>,
    return
  }
  func.func @transform_0(%arg0: i32) -> (i32, i32, i32) {
    %c0_i32 = arith.constant 0 : i32
    %c0_i32_0 = arith.constant 0 : i32
    %c0_i32_1 = arith.constant 0 : i32
    return %arg0, %c0_i32, %c0_i32_0 : i32, i32, i32
  }
  func.func @transform_1(%arg0: i32) -> (i32, i32) {
    %c0_i32 = arith.constant 0 : i32
    %c0_i32_0 = arith.constant 0 : i32
    %c0_i32_1 = arith.constant 0 : i32
    return %c0_i32, %c0_i32_0 : i32, i32
  }
  func.func @transform_2(%arg0: i32) -> (i32, i32) {
    %c0_i32 = arith.constant 0 : i32
    %c0_i32_0 = arith.constant 0 : i32
    %c0_i32_1 = arith.constant 0 : i32
    return %c0_i32, %c0_i32_0 : i32, i32
  }
  func.func @transform_4(%arg0: i32) -> (i32, i32, i32) {
    %c0_i32 = arith.constant 0 : i32
    %c0_i32_0 = arith.constant 0 : i32
    %c0_i32_1 = arith.constant 0 : i32
    %c0_i32_2 = arith.constant 0 : i32
    return %c0_i32, %c0_i32_0, %c0_i32_1 : i32, i32, i32
  }
  func.func @transform_5(%arg0: i32) -> (i32, i32) {
    %c0_i32 = arith.constant 0 : i32
    %c0_i32_0 = arith.constant 0 : i32
    %c0_i32_1 = arith.constant 0 : i32
    return %c0_i32, %c0_i32_0 : i32, i32
  }
  func.func @transform_6(%arg0: i32) -> (i32, i32) {
    %c0_i32 = arith.constant 0 : i32
    %c0_i32_0 = arith.constant 0 : i32
    %c0_i32_1 = arith.constant 0 : i32
    return %c0_i32, %c0_i32_0 : i32, i32
  }
  func.func @transform_7(%arg0: i32) -> (i32, i32) {
    %c0_i32 = arith.constant 0 : i32
    %c0_i32_0 = arith.constant 0 : i32
    return %arg0, %c0_i32 : i32, i32
  }
}

</mosaic_0001>

<llo_original>
// kernel: disc_forward.1
$region0: #{disc_forward.1}
  #allocation0 [shape = 'u32[]', space=smem, size = 0x4, offset = 0x4, fixed_abs, tag = 'smem constant byte address 0x4 - core index']
  #allocation1 [shape = 'u32[72,128]{1,0:T(1,128)}', space=vmem, size = 0x9000, scoped, tag = 'internal scratch']
  #allocation2 [shape = 'f32[2,24,128]{2,1,0:T(8,128)}', space=vmem, size = 0x6000, scoped, tag = 'scratch operand']
  #allocation3 [shape = 'f32[2,24,128]{2,1,0:T(8,128)}', space=vmem, size = 0x6000, scoped, tag = 'scratch operand']
  #allocation4 [shape = 'bf16[11,9,128,128]{3,2,1,0:T(8,128)(2,1)}', space=vmem, size = 0x318000, scoped, tag = 'scratch operand']
  #allocation5 [shape = 's32[1]{0}', space=sflag, size = 0x4, scoped, tag = 'scratch operand']
  #allocation6 [shape = 'f32[1,1]{1,0:T(1,128)S(1)}', space=vmem, size = 0x200, scoped, tag = 'scoped memory for disc_forward.1']
  #allocation14 [shape = 's32[]', space=sflag, size = 0x4, offset = 0, fixed_abs, tag = 'sflag constant byte address 0x0 - dummy sync flag']
  #allocation15 [shape = 's32[]', space=sflag, size = 0x4, offset = 0, fixed_abs, tag = 'sflag constant byte address 0x0 - dummy sync flag']
  #allocation16 [shape = 'u32[]', space=smem, size = 0x4, offset = 0x44, fixed_abs, tag = 'smem constant byte address 0x44 - assertion arg 0']
  #allocation17 [shape = 'u32[]', space=smem, size = 0x4, offset = 0x48, fixed_abs, tag = 'smem constant byte address 0x48 - assertion arg 1']
  %s0 = inlined_call_operand.vmem [shape: f32[2,8,128], index: 0, kind: input, shape index: {}]
  %s1 = inlined_call_operand.hbm [shape: bf16[128,128], index: 1, kind: input, shape index: {}]
  %s2 = inlined_call_operand.hbm [shape: f32[1,128], index: 2, kind: input, shape index: {}]
  %s3 = inlined_call_operand.hbm [shape: bf16[11,9,128,128], index: 3, kind: input, shape index: {}]
  %s4 = inlined_call_operand.hbm [shape: f32[11,1,128], index: 4, kind: input, shape index: {}]
  %s5 = inlined_call_operand.hbm [shape: f32[8,128], index: 5, kind: input, shape index: {}]
  %s6 = inlined_call_operand.<no memory space> [shape: f32[1,1], index: 6, kind: input, shape index: {}]
  %s7 = inlined_call_operand.vmem [shape: f32[2,1], index: 7, kind: output, shape index: {}]
  %s8 = sld [smem:[#allocation0]]
  $region54: #{disc_forward.1} parent=0
    _
  %s10 = ssub.s32 1, %s8
  %s11 = scalar_select 0, %s10, %s8
  %v12 = vstv %s6
  %13 = vst [vmem:[#allocation6] sm:$0x1] %v12
  $region1: #{disc_forward.1} parent=0
    #allocation7 [shape = 'u8[32768]{0}', space=vmem, size = 0x8000, scoped, tag = 'input window, operand 1, single buffered']
    #allocation8 [shape = 's32[1]{0}', space=sflag, size = 0x4, scoped, tag = 'scoped memory for disc_forward.1']
    #allocation9 [shape = 'u8[512]{0}', space=vmem, size = 0x400, scoped, tag = 'input window, operand 2, single buffered']
    #allocation10 [shape = 's32[1]{0}', space=sflag, size = 0x4, scoped, tag = 'scoped memory for disc_forward.1']
    #allocation11 [shape = 'u8[5632]{0}', space=vmem, size = 0x1800, scoped, tag = 'input window, operand 4, single buffered']
    #allocation12 [shape = 'u8[4096]{0}', space=vmem, size = 0x1000, scoped, tag = 'input window, operand 5, single buffered']
    #allocation13 [shape = 's32[1]{0}', space=sflag, size = 0x4, scoped, tag = 'scoped memory for disc_forward.1']
    %14 = vsyncpa [#allocation8], 0
    %15 = vsyncpa [#allocation10], 0
    %16 = vsyncpa [#allocation13], 0
    // Predicated region
    $region2: #{disc_forward.1} parent=1 // pred_check
      _
    $region3: #{disc_forward.1} parent=1 // pred_check_branch
      %18 = sbr.rel (0) target = $region5
    $region4: #{disc_forward.1} parent=1 // pred_region
      _
    $region5: #{disc_forward.1} parent=1 // pred_fallthru
      _
    // Predicated region
    $region6: #{disc_forward.1} parent=1 // pred_check
      _
    $region7: #{disc_forward.1} parent=1 // pred_check_branch
      %20 = sbr.rel (0) target = $region9
    $region8: #{disc_forward.1} parent=1 // pred_region
      %22 = vsyncadd [#allocation8], 0
      %s23 = sshll.u32 %s1, 4
      %s24 = int_to_ptr.hbm [resolvable:$true] %s23
      %s25 = sshll.u32 [#allocation7], 4
      %s26 = int_to_ptr.vmem [resolvable:$true] %s25
      %31 = dma.hbm_to_vmem [thread:$0]  %s24, 1024, %s26, [#allocation8], 64, 64, 4
    $region9: #{disc_forward.1} parent=1 // pred_fallthru
      _
    // Predicated region
    $region10: #{disc_forward.1} parent=1 // pred_check
      _
    $region11: #{disc_forward.1} parent=1 // pred_check_branch
      %33 = sbr.rel (0) target = $region13
    $region12: #{disc_forward.1} parent=1 // pred_region
      %35 = vsyncadd [#allocation10], 0
      %s37 = sshll.u32 %s2, 4
      %s38 = int_to_ptr.hbm [resolvable:$true] %s37
      %s39 = sshll.u32 [#allocation9], 4
      %s40 = int_to_ptr.vmem [resolvable:$true] %s39
      %42 = dma.hbm_to_vmem [thread:$0]  %s38, 16, %s40, [#allocation10]
    $region13: #{disc_forward.1} parent=1 // pred_fallthru
      _
    // Predicated region
    $region14: #{disc_forward.1} parent=1 // pred_check
      _
    $region15: #{disc_forward.1} parent=1 // pred_check_branch
      %44 = sbr.rel (0) target = $region17
    $region16: #{disc_forward.1} parent=1 // pred_region
      %46 = vsyncadd [#allocation10], 0
      %s47 = sshll.u32 %s4, 4
      %s48 = int_to_ptr.hbm [resolvable:$true] %s47
      %s49 = sshll.u32 [#allocation11], 4
      %s50 = int_to_ptr.vmem [resolvable:$true] %s49
      %55 = dma.hbm_to_vmem [thread:$0]  %s48, 176, %s50, [#allocation10], 16, 16, 1
    $region17: #{disc_forward.1} parent=1 // pred_fallthru
      _
    // Predicated region
    $region18: #{disc_forward.1} parent=1 // pred_check
      _
    $region19: #{disc_forward.1} parent=1 // pred_check_branch
      %57 = sbr.rel (0) target = $region21
    $region20: #{disc_forward.1} parent=1 // pred_region
      %59 = vsyncadd [#allocation13], 0
      %s61 = sshll.u32 %s5, 4
      %s62 = int_to_ptr.hbm [resolvable:$true] %s61
      %s63 = sshll.u32 [#allocation12], 4
      %s64 = int_to_ptr.vmem [resolvable:$true] %s63
      %66 = dma.hbm_to_vmem [thread:$0]  %s62, 128, %s64, [#allocation13]
    $region21: #{disc_forward.1} parent=1 // pred_fallthru
      _
    // Predicated region
    $region22: #{disc_forward.1} parent=1 // pred_check
      _
    $region23: #{disc_forward.1} parent=1 // pred_check_branch
      %68 = sbr.rel (0) target = $region25
    $region24: #{disc_forward.1} parent=1 // pred_region
      _
    $region25: #{disc_forward.1} parent=1 // pred_fallthru
      _
    // Predicated region
    $region26: #{disc_forward.1} parent=1 // pred_check
      _
    $region27: #{disc_forward.1} parent=1 // pred_check_branch
      %70 = sbr.rel (0) target = $region29
    $region28: #{disc_forward.1} parent=1 // pred_region
      %72 = dma.done [#allocation8], 1024
    $region29: #{disc_forward.1} parent=1 // pred_fallthru
      _
    // Predicated region
    $region30: #{disc_forward.1} parent=1 // pred_check
      _
    $region31: #{disc_forward.1} parent=1 // pred_check_branch
      %74 = sbr.rel (0) target = $region33
    $region32: #{disc_forward.1} parent=1 // pred_region
      %76 = dma.done [#allocation10], 16
    $region33: #{disc_forward.1} parent=1 // pred_fallthru
      _
    // Predicated region
    $region34: #{disc_forward.1} parent=1 // pred_check
      _
    $region35: #{disc_forward.1} parent=1 // pred_check_branch
      %78 = sbr.rel (0) target = $region37
    $region36: #{disc_forward.1} parent=1 // pred_region
      %80 = dma.done [#allocation10], 176
    $region37: #{disc_forward.1} parent=1 // pred_fallthru
      _
    // Predicated region
    $region38: #{disc_forward.1} parent=1 // pred_check
      _
    $region39: #{disc_forward.1} parent=1 // pred_check_branch
      %82 = sbr.rel (0) target = $region41
    $region40: #{disc_forward.1} parent=1 // pred_region
      %84 = dma.done [#allocation13], 128
    $region41: #{disc_forward.1} parent=1 // pred_fallthru
      _
    // Predicated region
    $region42: #{disc_forward.1} parent=1 // pred_check
      _
    $region43: #{disc_forward.1} parent=1 // pred_check_branch
      %86 = sbr.rel target = $region45
    $region44: #{disc_forward.1} parent=1 // pred_region
      %87 = sst [smem:[#allocation16]] [#allocation15]
      %88 = sst [smem:[#allocation17]] [#allocation14]
    $region45: #{disc_forward.1} parent=1 // pred_fallthru
      _
    %90 = shalt.err (0)
    %s92 = sshll.u32 %s3, 4
    %s93 = int_to_ptr.hbm [resolvable:$true] %s92
    %s94 = sshll.u32 [#allocation4], 4
    %s95 = int_to_ptr.vmem [resolvable:$true] %s94
    %97 = dma.hbm_to_vmem [thread:$0]  %s93, 101376, %s95, [#allocation5]
    %98 = vst [vmem:[#allocation2] sm:$0xff] 0.0
    %99 = vst [vmem:[#allocation2 + $0x18] sm:$0xff] 0.0
    %100 = vst [vmem:[#allocation2 + $0x10] sm:$0xff] 0.0
    %101 = vst [vmem:[#allocation2 + $0x28] sm:$0xff] 0.0
    %102 = vst [vmem:[#allocation3] sm:$0xff] 0.0
    %103 = vst [vmem:[#allocation3 + $0x18] sm:$0xff] 0.0
    %104 = vst [vmem:[#allocation3 + $0x10] sm:$0xff] 0.0
    %105 = vst [vmem:[#allocation3 + $0x28] sm:$0xff] 0.0
    %v106 = vld [vmem:[%s0] sm:$0xff]
    %v107 = vld [vmem:[%s0 + $0x8] sm:$0xff]
    %v108 = vpack.c.bf16 %v107, %v106
    %v109 = vld [vmem:[#allocation7] sm:$0xf]
    %v110 = vld [vmem:[#allocation7 + $0x4] sm:$0xf]
    %v111 = vld [vmem:[#allocation7 + $0x8] sm:$0xf]
    %v112 = vld [vmem:[#allocation7 + $0xc] sm:$0xf]
    %v113 = vld [vmem:[#allocation7 + $0x10] sm:$0xf]
    %v114 = vld [vmem:[#allocation7 + $0x14] sm:$0xf]
    %v115 = vld [vmem:[#allocation7 + $0x18] sm:$0xf]
    %v116 = vld [vmem:[#allocation7 + $0x1c] sm:$0xf]
    %v117 = vld [vmem:[#allocation7 + $0x20] sm:$0xf]
    %v118 = vld [vmem:[#allocation7 + $0x24] sm:$0xf]
    %v119 = vld [vmem:[#allocation7 + $0x28] sm:$0xf]
    %v120 = vld [vmem:[#allocation7 + $0x2c] sm:$0xf]
    %v121 = vld [vmem:[#allocation7 + $0x30] sm:$0xf]
    %v122 = vld [vmem:[#allocation7 + $0x34] sm:$0xf]
    %v123 = vld [vmem:[#allocation7 + $0x38] sm:$0xf]
    %v124 = vld [vmem:[#allocation7 + $0x3c] sm:$0xf]
    %v125 = vld [vmem:[#allocation9] sm:$0x1]
    %v127 = vperm.slane %v125, 0
    %v145 = vunpack.c.l.b16 %v109
    %v146 = vunpack.c.l.b16 %v110
    %v147 = vunpack.c.l.b16 %v111
    %v148 = vunpack.c.l.b16 %v112
    %v149 = vunpack.c.l.b16 %v113
    %v150 = vunpack.c.l.b16 %v114
    %v151 = vunpack.c.l.b16 %v115
    %v152 = vunpack.c.l.b16 %v116
    %v153 = vunpack.c.l.b16 %v117
    %v154 = vunpack.c.l.b16 %v118
    %v155 = vunpack.c.l.b16 %v119
    %v156 = vunpack.c.l.b16 %v120
    %v157 = vunpack.c.l.b16 %v121
    %v158 = vunpack.c.l.b16 %v122
    %v159 = vunpack.c.l.b16 %v123
    %v160 = vunpack.c.l.b16 %v124
    %v161 = vpack.c.b16 %v146, %v145
    %v162 = vpack.c.b16 %v148, %v147
    %v163 = vpack.c.b16 %v150, %v149
    %v164 = vpack.c.b16 %v152, %v151
    %v165 = vpack.c.b16 %v154, %v153
    %v166 = vpack.c.b16 %v156, %v155
    %v167 = vpack.c.b16 %v158, %v157
    %v168 = vpack.c.b16 %v160, %v159
    %177 = vmatpush.bf16.msra.mxu0 %v168
    %178 = vmatpush.bf16.msra.mxu0 %v167
    %179 = vmatpush.bf16.msra.mxu0 %v166
    %180 = vmatpush.bf16.msra.mxu0 %v165
    %181 = vmatpush.bf16.msra.mxu0 %v164
    %182 = vmatpush.bf16.msra.mxu0 %v163
    %183 = vmatpush.bf16.msra.mxu0 %v162
    %184 = vmatpush.bf16.msra.mxu0 %v161
    %185 = vmatmul.bf16.gmra.mxu0 %v108
    %v186 = vpop.f32.mrf.mxu0
    %v187 = vadd.f32 %v127, %v186
    %v188 = vpop.f32.mrf.mxu0
    %v189 = vadd.f32 %v127, %v188
    %190 = vdwg.mxu0
    %191 = vst [vmem:[#allocation2 + $0x8] sm:$0xff] %v187
    %192 = vst [vmem:[#allocation2 + $0x20] sm:$0xff] %v189
    %s193 = smul.u32 4, 11
    %s194 = smul.u32 %s193, 9
    %s195 = smul.u32 %s194, 16
    %s196 = smul.u32 %s195, 1
    %s197 = sshll.u32 %s196, 4
    %198 = dma.done [#allocation5], %s197
    %v199 = vld [vmem:[#allocation2 + $0x4] sm:$0xff]
    %v200 = vld [vmem:[#allocation2 + $0x1c] sm:$0xff]
    %v201 = vpack.c.bf16 %v199, %v199
    %v202 = vpack.c.bf16 %v200, %v200
    %v203 = vld [vmem:[#allocation2 + $0x5] sm:$0xff]
    %v204 = vld [vmem:[#allocation2 + $0x1d] sm:$0xff]
    %v205 = vpack.c.bf16 %v203, %v203
    %v206 = vpack.c.bf16 %v204, %v204
    %v211 = vunpack.c.l.b16 %v201
    %v212 = vunpack.c.l.b16 %v205
    %v213 = vunpack.c.l.b16 %v202
    %v214 = vunpack.c.l.b16 %v206
    %v215 = vld [vmem:[#allocation4] sm:$0xf]
    %v216 = vld [vmem:[#allocation4 + $0x4] sm:$0xf]
    %v217 = vld [vmem:[#allocation4 + $0x8] sm:$0xf]
    %v218 = vld [vmem:[#allocation4 + $0xc] sm:$0xf]
    %v219 = vld [vmem:[#allocation4 + $0x10] sm:$0xf]
    %v220 = vld [vmem:[#allocation4 + $0x14] sm:$0xf]
    %v221 = vld [vmem:[#allocation4 + $0x18] sm:$0xf]
    %v222 = vld [vmem:[#allocation4 + $0x1c] sm:$0xf]
    %v223 = vld [vmem:[#allocation4 + $0x20] sm:$0xf]
    %v224 = vld [vmem:[#allocation4 + $0x24] sm:$0xf]
    %v225 = vld [vmem:[#allocation4 + $0x28] sm:$0xf]
    %v226 = vld [vmem:[#allocation4 + $0x2c] sm:$0xf]
    %v227 = vld [vmem:[#allocation4 + $0x30] sm:$0xf]
    %v228 = vld [vmem:[#allocation4 + $0x34] sm:$0xf]
    %v229 = vld [vmem:[#allocation4 + $0x38] sm:$0xf]
    %v230 = vld [vmem:[#allocation4 + $0x3c] sm:$0xf]
    %v231 = vld [vmem:[#allocation4 + $0x40] sm:$0xf]
    %v232 = vld [vmem:[#allocation4 + $0x44] sm:$0xf]
    %v233 = vld [vmem:[#allocation4 + $0x48] sm:$0xf]
    %v234 = vld [vmem:[#allocation4 + $0x4c] sm:$0xf]
    %v235 = vld [vmem:[#allocation4 + $0x50] sm:$0xf]
    %v236 = vld [vmem:[#allocation4 + $0x54] sm:$0xf]
    %v237 = vld [vmem:[#allocation4 + $0x58] sm:$0xf]
    %v238 = vld [vmem:[#allocation4 + $0x5c] sm:$0xf]
    %v239 = vld [vmem:[#allocation4 + $0x60] sm:$0xf]
    %v240 = vld [vmem:[#allocation4 + $0x64] sm:$0xf]
    %v241 = vld [vmem:[#allocation4 + $0x68] sm:$0xf]
    %v242 = vld [vmem:[#allocation4 + $0x6c] sm:$0xf]
    %v243 = vld [vmem:[#allocation4 + $0x70] sm:$0xf]
    %v244 = vld [vmem:[#allocation4 + $0x74] sm:$0xf]
    %v245 = vld [vmem:[#allocation4 + $0x78] sm:$0xf]
    %v246 = vld [vmem:[#allocation4 + $0x7c] sm:$0xf]
    %v247 = vld [vmem:[#allocation2 + $0x6] sm:$0xff]
    %v248 = vld [vmem:[#allocation2 + $0x1e] sm:$0xff]
    %v249 = vpack.c.bf16 %v247, %v247
    %v250 = vpack.c.bf16 %v248, %v248
    %v251 = vld [vmem:[#allocation2 + $0x7] sm:$0xff]
    %v252 = vld [vmem:[#allocation2 + $0x1f] sm:$0xff]
    %v253 = vpack.c.bf16 %v251, %v251
    %v254 = vpack.c.bf16 %v252, %v252
    %v259 = vunpack.c.l.b16 %v249
    %v260 = vunpack.c.l.b16 %v253
    %v261 = vunpack.c.l.b16 %v250
    %v262 = vunpack.c.l.b16 %v254
    %s263 = scalar_lea.vmem [#allocation4], 128
    %v264 = vld [vmem:[%s263] sm:$0xf]
    %v265 = vld [vmem:[%s263 + $0x4] sm:$0xf]
    %v266 = vld [vmem:[%s263 + $0x8] sm:$0xf]
    %v267 = vld [vmem:[%s263 + $0xc] sm:$0xf]
    %v268 = vld [vmem:[%s263 + $0x10] sm:$0xf]
    %v269 = vld [vmem:[%s263 + $0x14] sm:$0xf]
    %v270 = vld [vmem:[%s263 + $0x18] sm:$0xf]
    %v271 = vld [vmem:[%s263 + $0x1c] sm:$0xf]
    %v272 = vld [vmem:[%s263 + $0x20] sm:$0xf]
    %v273 = vld [vmem:[%s263 + $0x24] sm:$0xf]
    %v274 = vld [vmem:[%s263 + $0x28] sm:$0xf]
    %v275 = vld [vmem:[%s263 + $0x2c] sm:$0xf]
    %v276 = vld [vmem:[%s263 + $0x30] sm:$0xf]
    %v277 = vld [vmem:[%s263 + $0x34] sm:$0xf]
    %v278 = vld [vmem:[%s263 + $0x38] sm:$0xf]
    %v279 = vld [vmem:[%s263 + $0x3c] sm:$0xf]
    %v280 = vld [vmem:[%s263 + $0x40] sm:$0xf]
    %v281 = vld [vmem:[%s263 + $0x44] sm:$0xf]
    %v282 = vld [vmem:[%s263 + $0x48] sm:$0xf]
    %v283 = vld [vmem:[%s263 + $0x4c] sm:$0xf]
    %v284 = vld [vmem:[%s263 + $0x50] sm:$0xf]
    %v285 = vld [vmem:[%s263 + $0x54] sm:$0xf]
    %v286 = vld [vmem:[%s263 + $0x58] sm:$0xf]
    %v287 = vld [vmem:[%s263 + $0x5c] sm:$0xf]
    %v288 = vld [vmem:[%s263 + $0x60] sm:$0xf]
    %v289 = vld [vmem:[%s263 + $0x64] sm:$0xf]
    %v290 = vld [vmem:[%s263 + $0x68] sm:$0xf]
    %v291 = vld [vmem:[%s263 + $0x6c] sm:$0xf]
    %v292 = vld [vmem:[%s263 + $0x70] sm:$0xf]
    %v293 = vld [vmem:[%s263 + $0x74] sm:$0xf]
    %v294 = vld [vmem:[%s263 + $0x78] sm:$0xf]
    %v295 = vld [vmem:[%s263 + $0x7c] sm:$0xf]
    %v296 = vpack.c.b16 %v261, %v259
    %v297 = vpack.c.b16 %v262, %v260
    %v332 = vunpack.c.l.b16 %v264
    %v333 = vunpack.c.l.b16 %v265
    %v334 = vunpack.c.l.b16 %v266
    %v335 = vunpack.c.l.b16 %v267
    %v336 = vunpack.c.l.b16 %v268
    %v337 = vunpack.c.l.b16 %v269
    %v338 = vunpack.c.l.b16 %v270
    %v339 = vunpack.c.l.b16 %v271
    %v340 = vunpack.c.l.b16 %v272
    %v341 = vunpack.c.l.b16 %v273
    %v342 = vunpack.c.l.b16 %v274
    %v343 = vunpack.c.l.b16 %v275
    %v344 = vunpack.c.l.b16 %v276
    %v345 = vunpack.c.l.b16 %v277
    %v346 = vunpack.c.l.b16 %v278
    %v347 = vunpack.c.l.b16 %v279
    %v348 = vunpack.c.l.b16 %v280
    %v349 = vunpack.c.l.b16 %v281
    %v350 = vunpack.c.l.b16 %v282
    %v351 = vunpack.c.l.b16 %v283
    %v352 = vunpack.c.l.b16 %v284
    %v353 = vunpack.c.l.b16 %v285
    %v354 = vunpack.c.l.b16 %v286
    %v355 = vunpack.c.l.b16 %v287
    %v356 = vunpack.c.l.b16 %v288
    %v357 = vunpack.c.l.b16 %v289
    %v358 = vunpack.c.l.b16 %v290
    %v359 = vunpack.c.l.b16 %v291
    %v360 = vunpack.c.l.b16 %v292
    %v361 = vunpack.c.l.b16 %v293
    %v362 = vunpack.c.l.b16 %v294
    %v363 = vunpack.c.l.b16 %v295
    %v364 = vpack.c.b16 %v333, %v332
    %v365 = vpack.c.b16 %v335, %v334
    %v366 = vpack.c.b16 %v337, %v336
    %v367 = vpack.c.b16 %v339, %v338
    %v368 = vpack.c.b16 %v341, %v340
    %v369 = vpack.c.b16 %v343, %v342
    %v370 = vpack.c.b16 %v345, %v344
    %v371 = vpack.c.b16 %v347, %v346
    %v372 = vpack.c.b16 %v349, %v348
    %v373 = vpack.c.b16 %v351, %v350
    %v374 = vpack.c.b16 %v353, %v352
    %v375 = vpack.c.b16 %v355, %v354
    %v376 = vpack.c.b16 %v357, %v356
    %v377 = vpack.c.b16 %v359, %v358
    %v378 = vpack.c.b16 %v361, %v360
    %v379 = vpack.c.b16 %v363, %v362
    %396 = vmatpush.bf16.msra.mxu0 %v371
    %397 = vmatpush.bf16.msra.mxu0 %v370
    %398 = vmatpush.bf16.msra.mxu0 %v369
    %399 = vmatpush.bf16.msra.mxu0 %v368
    %400 = vmatpush.bf16.msra.mxu0 %v367
    %401 = vmatpush.bf16.msra.mxu0 %v366
    %402 = vmatpush.bf16.msra.mxu0 %v365
    %403 = vmatpush.bf16.msra.mxu0 %v364
    %404 = vmatmul.bf16.gmra.mxu0 %v296
    %v405 = vpop.f32.mrf.mxu0
    %v406 = vadd.f32 0.0, %v405
    %v407 = vpop.f32.mrf.mxu0
    %v408 = vadd.f32 0.0, %v407
    %409 = vdwg.mxu0
    %410 = vmatpush.bf16.msra.mxu0 %v379
    %411 = vmatpush.bf16.msra.mxu0 %v378
    %412 = vmatpush.bf16.msra.mxu0 %v377
    %413 = vmatpush.bf16.msra.mxu0 %v376
    %414 = vmatpush.bf16.msra.mxu0 %v375
    %415 = vmatpush.bf16.msra.mxu0 %v374
    %416 = vmatpush.bf16.msra.mxu0 %v373
    %417 = vmatpush.bf16.msra.mxu0 %v372
    %418 = vmatmul.bf16.gmra.mxu0 %v297
    %v419 = vpop.f32.mrf.mxu0
    %v420 = vadd.f32 %v406, %v419
    %v421 = vpop.f32.mrf.mxu0
    %v422 = vadd.f32 %v408, %v421
    %423 = vdwg.mxu0
    %v424 = vpack.c.b16 %v213, %v211
    %v425 = vpack.c.b16 %v214, %v212
    %v460 = vunpack.c.l.b16 %v215
    %v461 = vunpack.c.l.b16 %v216
    %v462 = vunpack.c.l.b16 %v217
    %v463 = vunpack.c.l.b16 %v218
    %v464 = vunpack.c.l.b16 %v219
    %v465 = vunpack.c.l.b16 %v220
    %v466 = vunpack.c.l.b16 %v221
    %v467 = vunpack.c.l.b16 %v222
    %v468 = vunpack.c.l.b16 %v223
    %v469 = vunpack.c.l.b16 %v224
    %v470 = vunpack.c.l.b16 %v225
    %v471 = vunpack.c.l.b16 %v226
    %v472 = vunpack.c.l.b16 %v227
    %v473 = vunpack.c.l.b16 %v228
    %v474 = vunpack.c.l.b16 %v229
    %v475 = vunpack.c.l.b16 %v230
    %v476 = vunpack.c.l.b16 %v231
    %v477 = vunpack.c.l.b16 %v232
    %v478 = vunpack.c.l.b16 %v233
    %v479 = vunpack.c.l.b16 %v234
    %v480 = vunpack.c.l.b16 %v235
    %v481 = vunpack.c.l.b16 %v236
    %v482 = vunpack.c.l.b16 %v237
    %v483 = vunpack.c.l.b16 %v238
    %v484 = vunpack.c.l.b16 %v239
    %v485 = vunpack.c.l.b16 %v240
    %v486 = vunpack.c.l.b16 %v241
    %v487 = vunpack.c.l.b16 %v242
    %v488 = vunpack.c.l.b16 %v243
    %v489 = vunpack.c.l.b16 %v244
    %v490 = vunpack.c.l.b16 %v245
    %v491 = vunpack.c.l.b16 %v246
    %v492 = vpack.c.b16 %v461, %v460
    %v493 = vpack.c.b16 %v463, %v462
    %v494 = vpack.c.b16 %v465, %v464
    %v495 = vpack.c.b16 %v467, %v466
    %v496 = vpack.c.b16 %v469, %v468
    %v497 = vpack.c.b16 %v471, %v470
    %v498 = vpack.c.b16 %v473, %v472
    %v499 = vpack.c.b16 %v475, %v474
    %v500 = vpack.c.b16 %v477, %v476
    %v501 = vpack.c.b16 %v479, %v478
    %v502 = vpack.c.b16 %v481, %v480
    %v503 = vpack.c.b16 %v483, %v482
    %v504 = vpack.c.b16 %v485, %v484
    %v505 = vpack.c.b16 %v487, %v486
    %v506 = vpack.c.b16 %v489, %v488
    %v507 = vpack.c.b16 %v491, %v490
    %524 = vmatpush.bf16.msra.mxu0 %v499
    %525 = vmatpush.bf16.msra.mxu0 %v498
    %526 = vmatpush.bf16.msra.mxu0 %v497
    %527 = vmatpush.bf16.msra.mxu0 %v496
    %528 = vmatpush.bf16.msra.mxu0 %v495
    %529 = vmatpush.bf16.msra.mxu0 %v494
    %530 = vmatpush.bf16.msra.mxu0 %v493
    %531 = vmatpush.bf16.msra.mxu0 %v492
    %532 = vmatmul.bf16.gmra.mxu0 %v424
    %v533 = vpop.f32.mrf.mxu0
    %v534 = vadd.f32 %v420, %v533
    %v535 = vpop.f32.mrf.mxu0
    %v536 = vadd.f32 %v422, %v535
    %537 = vdwg.mxu0
    %538 = vmatpush.bf16.msra.mxu0 %v507
    %539 = vmatpush.bf16.msra.mxu0 %v506
    %540 = vmatpush.bf16.msra.mxu0 %v505
    %541 = vmatpush.bf16.msra.mxu0 %v504
    %542 = vmatpush.bf16.msra.mxu0 %v503
    %543 = vmatpush.bf16.msra.mxu0 %v502
    %544 = vmatpush.bf16.msra.mxu0 %v501
    %545 = vmatpush.bf16.msra.mxu0 %v500
    %546 = vmatmul.bf16.gmra.mxu0 %v425
    %v547 = vpop.f32.mrf.mxu0
    %v548 = vadd.f32 %v534, %v547
    %v549 = vpop.f32.mrf.mxu0
    %v550 = vadd.f32 %v536, %v549
    %551 = vdwg.mxu0
    %v552 = vld [vmem:[#allocation2 + $0x8] sm:$0xff]
    %v553 = vld [vmem:[#allocation2 + $0x20] sm:$0xff]
    %v554 = vpack.c.bf16 %v552, %v552
    %v555 = vpack.c.bf16 %v553, %v553
    %v556 = vld [vmem:[#allocation2 + $0x9] sm:$0xff]
    %v557 = vld [vmem:[#allocation2 + $0x21] sm:$0xff]
    %v558 = vpack.c.bf16 %v556, %v556
    %v559 = vpack.c.bf16 %v557, %v557
    %v564 = vunpack.c.l.b16 %v554
    %v565 = vunpack.c.l.b16 %v558
    %v566 = vunpack.c.l.b16 %v555
    %v567 = vunpack.c.l.b16 %v559
    %s568 = scalar_lea.vmem [#allocation4], 256
    %v569 = vld [vmem:[%s568] sm:$0xf]
    %v570 = vld [vmem:[%s568 + $0x4] sm:$0xf]
    %v571 = vld [vmem:[%s568 + $0x8] sm:$0xf]
    %v572 = vld [vmem:[%s568 + $0xc] sm:$0xf]
    %v573 = vld [vmem:[%s568 + $0x10] sm:$0xf]
    %v574 = vld [vmem:[%s568 + $0x14] sm:$0xf]
    %v575 = vld [vmem:[%s568 + $0x18] sm:$0xf]
    %v576 = vld [vmem:[%s568 + $0x1c] sm:$0xf]
    %v577 = vld [vmem:[%s568 + $0x20] sm:$0xf]
    %v578 = vld [vmem:[%s568 + $0x24] sm:$0xf]
    %v579 = vld [vmem:[%s568 + $0x28] sm:$0xf]
    %v580 = vld [vmem:[%s568 + $0x2c] sm:$0xf]
    %v581 = vld [vmem:[%s568 + $0x30] sm:$0xf]
    %v582 = vld [vmem:[%s568 + $0x34] sm:$0xf]
    %v583 = vld [vmem:[%s568 + $0x38] sm:$0xf]
    %v584 = vld [vmem:[%s568 + $0x3c] sm:$0xf]
    %v585 = vld [vmem:[%s568 + $0x40] sm:$0xf]
    %v586 = vld [vmem:[%s568 + $0x44] sm:$0xf]
    %v587 = vld [vmem:[%s568 + $0x48] sm:$0xf]
    %v588 = vld [vmem:[%s568 + $0x4c] sm:$0xf]
    %v589 = vld [vmem:[%s568 + $0x50] sm:$0xf]
    %v590 = vld [vmem:[%s568 + $0x54] sm:$0xf]
    %v591 = vld [vmem:[%s568 + $0x58] sm:$0xf]
    %v592 = vld [vmem:[%s568 + $0x5c] sm:$0xf]
    %v593 = vld [vmem:[%s568 + $0x60] sm:$0xf]
    %v594 = vld [vmem:[%s568 + $0x64] sm:$0xf]
    %v595 = vld [vmem:[%s568 + $0x68] sm:$0xf]
    %v596 = vld [vmem:[%s568 + $0x6c] sm:$0xf]
    %v597 = vld [vmem:[%s568 + $0x70] sm:$0xf]
    %v598 = vld [vmem:[%s568 + $0x74] sm:$0xf]
    %v599 = vld [vmem:[%s568 + $0x78] sm:$0xf]
    %v600 = vld [vmem:[%s568 + $0x7c] sm:$0xf]
    %v601 = vpack.c.b16 %v566, %v564
    %v602 = vpack.c.b16 %v567, %v565
    %v637 = vunpack.c.l.b16 %v569
    %v638 = vunpack.c.l.b16 %v570
    %v639 = vunpack.c.l.b16 %v571
    %v640 = vunpack.c.l.b16 %v572
    %v641 = vunpack.c.l.b16 %v573
    %v642 = vunpack.c.l.b16 %v574
    %v643 = vunpack.c.l.b16 %v575
    %v644 = vunpack.c.l.b16 %v576
    %v645 = vunpack.c.l.b16 %v577
    %v646 = vunpack.c.l.b16 %v578
    %v647 = vunpack.c.l.b16 %v579
    %v648 = vunpack.c.l.b16 %v580
    %v649 = vunpack.c.l.b16 %v581
    %v650 = vunpack.c.l.b16 %v582
    %v651 = vunpack.c.l.b16 %v583
    %v652 = vunpack.c.l.b16 %v584
    %v653 = vunpack.c.l.b16 %v585
    %v654 = vunpack.c.l.b16 %v586
    %v655 = vunpack.c.l.b16 %v587
    %v656 = vunpack.c.l.b16 %v588
    %v657 = vunpack.c.l.b16 %v589
    %v658 = vunpack.c.l.b16 %v590
    %v659 = vunpack.c.l.b16 %v591
    %v660 = vunpack.c.l.b16 %v592
    %v661 = vunpack.c.l.b16 %v593
    %v662 = vunpack.c.l.b16 %v594
    %v663 = vunpack.c.l.b16 %v595
    %v664 = vunpack.c.l.b16 %v596
    %v665 = vunpack.c.l.b16 %v597
    %v666 = vunpack.c.l.b16 %v598
    %v667 = vunpack.c.l.b16 %v599
    %v668 = vunpack.c.l.b16 %v600
    %v669 = vpack.c.b16 %v638, %v637
    %v670 = vpack.c.b16 %v640, %v639
    %v671 = vpack.c.b16 %v642, %v641
    %v672 = vpack.c.b16 %v644, %v643
    %v673 = vpack.c.b16 %v646, %v645
    %v674 = vpack.c.b16 %v648, %v647
    %v675 = vpack.c.b16 %v650, %v649
    %v676 = vpack.c.b16 %v652, %v651
    %v677 = vpack.c.b16 %v654, %v653
    %v678 = vpack.c.b16 %v656, %v655
    %v679 = vpack.c.b16 %v658, %v657
    %v680 = vpack.c.b16 %v660, %v659
    %v681 = vpack.c.b16 %v662, %v661
    %v682 = vpack.c.b16 %v664, %v663
    %v683 = vpack.c.b16 %v666, %v665
    %v684 = vpack.c.b16 %v668, %v667
    %701 = vmatpush.bf16.msra.mxu0 %v676
    %702 = vmatpush.bf16.msra.mxu0 %v675
    %703 = vmatpush.bf16.msra.mxu0 %v674
    %704 = vmatpush.bf16.msra.mxu0 %v673
    %705 = vmatpush.bf16.msra.mxu0 %v672
    %706 = vmatpush.bf16.msra.mxu0 %v671
    %707 = vmatpush.bf16.msra.mxu0 %v670
    %708 = vmatpush.bf16.msra.mxu0 %v669
    %709 = vmatmul.bf16.gmra.mxu0 %v601
    %v710 = vpop.f32.mrf.mxu0
    %v711 = vadd.f32 0.0, %v710
    %v712 = vpop.f32.mrf.mxu0
    %v713 = vadd.f32 0.0, %v712
    %714 = vdwg.mxu0
    %715 = vmatpush.bf16.msra.mxu0 %v684
    %716 = vmatpush.bf16.msra.mxu0 %v683
    %717 = vmatpush.bf16.msra.mxu0 %v682
    %718 = vmatpush.bf16.msra.mxu0 %v681
    %719 = vmatpush.bf16.msra.mxu0 %v680
    %720 = vmatpush.bf16.msra.mxu0 %v679
    %721 = vmatpush.bf16.msra.mxu0 %v678
    %722 = vmatpush.bf16.msra.mxu0 %v677
    %723 = vmatmul.bf16.gmra.mxu0 %v602
    %v724 = vpop.f32.mrf.mxu0
    %v725 = vadd.f32 %v711, %v724
    %v726 = vpop.f32.mrf.mxu0
    %v727 = vadd.f32 %v713, %v726
    %728 = vdwg.mxu0
    %v729 = vadd.f32 %v548, %v725
    %v730 = vadd.f32 %v550, %v727
    %v731 = vld [vmem:[#allocation2 + $0xa] sm:$0xff]
    %v732 = vld [vmem:[#allocation2 + $0x22] sm:$0xff]
    %v733 = vpack.c.bf16 %v731, %v731
    %v734 = vpack.c.bf16 %v732, %v732
    %v735 = vld [vmem:[#allocation2 + $0xb] sm:$0xff]
    %v736 = vld [vmem:[#allocation2 + $0x23] sm:$0xff]
    %v737 = vpack.c.bf16 %v735, %v735
    %v738 = vpack.c.bf16 %v736, %v736
    %v743 = vunpack.c.l.b16 %v733
    %v744 = vunpack.c.l.b16 %v737
    %v745 = vunpack.c.l.b16 %v734
    %v746 = vunpack.c.l.b16 %v738
    %s747 = scalar_lea.vmem [#allocation4], 384
    %v748 = vld [vmem:[%s747] sm:$0xf]
    %v749 = vld [vmem:[%s747 + $0x4] sm:$0xf]
    %v750 = vld [vmem:[%s747 + $0x8] sm:$0xf]
    %v751 = vld [vmem:[%s747 + $0xc] sm:$0xf]
    %v752 = vld [vmem:[%s747 + $0x10] sm:$0xf]
    %v753 = vld [vmem:[%s747 + $0x14] sm:$0xf]
    %v754 = vld [vmem:[%s747 + $0x18] sm:$0xf]
    %v755 = vld [vmem:[%s747 + $0x1c] sm:$0xf]
    %v756 = vld [vmem:[%s747 + $0x20] sm:$0xf]
    %v757 = vld [vmem:[%s747 + $0x24] sm:$0xf]
    %v758 = vld [vmem:[%s747 + $0x28] sm:$0xf]
    %v759 = vld [vmem:[%s747 + $0x2c] sm:$0xf]
    %v760 = vld [vmem:[%s747 + $0x30] sm:$0xf]
    %v761 = vld [vmem:[%s747 + $0x34] sm:$0xf]
    %v762 = vld [vmem:[%s747 + $0x38] sm:$0xf]
    %v763 = vld [vmem:[%s747 + $0x3c] sm:$0xf]
    %v764 = vld [vmem:[%s747 + $0x40] sm:$0xf]
    %v765 = vld [vmem:[%s747 + $0x44] sm:$0xf]
    %v766 = vld [vmem:[%s747 + $0x48] sm:$0xf]
    %v767 = vld [vmem:[%s747 + $0x4c] sm:$0xf]
    %v768 = vld [vmem:[%s747 + $0x50] sm:$0xf]
    %v769 = vld [vmem:[%s747 + $0x54] sm:$0xf]
    %v770 = vld [vmem:[%s747 + $0x58] sm:$0xf]
    %v771 = vld [vmem:[%s747 + $0x5c] sm:$0xf]
    %v772 = vld [vmem:[%s747 + $0x60] sm:$0xf]
    %v773 = vld [vmem:[%s747 + $0x64] sm:$0xf]
    %v774 = vld [vmem:[%s747 + $0x68] sm:$0xf]
    %v775 = vld [vmem:[%s747 + $0x6c] sm:$0xf]
    %v776 = vld [vmem:[%s747 + $0x70] sm:$0xf]
    %v777 = vld [vmem:[%s747 + $0x74] sm:$0xf]
    %v778 = vld [vmem:[%s747 + $0x78] sm:$0xf]
    %v779 = vld [vmem:[%s747 + $0x7c] sm:$0xf]
    %v780 = vpack.c.b16 %v745, %v743
    %v781 = vpack.c.b16 %v746, %v744
    %v816 = vunpack.c.l.b16 %v748
    %v817 = vunpack.c.l.b16 %v749
    %v818 = vunpack.c.l.b16 %v750
    %v819 = vunpack.c.l.b16 %v751
    %v820 = vunpack.c.l.b16 %v752
    %v821 = vunpack.c.l.b16 %v753
    %v822 = vunpack.c.l.b16 %v754
    %v823 = vunpack.c.l.b16 %v755
    %v824 = vunpack.c.l.b16 %v756
    %v825 = vunpack.c.l.b16 %v757
    %v826 = vunpack.c.l.b16 %v758
    %v827 = vunpack.c.l.b16 %v759
    %v828 = vunpack.c.l.b16 %v760
    %v829 = vunpack.c.l.b16 %v761
    %v830 = vunpack.c.l.b16 %v762
    %v831 = vunpack.c.l.b16 %v763
    %v832 = vunpack.c.l.b16 %v764
    %v833 = vunpack.c.l.b16 %v765
    %v834 = vunpack.c.l.b16 %v766
    %v835 = vunpack.c.l.b16 %v767
    %v836 = vunpack.c.l.b16 %v768
    %v837 = vunpack.c.l.b16 %v769
    %v838 = vunpack.c.l.b16 %v770
    %v839 = vunpack.c.l.b16 %v771
    %v840 = vunpack.c.l.b16 %v772
    %v841 = vunpack.c.l.b16 %v773
    %v842 = vunpack.c.l.b16 %v774
    %v843 = vunpack.c.l.b16 %v775
    %v844 = vunpack.c.l.b16 %v776
    %v845 = vunpack.c.l.b16 %v777
    %v846 = vunpack.c.l.b16 %v778
    %v847 = vunpack.c.l.b16 %v779
    %v848 = vpack.c.b16 %v817, %v816
    %v849 = vpack.c.b16 %v819, %v818
    %v850 = vpack.c.b16 %v821, %v820
    %v851 = vpack.c.b16 %v823, %v822
    %v852 = vpack.c.b16 %v825, %v824
    %v853 = vpack.c.b16 %v827, %v826
    %v854 = vpack.c.b16 %v829, %v828
    %v855 = vpack.c.b16 %v831, %v830
    %v856 = vpack.c.b16 %v833, %v832
    %v857 = vpack.c.b16 %v835, %v834
    %v858 = vpack.c.b16 %v837, %v836
    %v859 = vpack.c.b16 %v839, %v838
    %v860 = vpack.c.b16 %v841, %v840
    %v861 = vpack.c.b16 %v843, %v842
    %v862 = vpack.c.b16 %v845, %v844
    %v863 = vpack.c.b16 %v847, %v846
    %880 = vmatpush.bf16.msra.mxu0 %v855
    %881 = vmatpush.bf16.msra.mxu0 %v854
    %882 = vmatpush.bf16.msra.mxu0 %v853
    %883 = vmatpush.bf16.msra.mxu0 %v852
    %884 = vmatpush.bf16.msra.mxu0 %v851
    %885 = vmatpush.bf16.msra.mxu0 %v850
    %886 = vmatpush.bf16.msra.mxu0 %v849
    %887 = vmatpush.bf16.msra.mxu0 %v848
    %888 = vmatmul.bf16.gmra.mxu0 %v780
    %v889 = vpop.f32.mrf.mxu0
    %v890 = vadd.f32 0.0, %v889
    %v891 = vpop.f32.mrf.mxu0
    %v892 = vadd.f32 0.0, %v891
    %893 = vdwg.mxu0
    %894 = vmatpush.bf16.msra.mxu0 %v863
    %895 = vmatpush.bf16.msra.mxu0 %v862
    %896 = vmatpush.bf16.msra.mxu0 %v861
    %897 = vmatpush.bf16.msra.mxu0 %v860
    %898 = vmatpush.bf16.msra.mxu0 %v859
    %899 = vmatpush.bf16.msra.mxu0 %v858
    %900 = vmatpush.bf16.msra.mxu0 %v857
    %901 = vmatpush.bf16.msra.mxu0 %v856
    %902 = vmatmul.bf16.gmra.mxu0 %v781
    %v903 = vpop.f32.mrf.mxu0
    %v904 = vadd.f32 %v890, %v903
    %v905 = vpop.f32.mrf.mxu0
    %v906 = vadd.f32 %v892, %v905
    %907 = vdwg.mxu0
    %v908 = vadd.f32 %v729, %v904
    %v909 = vadd.f32 %v730, %v906
    %v910 = vld [vmem:[#allocation2 + $0xc] sm:$0xff]
    %v911 = vld [vmem:[#allocation2 + $0x24] sm:$0xff]
    %v912 = vpack.c.bf16 %v911, %v910
    %s913 = scalar_lea.vmem [#allocation4], 512
    %v914 = vld [vmem:[%s913] sm:$0xf]
    %v915 = vld [vmem:[%s913 + $0x4] sm:$0xf]
    %v916 = vld [vmem:[%s913 + $0x8] sm:$0xf]
    %v917 = vld [vmem:[%s913 + $0xc] sm:$0xf]
    %v918 = vld [vmem:[%s913 + $0x10] sm:$0xf]
    %v919 = vld [vmem:[%s913 + $0x14] sm:$0xf]
    %v920 = vld [vmem:[%s913 + $0x18] sm:$0xf]
    %v921 = vld [vmem:[%s913 + $0x1c] sm:$0xf]
    %v922 = vld [vmem:[%s913 + $0x20] sm:$0xf]
    %v923 = vld [vmem:[%s913 + $0x24] sm:$0xf]
    %v924 = vld [vmem:[%s913 + $0x28] sm:$0xf]
    %v925 = vld [vmem:[%s913 + $0x2c] sm:$0xf]
    %v926 = vld [vmem:[%s913 + $0x30] sm:$0xf]
    %v927 = vld [vmem:[%s913 + $0x34] sm:$0xf]
    %v928 = vld [vmem:[%s913 + $0x38] sm:$0xf]
    %v929 = vld [vmem:[%s913 + $0x3c] sm:$0xf]
    %v946 = vunpack.c.l.b16 %v914
    %v947 = vunpack.c.l.b16 %v915
    %v948 = vunpack.c.l.b16 %v916
    %v949 = vunpack.c.l.b16 %v917
    %v950 = vunpack.c.l.b16 %v918
    %v951 = vunpack.c.l.b16 %v919
    %v952 = vunpack.c.l.b16 %v920
    %v953 = vunpack.c.l.b16 %v921
    %v954 = vunpack.c.l.b16 %v922
    %v955 = vunpack.c.l.b16 %v923
    %v956 = vunpack.c.l.b16 %v924
    %v957 = vunpack.c.l.b16 %v925
    %v958 = vunpack.c.l.b16 %v926
    %v959 = vunpack.c.l.b16 %v927
    %v960 = vunpack.c.l.b16 %v928
    %v961 = vunpack.c.l.b16 %v929
    %v962 = vpack.c.b16 %v947, %v946
    %v963 = vpack.c.b16 %v949, %v948
    %v964 = vpack.c.b16 %v951, %v950
    %v965 = vpack.c.b16 %v953, %v952
    %v966 = vpack.c.b16 %v955, %v954
    %v967 = vpack.c.b16 %v957, %v956
    %v968 = vpack.c.b16 %v959, %v958
    %v969 = vpack.c.b16 %v961, %v960
    %978 = vmatpush.bf16.msra.mxu0 %v969
    %979 = vmatpush.bf16.msra.mxu0 %v968
    %980 = vmatpush.bf16.msra.mxu0 %v967
    %981 = vmatpush.bf16.msra.mxu0 %v966
    %982 = vmatpush.bf16.msra.mxu0 %v965
    %983 = vmatpush.bf16.msra.mxu0 %v964
    %984 = vmatpush.bf16.msra.mxu0 %v963
    %985 = vmatpush.bf16.msra.mxu0 %v962
    %986 = vmatmul.bf16.gmra.mxu0 %v912
    %v987 = vpop.f32.mrf.mxu0
    %v988 = vadd.f32 0.0, %v987
    %v989 = vpop.f32.mrf.mxu0
    %v990 = vadd.f32 0.0, %v989
    %991 = vdwg.mxu0
    %v992 = vadd.f32 %v908, %v988
    %v993 = vadd.f32 %v909, %v990
    %v994 = vld [vmem:[#allocation11] sm:$0x1]
    %v996 = vperm.slane %v994, 0
    %v998 = vadd.f32 %v992, %v996
    %v999 = vadd.f32 %v993, %v996
    %v1000 = vmul.f32 %v998, 0.2
    %v1001 = vmul.f32 %v999, 0.2
    %v1002 = vmax.f32 %v998, %v1000
    %v1003 = vmax.f32 %v999, %v1001
    %1004 = vst [vmem:[#allocation3 + $0x8] sm:$0xff] %v1002
    %1005 = vst [vmem:[#allocation3 + $0x20] sm:$0xff] %v1003
    %v1006 = vld [vmem:[#allocation3 + $0x4] sm:$0xff]
    %v1007 = vld [vmem:[#allocation3 + $0x1c] sm:$0xff]
    %v1008 = vpack.c.bf16 %v1006, %v1006
    %v1009 = vpack.c.bf16 %v1007, %v1007
    %v1010 = vld [vmem:[#allocation3 + $0x5] sm:$0xff]
    %v1011 = vld [vmem:[#allocation3 + $0x1d] sm:$0xff]
    %v1012 = vpack.c.bf16 %v1010, %v1010
    %v1013 = vpack.c.bf16 %v1011, %v1011
    %v1018 = vunpack.c.l.b16 %v1008
    %v1019 = vunpack.c.l.b16 %v1012
    %v1020 = vunpack.c.l.b16 %v1009
    %v1021 = vunpack.c.l.b16 %v1013
    %s1022 = scalar_lea.vmem [#allocation4], 576
    %v1023 = vld [vmem:[%s1022] sm:$0xf]
    %v1024 = vld [vmem:[%s1022 + $0x4] sm:$0xf]
    %v1025 = vld [vmem:[%s1022 + $0x8] sm:$0xf]
    %v1026 = vld [vmem:[%s1022 + $0xc] sm:$0xf]
    %v1027 = vld [vmem:[%s1022 + $0x10] sm:$0xf]
    %v1028 = vld [vmem:[%s1022 + $0x14] sm:$0xf]
    %v1029 = vld [vmem:[%s1022 + $0x18] sm:$0xf]
    %v1030 = vld [vmem:[%s1022 + $0x1c] sm:$0xf]
    %v1031 = vld [vmem:[%s1022 + $0x20] sm:$0xf]
    %v1032 = vld [vmem:[%s1022 + $0x24] sm:$0xf]
    %v1033 = vld [vmem:[%s1022 + $0x28] sm:$0xf]
    %v1034 = vld [vmem:[%s1022 + $0x2c] sm:$0xf]
    %v1035 = vld [vmem:[%s1022 + $0x30] sm:$0xf]
    %v1036 = vld [vmem:[%s1022 + $0x34] sm:$0xf]
    %v1037 = vld [vmem:[%s1022 + $0x38] sm:$0xf]
    %v1038 = vld [vmem:[%s1022 + $0x3c] sm:$0xf]
    %v1039 = vld [vmem:[%s1022 + $0x40] sm:$0xf]
    %v1040 = vld [vmem:[%s1022 + $0x44] sm:$0xf]
    %v1041 = vld [vmem:[%s1022 + $0x48] sm:$0xf]
    %v1042 = vld [vmem:[%s1022 + $0x4c] sm:$0xf]
    %v1043 = vld [vmem:[%s1022 + $0x50] sm:$0xf]
    %v1044 = vld [vmem:[%s1022 + $0x54] sm:$0xf]
    %v1045 = vld [vmem:[%s1022 + $0x58] sm:$0xf]
    %v1046 = vld [vmem:[%s1022 + $0x5c] sm:$0xf]
    %v1047 = vld [vmem:[%s1022 + $0x60] sm:$0xf]
    %v1048 = vld [vmem:[%s1022 + $0x64] sm:$0xf]
    %v1049 = vld [vmem:[%s1022 + $0x68] sm:$0xf]
    %v1050 = vld [vmem:[%s1022 + $0x6c] sm:$0xf]
    %v1051 = vld [vmem:[%s1022 + $0x70] sm:$0xf]
    %v1052 = vld [vmem:[%s1022 + $0x74] sm:$0xf]
    %v1053 = vld [vmem:[%s1022 + $0x78] sm:$0xf]
    %v1054 = vld [vmem:[%s1022 + $0x7c] sm:$0xf]
    %v1055 = vld [vmem:[#allocation3 + $0x6] sm:$0xff]
    %v1056 = vld [vmem:[#allocation3 + $0x1e] sm:$0xff]
    %v1057 = vpack.c.bf16 %v1055, %v1055
    %v1058 = vpack.c.bf16 %v1056, %v1056
    %v1059 = vld [vmem:[#allocation3 + $0x7] sm:$0xff]
    %v1060 = vld [vmem:[#allocation3 + $0x1f] sm:$0xff]
    %v1061 = vpack.c.bf16 %v1059, %v1059
    %v1062 = vpack.c.bf16 %v1060, %v1060
    %v1067 = vunpack.c.l.b16 %v1057
    %v1068 = vunpack.c.l.b16 %v1061
    %v1069 = vunpack.c.l.b16 %v1058
    %v1070 = vunpack.c.l.b16 %v1062
    %s1071 = scalar_lea.vmem [#allocation4], 704
    %v1072 = vld [vmem:[%s1071] sm:$0xf]
    %v1073 = vld [vmem:[%s1071 + $0x4] sm:$0xf]
    %v1074 = vld [vmem:[%s1071 + $0x8] sm:$0xf]
    %v1075 = vld [vmem:[%s1071 + $0xc] sm:$0xf]
    %v1076 = vld [vmem:[%s1071 + $0x10] sm:$0xf]
    %v1077 = vld [vmem:[%s1071 + $0x14] sm:$0xf]
    %v1078 = vld [vmem:[%s1071 + $0x18] sm:$0xf]
    %v1079 = vld [vmem:[%s1071 + $0x1c] sm:$0xf]
    %v1080 = vld [vmem:[%s1071 + $0x20] sm:$0xf]
    %v1081 = vld [vmem:[%s1071 + $0x24] sm:$0xf]
    %v1082 = vld [vmem:[%s1071 + $0x28] sm:$0xf]
    %v1083 = vld [vmem:[%s1071 + $0x2c] sm:$0xf]
    %v1084 = vld [vmem:[%s1071 + $0x30] sm:$0xf]
    %v1085 = vld [vmem:[%s1071 + $0x34] sm:$0xf]
    %v1086 = vld [vmem:[%s1071 + $0x38] sm:$0xf]
    %v1087 = vld [vmem:[%s1071 + $0x3c] sm:$0xf]
    %v1088 = vld [vmem:[%s1071 + $0x40] sm:$0xf]
    %v1089 = vld [vmem:[%s1071 + $0x44] sm:$0xf]
    %v1090 = vld [vmem:[%s1071 + $0x48] sm:$0xf]
    %v1091 = vld [vmem:[%s1071 + $0x4c] sm:$0xf]
    %v1092 = vld [vmem:[%s1071 + $0x50] sm:$0xf]
    %v1093 = vld [vmem:[%s1071 + $0x54] sm:$0xf]
    %v1094 = vld [vmem:[%s1071 + $0x58] sm:$0xf]
    %v1095 = vld [vmem:[%s1071 + $0x5c] sm:$0xf]
    %v1096 = vld [vmem:[%s1071 + $0x60] sm:$0xf]
    %v1097 = vld [vmem:[%s1071 + $0x64] sm:$0xf]
    %v1098 = vld [vmem:[%s1071 + $0x68] sm:$0xf]
    %v1099 = vld [vmem:[%s1071 + $0x6c] sm:$0xf]
    %v1100 = vld [vmem:[%s1071 + $0x70] sm:$0xf]
    %v1101 = vld [vmem:[%s1071 + $0x74] sm:$0xf]
    %v1102 = vld [vmem:[%s1071 + $0x78] sm:$0xf]
    %v1103 = vld [vmem:[%s1071 + $0x7c] sm:$0xf]
    %v1104 = vpack.c.b16 %v1069, %v1067
    %v1105 = vpack.c.b16 %v1070, %v1068
    %v1140 = vunpack.c.l.b16 %v1072
    %v1141 = vunpack.c.l.b16 %v1073
    %v1142 = vunpack.c.l.b16 %v1074
    %v1143 = vunpack.c.l.b16 %v1075
    %v1144 = vunpack.c.l.b16 %v1076
    %v1145 = vunpack.c.l.b16 %v1077
    %v1146 = vunpack.c.l.b16 %v1078
    %v1147 = vunpack.c.l.b16 %v1079
    %v1148 = vunpack.c.l.b16 %v1080
    %v1149 = vunpack.c.l.b16 %v1081
    %v1150 = vunpack.c.l.b16 %v1082
    %v1151 = vunpack.c.l.b16 %v1083
    %v1152 = vunpack.c.l.b16 %v1084
    %v1153 = vunpack.c.l.b16 %v1085
    %v1154 = vunpack.c.l.b16 %v1086
    %v1155 = vunpack.c.l.b16 %v1087
    %v1156 = vunpack.c.l.b16 %v1088
    %v1157 = vunpack.c.l.b16 %v1089
    %v1158 = vunpack.c.l.b16 %v1090
    %v1159 = vunpack.c.l.b16 %v1091
    %v1160 = vunpack.c.l.b16 %v1092
    %v1161 = vunpack.c.l.b16 %v1093
    %v1162 = vunpack.c.l.b16 %v1094
    %v1163 = vunpack.c.l.b16 %v1095
    %v1164 = vunpack.c.l.b16 %v1096
    %v1165 = vunpack.c.l.b16 %v1097
    %v1166 = vunpack.c.l.b16 %v1098
    %v1167 = vunpack.c.l.b16 %v1099
    %v1168 = vunpack.c.l.b16 %v1100
    %v1169 = vunpack.c.l.b16 %v1101
    %v1170 = vunpack.c.l.b16 %v1102
    %v1171 = vunpack.c.l.b16 %v1103
    %v1172 = vpack.c.b16 %v1141, %v1140
    %v1173 = vpack.c.b16 %v1143, %v1142
    %v1174 = vpack.c.b16 %v1145, %v1144
    %v1175 = vpack.c.b16 %v1147, %v1146
    %v1176 = vpack.c.b16 %v1149, %v1148
    %v1177 = vpack.c.b16 %v1151, %v1150
    %v1178 = vpack.c.b16 %v1153, %v1152
    %v1179 = vpack.c.b16 %v1155, %v1154
    %v1180 = vpack.c.b16 %v1157, %v1156
    %v1181 = vpack.c.b16 %v1159, %v1158
    %v1182 = vpack.c.b16 %v1161, %v1160
    %v1183 = vpack.c.b16 %v1163, %v1162
    %v1184 = vpack.c.b16 %v1165, %v1164
    %v1185 = vpack.c.b16 %v1167, %v1166
    %v1186 = vpack.c.b16 %v1169, %v1168
    %v1187 = vpack.c.b16 %v1171, %v1170
    %1204 = vmatpush.bf16.msra.mxu0 %v1179
    %1205 = vmatpush.bf16.msra.mxu0 %v1178
    %1206 = vmatpush.bf16.msra.mxu0 %v1177
    %1207 = vmatpush.bf16.msra.mxu0 %v1176
    %1208 = vmatpush.bf16.msra.mxu0 %v1175
    %1209 = vmatpush.bf16.msra.mxu0 %v1174
    %1210 = vmatpush.bf16.msra.mxu0 %v1173
    %1211 = vmatpush.bf16.msra.mxu0 %v1172
    %1212 = vmatmul.bf16.gmra.mxu0 %v1104
    %v1213 = vpop.f32.mrf.mxu0
    %v1214 = vadd.f32 0.0, %v1213
    %v1215 = vpop.f32.mrf.mxu0
    %v1216 = vadd.f32 0.0, %v1215
    %1217 = vdwg.mxu0
    %1218 = vmatpush.bf16.msra.mxu0 %v1187
    %1219 = vmatpush.bf16.msra.mxu0 %v1186
    %1220 = vmatpush.bf16.msra.mxu0 %v1185
    %1221 = vmatpush.bf16.msra.mxu0 %v1184
    %1222 = vmatpush.bf16.msra.mxu0 %v1183
    %1223 = vmatpush.bf16.msra.mxu0 %v1182
    %1224 = vmatpush.bf16.msra.mxu0 %v1181
    %1225 = vmatpush.bf16.msra.mxu0 %v1180
    %1226 = vmatmul.bf16.gmra.mxu0 %v1105
    %v1227 = vpop.f32.mrf.mxu0
    %v1228 = vadd.f32 %v1214, %v1227
    %v1229 = vpop.f32.mrf.mxu0
    %v1230 = vadd.f32 %v1216, %v1229
    %1231 = vdwg.mxu0
    %v1232 = vpack.c.b16 %v1020, %v1018
    %v1233 = vpack.c.b16 %v1021, %v1019
    %v1268 = vunpack.c.l.b16 %v1023
    %v1269 = vunpack.c.l.b16 %v1024
    %v1270 = vunpack.c.l.b16 %v1025
    %v1271 = vunpack.c.l.b16 %v1026
    %v1272 = vunpack.c.l.b16 %v1027
    %v1273 = vunpack.c.l.b16 %v1028
    %v1274 = vunpack.c.l.b16 %v1029
    %v1275 = vunpack.c.l.b16 %v1030
    %v1276 = vunpack.c.l.b16 %v1031
    %v1277 = vunpack.c.l.b16 %v1032
    %v1278 = vunpack.c.l.b16 %v1033
    %v1279 = vunpack.c.l.b16 %v1034
    %v1280 = vunpack.c.l.b16 %v1035
    %v1281 = vunpack.c.l.b16 %v1036
    %v1282 = vunpack.c.l.b16 %v1037
    %v1283 = vunpack.c.l.b16 %v1038
    %v1284 = vunpack.c.l.b16 %v1039
    %v1285 = vunpack.c.l.b16 %v1040
    %v1286 = vunpack.c.l.b16 %v1041
    %v1287 = vunpack.c.l.b16 %v1042
    %v1288 = vunpack.c.l.b16 %v1043
    %v1289 = vunpack.c.l.b16 %v1044
    %v1290 = vunpack.c.l.b16 %v1045
    %v1291 = vunpack.c.l.b16 %v1046
    %v1292 = vunpack.c.l.b16 %v1047
    %v1293 = vunpack.c.l.b16 %v1048
    %v1294 = vunpack.c.l.b16 %v1049
    %v1295 = vunpack.c.l.b16 %v1050
    %v1296 = vunpack.c.l.b16 %v1051
    %v1297 = vunpack.c.l.b16 %v1052
    %v1298 = vunpack.c.l.b16 %v1053
    %v1299 = vunpack.c.l.b16 %v1054
    %v1300 = vpack.c.b16 %v1269, %v1268
    %v1301 = vpack.c.b16 %v1271, %v1270
    %v1302 = vpack.c.b16 %v1273, %v1272
    %v1303 = vpack.c.b16 %v1275, %v1274
    %v1304 = vpack.c.b16 %v1277, %v1276
    %v1305 = vpack.c.b16 %v1279, %v1278
    %v1306 = vpack.c.b16 %v1281, %v1280
    %v1307 = vpack.c.b16 %v1283, %v1282
    %v1308 = vpack.c.b16 %v1285, %v1284
    %v1309 = vpack.c.b16 %v1287, %v1286
    %v1310 = vpack.c.b16 %v1289, %v1288
    %v1311 = vpack.c.b16 %v1291, %v1290
    %v1312 = vpack.c.b16 %v1293, %v1292
    %v1313 = vpack.c.b16 %v1295, %v1294
    %v1314 = vpack.c.b16 %v1297, %v1296
    %v1315 = vpack.c.b16 %v1299, %v1298
    %1332 = vmatpush.bf16.msra.mxu0 %v1307
    %1333 = vmatpush.bf16.msra.mxu0 %v1306
    %1334 = vmatpush.bf16.msra.mxu0 %v1305
    %1335 = vmatpush.bf16.msra.mxu0 %v1304
    %1336 = vmatpush.bf16.msra.mxu0 %v1303
    %1337 = vmatpush.bf16.msra.mxu0 %v1302
    %1338 = vmatpush.bf16.msra.mxu0 %v1301
    %1339 = vmatpush.bf16.msra.mxu0 %v1300
    %1340 = vmatmul.bf16.gmra.mxu0 %v1232
    %v1341 = vpop.f32.mrf.mxu0
    %v1342 = vadd.f32 %v1228, %v1341
    %v1343 = vpop.f32.mrf.mxu0
    %v1344 = vadd.f32 %v1230, %v1343
    %1345 = vdwg.mxu0
    %1346 = vmatpush.bf16.msra.mxu0 %v1315
    %1347 = vmatpush.bf16.msra.mxu0 %v1314
    %1348 = vmatpush.bf16.msra.mxu0 %v1313
    %1349 = vmatpush.bf16.msra.mxu0 %v1312
    %1350 = vmatpush.bf16.msra.mxu0 %v1311
    %1351 = vmatpush.bf16.msra.mxu0 %v1310
    %1352 = vmatpush.bf16.msra.mxu0 %v1309
    %1353 = vmatpush.bf16.msra.mxu0 %v1308
    %1354 = vmatmul.bf16.gmra.mxu0 %v1233
    %v1355 = vpop.f32.mrf.mxu0
    %v1356 = vadd.f32 %v1342, %v1355
    %v1357 = vpop.f32.mrf.mxu0
    %v1358 = vadd.f32 %v1344, %v1357
    %1359 = vdwg.mxu0
    %v1360 = vld [vmem:[#allocation3 + $0x8] sm:$0xff]
    %v1361 = vld [vmem:[#allocation3 + $0x20] sm:$0xff]
    %v1362 = vpack.c.bf16 %v1360, %v1360
    %v1363 = vpack.c.bf16 %v1361, %v1361
    %v1364 = vld [vmem:[#allocation3 + $0x9] sm:$0xff]
    %v1365 = vld [vmem:[#allocation3 + $0x21] sm:$0xff]
    %v1366 = vpack.c.bf16 %v1364, %v1364
    %v1367 = vpack.c.bf16 %v1365, %v1365
    %v1372 = vunpack.c.l.b16 %v1362
    %v1373 = vunpack.c.l.b16 %v1366
    %v1374 = vunpack.c.l.b16 %v1363
    %v1375 = vunpack.c.l.b16 %v1367
    %s1376 = scalar_lea.vmem [#allocation4], 832
    %v1377 = vld [vmem:[%s1376] sm:$0xf]
    %v1378 = vld [vmem:[%s1376 + $0x4] sm:$0xf]
    %v1379 = vld [vmem:[%s1376 + $0x8] sm:$0xf]
    %v1380 = vld [vmem:[%s1376 + $0xc] sm:$0xf]
    %v1381 = vld [vmem:[%s1376 + $0x10] sm:$0xf]
    %v1382 = vld [vmem:[%s1376 + $0x14] sm:$0xf]
    %v1383 = vld [vmem:[%s1376 + $0x18] sm:$0xf]
    %v1384 = vld [vmem:[%s1376 + $0x1c] sm:$0xf]
    %v1385 = vld [vmem:[%s1376 + $0x20] sm:$0xf]
    %v1386 = vld [vmem:[%s1376 + $0x24] sm:$0xf]
    %v1387 = vld [vmem:[%s1376 + $0x28] sm:$0xf]
    %v1388 = vld [vmem:[%s1376 + $0x2c] sm:$0xf]
    %v1389 = vld [vmem:[%s1376 + $0x30] sm:$0xf]
    %v1390 = vld [vmem:[%s1376 + $0x34] sm:$0xf]
    %v1391 = vld [vmem:[%s1376 + $0x38] sm:$0xf]
    %v1392 = vld [vmem:[%s1376 + $0x3c] sm:$0xf]
    %v1393 = vld [vmem:[%s1376 + $0x40] sm:$0xf]
    %v1394 = vld [vmem:[%s1376 + $0x44] sm:$0xf]
    %v1395 = vld [vmem:[%s1376 + $0x48] sm:$0xf]
    %v1396 = vld [vmem:[%s1376 + $0x4c] sm:$0xf]
    %v1397 = vld [vmem:[%s1376 + $0x50] sm:$0xf]
    %v1398 = vld [vmem:[%s1376 + $0x54] sm:$0xf]
    %v1399 = vld [vmem:[%s1376 + $0x58] sm:$0xf]
    %v1400 = vld [vmem:[%s1376 + $0x5c] sm:$0xf]
    %v1401 = vld [vmem:[%s1376 + $0x60] sm:$0xf]
    %v1402 = vld [vmem:[%s1376 + $0x64] sm:$0xf]
    %v1403 = vld [vmem:[%s1376 + $0x68] sm:$0xf]
    %v1404 = vld [vmem:[%s1376 + $0x6c] sm:$0xf]
    %v1405 = vld [vmem:[%s1376 + $0x70] sm:$0xf]
    %v1406 = vld [vmem:[%s1376 + $0x74] sm:$0xf]
    %v1407 = vld [vmem:[%s1376 + $0x78] sm:$0xf]
    %v1408 = vld [vmem:[%s1376 + $0x7c] sm:$0xf]
    %v1409 = vpack.c.b16 %v1374, %v1372
    %v1410 = vpack.c.b16 %v1375, %v1373
    %v1445 = vunpack.c.l.b16 %v1377
    %v1446 = vunpack.c.l.b16 %v1378
    %v1447 = vunpack.c.l.b16 %v1379
    %v1448 = vunpack.c.l.b16 %v1380
    %v1449 = vunpack.c.l.b16 %v1381
    %v1450 = vunpack.c.l.b16 %v1382
    %v1451 = vunpack.c.l.b16 %v1383
    %v1452 = vunpack.c.l.b16 %v1384
    %v1453 = vunpack.c.l.b16 %v1385
    %v1454 = vunpack.c.l.b16 %v1386
    %v1455 = vunpack.c.l.b16 %v1387
    %v1456 = vunpack.c.l.b16 %v1388
    %v1457 = vunpack.c.l.b16 %v1389
    %v1458 = vunpack.c.l.b16 %v1390
    %v1459 = vunpack.c.l.b16 %v1391
    %v1460 = vunpack.c.l.b16 %v1392
    %v1461 = vunpack.c.l.b16 %v1393
    %v1462 = vunpack.c.l.b16 %v1394
    %v1463 = vunpack.c.l.b16 %v1395
    %v1464 = vunpack.c.l.b16 %v1396
    %v1465 = vunpack.c.l.b16 %v1397
    %v1466 = vunpack.c.l.b16 %v1398
    %v1467 = vunpack.c.l.b16 %v1399
    %v1468 = vunpack.c.l.b16 %v1400
    %v1469 = vunpack.c.l.b16 %v1401
    %v1470 = vunpack.c.l.b16 %v1402
    %v1471 = vunpack.c.l.b16 %v1403
    %v1472 = vunpack.c.l.b16 %v1404
    %v1473 = vunpack.c.l.b16 %v1405
    %v1474 = vunpack.c.l.b16 %v1406
    %v1475 = vunpack.c.l.b16 %v1407
    %v1476 = vunpack.c.l.b16 %v1408
    %v1477 = vpack.c.b16 %v1446, %v1445
    %v1478 = vpack.c.b16 %v1448, %v1447
    %v1479 = vpack.c.b16 %v1450, %v1449
    %v1480 = vpack.c.b16 %v1452, %v1451
    %v1481 = vpack.c.b16 %v1454, %v1453
    %v1482 = vpack.c.b16 %v1456, %v1455
    %v1483 = vpack.c.b16 %v1458, %v1457
    %v1484 = vpack.c.b16 %v1460, %v1459
    %v1485 = vpack.c.b16 %v1462, %v1461
    %v1486 = vpack.c.b16 %v1464, %v1463
    %v1487 = vpack.c.b16 %v1466, %v1465
    %v1488 = vpack.c.b16 %v1468, %v1467
    %v1489 = vpack.c.b16 %v1470, %v1469
    %v1490 = vpack.c.b16 %v1472, %v1471
    %v1491 = vpack.c.b16 %v1474, %v1473
    %v1492 = vpack.c.b16 %v1476, %v1475
    %1509 = vmatpush.bf16.msra.mxu0 %v1484
    %1510 = vmatpush.bf16.msra.mxu0 %v1483
    %1511 = vmatpush.bf16.msra.mxu0 %v1482
    %1512 = vmatpush.bf16.msra.mxu0 %v1481
    %1513 = vmatpush.bf16.msra.mxu0 %v1480
    %1514 = vmatpush.bf16.msra.mxu0 %v1479
    %1515 = vmatpush.bf16.msra.mxu0 %v1478
    %1516 = vmatpush.bf16.msra.mxu0 %v1477
    %1517 = vmatmul.bf16.gmra.mxu0 %v1409
    %v1518 = vpop.f32.mrf.mxu0
    %v1519 = vadd.f32 0.0, %v1518
    %v1520 = vpop.f32.mrf.mxu0
    %v1521 = vadd.f32 0.0, %v1520
    %1522 = vdwg.mxu0
    %1523 = vmatpush.bf16.msra.mxu0 %v1492
    %1524 = vmatpush.bf16.msra.mxu0 %v1491
    %1525 = vmatpush.bf16.msra.mxu0 %v1490
    %1526 = vmatpush.bf16.msra.mxu0 %v1489
    %1527 = vmatpush.bf16.msra.mxu0 %v1488
    %1528 = vmatpush.bf16.msra.mxu0 %v1487
    %1529 = vmatpush.bf16.msra.mxu0 %v1486
    %1530 = vmatpush.bf16.msra.mxu0 %v1485
    %1531 = vmatmul.bf16.gmra.mxu0 %v1410
    %v1532 = vpop.f32.mrf.mxu0
    %v1533 = vadd.f32 %v1519, %v1532
    %v1534 = vpop.f32.mrf.mxu0
    %v1535 = vadd.f32 %v1521, %v1534
    %1536 = vdwg.mxu0
    %v1537 = vadd.f32 %v1356, %v1533
    %v1538 = vadd.f32 %v1358, %v1535
    %v1539 = vld [vmem:[#allocation3 + $0xa] sm:$0xff]
    %v1540 = vld [vmem:[#allocation3 + $0x22] sm:$0xff]
    %v1541 = vpack.c.bf16 %v1539, %v1539
    %v1542 = vpack.c.bf16 %v1540, %v1540
    %v1543 = vld [vmem:[#allocation3 + $0xb] sm:$0xff]
    %v1544 = vld [vmem:[#allocation3 + $0x23] sm:$0xff]
    %v1545 = vpack.c.bf16 %v1543, %v1543
    %v1546 = vpack.c.bf16 %v1544, %v1544
    %v1551 = vunpack.c.l.b16 %v1541
    %v1552 = vunpack.c.l.b16 %v1545
    %v1553 = vunpack.c.l.b16 %v1542
    %v1554 = vunpack.c.l.b16 %v1546
    %s1555 = scalar_lea.vmem [#allocation4], 960
    %v1556 = vld [vmem:[%s1555] sm:$0xf]
    %v1557 = vld [vmem:[%s1555 + $0x4] sm:$0xf]
    %v1558 = vld [vmem:[%s1555 + $0x8] sm:$0xf]
    %v1559 = vld [vmem:[%s1555 + $0xc] sm:$0xf]
    %v1560 = vld [vmem:[%s1555 + $0x10] sm:$0xf]
    %v1561 = vld [vmem:[%s1555 + $0x14] sm:$0xf]
    %v1562 = vld [vmem:[%s1555 + $0x18] sm:$0xf]
    %v1563 = vld [vmem:[%s1555 + $0x1c] sm:$0xf]
    %v1564 = vld [vmem:[%s1555 + $0x20] sm:$0xf]
    %v1565 = vld [vmem:[%s1555 + $0x24] sm:$0xf]
    %v1566 = vld [vmem:[%s1555 + $0x28] sm:$0xf]
    %v1567 = vld [vmem:[%s1555 + $0x2c] sm:$0xf]
    %v1568 = vld [vmem:[%s1555 + $0x30] sm:$0xf]
    %v1569 = vld [vmem:[%s1555 + $0x34] sm:$0xf]
    %v1570 = vld [vmem:[%s1555 + $0x38] sm:$0xf]
    %v1571 = vld [vmem:[%s1555 + $0x3c] sm:$0xf]
    %v1572 = vld [vmem:[%s1555 + $0x40] sm:$0xf]
    %v1573 = vld [vmem:[%s1555 + $0x44] sm:$0xf]
    %v1574 = vld [vmem:[%s1555 + $0x48] sm:$0xf]
    %v1575 = vld [vmem:[%s1555 + $0x4c] sm:$0xf]
    %v1576 = vld [vmem:[%s1555 + $0x50] sm:$0xf]
    %v1577 = vld [vmem:[%s1555 + $0x54] sm:$0xf]
    %v1578 = vld [vmem:[%s1555 + $0x58] sm:$0xf]
    %v1579 = vld [vmem:[%s1555 + $0x5c] sm:$0xf]
    %v1580 = vld [vmem:[%s1555 + $0x60] sm:$0xf]
    %v1581 = vld [vmem:[%s1555 + $0x64] sm:$0xf]
    %v1582 = vld [vmem:[%s1555 + $0x68] sm:$0xf]
    %v1583 = vld [vmem:[%s1555 + $0x6c] sm:$0xf]
    %v1584 = vld [vmem:[%s1555 + $0x70] sm:$0xf]
    %v1585 = vld [vmem:[%s1555 + $0x74] sm:$0xf]
    %v1586 = vld [vmem:[%s1555 + $0x78] sm:$0xf]
    %v1587 = vld [vmem:[%s1555 + $0x7c] sm:$0xf]
    %v1588 = vpack.c.b16 %v1553, %v1551
    %v1589 = vpack.c.b16 %v1554, %v1552
    %v1624 = vunpack.c.l.b16 %v1556
    %v1625 = vunpack.c.l.b16 %v1557
    %v1626 = vunpack.c.l.b16 %v1558
    %v1627 = vunpack.c.l.b16 %v1559
    %v1628 = vunpack.c.l.b16 %v1560
    %v1629 = vunpack.c.l.b16 %v1561
    %v1630 = vunpack.c.l.b16 %v1562
    %v1631 = vunpack.c.l.b16 %v1563
    %v1632 = vunpack.c.l.b16 %v1564
    %v1633 = vunpack.c.l.b16 %v1565
    %v1634 = vunpack.c.l.b16 %v1566
    %v1635 = vunpack.c.l.b16 %v1567
    %v1636 = vunpack.c.l.b16 %v1568
    %v1637 = vunpack.c.l.b16 %v1569
    %v1638 = vunpack.c.l.b16 %v1570
    %v1639 = vunpack.c.l.b16 %v1571
    %v1640 = vunpack.c.l.b16 %v1572
    %v1641 = vunpack.c.l.b16 %v1573
    %v1642 = vunpack.c.l.b16 %v1574
    %v1643 = vunpack.c.l.b16 %v1575
    %v1644 = vunpack.c.l.b16 %v1576
    %v1645 = vunpack.c.l.b16 %v1577
    %v1646 = vunpack.c.l.b16 %v1578
    %v1647 = vunpack.c.l.b16 %v1579
    %v1648 = vunpack.c.l.b16 %v1580
    %v1649 = vunpack.c.l.b16 %v1581
    %v1650 = vunpack.c.l.b16 %v1582
    %v1651 = vunpack.c.l.b16 %v1583
    %v1652 = vunpack.c.l.b16 %v1584
    %v1653 = vunpack.c.l.b16 %v1585
    %v1654 = vunpack.c.l.b16 %v1586
    %v1655 = vunpack.c.l.b16 %v1587
    %v1656 = vpack.c.b16 %v1625, %v1624
    %v1657 = vpack.c.b16 %v1627, %v1626
    %v1658 = vpack.c.b16 %v1629, %v1628
    %v1659 = vpack.c.b16 %v1631, %v1630
    %v1660 = vpack.c.b16 %v1633, %v1632
    %v1661 = vpack.c.b16 %v1635, %v1634
    %v1662 = vpack.c.b16 %v1637, %v1636
    %v1663 = vpack.c.b16 %v1639, %v1638
    %v1664 = vpack.c.b16 %v1641, %v1640
    %v1665 = vpack.c.b16 %v1643, %v1642
    %v1666 = vpack.c.b16 %v1645, %v1644
    %v1667 = vpack.c.b16 %v1647, %v1646
    %v1668 = vpack.c.b16 %v1649, %v1648
    %v1669 = vpack.c.b16 %v1651, %v1650
    %v1670 = vpack.c.b16 %v1653, %v1652
    %v1671 = vpack.c.b16 %v1655, %v1654
    %1688 = vmatpush.bf16.msra.mxu0 %v1663
    %1689 = vmatpush.bf16.msra.mxu0 %v1662
    %1690 = vmatpush.bf16.msra.mxu0 %v1661
    %1691 = vmatpush.bf16.msra.mxu0 %v1660
    %1692 = vmatpush.bf16.msra.mxu0 %v1659
    %1693 = vmatpush.bf16.msra.mxu0 %v1658
    %1694 = vmatpush.bf16.msra.mxu0 %v1657
    %1695 = vmatpush.bf16.msra.mxu0 %v1656
    %1696 = vmatmul.bf16.gmra.mxu0 %v1588
    %v1697 = vpop.f32.mrf.mxu0
    %v1698 = vadd.f32 0.0, %v1697
    %v1699 = vpop.f32.mrf.mxu0
    %v1700 = vadd.f32 0.0, %v1699
    %1701 = vdwg.mxu0
    %1702 = vmatpush.bf16.msra.mxu0 %v1671
    %1703 = vmatpush.bf16.msra.mxu0 %v1670
    %1704 = vmatpush.bf16.msra.mxu0 %v1669
    %1705 = vmatpush.bf16.msra.mxu0 %v1668
    %1706 = vmatpush.bf16.msra.mxu0 %v1667
    %1707 = vmatpush.bf16.msra.mxu0 %v1666
    %1708 = vmatpush.bf16.msra.mxu0 %v1665
    %1709 = vmatpush.bf16.msra.mxu0 %v1664
    %1710 = vmatmul.bf16.gmra.mxu0 %v1589
    %v1711 = vpop.f32.mrf.mxu0
    %v1712 = vadd.f32 %v1698, %v1711
    %v1713 = vpop.f32.mrf.mxu0
    %v1714 = vadd.f32 %v1700, %v1713
    %1715 = vdwg.mxu0
    %v1716 = vadd.f32 %v1537, %v1712
    %v1717 = vadd.f32 %v1538, %v1714
    %v1718 = vld [vmem:[#allocation3 + $0xc] sm:$0xff]
    %v1719 = vld [vmem:[#allocation3 + $0x24] sm:$0xff]
    %v1720 = vpack.c.bf16 %v1719, %v1718
    %s1721 = scalar_lea.vmem [#allocation4], 1088
    %v1722 = vld [vmem:[%s1721] sm:$0xf]
    %v1723 = vld [vmem:[%s1721 + $0x4] sm:$0xf]
    %v1724 = vld [vmem:[%s1721 + $0x8] sm:$0xf]
    %v1725 = vld [vmem:[%s1721 + $0xc] sm:$0xf]
    %v1726 = vld [vmem:[%s1721 + $0x10] sm:$0xf]
    %v1727 = vld [vmem:[%s1721 + $0x14] sm:$0xf]
    %v1728 = vld [vmem:[%s1721 + $0x18] sm:$0xf]
    %v1729 = vld [vmem:[%s1721 + $0x1c] sm:$0xf]
    %v1730 = vld [vmem:[%s1721 + $0x20] sm:$0xf]
    %v1731 = vld [vmem:[%s1721 + $0x24] sm:$0xf]
    %v1732 = vld [vmem:[%s1721 + $0x28] sm:$0xf]
    %v1733 = vld [vmem:[%s1721 + $0x2c] sm:$0xf]
    %v1734 = vld [vmem:[%s1721 + $0x30] sm:$0xf]
    %v1735 = vld [vmem:[%s1721 + $0x34] sm:$0xf]
    %v1736 = vld [vmem:[%s1721 + $0x38] sm:$0xf]
    %v1737 = vld [vmem:[%s1721 + $0x3c] sm:$0xf]
    %v1754 = vunpack.c.l.b16 %v1722
    %v1755 = vunpack.c.l.b16 %v1723
    %v1756 = vunpack.c.l.b16 %v1724
    %v1757 = vunpack.c.l.b16 %v1725
    %v1758 = vunpack.c.l.b16 %v1726
    %v1759 = vunpack.c.l.b16 %v1727
    %v1760 = vunpack.c.l.b16 %v1728
    %v1761 = vunpack.c.l.b16 %v1729
    %v1762 = vunpack.c.l.b16 %v1730
    %v1763 = vunpack.c.l.b16 %v1731
    %v1764 = vunpack.c.l.b16 %v1732
    %v1765 = vunpack.c.l.b16 %v1733
    %v1766 = vunpack.c.l.b16 %v1734
    %v1767 = vunpack.c.l.b16 %v1735
    %v1768 = vunpack.c.l.b16 %v1736
    %v1769 = vunpack.c.l.b16 %v1737
    %v1770 = vpack.c.b16 %v1755, %v1754
    %v1771 = vpack.c.b16 %v1757, %v1756
    %v1772 = vpack.c.b16 %v1759, %v1758
    %v1773 = vpack.c.b16 %v1761, %v1760
    %v1774 = vpack.c.b16 %v1763, %v1762
    %v1775 = vpack.c.b16 %v1765, %v1764
    %v1776 = vpack.c.b16 %v1767, %v1766
    %v1777 = vpack.c.b16 %v1769, %v1768
    %1786 = vmatpush.bf16.msra.mxu0 %v1777
    %1787 = vmatpush.bf16.msra.mxu0 %v1776
    %1788 = vmatpush.bf16.msra.mxu0 %v1775
    %1789 = vmatpush.bf16.msra.mxu0 %v1774
    %1790 = vmatpush.bf16.msra.mxu0 %v1773
    %1791 = vmatpush.bf16.msra.mxu0 %v1772
    %1792 = vmatpush.bf16.msra.mxu0 %v1771
    %1793 = vmatpush.bf16.msra.mxu0 %v1770
    %1794 = vmatmul.bf16.gmra.mxu0 %v1720
    %v1795 = vpop.f32.mrf.mxu0
    %v1796 = vadd.f32 0.0, %v1795
    %v1797 = vpop.f32.mrf.mxu0
    %v1798 = vadd.f32 0.0, %v1797
    %1799 = vdwg.mxu0
    %v1800 = vadd.f32 %v1716, %v1796
    %v1801 = vadd.f32 %v1717, %v1798
    %s1802 = scalar_lea.vmem [#allocation11], 1
    %v1803 = vld [vmem:[%s1802] sm:$0x1]
    %v1805 = vperm.slane %v1803, 0
    %v1807 = vadd.f32 %v1800, %v1805
    %v1808 = vadd.f32 %v1801, %v1805
    %v1809 = vld [vmem:[#allocation2 + $0x8] sm:$0xff]
    %v1810 = vld [vmem:[#allocation2 + $0x20] sm:$0xff]
    %v1811 = vadd.f32 %v1807, %v1809
    %v1812 = vadd.f32 %v1808, %v1810
    %v1813 = vmul.f32 %v1811, 0.2
    %v1814 = vmul.f32 %v1812, 0.2
    %v1815 = vmax.f32 %v1811, %v1813
    %v1816 = vmax.f32 %v1812, %v1814
    %1817 = vst [vmem:[#allocation2 + $0x8] sm:$0xff] %v1815
    %1818 = vst [vmem:[#allocation2 + $0x20] sm:$0xff] %v1816
    %v1819 = vld [vmem:[#allocation2 + $0x4] sm:$0xff]
    %v1820 = vld [vmem:[#allocation2 + $0x1c] sm:$0xff]
    %v1821 = vpack.c.bf16 %v1819, %v1819
    %v1822 = vpack.c.bf16 %v1820, %v1820
    %v1823 = vld [vmem:[#allocation2 + $0x5] sm:$0xff]
    %v1824 = vld [vmem:[#allocation2 + $0x1d] sm:$0xff]
    %v1825 = vpack.c.bf16 %v1823, %v1823
    %v1826 = vpack.c.bf16 %v1824, %v1824
    %v1831 = vunpack.c.l.b16 %v1821
    %v1832 = vunpack.c.l.b16 %v1825
    %v1833 = vunpack.c.l.b16 %v1822
    %v1834 = vunpack.c.l.b16 %v1826
    %s1835 = scalar_lea.vmem [#allocation4], 1152
    %v1836 = vld [vmem:[%s1835] sm:$0xf]
    %v1837 = vld [vmem:[%s1835 + $0x4] sm:$0xf]
    %v1838 = vld [vmem:[%s1835 + $0x8] sm:$0xf]
    %v1839 = vld [vmem:[%s1835 + $0xc] sm:$0xf]
    %v1840 = vld [vmem:[%s1835 + $0x10] sm:$0xf]
    %v1841 = vld [vmem:[%s1835 + $0x14] sm:$0xf]
    %v1842 = vld [vmem:[%s1835 + $0x18] sm:$0xf]
    %v1843 = vld [vmem:[%s1835 + $0x1c] sm:$0xf]
    %v1844 = vld [vmem:[%s1835 + $0x20] sm:$0xf]
    %v1845 = vld [vmem:[%s1835 + $0x24] sm:$0xf]
    %v1846 = vld [vmem:[%s1835 + $0x28] sm:$0xf]
    %v1847 = vld [vmem:[%s1835 + $0x2c] sm:$0xf]
    %v1848 = vld [vmem:[%s1835 + $0x30] sm:$0xf]
    %v1849 = vld [vmem:[%s1835 + $0x34] sm:$0xf]
    %v1850 = vld [vmem:[%s1835 + $0x38] sm:$0xf]
    %v1851 = vld [vmem:[%s1835 + $0x3c] sm:$0xf]
    %v1852 = vld [vmem:[%s1835 + $0x40] sm:$0xf]
    %v1853 = vld [vmem:[%s1835 + $0x44] sm:$0xf]
    %v1854 = vld [vmem:[%s1835 + $0x48] sm:$0xf]
    %v1855 = vld [vmem:[%s1835 + $0x4c] sm:$0xf]
    %v1856 = vld [vmem:[%s1835 + $0x50] sm:$0xf]
    %v1857 = vld [vmem:[%s1835 + $0x54] sm:$0xf]
    %v1858 = vld [vmem:[%s1835 + $0x58] sm:$0xf]
    %v1859 = vld [vmem:[%s1835 + $0x5c] sm:$0xf]
    %v1860 = vld [vmem:[%s1835 + $0x60] sm:$0xf]
    %v1861 = vld [vmem:[%s1835 + $0x64] sm:$0xf]
    %v1862 = vld [vmem:[%s1835 + $0x68] sm:$0xf]
    %v1863 = vld [vmem:[%s1835 + $0x6c] sm:$0xf]
    %v1864 = vld [vmem:[%s1835 + $0x70] sm:$0xf]
    %v1865 = vld [vmem:[%s1835 + $0x74] sm:$0xf]
    %v1866 = vld [vmem:[%s1835 + $0x78] sm:$0xf]
    %v1867 = vld [vmem:[%s1835 + $0x7c] sm:$0xf]
    %v1868 = vld [vmem:[#allocation2 + $0x6] sm:$0xff]
    %v1869 = vld [vmem:[#allocation2 + $0x1e] sm:$0xff]
    %v1870 = vpack.c.bf16 %v1868, %v1868
    %v1871 = vpack.c.bf16 %v1869, %v1869
    %v1872 = vld [vmem:[#allocation2 + $0x7] sm:$0xff]
    %v1873 = vld [vmem:[#allocation2 + $0x1f] sm:$0xff]
    %v1874 = vpack.c.bf16 %v1872, %v1872
    %v1875 = vpack.c.bf16 %v1873, %v1873
    %v1880 = vunpack.c.l.b16 %v1870
    %v1881 = vunpack.c.l.b16 %v1874
    %v1882 = vunpack.c.l.b16 %v1871
    %v1883 = vunpack.c.l.b16 %v1875
    %s1884 = scalar_lea.vmem [#allocation4], 1280
    %v1885 = vld [vmem:[%s1884] sm:$0xf]
    %v1886 = vld [vmem:[%s1884 + $0x4] sm:$0xf]
    %v1887 = vld [vmem:[%s1884 + $0x8] sm:$0xf]
    %v1888 = vld [vmem:[%s1884 + $0xc] sm:$0xf]
    %v1889 = vld [vmem:[%s1884 + $0x10] sm:$0xf]
    %v1890 = vld [vmem:[%s1884 + $0x14] sm:$0xf]
    %v1891 = vld [vmem:[%s1884 + $0x18] sm:$0xf]
    %v1892 = vld [vmem:[%s1884 + $0x1c] sm:$0xf]
    %v1893 = vld [vmem:[%s1884 + $0x20] sm:$0xf]
    %v1894 = vld [vmem:[%s1884 + $0x24] sm:$0xf]
    %v1895 = vld [vmem:[%s1884 + $0x28] sm:$0xf]
    %v1896 = vld [vmem:[%s1884 + $0x2c] sm:$0xf]
    %v1897 = vld [vmem:[%s1884 + $0x30] sm:$0xf]
    %v1898 = vld [vmem:[%s1884 + $0x34] sm:$0xf]
    %v1899 = vld [vmem:[%s1884 + $0x38] sm:$0xf]
    %v1900 = vld [vmem:[%s1884 + $0x3c] sm:$0xf]
    %v1901 = vld [vmem:[%s1884 + $0x40] sm:$0xf]
    %v1902 = vld [vmem:[%s1884 + $0x44] sm:$0xf]
    %v1903 = vld [vmem:[%s1884 + $0x48] sm:$0xf]
    %v1904 = vld [vmem:[%s1884 + $0x4c] sm:$0xf]
    %v1905 = vld [vmem:[%s1884 + $0x50] sm:$0xf]
    %v1906 = vld [vmem:[%s1884 + $0x54] sm:$0xf]
    %v1907 = vld [vmem:[%s1884 + $0x58] sm:$0xf]
    %v1908 = vld [vmem:[%s1884 + $0x5c] sm:$0xf]
    %v1909 = vld [vmem:[%s1884 + $0x60] sm:$0xf]
    %v1910 = vld [vmem:[%s1884 + $0x64] sm:$0xf]
    %v1911 = vld [vmem:[%s1884 + $0x68] sm:$0xf]
    %v1912 = vld [vmem:[%s1884 + $0x6c] sm:$0xf]
    %v1913 = vld [vmem:[%s1884 + $0x70] sm:$0xf]
    %v1914 = vld [vmem:[%s1884 + $0x74] sm:$0xf]
    %v1915 = vld [vmem:[%s1884 + $0x78] sm:$0xf]
    %v1916 = vld [vmem:[%s1884 + $0x7c] sm:$0xf]
    %v1917 = vpack.c.b16 %v1882, %v1880
    %v1918 = vpack.c.b16 %v1883, %v1881
    %v1953 = vunpack.c.l.b16 %v1885
    %v1954 = vunpack.c.l.b16 %v1886
    %v1955 = vunpack.c.l.b16 %v1887
    %v1956 = vunpack.c.l.b16 %v1888
    %v1957 = vunpack.c.l.b16 %v1889
    %v1958 = vunpack.c.l.b16 %v1890
    %v1959 = vunpack.c.l.b16 %v1891
    %v1960 = vunpack.c.l.b16 %v1892
    %v1961 = vunpack.c.l.b16 %v1893
    %v1962 = vunpack.c.l.b16 %v1894
    %v1963 = vunpack.c.l.b16 %v1895
    %v1964 = vunpack.c.l.b16 %v1896
    %v1965 = vunpack.c.l.b16 %v1897
    %v1966 = vunpack.c.l.b16 %v1898
    %v1967 = vunpack.c.l.b16 %v1899
    %v1968 = vunpack.c.l.b16 %v1900
    %v1969 = vunpack.c.l.b16 %v1901
    %v1970 = vunpack.c.l.b16 %v1902
    %v1971 = vunpack.c.l.b16 %v1903
    %v1972 = vunpack.c.l.b16 %v1904
    %v1973 = vunpack.c.l.b16 %v1905
    %v1974 = vunpack.c.l.b16 %v1906
    %v1975 = vunpack.c.l.b16 %v1907
    %v1976 = vunpack.c.l.b16 %v1908
    %v1977 = vunpack.c.l.b16 %v1909
    %v1978 = vunpack.c.l.b16 %v1910
    %v1979 = vunpack.c.l.b16 %v1911
    %v1980 = vunpack.c.l.b16 %v1912
    %v1981 = vunpack.c.l.b16 %v1913
    %v1982 = vunpack.c.l.b16 %v1914
    %v1983 = vunpack.c.l.b16 %v1915
    %v1984 = vunpack.c.l.b16 %v1916
    %v1985 = vpack.c.b16 %v1954, %v1953
    %v1986 = vpack.c.b16 %v1956, %v1955
    %v1987 = vpack.c.b16 %v1958, %v1957
    %v1988 = vpack.c.b16 %v1960, %v1959
    %v1989 = vpack.c.b16 %v1962, %v1961
    %v1990 = vpack.c.b16 %v1964, %v1963
    %v1991 = vpack.c.b16 %v1966, %v1965
    %v1992 = vpack.c.b16 %v1968, %v1967
    %v1993 = vpack.c.b16 %v1970, %v1969
    %v1994 = vpack.c.b16 %v1972, %v1971
    %v1995 = vpack.c.b16 %v1974, %v1973
    %v1996 = vpack.c.b16 %v1976, %v1975
    %v1997 = vpack.c.b16 %v1978, %v1977
    %v1998 = vpack.c.b16 %v1980, %v1979
    %v1999 = vpack.c.b16 %v1982, %v1981
    %v2000 = vpack.c.b16 %v1984, %v1983
    %2017 = vmatpush.bf16.msra.mxu0 %v1992
    %2018 = vmatpush.bf16.msra.mxu0 %v1991
    %2019 = vmatpush.bf16.msra.mxu0 %v1990
    %2020 = vmatpush.bf16.msra.mxu0 %v1989
    %2021 = vmatpush.bf16.msra.mxu0 %v1988
    %2022 = vmatpush.bf16.msra.mxu0 %v1987
    %2023 = vmatpush.bf16.msra.mxu0 %v1986
    %2024 = vmatpush.bf16.msra.mxu0 %v1985
    %2025 = vmatmul.bf16.gmra.mxu0 %v1917
    %v2026 = vpop.f32.mrf.mxu0
    %v2027 = vadd.f32 0.0, %v2026
    %v2028 = vpop.f32.mrf.mxu0
    %v2029 = vadd.f32 0.0, %v2028
    %2030 = vdwg.mxu0
    %2031 = vmatpush.bf16.msra.mxu0 %v2000
    %2032 = vmatpush.bf16.msra.mxu0 %v1999
    %2033 = vmatpush.bf16.msra.mxu0 %v1998
    %2034 = vmatpush.bf16.msra.mxu0 %v1997
    %2035 = vmatpush.bf16.msra.mxu0 %v1996
    %2036 = vmatpush.bf16.msra.mxu0 %v1995
    %2037 = vmatpush.bf16.msra.mxu0 %v1994
    %2038 = vmatpush.bf16.msra.mxu0 %v1993
    %2039 = vmatmul.bf16.gmra.mxu0 %v1918
    %v2040 = vpop.f32.mrf.mxu0
    %v2041 = vadd.f32 %v2027, %v2040
    %v2042 = vpop.f32.mrf.mxu0
    %v2043 = vadd.f32 %v2029, %v2042
    %2044 = vdwg.mxu0
    %v2045 = vpack.c.b16 %v1833, %v1831
    %v2046 = vpack.c.b16 %v1834, %v1832
    %v2081 = vunpack.c.l.b16 %v1836
    %v2082 = vunpack.c.l.b16 %v1837
    %v2083 = vunpack.c.l.b16 %v1838
    %v2084 = vunpack.c.l.b16 %v1839
    %v2085 = vunpack.c.l.b16 %v1840
    %v2086 = vunpack.c.l.b16 %v1841
    %v2087 = vunpack.c.l.b16 %v1842
    %v2088 = vunpack.c.l.b16 %v1843
    %v2089 = vunpack.c.l.b16 %v1844
    %v2090 = vunpack.c.l.b16 %v1845
    %v2091 = vunpack.c.l.b16 %v1846
    %v2092 = vunpack.c.l.b16 %v1847
    %v2093 = vunpack.c.l.b16 %v1848
    %v2094 = vunpack.c.l.b16 %v1849
    %v2095 = vunpack.c.l.b16 %v1850
    %v2096 = vunpack.c.l.b16 %v1851
    %v2097 = vunpack.c.l.b16 %v1852
    %v2098 = vunpack.c.l.b16 %v1853
    %v2099 = vunpack.c.l.b16 %v1854
    %v2100 = vunpack.c.l.b16 %v1855
    %v2101 = vunpack.c.l.b16 %v1856
    %v2102 = vunpack.c.l.b16 %v1857
    %v2103 = vunpack.c.l.b16 %v1858
    %v2104 = vunpack.c.l.b16 %v1859
    %v2105 = vunpack.c.l.b16 %v1860
    %v2106 = vunpack.c.l.b16 %v1861
    %v2107 = vunpack.c.l.b16 %v1862
    %v2108 = vunpack.c.l.b16 %v1863
    %v2109 = vunpack.c.l.b16 %v1864
    %v2110 = vunpack.c.l.b16 %v1865
    %v2111 = vunpack.c.l.b16 %v1866
    %v2112 = vunpack.c.l.b16 %v1867
    %v2113 = vpack.c.b16 %v2082, %v2081
    %v2114 = vpack.c.b16 %v2084, %v2083
    %v2115 = vpack.c.b16 %v2086, %v2085
    %v2116 = vpack.c.b16 %v2088, %v2087
    %v2117 = vpack.c.b16 %v2090, %v2089
    %v2118 = vpack.c.b16 %v2092, %v2091
    %v2119 = vpack.c.b16 %v2094, %v2093
    %v2120 = vpack.c.b16 %v2096, %v2095
    %v2121 = vpack.c.b16 %v2098, %v2097
    %v2122 = vpack.c.b16 %v2100, %v2099
    %v2123 = vpack.c.b16 %v2102, %v2101
    %v2124 = vpack.c.b16 %v2104, %v2103
    %v2125 = vpack.c.b16 %v2106, %v2105
    %v2126 = vpack.c.b16 %v2108, %v2107
    %v2127 = vpack.c.b16 %v2110, %v2109
    %v2128 = vpack.c.b16 %v2112, %v2111
    %2145 = vmatpush.bf16.msra.mxu0 %v2120
    %2146 = vmatpush.bf16.msra.mxu0 %v2119
    %2147 = vmatpush.bf16.msra.mxu0 %v2118
    %2148 = vmatpush.bf16.msra.mxu0 %v2117
    %2149 = vmatpush.bf16.msra.mxu0 %v2116
    %2150 = vmatpush.bf16.msra.mxu0 %v2115
    %2151 = vmatpush.bf16.msra.mxu0 %v2114
    %2152 = vmatpush.bf16.msra.mxu0 %v2113
    %2153 = vmatmul.bf16.gmra.mxu0 %v2045
    %v2154 = vpop.f32.mrf.mxu0
    %v2155 = vadd.f32 %v2041, %v2154
    %v2156 = vpop.f32.mrf.mxu0
    %v2157 = vadd.f32 %v2043, %v2156
    %2158 = vdwg.mxu0
    %2159 = vmatpush.bf16.msra.mxu0 %v2128
    %2160 = vmatpush.bf16.msra.mxu0 %v2127
    %2161 = vmatpush.bf16.msra.mxu0 %v2126
    %2162 = vmatpush.bf16.msra.mxu0 %v2125
    %2163 = vmatpush.bf16.msra.mxu0 %v2124
    %2164 = vmatpush.bf16.msra.mxu0 %v2123
    %2165 = vmatpush.bf16.msra.mxu0 %v2122
    %2166 = vmatpush.bf16.msra.mxu0 %v2121
    %2167 = vmatmul.bf16.gmra.mxu0 %v2046
    %v2168 = vpop.f32.mrf.mxu0
    %v2169 = vadd.f32 %v2155, %v2168
    %v2170 = vpop.f32.mrf.mxu0
    %v2171 = vadd.f32 %v2157, %v2170
    %2172 = vdwg.mxu0
    %v2173 = vld [vmem:[#allocation2 + $0x8] sm:$0xff]
    %v2174 = vld [vmem:[#allocation2 + $0x20] sm:$0xff]
    %v2175 = vpack.c.bf16 %v2173, %v2173
    %v2176 = vpack.c.bf16 %v2174, %v2174
    %v2177 = vld [vmem:[#allocation2 + $0x9] sm:$0xff]
    %v2178 = vld [vmem:[#allocation2 + $0x21] sm:$0xff]
    %v2179 = vpack.c.bf16 %v2177, %v2177
    %v2180 = vpack.c.bf16 %v2178, %v2178
    %v2185 = vunpack.c.l.b16 %v2175
    %v2186 = vunpack.c.l.b16 %v2179
    %v2187 = vunpack.c.l.b16 %v2176
    %v2188 = vunpack.c.l.b16 %v2180
    %s2189 = scalar_lea.vmem [#allocation4], 1408
    %v2190 = vld [vmem:[%s2189] sm:$0xf]
    %v2191 = vld [vmem:[%s2189 + $0x4] sm:$0xf]
    %v2192 = vld [vmem:[%s2189 + $0x8] sm:$0xf]
    %v2193 = vld [vmem:[%s2189 + $0xc] sm:$0xf]
    %v2194 = vld [vmem:[%s2189 + $0x10] sm:$0xf]
    %v2195 = vld [vmem:[%s2189 + $0x14] sm:$0xf]
    %v2196 = vld [vmem:[%s2189 + $0x18] sm:$0xf]
    %v2197 = vld [vmem:[%s2189 + $0x1c] sm:$0xf]
    %v2198 = vld [vmem:[%s2189 + $0x20] sm:$0xf]
    %v2199 = vld [vmem:[%s2189 + $0x24] sm:$0xf]
    %v2200 = vld [vmem:[%s2189 + $0x28] sm:$0xf]
    %v2201 = vld [vmem:[%s2189 + $0x2c] sm:$0xf]
    %v2202 = vld [vmem:[%s2189 + $0x30] sm:$0xf]
    %v2203 = vld [vmem:[%s2189 + $0x34] sm:$0xf]
    %v2204 = vld [vmem:[%s2189 + $0x38] sm:$0xf]
    %v2205 = vld [vmem:[%s2189 + $0x3c] sm:$0xf]
    %v2206 = vld [vmem:[%s2189 + $0x40] sm:$0xf]
    %v2207 = vld [vmem:[%s2189 + $0x44] sm:$0xf]
    %v2208 = vld [vmem:[%s2189 + $0x48] sm:$0xf]
    %v2209 = vld [vmem:[%s2189 + $0x4c] sm:$0xf]
    %v2210 = vld [vmem:[%s2189 + $0x50] sm:$0xf]
    %v2211 = vld [vmem:[%s2189 + $0x54] sm:$0xf]
    %v2212 = vld [vmem:[%s2189 + $0x58] sm:$0xf]
    %v2213 = vld [vmem:[%s2189 + $0x5c] sm:$0xf]
    %v2214 = vld [vmem:[%s2189 + $0x60] sm:$0xf]
    %v2215 = vld [vmem:[%s2189 + $0x64] sm:$0xf]
    %v2216 = vld [vmem:[%s2189 + $0x68] sm:$0xf]
    %v2217 = vld [vmem:[%s2189 + $0x6c] sm:$0xf]
    %v2218 = vld [vmem:[%s2189 + $0x70] sm:$0xf]
    %v2219 = vld [vmem:[%s2189 + $0x74] sm:$0xf]
    %v2220 = vld [vmem:[%s2189 + $0x78] sm:$0xf]
    %v2221 = vld [vmem:[%s2189 + $0x7c] sm:$0xf]
    %v2222 = vpack.c.b16 %v2187, %v2185
    %v2223 = vpack.c.b16 %v2188, %v2186
    %v2258 = vunpack.c.l.b16 %v2190
    %v2259 = vunpack.c.l.b16 %v2191
    %v2260 = vunpack.c.l.b16 %v2192
    %v2261 = vunpack.c.l.b16 %v2193
    %v2262 = vunpack.c.l.b16 %v2194
    %v2263 = vunpack.c.l.b16 %v2195
    %v2264 = vunpack.c.l.b16 %v2196
    %v2265 = vunpack.c.l.b16 %v2197
    %v2266 = vunpack.c.l.b16 %v2198
    %v2267 = vunpack.c.l.b16 %v2199
    %v2268 = vunpack.c.l.b16 %v2200
    %v2269 = vunpack.c.l.b16 %v2201
    %v2270 = vunpack.c.l.b16 %v2202
    %v2271 = vunpack.c.l.b16 %v2203
    %v2272 = vunpack.c.l.b16 %v2204
    %v2273 = vunpack.c.l.b16 %v2205
    %v2274 = vunpack.c.l.b16 %v2206
    %v2275 = vunpack.c.l.b16 %v2207
    %v2276 = vunpack.c.l.b16 %v2208
    %v2277 = vunpack.c.l.b16 %v2209
    %v2278 = vunpack.c.l.b16 %v2210
    %v2279 = vunpack.c.l.b16 %v2211
    %v2280 = vunpack.c.l.b16 %v2212
    %v2281 = vunpack.c.l.b16 %v2213
    %v2282 = vunpack.c.l.b16 %v2214
    %v2283 = vunpack.c.l.b16 %v2215
    %v2284 = vunpack.c.l.b16 %v2216
    %v2285 = vunpack.c.l.b16 %v2217
    %v2286 = vunpack.c.l.b16 %v2218
    %v2287 = vunpack.c.l.b16 %v2219
    %v2288 = vunpack.c.l.b16 %v2220
    %v2289 = vunpack.c.l.b16 %v2221
    %v2290 = vpack.c.b16 %v2259, %v2258
    %v2291 = vpack.c.b16 %v2261, %v2260
    %v2292 = vpack.c.b16 %v2263, %v2262
    %v2293 = vpack.c.b16 %v2265, %v2264
    %v2294 = vpack.c.b16 %v2267, %v2266
    %v2295 = vpack.c.b16 %v2269, %v2268
    %v2296 = vpack.c.b16 %v2271, %v2270
    %v2297 = vpack.c.b16 %v2273, %v2272
    %v2298 = vpack.c.b16 %v2275, %v2274
    %v2299 = vpack.c.b16 %v2277, %v2276
    %v2300 = vpack.c.b16 %v2279, %v2278
    %v2301 = vpack.c.b16 %v2281, %v2280
    %v2302 = vpack.c.b16 %v2283, %v2282
    %v2303 = vpack.c.b16 %v2285, %v2284
    %v2304 = vpack.c.b16 %v2287, %v2286
    %v2305 = vpack.c.b16 %v2289, %v2288
    %2322 = vmatpush.bf16.msra.mxu0 %v2297
    %2323 = vmatpush.bf16.msra.mxu0 %v2296
    %2324 = vmatpush.bf16.msra.mxu0 %v2295
    %2325 = vmatpush.bf16.msra.mxu0 %v2294
    %2326 = vmatpush.bf16.msra.mxu0 %v2293
    %2327 = vmatpush.bf16.msra.mxu0 %v2292
    %2328 = vmatpush.bf16.msra.mxu0 %v2291
    %2329 = vmatpush.bf16.msra.mxu0 %v2290
    %2330 = vmatmul.bf16.gmra.mxu0 %v2222
    %v2331 = vpop.f32.mrf.mxu0
    %v2332 = vadd.f32 0.0, %v2331
    %v2333 = vpop.f32.mrf.mxu0
    %v2334 = vadd.f32 0.0, %v2333
    %2335 = vdwg.mxu0
    %2336 = vmatpush.bf16.msra.mxu0 %v2305
    %2337 = vmatpush.bf16.msra.mxu0 %v2304
    %2338 = vmatpush.bf16.msra.mxu0 %v2303
    %2339 = vmatpush.bf16.msra.mxu0 %v2302
    %2340 = vmatpush.bf16.msra.mxu0 %v2301
    %2341 = vmatpush.bf16.msra.mxu0 %v2300
    %2342 = vmatpush.bf16.msra.mxu0 %v2299
    %2343 = vmatpush.bf16.msra.mxu0 %v2298
    %2344 = vmatmul.bf16.gmra.mxu0 %v2223
    %v2345 = vpop.f32.mrf.mxu0
    %v2346 = vadd.f32 %v2332, %v2345
    %v2347 = vpop.f32.mrf.mxu0
    %v2348 = vadd.f32 %v2334, %v2347
    %2349 = vdwg.mxu0
    %v2350 = vadd.f32 %v2169, %v2346
    %v2351 = vadd.f32 %v2171, %v2348
    %v2352 = vld [vmem:[#allocation2 + $0xa] sm:$0xff]
    %v2353 = vld [vmem:[#allocation2 + $0x22] sm:$0xff]
    %v2354 = vpack.c.bf16 %v2352, %v2352
    %v2355 = vpack.c.bf16 %v2353, %v2353
    %v2356 = vld [vmem:[#allocation2 + $0xb] sm:$0xff]
    %v2357 = vld [vmem:[#allocation2 + $0x23] sm:$0xff]
    %v2358 = vpack.c.bf16 %v2356, %v2356
    %v2359 = vpack.c.bf16 %v2357, %v2357
    %v2364 = vunpack.c.l.b16 %v2354
    %v2365 = vunpack.c.l.b16 %v2358
    %v2366 = vunpack.c.l.b16 %v2355
    %v2367 = vunpack.c.l.b16 %v2359
    %s2368 = scalar_lea.vmem [#allocation4], 1536
    %v2369 = vld [vmem:[%s2368] sm:$0xf]
    %v2370 = vld [vmem:[%s2368 + $0x4] sm:$0xf]
    %v2371 = vld [vmem:[%s2368 + $0x8] sm:$0xf]
    %v2372 = vld [vmem:[%s2368 + $0xc] sm:$0xf]
    %v2373 = vld [vmem:[%s2368 + $0x10] sm:$0xf]
    %v2374 = vld [vmem:[%s2368 + $0x14] sm:$0xf]
    %v2375 = vld [vmem:[%s2368 + $0x18] sm:$0xf]
    %v2376 = vld [vmem:[%s2368 + $0x1c] sm:$0xf]
    %v2377 = vld [vmem:[%s2368 + $0x20] sm:$0xf]
    %v2378 = vld [vmem:[%s2368 + $0x24] sm:$0xf]
    %v2379 = vld [vmem:[%s2368 + $0x28] sm:$0xf]
    %v2380 = vld [vmem:[%s2368 + $0x2c] sm:$0xf]
    %v2381 = vld [vmem:[%s2368 + $0x30] sm:$0xf]
    %v2382 = vld [vmem:[%s2368 + $0x34] sm:$0xf]
    %v2383 = vld [vmem:[%s2368 + $0x38] sm:$0xf]
    %v2384 = vld [vmem:[%s2368 + $0x3c] sm:$0xf]
    %v2385 = vld [vmem:[%s2368 + $0x40] sm:$0xf]
    %v2386 = vld [vmem:[%s2368 + $0x44] sm:$0xf]
    %v2387 = vld [vmem:[%s2368 + $0x48] sm:$0xf]
    %v2388 = vld [vmem:[%s2368 + $0x4c] sm:$0xf]
    %v2389 = vld [vmem:[%s2368 + $0x50] sm:$0xf]
    %v2390 = vld [vmem:[%s2368 + $0x54] sm:$0xf]
    %v2391 = vld [vmem:[%s2368 + $0x58] sm:$0xf]
    %v2392 = vld [vmem:[%s2368 + $0x5c] sm:$0xf]
    %v2393 = vld [vmem:[%s2368 + $0x60] sm:$0xf]
    %v2394 = vld [vmem:[%s2368 + $0x64] sm:$0xf]
    %v2395 = vld [vmem:[%s2368 + $0x68] sm:$0xf]
    %v2396 = vld [vmem:[%s2368 + $0x6c] sm:$0xf]
    %v2397 = vld [vmem:[%s2368 + $0x70] sm:$0xf]
    %v2398 = vld [vmem:[%s2368 + $0x74] sm:$0xf]
    %v2399 = vld [vmem:[%s2368 + $0x78] sm:$0xf]
    %v2400 = vld [vmem:[%s2368 + $0x7c] sm:$0xf]
    %v2401 = vpack.c.b16 %v2366, %v2364
    %v2402 = vpack.c.b16 %v2367, %v2365
    %v2437 = vunpack.c.l.b16 %v2369
    %v2438 = vunpack.c.l.b16 %v2370
    %v2439 = vunpack.c.l.b16 %v2371
    %v2440 = vunpack.c.l.b16 %v2372
    %v2441 = vunpack.c.l.b16 %v2373
    %v2442 = vunpack.c.l.b16 %v2374
    %v2443 = vunpack.c.l.b16 %v2375
    %v2444 = vunpack.c.l.b16 %v2376
    %v2445 = vunpack.c.l.b16 %v2377
    %v2446 = vunpack.c.l.b16 %v2378
    %v2447 = vunpack.c.l.b16 %v2379
    %v2448 = vunpack.c.l.b16 %v2380
    %v2449 = vunpack.c.l.b16 %v2381
    %v2450 = vunpack.c.l.b16 %v2382
    %v2451 = vunpack.c.l.b16 %v2383
    %v2452 = vunpack.c.l.b16 %v2384
    %v2453 = vunpack.c.l.b16 %v2385
    %v2454 = vunpack.c.l.b16 %v2386
    %v2455 = vunpack.c.l.b16 %v2387
    %v2456 = vunpack.c.l.b16 %v2388
    %v2457 = vunpack.c.l.b16 %v2389
    %v2458 = vunpack.c.l.b16 %v2390
    %v2459 = vunpack.c.l.b16 %v2391
    %v2460 = vunpack.c.l.b16 %v2392
    %v2461 = vunpack.c.l.b16 %v2393
    %v2462 = vunpack.c.l.b16 %v2394
    %v2463 = vunpack.c.l.b16 %v2395
    %v2464 = vunpack.c.l.b16 %v2396
    %v2465 = vunpack.c.l.b16 %v2397
    %v2466 = vunpack.c.l.b16 %v2398
    %v2467 = vunpack.c.l.b16 %v2399
    %v2468 = vunpack.c.l.b16 %v2400
    %v2469 = vpack.c.b16 %v2438, %v2437
    %v2470 = vpack.c.b16 %v2440, %v2439
    %v2471 = vpack.c.b16 %v2442, %v2441
    %v2472 = vpack.c.b16 %v2444, %v2443
    %v2473 = vpack.c.b16 %v2446, %v2445
    %v2474 = vpack.c.b16 %v2448, %v2447
    %v2475 = vpack.c.b16 %v2450, %v2449
    %v2476 = vpack.c.b16 %v2452, %v2451
    %v2477 = vpack.c.b16 %v2454, %v2453
    %v2478 = vpack.c.b16 %v2456, %v2455
    %v2479 = vpack.c.b16 %v2458, %v2457
    %v2480 = vpack.c.b16 %v2460, %v2459
    %v2481 = vpack.c.b16 %v2462, %v2461
    %v2482 = vpack.c.b16 %v2464, %v2463
    %v2483 = vpack.c.b16 %v2466, %v2465
    %v2484 = vpack.c.b16 %v2468, %v2467
    %2501 = vmatpush.bf16.msra.mxu0 %v2476
    %2502 = vmatpush.bf16.msra.mxu0 %v2475
    %2503 = vmatpush.bf16.msra.mxu0 %v2474
    %2504 = vmatpush.bf16.msra.mxu0 %v2473
    %2505 = vmatpush.bf16.msra.mxu0 %v2472
    %2506 = vmatpush.bf16.msra.mxu0 %v2471
    %2507 = vmatpush.bf16.msra.mxu0 %v2470
    %2508 = vmatpush.bf16.msra.mxu0 %v2469
    %2509 = vmatmul.bf16.gmra.mxu0 %v2401
    %v2510 = vpop.f32.mrf.mxu0
    %v2511 = vadd.f32 0.0, %v2510
    %v2512 = vpop.f32.mrf.mxu0
    %v2513 = vadd.f32 0.0, %v2512
    %2514 = vdwg.mxu0
    %2515 = vmatpush.bf16.msra.mxu0 %v2484
    %2516 = vmatpush.bf16.msra.mxu0 %v2483
    %2517 = vmatpush.bf16.msra.mxu0 %v2482
    %2518 = vmatpush.bf16.msra.mxu0 %v2481
    %2519 = vmatpush.bf16.msra.mxu0 %v2480
    %2520 = vmatpush.bf16.msra.mxu0 %v2479
    %2521 = vmatpush.bf16.msra.mxu0 %v2478
    %2522 = vmatpush.bf16.msra.mxu0 %v2477
    %2523 = vmatmul.bf16.gmra.mxu0 %v2402
    %v2524 = vpop.f32.mrf.mxu0
    %v2525 = vadd.f32 %v2511, %v2524
    %v2526 = vpop.f32.mrf.mxu0
    %v2527 = vadd.f32 %v2513, %v2526
    %2528 = vdwg.mxu0
    %v2529 = vadd.f32 %v2350, %v2525
    %v2530 = vadd.f32 %v2351, %v2527
    %v2531 = vld [vmem:[#allocation2 + $0xc] sm:$0xff]
    %v2532 = vld [vmem:[#allocation2 + $0x24] sm:$0xff]
    %v2533 = vpack.c.bf16 %v2532, %v2531
    %s2534 = scalar_lea.vmem [#allocation4], 1664
    %v2535 = vld [vmem:[%s2534] sm:$0xf]
    %v2536 = vld [vmem:[%s2534 + $0x4] sm:$0xf]
    %v2537 = vld [vmem:[%s2534 + $0x8] sm:$0xf]
    %v2538 = vld [vmem:[%s2534 + $0xc] sm:$0xf]
    %v2539 = vld [vmem:[%s2534 + $0x10] sm:$0xf]
    %v2540 = vld [vmem:[%s2534 + $0x14] sm:$0xf]
    %v2541 = vld [vmem:[%s2534 + $0x18] sm:$0xf]
    %v2542 = vld [vmem:[%s2534 + $0x1c] sm:$0xf]
    %v2543 = vld [vmem:[%s2534 + $0x20] sm:$0xf]
    %v2544 = vld [vmem:[%s2534 + $0x24] sm:$0xf]
    %v2545 = vld [vmem:[%s2534 + $0x28] sm:$0xf]
    %v2546 = vld [vmem:[%s2534 + $0x2c] sm:$0xf]
    %v2547 = vld [vmem:[%s2534 + $0x30] sm:$0xf]
    %v2548 = vld [vmem:[%s2534 + $0x34] sm:$0xf]
    %v2549 = vld [vmem:[%s2534 + $0x38] sm:$0xf]
    %v2550 = vld [vmem:[%s2534 + $0x3c] sm:$0xf]
    %v2567 = vunpack.c.l.b16 %v2535
    %v2568 = vunpack.c.l.b16 %v2536
    %v2569 = vunpack.c.l.b16 %v2537
    %v2570 = vunpack.c.l.b16 %v2538
    %v2571 = vunpack.c.l.b16 %v2539
    %v2572 = vunpack.c.l.b16 %v2540
    %v2573 = vunpack.c.l.b16 %v2541
    %v2574 = vunpack.c.l.b16 %v2542
    %v2575 = vunpack.c.l.b16 %v2543
    %v2576 = vunpack.c.l.b16 %v2544
    %v2577 = vunpack.c.l.b16 %v2545
    %v2578 = vunpack.c.l.b16 %v2546
    %v2579 = vunpack.c.l.b16 %v2547
    %v2580 = vunpack.c.l.b16 %v2548
    %v2581 = vunpack.c.l.b16 %v2549
    %v2582 = vunpack.c.l.b16 %v2550
    %v2583 = vpack.c.b16 %v2568, %v2567
    %v2584 = vpack.c.b16 %v2570, %v2569
    %v2585 = vpack.c.b16 %v2572, %v2571
    %v2586 = vpack.c.b16 %v2574, %v2573
    %v2587 = vpack.c.b16 %v2576, %v2575
    %v2588 = vpack.c.b16 %v2578, %v2577
    %v2589 = vpack.c.b16 %v2580, %v2579
    %v2590 = vpack.c.b16 %v2582, %v2581
    %2599 = vmatpush.bf16.msra.mxu0 %v2590
    %2600 = vmatpush.bf16.msra.mxu0 %v2589
    %2601 = vmatpush.bf16.msra.mxu0 %v2588
    %2602 = vmatpush.bf16.msra.mxu0 %v2587
    %2603 = vmatpush.bf16.msra.mxu0 %v2586
    %2604 = vmatpush.bf16.msra.mxu0 %v2585
    %2605 = vmatpush.bf16.msra.mxu0 %v2584
    %2606 = vmatpush.bf16.msra.mxu0 %v2583
    %2607 = vmatmul.bf16.gmra.mxu0 %v2533
    %v2608 = vpop.f32.mrf.mxu0
    %v2609 = vadd.f32 0.0, %v2608
    %v2610 = vpop.f32.mrf.mxu0
    %v2611 = vadd.f32 0.0, %v2610
    %2612 = vdwg.mxu0
    %v2613 = vadd.f32 %v2529, %v2609
    %v2614 = vadd.f32 %v2530, %v2611
    %s2615 = scalar_lea.vmem [#allocation11], 2
    %v2616 = vld [vmem:[%s2615] sm:$0x1]
    %v2618 = vperm.slane %v2616, 0
    %v2620 = vadd.f32 %v2613, %v2618
    %v2621 = vadd.f32 %v2614, %v2618
    %2622 = vst [vmem:[#allocation3 + $0x8] sm:$0xff] %v2620
    %2623 = vst [vmem:[#allocation3 + $0x20] sm:$0xff] %v2621
    %v2624 = vld [vmem:[#allocation3 + $0x4] sm:$0xff]
    %v2625 = vld [vmem:[#allocation3 + $0x1c] sm:$0xff]
    %v2626 = vpack.c.bf16 %v2624, %v2624
    %v2627 = vpack.c.bf16 %v2625, %v2625
    %v2628 = vld [vmem:[#allocation3 + $0x5] sm:$0xff]
    %v2629 = vld [vmem:[#allocation3 + $0x1d] sm:$0xff]
    %v2630 = vpack.c.bf16 %v2628, %v2628
    %v2631 = vpack.c.bf16 %v2629, %v2629
    %v2636 = vunpack.c.l.b16 %v2626
    %v2637 = vunpack.c.l.b16 %v2630
    %v2638 = vunpack.c.l.b16 %v2627
    %v2639 = vunpack.c.l.b16 %v2631
    %s2640 = scalar_lea.vmem [#allocation4], 1728
    %v2641 = vld [vmem:[%s2640] sm:$0xf]
    %v2642 = vld [vmem:[%s2640 + $0x4] sm:$0xf]
    %v2643 = vld [vmem:[%s2640 + $0x8] sm:$0xf]
    %v2644 = vld [vmem:[%s2640 + $0xc] sm:$0xf]
    %v2645 = vld [vmem:[%s2640 + $0x10] sm:$0xf]
    %v2646 = vld [vmem:[%s2640 + $0x14] sm:$0xf]
    %v2647 = vld [vmem:[%s2640 + $0x18] sm:$0xf]
    %v2648 = vld [vmem:[%s2640 + $0x1c] sm:$0xf]
    %v2649 = vld [vmem:[%s2640 + $0x20] sm:$0xf]
    %v2650 = vld [vmem:[%s2640 + $0x24] sm:$0xf]
    %v2651 = vld [vmem:[%s2640 + $0x28] sm:$0xf]
    %v2652 = vld [vmem:[%s2640 + $0x2c] sm:$0xf]
    %v2653 = vld [vmem:[%s2640 + $0x30] sm:$0xf]
    %v2654 = vld [vmem:[%s2640 + $0x34] sm:$0xf]
    %v2655 = vld [vmem:[%s2640 + $0x38] sm:$0xf]
    %v2656 = vld [vmem:[%s2640 + $0x3c] sm:$0xf]
    %v2657 = vld [vmem:[%s2640 + $0x40] sm:$0xf]
    %v2658 = vld [vmem:[%s2640 + $0x44] sm:$0xf]
    %v2659 = vld [vmem:[%s2640 + $0x48] sm:$0xf]
    %v2660 = vld [vmem:[%s2640 + $0x4c] sm:$0xf]
    %v2661 = vld [vmem:[%s2640 + $0x50] sm:$0xf]
    %v2662 = vld [vmem:[%s2640 + $0x54] sm:$0xf]
    %v2663 = vld [vmem:[%s2640 + $0x58] sm:$0xf]
    %v2664 = vld [vmem:[%s2640 + $0x5c] sm:$0xf]
    %v2665 = vld [vmem:[%s2640 + $0x60] sm:$0xf]
    %v2666 = vld [vmem:[%s2640 + $0x64] sm:$0xf]
    %v2667 = vld [vmem:[%s2640 + $0x68] sm:$0xf]
    %v2668 = vld [vmem:[%s2640 + $0x6c] sm:$0xf]
    %v2669 = vld [vmem:[%s2640 + $0x70] sm:$0xf]
    %v2670 = vld [vmem:[%s2640 + $0x74] sm:$0xf]
    %v2671 = vld [vmem:[%s2640 + $0x78] sm:$0xf]
    %v2672 = vld [vmem:[%s2640 + $0x7c] sm:$0xf]
    %v2673 = vld [vmem:[#allocation3 + $0x6] sm:$0xff]
    %v2674 = vld [vmem:[#allocation3 + $0x1e] sm:$0xff]
    %v2675 = vpack.c.bf16 %v2673, %v2673
    %v2676 = vpack.c.bf16 %v2674, %v2674
    %v2677 = vld [vmem:[#allocation3 + $0x7] sm:$0xff]
    %v2678 = vld [vmem:[#allocation3 + $0x1f] sm:$0xff]
    %v2679 = vpack.c.bf16 %v2677, %v2677
    %v2680 = vpack.c.bf16 %v2678, %v2678
    %v2685 = vunpack.c.l.b16 %v2675
    %v2686 = vunpack.c.l.b16 %v2679
    %v2687 = vunpack.c.l.b16 %v2676
    %v2688 = vunpack.c.l.b16 %v2680
    %s2689 = scalar_lea.vmem [#allocation4], 1856
    %v2690 = vld [vmem:[%s2689] sm:$0xf]
    %v2691 = vld [vmem:[%s2689 + $0x4] sm:$0xf]
    %v2692 = vld [vmem:[%s2689 + $0x8] sm:$0xf]
    %v2693 = vld [vmem:[%s2689 + $0xc] sm:$0xf]
    %v2694 = vld [vmem:[%s2689 + $0x10] sm:$0xf]
    %v2695 = vld [vmem:[%s2689 + $0x14] sm:$0xf]
    %v2696 = vld [vmem:[%s2689 + $0x18] sm:$0xf]
    %v2697 = vld [vmem:[%s2689 + $0x1c] sm:$0xf]
    %v2698 = vld [vmem:[%s2689 + $0x20] sm:$0xf]
    %v2699 = vld [vmem:[%s2689 + $0x24] sm:$0xf]
    %v2700 = vld [vmem:[%s2689 + $0x28] sm:$0xf]
    %v2701 = vld [vmem:[%s2689 + $0x2c] sm:$0xf]
    %v2702 = vld [vmem:[%s2689 + $0x30] sm:$0xf]
    %v2703 = vld [vmem:[%s2689 + $0x34] sm:$0xf]
    %v2704 = vld [vmem:[%s2689 + $0x38] sm:$0xf]
    %v2705 = vld [vmem:[%s2689 + $0x3c] sm:$0xf]
    %v2706 = vld [vmem:[%s2689 + $0x40] sm:$0xf]
    %v2707 = vld [vmem:[%s2689 + $0x44] sm:$0xf]
    %v2708 = vld [vmem:[%s2689 + $0x48] sm:$0xf]
    %v2709 = vld [vmem:[%s2689 + $0x4c] sm:$0xf]
    %v2710 = vld [vmem:[%s2689 + $0x50] sm:$0xf]
    %v2711 = vld [vmem:[%s2689 + $0x54] sm:$0xf]
    %v2712 = vld [vmem:[%s2689 + $0x58] sm:$0xf]
    %v2713 = vld [vmem:[%s2689 + $0x5c] sm:$0xf]
    %v2714 = vld [vmem:[%s2689 + $0x60] sm:$0xf]
    %v2715 = vld [vmem:[%s2689 + $0x64] sm:$0xf]
    %v2716 = vld [vmem:[%s2689 + $0x68] sm:$0xf]
    %v2717 = vld [vmem:[%s2689 + $0x6c] sm:$0xf]
    %v2718 = vld [vmem:[%s2689 + $0x70] sm:$0xf]
    %v2719 = vld [vmem:[%s2689 + $0x74] sm:$0xf]
    %v2720 = vld [vmem:[%s2689 + $0x78] sm:$0xf]
    %v2721 = vld [vmem:[%s2689 + $0x7c] sm:$0xf]
    %v2722 = vpack.c.b16 %v2687, %v2685
    %v2723 = vpack.c.b16 %v2688, %v2686
    %v2758 = vunpack.c.l.b16 %v2690
    %v2759 = vunpack.c.l.b16 %v2691
    %v2760 = vunpack.c.l.b16 %v2692
    %v2761 = vunpack.c.l.b16 %v2693
    %v2762 = vunpack.c.l.b16 %v2694
    %v2763 = vunpack.c.l.b16 %v2695
    %v2764 = vunpack.c.l.b16 %v2696
    %v2765 = vunpack.c.l.b16 %v2697
    %v2766 = vunpack.c.l.b16 %v2698
    %v2767 = vunpack.c.l.b16 %v2699
    %v2768 = vunpack.c.l.b16 %v2700
    %v2769 = vunpack.c.l.b16 %v2701
    %v2770 = vunpack.c.l.b16 %v2702
    %v2771 = vunpack.c.l.b16 %v2703
    %v2772 = vunpack.c.l.b16 %v2704
    %v2773 = vunpack.c.l.b16 %v2705
    %v2774 = vunpack.c.l.b16 %v2706
    %v2775 = vunpack.c.l.b16 %v2707
    %v2776 = vunpack.c.l.b16 %v2708
    %v2777 = vunpack.c.l.b16 %v2709
    %v2778 = vunpack.c.l.b16 %v2710
    %v2779 = vunpack.c.l.b16 %v2711
    %v2780 = vunpack.c.l.b16 %v2712
    %v2781 = vunpack.c.l.b16 %v2713
    %v2782 = vunpack.c.l.b16 %v2714
    %v2783 = vunpack.c.l.b16 %v2715
    %v2784 = vunpack.c.l.b16 %v2716
    %v2785 = vunpack.c.l.b16 %v2717
    %v2786 = vunpack.c.l.b16 %v2718
    %v2787 = vunpack.c.l.b16 %v2719
    %v2788 = vunpack.c.l.b16 %v2720
    %v2789 = vunpack.c.l.b16 %v2721
    %v2790 = vpack.c.b16 %v2759, %v2758
    %v2791 = vpack.c.b16 %v2761, %v2760
    %v2792 = vpack.c.b16 %v2763, %v2762
    %v2793 = vpack.c.b16 %v2765, %v2764
    %v2794 = vpack.c.b16 %v2767, %v2766
    %v2795 = vpack.c.b16 %v2769, %v2768
    %v2796 = vpack.c.b16 %v2771, %v2770
    %v2797 = vpack.c.b16 %v2773, %v2772
    %v2798 = vpack.c.b16 %v2775, %v2774
    %v2799 = vpack.c.b16 %v2777, %v2776
    %v2800 = vpack.c.b16 %v2779, %v2778
    %v2801 = vpack.c.b16 %v2781, %v2780
    %v2802 = vpack.c.b16 %v2783, %v2782
    %v2803 = vpack.c.b16 %v2785, %v2784
    %v2804 = vpack.c.b16 %v2787, %v2786
    %v2805 = vpack.c.b16 %v2789, %v2788
    %2822 = vmatpush.bf16.msra.mxu0 %v2797
    %2823 = vmatpush.bf16.msra.mxu0 %v2796
    %2824 = vmatpush.bf16.msra.mxu0 %v2795
    %2825 = vmatpush.bf16.msra.mxu0 %v2794
    %2826 = vmatpush.bf16.msra.mxu0 %v2793
    %2827 = vmatpush.bf16.msra.mxu0 %v2792
    %2828 = vmatpush.bf16.msra.mxu0 %v2791
    %2829 = vmatpush.bf16.msra.mxu0 %v2790
    %2830 = vmatmul.bf16.gmra.mxu0 %v2722
    %v2831 = vpop.f32.mrf.mxu0
    %v2832 = vadd.f32 0.0, %v2831
    %v2833 = vpop.f32.mrf.mxu0
    %v2834 = vadd.f32 0.0, %v2833
    %2835 = vdwg.mxu0
    %2836 = vmatpush.bf16.msra.mxu0 %v2805
    %2837 = vmatpush.bf16.msra.mxu0 %v2804
    %2838 = vmatpush.bf16.msra.mxu0 %v2803
    %2839 = vmatpush.bf16.msra.mxu0 %v2802
    %2840 = vmatpush.bf16.msra.mxu0 %v2801
    %2841 = vmatpush.bf16.msra.mxu0 %v2800
    %2842 = vmatpush.bf16.msra.mxu0 %v2799
    %2843 = vmatpush.bf16.msra.mxu0 %v2798
    %2844 = vmatmul.bf16.gmra.mxu0 %v2723
    %v2845 = vpop.f32.mrf.mxu0
    %v2846 = vadd.f32 %v2832, %v2845
    %v2847 = vpop.f32.mrf.mxu0
    %v2848 = vadd.f32 %v2834, %v2847
    %2849 = vdwg.mxu0
    %v2850 = vpack.c.b16 %v2638, %v2636
    %v2851 = vpack.c.b16 %v2639, %v2637
    %v2886 = vunpack.c.l.b16 %v2641
    %v2887 = vunpack.c.l.b16 %v2642
    %v2888 = vunpack.c.l.b16 %v2643
    %v2889 = vunpack.c.l.b16 %v2644
    %v2890 = vunpack.c.l.b16 %v2645
    %v2891 = vunpack.c.l.b16 %v2646
    %v2892 = vunpack.c.l.b16 %v2647
    %v2893 = vunpack.c.l.b16 %v2648
    %v2894 = vunpack.c.l.b16 %v2649
    %v2895 = vunpack.c.l.b16 %v2650
    %v2896 = vunpack.c.l.b16 %v2651
    %v2897 = vunpack.c.l.b16 %v2652
    %v2898 = vunpack.c.l.b16 %v2653
    %v2899 = vunpack.c.l.b16 %v2654
    %v2900 = vunpack.c.l.b16 %v2655
    %v2901 = vunpack.c.l.b16 %v2656
    %v2902 = vunpack.c.l.b16 %v2657
    %v2903 = vunpack.c.l.b16 %v2658
    %v2904 = vunpack.c.l.b16 %v2659
    %v2905 = vunpack.c.l.b16 %v2660
    %v2906 = vunpack.c.l.b16 %v2661
    %v2907 = vunpack.c.l.b16 %v2662
    %v2908 = vunpack.c.l.b16 %v2663
    %v2909 = vunpack.c.l.b16 %v2664
    %v2910 = vunpack.c.l.b16 %v2665
    %v2911 = vunpack.c.l.b16 %v2666
    %v2912 = vunpack.c.l.b16 %v2667
    %v2913 = vunpack.c.l.b16 %v2668
    %v2914 = vunpack.c.l.b16 %v2669
    %v2915 = vunpack.c.l.b16 %v2670
    %v2916 = vunpack.c.l.b16 %v2671
    %v2917 = vunpack.c.l.b16 %v2672
    %v2918 = vpack.c.b16 %v2887, %v2886
    %v2919 = vpack.c.b16 %v2889, %v2888
    %v2920 = vpack.c.b16 %v2891, %v2890
    %v2921 = vpack.c.b16 %v2893, %v2892
    %v2922 = vpack.c.b16 %v2895, %v2894
    %v2923 = vpack.c.b16 %v2897, %v2896
    %v2924 = vpack.c.b16 %v2899, %v2898
    %v2925 = vpack.c.b16 %v2901, %v2900
    %v2926 = vpack.c.b16 %v2903, %v2902
    %v2927 = vpack.c.b16 %v2905, %v2904
    %v2928 = vpack.c.b16 %v2907, %v2906
    %v2929 = vpack.c.b16 %v2909, %v2908
    %v2930 = vpack.c.b16 %v2911, %v2910
    %v2931 = vpack.c.b16 %v2913, %v2912
    %v2932 = vpack.c.b16 %v2915, %v2914
    %v2933 = vpack.c.b16 %v2917, %v2916
    %2950 = vmatpush.bf16.msra.mxu0 %v2925
    %2951 = vmatpush.bf16.msra.mxu0 %v2924
    %2952 = vmatpush.bf16.msra.mxu0 %v2923
    %2953 = vmatpush.bf16.msra.mxu0 %v2922
    %2954 = vmatpush.bf16.msra.mxu0 %v2921
    %2955 = vmatpush.bf16.msra.mxu0 %v2920
    %2956 = vmatpush.bf16.msra.mxu0 %v2919
    %2957 = vmatpush.bf16.msra.mxu0 %v2918
    %2958 = vmatmul.bf16.gmra.mxu0 %v2850
    %v2959 = vpop.f32.mrf.mxu0
    %v2960 = vadd.f32 %v2846, %v2959
    %v2961 = vpop.f32.mrf.mxu0
    %v2962 = vadd.f32 %v2848, %v2961
    %2963 = vdwg.mxu0
    %2964 = vmatpush.bf16.msra.mxu0 %v2933
    %2965 = vmatpush.bf16.msra.mxu0 %v2932
    %2966 = vmatpush.bf16.msra.mxu0 %v2931
    %2967 = vmatpush.bf16.msra.mxu0 %v2930
    %2968 = vmatpush.bf16.msra.mxu0 %v2929
    %2969 = vmatpush.bf16.msra.mxu0 %v2928
    %2970 = vmatpush.bf16.msra.mxu0 %v2927
    %2971 = vmatpush.bf16.msra.mxu0 %v2926
    %2972 = vmatmul.bf16.gmra.mxu0 %v2851
    %v2973 = vpop.f32.mrf.mxu0
    %v2974 = vadd.f32 %v2960, %v2973
    %v2975 = vpop.f32.mrf.mxu0
    %v2976 = vadd.f32 %v2962, %v2975
    %2977 = vdwg.mxu0
    %v2978 = vld [vmem:[#allocation3 + $0x8] sm:$0xff]
    %v2979 = vld [vmem:[#allocation3 + $0x20] sm:$0xff]
    %v2980 = vpack.c.bf16 %v2978, %v2978
    %v2981 = vpack.c.bf16 %v2979, %v2979
    %v2982 = vld [vmem:[#allocation3 + $0x9] sm:$0xff]
    %v2983 = vld [vmem:[#allocation3 + $0x21] sm:$0xff]
    %v2984 = vpack.c.bf16 %v2982, %v2982
    %v2985 = vpack.c.bf16 %v2983, %v2983
    %v2990 = vunpack.c.l.b16 %v2980
    %v2991 = vunpack.c.l.b16 %v2984
    %v2992 = vunpack.c.l.b16 %v2981
    %v2993 = vunpack.c.l.b16 %v2985
    %s2994 = scalar_lea.vmem [#allocation4], 1984
    %v2995 = vld [vmem:[%s2994] sm:$0xf]
    %v2996 = vld [vmem:[%s2994 + $0x4] sm:$0xf]
    %v2997 = vld [vmem:[%s2994 + $0x8] sm:$0xf]
    %v2998 = vld [vmem:[%s2994 + $0xc] sm:$0xf]
    %v2999 = vld [vmem:[%s2994 + $0x10] sm:$0xf]
    %v3000 = vld [vmem:[%s2994 + $0x14] sm:$0xf]
    %v3001 = vld [vmem:[%s2994 + $0x18] sm:$0xf]
    %v3002 = vld [vmem:[%s2994 + $0x1c] sm:$0xf]
    %v3003 = vld [vmem:[%s2994 + $0x20] sm:$0xf]
    %v3004 = vld [vmem:[%s2994 + $0x24] sm:$0xf]
    %v3005 = vld [vmem:[%s2994 + $0x28] sm:$0xf]
    %v3006 = vld [vmem:[%s2994 + $0x2c] sm:$0xf]
    %v3007 = vld [vmem:[%s2994 + $0x30] sm:$0xf]
    %v3008 = vld [vmem:[%s2994 + $0x34] sm:$0xf]
    %v3009 = vld [vmem:[%s2994 + $0x38] sm:$0xf]
    %v3010 = vld [vmem:[%s2994 + $0x3c] sm:$0xf]
    %v3011 = vld [vmem:[%s2994 + $0x40] sm:$0xf]
    %v3012 = vld [vmem:[%s2994 + $0x44] sm:$0xf]
    %v3013 = vld [vmem:[%s2994 + $0x48] sm:$0xf]
    %v3014 = vld [vmem:[%s2994 + $0x4c] sm:$0xf]
    %v3015 = vld [vmem:[%s2994 + $0x50] sm:$0xf]
    %v3016 = vld [vmem:[%s2994 + $0x54] sm:$0xf]
    %v3017 = vld [vmem:[%s2994 + $0x58] sm:$0xf]
    %v3018 = vld [vmem:[%s2994 + $0x5c] sm:$0xf]
    %v3019 = vld [vmem:[%s2994 + $0x60] sm:$0xf]
    %v3020 = vld [vmem:[%s2994 + $0x64] sm:$0xf]
    %v3021 = vld [vmem:[%s2994 + $0x68] sm:$0xf]
    %v3022 = vld [vmem:[%s2994 + $0x6c] sm:$0xf]
    %v3023 = vld [vmem:[%s2994 + $0x70] sm:$0xf]
    %v3024 = vld [vmem:[%s2994 + $0x74] sm:$0xf]
    %v3025 = vld [vmem:[%s2994 + $0x78] sm:$0xf]
    %v3026 = vld [vmem:[%s2994 + $0x7c] sm:$0xf]
    %v3027 = vpack.c.b16 %v2992, %v2990
    %v3028 = vpack.c.b16 %v2993, %v2991
    %v3063 = vunpack.c.l.b16 %v2995
    %v3064 = vunpack.c.l.b16 %v2996
    %v3065 = vunpack.c.l.b16 %v2997
    %v3066 = vunpack.c.l.b16 %v2998
    %v3067 = vunpack.c.l.b16 %v2999
    %v3068 = vunpack.c.l.b16 %v3000
    %v3069 = vunpack.c.l.b16 %v3001
    %v3070 = vunpack.c.l.b16 %v3002
    %v3071 = vunpack.c.l.b16 %v3003
    %v3072 = vunpack.c.l.b16 %v3004
    %v3073 = vunpack.c.l.b16 %v3005
    %v3074 = vunpack.c.l.b16 %v3006
    %v3075 = vunpack.c.l.b16 %v3007
    %v3076 = vunpack.c.l.b16 %v3008
    %v3077 = vunpack.c.l.b16 %v3009
    %v3078 = vunpack.c.l.b16 %v3010
    %v3079 = vunpack.c.l.b16 %v3011
    %v3080 = vunpack.c.l.b16 %v3012
    %v3081 = vunpack.c.l.b16 %v3013
    %v3082 = vunpack.c.l.b16 %v3014
    %v3083 = vunpack.c.l.b16 %v3015
    %v3084 = vunpack.c.l.b16 %v3016
    %v3085 = vunpack.c.l.b16 %v3017
    %v3086 = vunpack.c.l.b16 %v3018
    %v3087 = vunpack.c.l.b16 %v3019
    %v3088 = vunpack.c.l.b16 %v3020
    %v3089 = vunpack.c.l.b16 %v3021
    %v3090 = vunpack.c.l.b16 %v3022
    %v3091 = vunpack.c.l.b16 %v3023
    %v3092 = vunpack.c.l.b16 %v3024
    %v3093 = vunpack.c.l.b16 %v3025
    %v3094 = vunpack.c.l.b16 %v3026
    %v3095 = vpack.c.b16 %v3064, %v3063
    %v3096 = vpack.c.b16 %v3066, %v3065
    %v3097 = vpack.c.b16 %v3068, %v3067
    %v3098 = vpack.c.b16 %v3070, %v3069
    %v3099 = vpack.c.b16 %v3072, %v3071
    %v3100 = vpack.c.b16 %v3074, %v3073
    %v3101 = vpack.c.b16 %v3076, %v3075
    %v3102 = vpack.c.b16 %v3078, %v3077
    %v3103 = vpack.c.b16 %v3080, %v3079
    %v3104 = vpack.c.b16 %v3082, %v3081
    %v3105 = vpack.c.b16 %v3084, %v3083
    %v3106 = vpack.c.b16 %v3086, %v3085
    %v3107 = vpack.c.b16 %v3088, %v3087
    %v3108 = vpack.c.b16 %v3090, %v3089
    %v3109 = vpack.c.b16 %v3092, %v3091
    %v3110 = vpack.c.b16 %v3094, %v3093
    %3127 = vmatpush.bf16.msra.mxu0 %v3102
    %3128 = vmatpush.bf16.msra.mxu0 %v3101
    %3129 = vmatpush.bf16.msra.mxu0 %v3100
    %3130 = vmatpush.bf16.msra.mxu0 %v3099
    %3131 = vmatpush.bf16.msra.mxu0 %v3098
    %3132 = vmatpush.bf16.msra.mxu0 %v3097
    %3133 = vmatpush.bf16.msra.mxu0 %v3096
    %3134 = vmatpush.bf16.msra.mxu0 %v3095
    %3135 = vmatmul.bf16.gmra.mxu0 %v3027
    %v3136 = vpop.f32.mrf.mxu0
    %v3137 = vadd.f32 0.0, %v3136
    %v3138 = vpop.f32.mrf.mxu0
    %v3139 = vadd.f32 0.0, %v3138
    %3140 = vdwg.mxu0
    %3141 = vmatpush.bf16.msra.mxu0 %v3110
    %3142 = vmatpush.bf16.msra.mxu0 %v3109
    %3143 = vmatpush.bf16.msra.mxu0 %v3108
    %3144 = vmatpush.bf16.msra.mxu0 %v3107
    %3145 = vmatpush.bf16.msra.mxu0 %v3106
    %3146 = vmatpush.bf16.msra.mxu0 %v3105
    %3147 = vmatpush.bf16.msra.mxu0 %v3104
    %3148 = vmatpush.bf16.msra.mxu0 %v3103
    %3149 = vmatmul.bf16.gmra.mxu0 %v3028
    %v3150 = vpop.f32.mrf.mxu0
    %v3151 = vadd.f32 %v3137, %v3150
    %v3152 = vpop.f32.mrf.mxu0
    %v3153 = vadd.f32 %v3139, %v3152
    %3154 = vdwg.mxu0
    %v3155 = vadd.f32 %v2974, %v3151
    %v3156 = vadd.f32 %v2976, %v3153
    %v3157 = vld [vmem:[#allocation3 + $0xa] sm:$0xff]
    %v3158 = vld [vmem:[#allocation3 + $0x22] sm:$0xff]
    %v3159 = vpack.c.bf16 %v3157, %v3157
    %v3160 = vpack.c.bf16 %v3158, %v3158
    %v3161 = vld [vmem:[#allocation3 + $0xb] sm:$0xff]
    %v3162 = vld [vmem:[#allocation3 + $0x23] sm:$0xff]
    %v3163 = vpack.c.bf16 %v3161, %v3161
    %v3164 = vpack.c.bf16 %v3162, %v3162
    %v3169 = vunpack.c.l.b16 %v3159
    %v3170 = vunpack.c.l.b16 %v3163
    %v3171 = vunpack.c.l.b16 %v3160
    %v3172 = vunpack.c.l.b16 %v3164
    %s3173 = scalar_lea.vmem [#allocation4], 2112
    %v3174 = vld [vmem:[%s3173] sm:$0xf]
    %v3175 = vld [vmem:[%s3173 + $0x4] sm:$0xf]
    %v3176 = vld [vmem:[%s3173 + $0x8] sm:$0xf]
    %v3177 = vld [vmem:[%s3173 + $0xc] sm:$0xf]
    %v3178 = vld [vmem:[%s3173 + $0x10] sm:$0xf]
    %v3179 = vld [vmem:[%s3173 + $0x14] sm:$0xf]
    %v3180 = vld [vmem:[%s3173 + $0x18] sm:$0xf]
    %v3181 = vld [vmem:[%s3173 + $0x1c] sm:$0xf]
    %v3182 = vld [vmem:[%s3173 + $0x20] sm:$0xf]
    %v3183 = vld [vmem:[%s3173 + $0x24] sm:$0xf]
    %v3184 = vld [vmem:[%s3173 + $0x28] sm:$0xf]
    %v3185 = vld [vmem:[%s3173 + $0x2c] sm:$0xf]
    %v3186 = vld [vmem:[%s3173 + $0x30] sm:$0xf]
    %v3187 = vld [vmem:[%s3173 + $0x34] sm:$0xf]
    %v3188 = vld [vmem:[%s3173 + $0x38] sm:$0xf]
    %v3189 = vld [vmem:[%s3173 + $0x3c] sm:$0xf]
    %v3190 = vld [vmem:[%s3173 + $0x40] sm:$0xf]
    %v3191 = vld [vmem:[%s3173 + $0x44] sm:$0xf]
    %v3192 = vld [vmem:[%s3173 + $0x48] sm:$0xf]
    %v3193 = vld [vmem:[%s3173 + $0x4c] sm:$0xf]
    %v3194 = vld [vmem:[%s3173 + $0x50] sm:$0xf]
    %v3195 = vld [vmem:[%s3173 + $0x54] sm:$0xf]
    %v3196 = vld [vmem:[%s3173 + $0x58] sm:$0xf]
    %v3197 = vld [vmem:[%s3173 + $0x5c] sm:$0xf]
    %v3198 = vld [vmem:[%s3173 + $0x60] sm:$0xf]
    %v3199 = vld [vmem:[%s3173 + $0x64] sm:$0xf]
    %v3200 = vld [vmem:[%s3173 + $0x68] sm:$0xf]
    %v3201 = vld [vmem:[%s3173 + $0x6c] sm:$0xf]
    %v3202 = vld [vmem:[%s3173 + $0x70] sm:$0xf]
    %v3203 = vld [vmem:[%s3173 + $0x74] sm:$0xf]
    %v3204 = vld [vmem:[%s3173 + $0x78] sm:$0xf]
    %v3205 = vld [vmem:[%s3173 + $0x7c] sm:$0xf]
    %v3206 = vpack.c.b16 %v3171, %v3169
    %v3207 = vpack.c.b16 %v3172, %v3170
    %v3242 = vunpack.c.l.b16 %v3174
    %v3243 = vunpack.c.l.b16 %v3175
    %v3244 = vunpack.c.l.b16 %v3176
    %v3245 = vunpack.c.l.b16 %v3177
    %v3246 = vunpack.c.l.b16 %v3178
    %v3247 = vunpack.c.l.b16 %v3179
    %v3248 = vunpack.c.l.b16 %v3180
    %v3249 = vunpack.c.l.b16 %v3181
    %v3250 = vunpack.c.l.b16 %v3182
    %v3251 = vunpack.c.l.b16 %v3183
    %v3252 = vunpack.c.l.b16 %v3184
    %v3253 = vunpack.c.l.b16 %v3185
    %v3254 = vunpack.c.l.b16 %v3186
    %v3255 = vunpack.c.l.b16 %v3187
    %v3256 = vunpack.c.l.b16 %v3188
    %v3257 = vunpack.c.l.b16 %v3189
    %v3258 = vunpack.c.l.b16 %v3190
    %v3259 = vunpack.c.l.b16 %v3191
    %v3260 = vunpack.c.l.b16 %v3192
    %v3261 = vunpack.c.l.b16 %v3193
    %v3262 = vunpack.c.l.b16 %v3194
    %v3263 = vunpack.c.l.b16 %v3195
    %v3264 = vunpack.c.l.b16 %v3196
    %v3265 = vunpack.c.l.b16 %v3197
    %v3266 = vunpack.c.l.b16 %v3198
    %v3267 = vunpack.c.l.b16 %v3199
    %v3268 = vunpack.c.l.b16 %v3200
    %v3269 = vunpack.c.l.b16 %v3201
    %v3270 = vunpack.c.l.b16 %v3202
    %v3271 = vunpack.c.l.b16 %v3203
    %v3272 = vunpack.c.l.b16 %v3204
    %v3273 = vunpack.c.l.b16 %v3205
    %v3274 = vpack.c.b16 %v3243, %v3242
    %v3275 = vpack.c.b16 %v3245, %v3244
    %v3276 = vpack.c.b16 %v3247, %v3246
    %v3277 = vpack.c.b16 %v3249, %v3248
    %v3278 = vpack.c.b16 %v3251, %v3250
    %v3279 = vpack.c.b16 %v3253, %v3252
    %v3280 = vpack.c.b16 %v3255, %v3254
    %v3281 = vpack.c.b16 %v3257, %v3256
    %v3282 = vpack.c.b16 %v3259, %v3258
    %v3283 = vpack.c.b16 %v3261, %v3260
    %v3284 = vpack.c.b16 %v3263, %v3262
    %v3285 = vpack.c.b16 %v3265, %v3264
    %v3286 = vpack.c.b16 %v3267, %v3266
    %v3287 = vpack.c.b16 %v3269, %v3268
    %v3288 = vpack.c.b16 %v3271, %v3270
    %v3289 = vpack.c.b16 %v3273, %v3272
    %3306 = vmatpush.bf16.msra.mxu0 %v3281
    %3307 = vmatpush.bf16.msra.mxu0 %v3280
    %3308 = vmatpush.bf16.msra.mxu0 %v3279
    %3309 = vmatpush.bf16.msra.mxu0 %v3278
    %3310 = vmatpush.bf16.msra.mxu0 %v3277
    %3311 = vmatpush.bf16.msra.mxu0 %v3276
    %3312 = vmatpush.bf16.msra.mxu0 %v3275
    %3313 = vmatpush.bf16.msra.mxu0 %v3274
    %3314 = vmatmul.bf16.gmra.mxu0 %v3206
    %v3315 = vpop.f32.mrf.mxu0
    %v3316 = vadd.f32 0.0, %v3315
    %v3317 = vpop.f32.mrf.mxu0
    %v3318 = vadd.f32 0.0, %v3317
    %3319 = vdwg.mxu0
    %3320 = vmatpush.bf16.msra.mxu0 %v3289
    %3321 = vmatpush.bf16.msra.mxu0 %v3288
    %3322 = vmatpush.bf16.msra.mxu0 %v3287
    %3323 = vmatpush.bf16.msra.mxu0 %v3286
    %3324 = vmatpush.bf16.msra.mxu0 %v3285
    %3325 = vmatpush.bf16.msra.mxu0 %v3284
    %3326 = vmatpush.bf16.msra.mxu0 %v3283
    %3327 = vmatpush.bf16.msra.mxu0 %v3282
    %3328 = vmatmul.bf16.gmra.mxu0 %v3207
    %v3329 = vpop.f32.mrf.mxu0
    %v3330 = vadd.f32 %v3316, %v3329
    %v3331 = vpop.f32.mrf.mxu0
    %v3332 = vadd.f32 %v3318, %v3331
    %3333 = vdwg.mxu0
    %v3334 = vadd.f32 %v3155, %v3330
    %v3335 = vadd.f32 %v3156, %v3332
    %v3336 = vld [vmem:[#allocation3 + $0xc] sm:$0xff]
    %v3337 = vld [vmem:[#allocation3 + $0x24] sm:$0xff]
    %v3338 = vpack.c.bf16 %v3337, %v3336
    %s3339 = scalar_lea.vmem [#allocation4], 2240
    %v3340 = vld [vmem:[%s3339] sm:$0xf]
    %v3341 = vld [vmem:[%s3339 + $0x4] sm:$0xf]
    %v3342 = vld [vmem:[%s3339 + $0x8] sm:$0xf]
    %v3343 = vld [vmem:[%s3339 + $0xc] sm:$0xf]
    %v3344 = vld [vmem:[%s3339 + $0x10] sm:$0xf]
    %v3345 = vld [vmem:[%s3339 + $0x14] sm:$0xf]
    %v3346 = vld [vmem:[%s3339 + $0x18] sm:$0xf]
    %v3347 = vld [vmem:[%s3339 + $0x1c] sm:$0xf]
    %v3348 = vld [vmem:[%s3339 + $0x20] sm:$0xf]
    %v3349 = vld [vmem:[%s3339 + $0x24] sm:$0xf]
    %v3350 = vld [vmem:[%s3339 + $0x28] sm:$0xf]
    %v3351 = vld [vmem:[%s3339 + $0x2c] sm:$0xf]
    %v3352 = vld [vmem:[%s3339 + $0x30] sm:$0xf]
    %v3353 = vld [vmem:[%s3339 + $0x34] sm:$0xf]
    %v3354 = vld [vmem:[%s3339 + $0x38] sm:$0xf]
    %v3355 = vld [vmem:[%s3339 + $0x3c] sm:$0xf]
    %v3372 = vunpack.c.l.b16 %v3340
    %v3373 = vunpack.c.l.b16 %v3341
    %v3374 = vunpack.c.l.b16 %v3342
    %v3375 = vunpack.c.l.b16 %v3343
    %v3376 = vunpack.c.l.b16 %v3344
    %v3377 = vunpack.c.l.b16 %v3345
    %v3378 = vunpack.c.l.b16 %v3346
    %v3379 = vunpack.c.l.b16 %v3347
    %v3380 = vunpack.c.l.b16 %v3348
    %v3381 = vunpack.c.l.b16 %v3349
    %v3382 = vunpack.c.l.b16 %v3350
    %v3383 = vunpack.c.l.b16 %v3351
    %v3384 = vunpack.c.l.b16 %v3352
    %v3385 = vunpack.c.l.b16 %v3353
    %v3386 = vunpack.c.l.b16 %v3354
    %v3387 = vunpack.c.l.b16 %v3355
    %v3388 = vpack.c.b16 %v3373, %v3372
    %v3389 = vpack.c.b16 %v3375, %v3374
    %v3390 = vpack.c.b16 %v3377, %v3376
    %v3391 = vpack.c.b16 %v3379, %v3378
    %v3392 = vpack.c.b16 %v3381, %v3380
    %v3393 = vpack.c.b16 %v3383, %v3382
    %v3394 = vpack.c.b16 %v3385, %v3384
    %v3395 = vpack.c.b16 %v3387, %v3386
    %3404 = vmatpush.bf16.msra.mxu0 %v3395
    %3405 = vmatpush.bf16.msra.mxu0 %v3394
    %3406 = vmatpush.bf16.msra.mxu0 %v3393
    %3407 = vmatpush.bf16.msra.mxu0 %v3392
    %3408 = vmatpush.bf16.msra.mxu0 %v3391
    %3409 = vmatpush.bf16.msra.mxu0 %v3390
    %3410 = vmatpush.bf16.msra.mxu0 %v3389
    %3411 = vmatpush.bf16.msra.mxu0 %v3388
    %3412 = vmatmul.bf16.gmra.mxu0 %v3338
    %v3413 = vpop.f32.mrf.mxu0
    %v3414 = vadd.f32 0.0, %v3413
    %v3415 = vpop.f32.mrf.mxu0
    %v3416 = vadd.f32 0.0, %v3415
    %3417 = vdwg.mxu0
    %v3418 = vadd.f32 %v3334, %v3414
    %v3419 = vadd.f32 %v3335, %v3416
    %s3420 = scalar_lea.vmem [#allocation11], 3
    %v3421 = vld [vmem:[%s3420] sm:$0x1]
    %v3423 = vperm.slane %v3421, 0
    %v3425 = vadd.f32 %v3418, %v3423
    %v3426 = vadd.f32 %v3419, %v3423
    %v3427 = vmul.f32 %v3425, 0.2
    %v3428 = vmul.f32 %v3426, 0.2
    %v3429 = vmax.f32 %v3425, %v3427
    %v3430 = vmax.f32 %v3426, %v3428
    %3431 = vst [vmem:[#allocation2 + $0x8] sm:$0xff] %v3429
    %3432 = vst [vmem:[#allocation2 + $0x20] sm:$0xff] %v3430
    %v3433 = vld [vmem:[#allocation2 + $0x4] sm:$0xff]
    %v3434 = vld [vmem:[#allocation2 + $0x1c] sm:$0xff]
    %v3435 = vpack.c.bf16 %v3433, %v3433
    %v3436 = vpack.c.bf16 %v3434, %v3434
    %v3437 = vld [vmem:[#allocation2 + $0x5] sm:$0xff]
    %v3438 = vld [vmem:[#allocation2 + $0x1d] sm:$0xff]
    %v3439 = vpack.c.bf16 %v3437, %v3437
    %v3440 = vpack.c.bf16 %v3438, %v3438
    %v3445 = vunpack.c.l.b16 %v3435
    %v3446 = vunpack.c.l.b16 %v3439
    %v3447 = vunpack.c.l.b16 %v3436
    %v3448 = vunpack.c.l.b16 %v3440
    %s3449 = scalar_lea.vmem [#allocation4], 2304
    %v3450 = vld [vmem:[%s3449] sm:$0xf]
    %v3451 = vld [vmem:[%s3449 + $0x4] sm:$0xf]
    %v3452 = vld [vmem:[%s3449 + $0x8] sm:$0xf]
    %v3453 = vld [vmem:[%s3449 + $0xc] sm:$0xf]
    %v3454 = vld [vmem:[%s3449 + $0x10] sm:$0xf]
    %v3455 = vld [vmem:[%s3449 + $0x14] sm:$0xf]
    %v3456 = vld [vmem:[%s3449 + $0x18] sm:$0xf]
    %v3457 = vld [vmem:[%s3449 + $0x1c] sm:$0xf]
    %v3458 = vld [vmem:[%s3449 + $0x20] sm:$0xf]
    %v3459 = vld [vmem:[%s3449 + $0x24] sm:$0xf]
    %v3460 = vld [vmem:[%s3449 + $0x28] sm:$0xf]
    %v3461 = vld [vmem:[%s3449 + $0x2c] sm:$0xf]
    %v3462 = vld [vmem:[%s3449 + $0x30] sm:$0xf]
    %v3463 = vld [vmem:[%s3449 + $0x34] sm:$0xf]
    %v3464 = vld [vmem:[%s3449 + $0x38] sm:$0xf]
    %v3465 = vld [vmem:[%s3449 + $0x3c] sm:$0xf]
    %v3466 = vld [vmem:[%s3449 + $0x40] sm:$0xf]
    %v3467 = vld [vmem:[%s3449 + $0x44] sm:$0xf]
    %v3468 = vld [vmem:[%s3449 + $0x48] sm:$0xf]
    %v3469 = vld [vmem:[%s3449 + $0x4c] sm:$0xf]
    %v3470 = vld [vmem:[%s3449 + $0x50] sm:$0xf]
    %v3471 = vld [vmem:[%s3449 + $0x54] sm:$0xf]
    %v3472 = vld [vmem:[%s3449 + $0x58] sm:$0xf]
    %v3473 = vld [vmem:[%s3449 + $0x5c] sm:$0xf]
    %v3474 = vld [vmem:[%s3449 + $0x60] sm:$0xf]
    %v3475 = vld [vmem:[%s3449 + $0x64] sm:$0xf]
    %v3476 = vld [vmem:[%s3449 + $0x68] sm:$0xf]
    %v3477 = vld [vmem:[%s3449 + $0x6c] sm:$0xf]
    %v3478 = vld [vmem:[%s3449 + $0x70] sm:$0xf]
    %v3479 = vld [vmem:[%s3449 + $0x74] sm:$0xf]
    %v3480 = vld [vmem:[%s3449 + $0x78] sm:$0xf]
    %v3481 = vld [vmem:[%s3449 + $0x7c] sm:$0xf]
    %v3482 = vld [vmem:[#allocation2 + $0x6] sm:$0xff]
    %v3483 = vld [vmem:[#allocation2 + $0x1e] sm:$0xff]
    %v3484 = vpack.c.bf16 %v3482, %v3482
    %v3485 = vpack.c.bf16 %v3483, %v3483
    %v3486 = vld [vmem:[#allocation2 + $0x7] sm:$0xff]
    %v3487 = vld [vmem:[#allocation2 + $0x1f] sm:$0xff]
    %v3488 = vpack.c.bf16 %v3486, %v3486
    %v3489 = vpack.c.bf16 %v3487, %v3487
    %v3494 = vunpack.c.l.b16 %v3484
    %v3495 = vunpack.c.l.b16 %v3488
    %v3496 = vunpack.c.l.b16 %v3485
    %v3497 = vunpack.c.l.b16 %v3489
    %s3498 = scalar_lea.vmem [#allocation4], 2432
    %v3499 = vld [vmem:[%s3498] sm:$0xf]
    %v3500 = vld [vmem:[%s3498 + $0x4] sm:$0xf]
    %v3501 = vld [vmem:[%s3498 + $0x8] sm:$0xf]
    %v3502 = vld [vmem:[%s3498 + $0xc] sm:$0xf]
    %v3503 = vld [vmem:[%s3498 + $0x10] sm:$0xf]
    %v3504 = vld [vmem:[%s3498 + $0x14] sm:$0xf]
    %v3505 = vld [vmem:[%s3498 + $0x18] sm:$0xf]
    %v3506 = vld [vmem:[%s3498 + $0x1c] sm:$0xf]
    %v3507 = vld [vmem:[%s3498 + $0x20] sm:$0xf]
    %v3508 = vld [vmem:[%s3498 + $0x24] sm:$0xf]
    %v3509 = vld [vmem:[%s3498 + $0x28] sm:$0xf]
    %v3510 = vld [vmem:[%s3498 + $0x2c] sm:$0xf]
    %v3511 = vld [vmem:[%s3498 + $0x30] sm:$0xf]
    %v3512 = vld [vmem:[%s3498 + $0x34] sm:$0xf]
    %v3513 = vld [vmem:[%s3498 + $0x38] sm:$0xf]
    %v3514 = vld [vmem:[%s3498 + $0x3c] sm:$0xf]
    %v3515 = vld [vmem:[%s3498 + $0x40] sm:$0xf]
    %v3516 = vld [vmem:[%s3498 + $0x44] sm:$0xf]
    %v3517 = vld [vmem:[%s3498 + $0x48] sm:$0xf]
    %v3518 = vld [vmem:[%s3498 + $0x4c] sm:$0xf]
    %v3519 = vld [vmem:[%s3498 + $0x50] sm:$0xf]
    %v3520 = vld [vmem:[%s3498 + $0x54] sm:$0xf]
    %v3521 = vld [vmem:[%s3498 + $0x58] sm:$0xf]
    %v3522 = vld [vmem:[%s3498 + $0x5c] sm:$0xf]
    %v3523 = vld [vmem:[%s3498 + $0x60] sm:$0xf]
    %v3524 = vld [vmem:[%s3498 + $0x64] sm:$0xf]
    %v3525 = vld [vmem:[%s3498 + $0x68] sm:$0xf]
    %v3526 = vld [vmem:[%s3498 + $0x6c] sm:$0xf]
    %v3527 = vld [vmem:[%s3498 + $0x70] sm:$0xf]
    %v3528 = vld [vmem:[%s3498 + $0x74] sm:$0xf]
    %v3529 = vld [vmem:[%s3498 + $0x78] sm:$0xf]
    %v3530 = vld [vmem:[%s3498 + $0x7c] sm:$0xf]
    %v3531 = vpack.c.b16 %v3496, %v3494
    %v3532 = vpack.c.b16 %v3497, %v3495
    %v3567 = vunpack.c.l.b16 %v3499
    %v3568 = vunpack.c.l.b16 %v3500
    %v3569 = vunpack.c.l.b16 %v3501
    %v3570 = vunpack.c.l.b16 %v3502
    %v3571 = vunpack.c.l.b16 %v3503
    %v3572 = vunpack.c.l.b16 %v3504
    %v3573 = vunpack.c.l.b16 %v3505
    %v3574 = vunpack.c.l.b16 %v3506
    %v3575 = vunpack.c.l.b16 %v3507
    %v3576 = vunpack.c.l.b16 %v3508
    %v3577 = vunpack.c.l.b16 %v3509
    %v3578 = vunpack.c.l.b16 %v3510
    %v3579 = vunpack.c.l.b16 %v3511
    %v3580 = vunpack.c.l.b16 %v3512
    %v3581 = vunpack.c.l.b16 %v3513
    %v3582 = vunpack.c.l.b16 %v3514
    %v3583 = vunpack.c.l.b16 %v3515
    %v3584 = vunpack.c.l.b16 %v3516
    %v3585 = vunpack.c.l.b16 %v3517
    %v3586 = vunpack.c.l.b16 %v3518
    %v3587 = vunpack.c.l.b16 %v3519
    %v3588 = vunpack.c.l.b16 %v3520
    %v3589 = vunpack.c.l.b16 %v3521
    %v3590 = vunpack.c.l.b16 %v3522
    %v3591 = vunpack.c.l.b16 %v3523
    %v3592 = vunpack.c.l.b16 %v3524
    %v3593 = vunpack.c.l.b16 %v3525
    %v3594 = vunpack.c.l.b16 %v3526
    %v3595 = vunpack.c.l.b16 %v3527
    %v3596 = vunpack.c.l.b16 %v3528
    %v3597 = vunpack.c.l.b16 %v3529
    %v3598 = vunpack.c.l.b16 %v3530
    %v3599 = vpack.c.b16 %v3568, %v3567
    %v3600 = vpack.c.b16 %v3570, %v3569
    %v3601 = vpack.c.b16 %v3572, %v3571
    %v3602 = vpack.c.b16 %v3574, %v3573
    %v3603 = vpack.c.b16 %v3576, %v3575
    %v3604 = vpack.c.b16 %v3578, %v3577
    %v3605 = vpack.c.b16 %v3580, %v3579
    %v3606 = vpack.c.b16 %v3582, %v3581
    %v3607 = vpack.c.b16 %v3584, %v3583
    %v3608 = vpack.c.b16 %v3586, %v3585
    %v3609 = vpack.c.b16 %v3588, %v3587
    %v3610 = vpack.c.b16 %v3590, %v3589
    %v3611 = vpack.c.b16 %v3592, %v3591
    %v3612 = vpack.c.b16 %v3594, %v3593
    %v3613 = vpack.c.b16 %v3596, %v3595
    %v3614 = vpack.c.b16 %v3598, %v3597
    %3631 = vmatpush.bf16.msra.mxu0 %v3606
    %3632 = vmatpush.bf16.msra.mxu0 %v3605
    %3633 = vmatpush.bf16.msra.mxu0 %v3604
    %3634 = vmatpush.bf16.msra.mxu0 %v3603
    %3635 = vmatpush.bf16.msra.mxu0 %v3602
    %3636 = vmatpush.bf16.msra.mxu0 %v3601
    %3637 = vmatpush.bf16.msra.mxu0 %v3600
    %3638 = vmatpush.bf16.msra.mxu0 %v3599
    %3639 = vmatmul.bf16.gmra.mxu0 %v3531
    %v3640 = vpop.f32.mrf.mxu0
    %v3641 = vadd.f32 0.0, %v3640
    %v3642 = vpop.f32.mrf.mxu0
    %v3643 = vadd.f32 0.0, %v3642
    %3644 = vdwg.mxu0
    %3645 = vmatpush.bf16.msra.mxu0 %v3614
    %3646 = vmatpush.bf16.msra.mxu0 %v3613
    %3647 = vmatpush.bf16.msra.mxu0 %v3612
    %3648 = vmatpush.bf16.msra.mxu0 %v3611
    %3649 = vmatpush.bf16.msra.mxu0 %v3610
    %3650 = vmatpush.bf16.msra.mxu0 %v3609
    %3651 = vmatpush.bf16.msra.mxu0 %v3608
    %3652 = vmatpush.bf16.msra.mxu0 %v3607
    %3653 = vmatmul.bf16.gmra.mxu0 %v3532
    %v3654 = vpop.f32.mrf.mxu0
    %v3655 = vadd.f32 %v3641, %v3654
    %v3656 = vpop.f32.mrf.mxu0
    %v3657 = vadd.f32 %v3643, %v3656
    %3658 = vdwg.mxu0
    %v3659 = vpack.c.b16 %v3447, %v3445
    %v3660 = vpack.c.b16 %v3448, %v3446
    %v3695 = vunpack.c.l.b16 %v3450
    %v3696 = vunpack.c.l.b16 %v3451
    %v3697 = vunpack.c.l.b16 %v3452
    %v3698 = vunpack.c.l.b16 %v3453
    %v3699 = vunpack.c.l.b16 %v3454
    %v3700 = vunpack.c.l.b16 %v3455
    %v3701 = vunpack.c.l.b16 %v3456
    %v3702 = vunpack.c.l.b16 %v3457
    %v3703 = vunpack.c.l.b16 %v3458
    %v3704 = vunpack.c.l.b16 %v3459
    %v3705 = vunpack.c.l.b16 %v3460
    %v3706 = vunpack.c.l.b16 %v3461
    %v3707 = vunpack.c.l.b16 %v3462
    %v3708 = vunpack.c.l.b16 %v3463
    %v3709 = vunpack.c.l.b16 %v3464
    %v3710 = vunpack.c.l.b16 %v3465
    %v3711 = vunpack.c.l.b16 %v3466
    %v3712 = vunpack.c.l.b16 %v3467
    %v3713 = vunpack.c.l.b16 %v3468
    %v3714 = vunpack.c.l.b16 %v3469
    %v3715 = vunpack.c.l.b16 %v3470
    %v3716 = vunpack.c.l.b16 %v3471
    %v3717 = vunpack.c.l.b16 %v3472
    %v3718 = vunpack.c.l.b16 %v3473
    %v3719 = vunpack.c.l.b16 %v3474
    %v3720 = vunpack.c.l.b16 %v3475
    %v3721 = vunpack.c.l.b16 %v3476
    %v3722 = vunpack.c.l.b16 %v3477
    %v3723 = vunpack.c.l.b16 %v3478
    %v3724 = vunpack.c.l.b16 %v3479
    %v3725 = vunpack.c.l.b16 %v3480
    %v3726 = vunpack.c.l.b16 %v3481
    %v3727 = vpack.c.b16 %v3696, %v3695
    %v3728 = vpack.c.b16 %v3698, %v3697
    %v3729 = vpack.c.b16 %v3700, %v3699
    %v3730 = vpack.c.b16 %v3702, %v3701
    %v3731 = vpack.c.b16 %v3704, %v3703
    %v3732 = vpack.c.b16 %v3706, %v3705
    %v3733 = vpack.c.b16 %v3708, %v3707
    %v3734 = vpack.c.b16 %v3710, %v3709
    %v3735 = vpack.c.b16 %v3712, %v3711
    %v3736 = vpack.c.b16 %v3714, %v3713
    %v3737 = vpack.c.b16 %v3716, %v3715
    %v3738 = vpack.c.b16 %v3718, %v3717
    %v3739 = vpack.c.b16 %v3720, %v3719
    %v3740 = vpack.c.b16 %v3722, %v3721
    %v3741 = vpack.c.b16 %v3724, %v3723
    %v3742 = vpack.c.b16 %v3726, %v3725
    %3759 = vmatpush.bf16.msra.mxu0 %v3734
    %3760 = vmatpush.bf16.msra.mxu0 %v3733
    %3761 = vmatpush.bf16.msra.mxu0 %v3732
    %3762 = vmatpush.bf16.msra.mxu0 %v3731
    %3763 = vmatpush.bf16.msra.mxu0 %v3730
    %3764 = vmatpush.bf16.msra.mxu0 %v3729
    %3765 = vmatpush.bf16.msra.mxu0 %v3728
    %3766 = vmatpush.bf16.msra.mxu0 %v3727
    %3767 = vmatmul.bf16.gmra.mxu0 %v3659
    %v3768 = vpop.f32.mrf.mxu0
    %v3769 = vadd.f32 %v3655, %v3768
    %v3770 = vpop.f32.mrf.mxu0
    %v3771 = vadd.f32 %v3657, %v3770
    %3772 = vdwg.mxu0
    %3773 = vmatpush.bf16.msra.mxu0 %v3742
    %3774 = vmatpush.bf16.msra.mxu0 %v3741
    %3775 = vmatpush.bf16.msra.mxu0 %v3740
    %3776 = vmatpush.bf16.msra.mxu0 %v3739
    %3777 = vmatpush.bf16.msra.mxu0 %v3738
    %3778 = vmatpush.bf16.msra.mxu0 %v3737
    %3779 = vmatpush.bf16.msra.mxu0 %v3736
    %3780 = vmatpush.bf16.msra.mxu0 %v3735
    %3781 = vmatmul.bf16.gmra.mxu0 %v3660
    %v3782 = vpop.f32.mrf.mxu0
    %v3783 = vadd.f32 %v3769, %v3782
    %v3784 = vpop.f32.mrf.mxu0
    %v3785 = vadd.f32 %v3771, %v3784
    %3786 = vdwg.mxu0
    %v3787 = vld [vmem:[#allocation2 + $0x8] sm:$0xff]
    %v3788 = vld [vmem:[#allocation2 + $0x20] sm:$0xff]
    %v3789 = vpack.c.bf16 %v3787, %v3787
    %v3790 = vpack.c.bf16 %v3788, %v3788
    %v3791 = vld [vmem:[#allocation2 + $0x9] sm:$0xff]
    %v3792 = vld [vmem:[#allocation2 + $0x21] sm:$0xff]
    %v3793 = vpack.c.bf16 %v3791, %v3791
    %v3794 = vpack.c.bf16 %v3792, %v3792
    %v3799 = vunpack.c.l.b16 %v3789
    %v3800 = vunpack.c.l.b16 %v3793
    %v3801 = vunpack.c.l.b16 %v3790
    %v3802 = vunpack.c.l.b16 %v3794
    %s3803 = scalar_lea.vmem [#allocation4], 2560
    %v3804 = vld [vmem:[%s3803] sm:$0xf]
    %v3805 = vld [vmem:[%s3803 + $0x4] sm:$0xf]
    %v3806 = vld [vmem:[%s3803 + $0x8] sm:$0xf]
    %v3807 = vld [vmem:[%s3803 + $0xc] sm:$0xf]
    %v3808 = vld [vmem:[%s3803 + $0x10] sm:$0xf]
    %v3809 = vld [vmem:[%s3803 + $0x14] sm:$0xf]
    %v3810 = vld [vmem:[%s3803 + $0x18] sm:$0xf]
    %v3811 = vld [vmem:[%s3803 + $0x1c] sm:$0xf]
    %v3812 = vld [vmem:[%s3803 + $0x20] sm:$0xf]
    %v3813 = vld [vmem:[%s3803 + $0x24] sm:$0xf]
    %v3814 = vld [vmem:[%s3803 + $0x28] sm:$0xf]
    %v3815 = vld [vmem:[%s3803 + $0x2c] sm:$0xf]
    %v3816 = vld [vmem:[%s3803 + $0x30] sm:$0xf]
    %v3817 = vld [vmem:[%s3803 + $0x34] sm:$0xf]
    %v3818 = vld [vmem:[%s3803 + $0x38] sm:$0xf]
    %v3819 = vld [vmem:[%s3803 + $0x3c] sm:$0xf]
    %v3820 = vld [vmem:[%s3803 + $0x40] sm:$0xf]
    %v3821 = vld [vmem:[%s3803 + $0x44] sm:$0xf]
    %v3822 = vld [vmem:[%s3803 + $0x48] sm:$0xf]
    %v3823 = vld [vmem:[%s3803 + $0x4c] sm:$0xf]
    %v3824 = vld [vmem:[%s3803 + $0x50] sm:$0xf]
    %v3825 = vld [vmem:[%s3803 + $0x54] sm:$0xf]
    %v3826 = vld [vmem:[%s3803 + $0x58] sm:$0xf]
    %v3827 = vld [vmem:[%s3803 + $0x5c] sm:$0xf]
    %v3828 = vld [vmem:[%s3803 + $0x60] sm:$0xf]
    %v3829 = vld [vmem:[%s3803 + $0x64] sm:$0xf]
    %v3830 = vld [vmem:[%s3803 + $0x68] sm:$0xf]
    %v3831 = vld [vmem:[%s3803 + $0x6c] sm:$0xf]
    %v3832 = vld [vmem:[%s3803 + $0x70] sm:$0xf]
    %v3833 = vld [vmem:[%s3803 + $0x74] sm:$0xf]
    %v3834 = vld [vmem:[%s3803 + $0x78] sm:$0xf]
    %v3835 = vld [vmem:[%s3803 + $0x7c] sm:$0xf]
    %v3836 = vpack.c.b16 %v3801, %v3799
    %v3837 = vpack.c.b16 %v3802, %v3800
    %v3872 = vunpack.c.l.b16 %v3804
    %v3873 = vunpack.c.l.b16 %v3805
    %v3874 = vunpack.c.l.b16 %v3806
    %v3875 = vunpack.c.l.b16 %v3807
    %v3876 = vunpack.c.l.b16 %v3808
    %v3877 = vunpack.c.l.b16 %v3809
    %v3878 = vunpack.c.l.b16 %v3810
    %v3879 = vunpack.c.l.b16 %v3811
    %v3880 = vunpack.c.l.b16 %v3812
    %v3881 = vunpack.c.l.b16 %v3813
    %v3882 = vunpack.c.l.b16 %v3814
    %v3883 = vunpack.c.l.b16 %v3815
    %v3884 = vunpack.c.l.b16 %v3816
    %v3885 = vunpack.c.l.b16 %v3817
    %v3886 = vunpack.c.l.b16 %v3818
    %v3887 = vunpack.c.l.b16 %v3819
    %v3888 = vunpack.c.l.b16 %v3820
    %v3889 = vunpack.c.l.b16 %v3821
    %v3890 = vunpack.c.l.b16 %v3822
    %v3891 = vunpack.c.l.b16 %v3823
    %v3892 = vunpack.c.l.b16 %v3824
    %v3893 = vunpack.c.l.b16 %v3825
    %v3894 = vunpack.c.l.b16 %v3826
    %v3895 = vunpack.c.l.b16 %v3827
    %v3896 = vunpack.c.l.b16 %v3828
    %v3897 = vunpack.c.l.b16 %v3829
    %v3898 = vunpack.c.l.b16 %v3830
    %v3899 = vunpack.c.l.b16 %v3831
    %v3900 = vunpack.c.l.b16 %v3832
    %v3901 = vunpack.c.l.b16 %v3833
    %v3902 = vunpack.c.l.b16 %v3834
    %v3903 = vunpack.c.l.b16 %v3835
    %v3904 = vpack.c.b16 %v3873, %v3872
    %v3905 = vpack.c.b16 %v3875, %v3874
    %v3906 = vpack.c.b16 %v3877, %v3876
    %v3907 = vpack.c.b16 %v3879, %v3878
    %v3908 = vpack.c.b16 %v3881, %v3880
    %v3909 = vpack.c.b16 %v3883, %v3882
    %v3910 = vpack.c.b16 %v3885, %v3884
    %v3911 = vpack.c.b16 %v3887, %v3886
    %v3912 = vpack.c.b16 %v3889, %v3888
    %v3913 = vpack.c.b16 %v3891, %v3890
    %v3914 = vpack.c.b16 %v3893, %v3892
    %v3915 = vpack.c.b16 %v3895, %v3894
    %v3916 = vpack.c.b16 %v3897, %v3896
    %v3917 = vpack.c.b16 %v3899, %v3898
    %v3918 = vpack.c.b16 %v3901, %v3900
    %v3919 = vpack.c.b16 %v3903, %v3902
    %3936 = vmatpush.bf16.msra.mxu0 %v3911
    %3937 = vmatpush.bf16.msra.mxu0 %v3910
    %3938 = vmatpush.bf16.msra.mxu0 %v3909
    %3939 = vmatpush.bf16.msra.mxu0 %v3908
    %3940 = vmatpush.bf16.msra.mxu0 %v3907
    %3941 = vmatpush.bf16.msra.mxu0 %v3906
    %3942 = vmatpush.bf16.msra.mxu0 %v3905
    %3943 = vmatpush.bf16.msra.mxu0 %v3904
    %3944 = vmatmul.bf16.gmra.mxu0 %v3836
    %v3945 = vpop.f32.mrf.mxu0
    %v3946 = vadd.f32 0.0, %v3945
    %v3947 = vpop.f32.mrf.mxu0
    %v3948 = vadd.f32 0.0, %v3947
    %3949 = vdwg.mxu0
    %3950 = vmatpush.bf16.msra.mxu0 %v3919
    %3951 = vmatpush.bf16.msra.mxu0 %v3918
    %3952 = vmatpush.bf16.msra.mxu0 %v3917
    %3953 = vmatpush.bf16.msra.mxu0 %v3916
    %3954 = vmatpush.bf16.msra.mxu0 %v3915
    %3955 = vmatpush.bf16.msra.mxu0 %v3914
    %3956 = vmatpush.bf16.msra.mxu0 %v3913
    %3957 = vmatpush.bf16.msra.mxu0 %v3912
    %3958 = vmatmul.bf16.gmra.mxu0 %v3837
    %v3959 = vpop.f32.mrf.mxu0
    %v3960 = vadd.f32 %v3946, %v3959
    %v3961 = vpop.f32.mrf.mxu0
    %v3962 = vadd.f32 %v3948, %v3961
    %3963 = vdwg.mxu0
    %v3964 = vadd.f32 %v3783, %v3960
    %v3965 = vadd.f32 %v3785, %v3962
    %v3966 = vld [vmem:[#allocation2 + $0xa] sm:$0xff]
    %v3967 = vld [vmem:[#allocation2 + $0x22] sm:$0xff]
    %v3968 = vpack.c.bf16 %v3966, %v3966
    %v3969 = vpack.c.bf16 %v3967, %v3967
    %v3970 = vld [vmem:[#allocation2 + $0xb] sm:$0xff]
    %v3971 = vld [vmem:[#allocation2 + $0x23] sm:$0xff]
    %v3972 = vpack.c.bf16 %v3970, %v3970
    %v3973 = vpack.c.bf16 %v3971, %v3971
    %v3978 = vunpack.c.l.b16 %v3968
    %v3979 = vunpack.c.l.b16 %v3972
    %v3980 = vunpack.c.l.b16 %v3969
    %v3981 = vunpack.c.l.b16 %v3973
    %s3982 = scalar_lea.vmem [#allocation4], 2688
    %v3983 = vld [vmem:[%s3982] sm:$0xf]
    %v3984 = vld [vmem:[%s3982 + $0x4] sm:$0xf]
    %v3985 = vld [vmem:[%s3982 + $0x8] sm:$0xf]
    %v3986 = vld [vmem:[%s3982 + $0xc] sm:$0xf]
    %v3987 = vld [vmem:[%s3982 + $0x10] sm:$0xf]
    %v3988 = vld [vmem:[%s3982 + $0x14] sm:$0xf]
    %v3989 = vld [vmem:[%s3982 + $0x18] sm:$0xf]
    %v3990 = vld [vmem:[%s3982 + $0x1c] sm:$0xf]
    %v3991 = vld [vmem:[%s3982 + $0x20] sm:$0xf]
    %v3992 = vld [vmem:[%s3982 + $0x24] sm:$0xf]
    %v3993 = vld [vmem:[%s3982 + $0x28] sm:$0xf]
    %v3994 = vld [vmem:[%s3982 + $0x2c] sm:$0xf]
    %v3995 = vld [vmem:[%s3982 + $0x30] sm:$0xf]
    %v3996 = vld [vmem:[%s3982 + $0x34] sm:$0xf]
    %v3997 = vld [vmem:[%s3982 + $0x38] sm:$0xf]
    %v3998 = vld [vmem:[%s3982 + $0x3c] sm:$0xf]
    %v3999 = vld [vmem:[%s3982 + $0x40] sm:$0xf]
    %v4000 = vld [vmem:[%s3982 + $0x44] sm:$0xf]
    %v4001 = vld [vmem:[%s3982 + $0x48] sm:$0xf]
    %v4002 = vld [vmem:[%s3982 + $0x4c] sm:$0xf]
    %v4003 = vld [vmem:[%s3982 + $0x50] sm:$0xf]
    %v4004 = vld [vmem:[%s3982 + $0x54] sm:$0xf]
    %v4005 = vld [vmem:[%s3982 + $0x58] sm:$0xf]
    %v4006 = vld [vmem:[%s3982 + $0x5c] sm:$0xf]
    %v4007 = vld [vmem:[%s3982 + $0x60] sm:$0xf]
    %v4008 = vld [vmem:[%s3982 + $0x64] sm:$0xf]
    %v4009 = vld [vmem:[%s3982 + $0x68] sm:$0xf]
    %v4010 = vld [vmem:[%s3982 + $0x6c] sm:$0xf]
    %v4011 = vld [vmem:[%s3982 + $0x70] sm:$0xf]
    %v4012 = vld [vmem:[%s3982 + $0x74] sm:$0xf]
    %v4013 = vld [vmem:[%s3982 + $0x78] sm:$0xf]
    %v4014 = vld [vmem:[%s3982 + $0x7c] sm:$0xf]
    %v4015 = vpack.c.b16 %v3980, %v3978
    %v4016 = vpack.c.b16 %v3981, %v3979
    %v4051 = vunpack.c.l.b16 %v3983
    %v4052 = vunpack.c.l.b16 %v3984
    %v4053 = vunpack.c.l.b16 %v3985
    %v4054 = vunpack.c.l.b16 %v3986
    %v4055 = vunpack.c.l.b16 %v3987
    %v4056 = vunpack.c.l.b16 %v3988
    %v4057 = vunpack.c.l.b16 %v3989
    %v4058 = vunpack.c.l.b16 %v3990
    %v4059 = vunpack.c.l.b16 %v3991
    %v4060 = vunpack.c.l.b16 %v3992
    %v4061 = vunpack.c.l.b16 %v3993
    %v4062 = vunpack.c.l.b16 %v3994
    %v4063 = vunpack.c.l.b16 %v3995
    %v4064 = vunpack.c.l.b16 %v3996
    %v4065 = vunpack.c.l.b16 %v3997
    %v4066 = vunpack.c.l.b16 %v3998
    %v4067 = vunpack.c.l.b16 %v3999
    %v4068 = vunpack.c.l.b16 %v4000
    %v4069 = vunpack.c.l.b16 %v4001
    %v4070 = vunpack.c.l.b16 %v4002
    %v4071 = vunpack.c.l.b16 %v4003
    %v4072 = vunpack.c.l.b16 %v4004
    %v4073 = vunpack.c.l.b16 %v4005
    %v4074 = vunpack.c.l.b16 %v4006
    %v4075 = vunpack.c.l.b16 %v4007
    %v4076 = vunpack.c.l.b16 %v4008
    %v4077 = vunpack.c.l.b16 %v4009
    %v4078 = vunpack.c.l.b16 %v4010
    %v4079 = vunpack.c.l.b16 %v4011
    %v4080 = vunpack.c.l.b16 %v4012
    %v4081 = vunpack.c.l.b16 %v4013
    %v4082 = vunpack.c.l.b16 %v4014
    %v4083 = vpack.c.b16 %v4052, %v4051
    %v4084 = vpack.c.b16 %v4054, %v4053
    %v4085 = vpack.c.b16 %v4056, %v4055
    %v4086 = vpack.c.b16 %v4058, %v4057
    %v4087 = vpack.c.b16 %v4060, %v4059
    %v4088 = vpack.c.b16 %v4062, %v4061
    %v4089 = vpack.c.b16 %v4064, %v4063
    %v4090 = vpack.c.b16 %v4066, %v4065
    %v4091 = vpack.c.b16 %v4068, %v4067
    %v4092 = vpack.c.b16 %v4070, %v4069
    %v4093 = vpack.c.b16 %v4072, %v4071
    %v4094 = vpack.c.b16 %v4074, %v4073
    %v4095 = vpack.c.b16 %v4076, %v4075
    %v4096 = vpack.c.b16 %v4078, %v4077
    %v4097 = vpack.c.b16 %v4080, %v4079
    %v4098 = vpack.c.b16 %v4082, %v4081
    %4115 = vmatpush.bf16.msra.mxu0 %v4090
    %4116 = vmatpush.bf16.msra.mxu0 %v4089
    %4117 = vmatpush.bf16.msra.mxu0 %v4088
    %4118 = vmatpush.bf16.msra.mxu0 %v4087
    %4119 = vmatpush.bf16.msra.mxu0 %v4086
    %4120 = vmatpush.bf16.msra.mxu0 %v4085
    %4121 = vmatpush.bf16.msra.mxu0 %v4084
    %4122 = vmatpush.bf16.msra.mxu0 %v4083
    %4123 = vmatmul.bf16.gmra.mxu0 %v4015
    %v4124 = vpop.f32.mrf.mxu0
    %v4125 = vadd.f32 0.0, %v4124
    %v4126 = vpop.f32.mrf.mxu0
    %v4127 = vadd.f32 0.0, %v4126
    %4128 = vdwg.mxu0
    %4129 = vmatpush.bf16.msra.mxu0 %v4098
    %4130 = vmatpush.bf16.msra.mxu0 %v4097
    %4131 = vmatpush.bf16.msra.mxu0 %v4096
    %4132 = vmatpush.bf16.msra.mxu0 %v4095
    %4133 = vmatpush.bf16.msra.mxu0 %v4094
    %4134 = vmatpush.bf16.msra.mxu0 %v4093
    %4135 = vmatpush.bf16.msra.mxu0 %v4092
    %4136 = vmatpush.bf16.msra.mxu0 %v4091
    %4137 = vmatmul.bf16.gmra.mxu0 %v4016
    %v4138 = vpop.f32.mrf.mxu0
    %v4139 = vadd.f32 %v4125, %v4138
    %v4140 = vpop.f32.mrf.mxu0
    %v4141 = vadd.f32 %v4127, %v4140
    %4142 = vdwg.mxu0
    %v4143 = vadd.f32 %v3964, %v4139
    %v4144 = vadd.f32 %v3965, %v4141
    %v4145 = vld [vmem:[#allocation2 + $0xc] sm:$0xff]
    %v4146 = vld [vmem:[#allocation2 + $0x24] sm:$0xff]
    %v4147 = vpack.c.bf16 %v4146, %v4145
    %s4148 = scalar_lea.vmem [#allocation4], 2816
    %v4149 = vld [vmem:[%s4148] sm:$0xf]
    %v4150 = vld [vmem:[%s4148 + $0x4] sm:$0xf]
    %v4151 = vld [vmem:[%s4148 + $0x8] sm:$0xf]
    %v4152 = vld [vmem:[%s4148 + $0xc] sm:$0xf]
    %v4153 = vld [vmem:[%s4148 + $0x10] sm:$0xf]
    %v4154 = vld [vmem:[%s4148 + $0x14] sm:$0xf]
    %v4155 = vld [vmem:[%s4148 + $0x18] sm:$0xf]
    %v4156 = vld [vmem:[%s4148 + $0x1c] sm:$0xf]
    %v4157 = vld [vmem:[%s4148 + $0x20] sm:$0xf]
    %v4158 = vld [vmem:[%s4148 + $0x24] sm:$0xf]
    %v4159 = vld [vmem:[%s4148 + $0x28] sm:$0xf]
    %v4160 = vld [vmem:[%s4148 + $0x2c] sm:$0xf]
    %v4161 = vld [vmem:[%s4148 + $0x30] sm:$0xf]
    %v4162 = vld [vmem:[%s4148 + $0x34] sm:$0xf]
    %v4163 = vld [vmem:[%s4148 + $0x38] sm:$0xf]
    %v4164 = vld [vmem:[%s4148 + $0x3c] sm:$0xf]
    %v4181 = vunpack.c.l.b16 %v4149
    %v4182 = vunpack.c.l.b16 %v4150
    %v4183 = vunpack.c.l.b16 %v4151
    %v4184 = vunpack.c.l.b16 %v4152
    %v4185 = vunpack.c.l.b16 %v4153
    %v4186 = vunpack.c.l.b16 %v4154
    %v4187 = vunpack.c.l.b16 %v4155
    %v4188 = vunpack.c.l.b16 %v4156
    %v4189 = vunpack.c.l.b16 %v4157
    %v4190 = vunpack.c.l.b16 %v4158
    %v4191 = vunpack.c.l.b16 %v4159
    %v4192 = vunpack.c.l.b16 %v4160
    %v4193 = vunpack.c.l.b16 %v4161
    %v4194 = vunpack.c.l.b16 %v4162
    %v4195 = vunpack.c.l.b16 %v4163
    %v4196 = vunpack.c.l.b16 %v4164
    %v4197 = vpack.c.b16 %v4182, %v4181
    %v4198 = vpack.c.b16 %v4184, %v4183
    %v4199 = vpack.c.b16 %v4186, %v4185
    %v4200 = vpack.c.b16 %v4188, %v4187
    %v4201 = vpack.c.b16 %v4190, %v4189
    %v4202 = vpack.c.b16 %v4192, %v4191
    %v4203 = vpack.c.b16 %v4194, %v4193
    %v4204 = vpack.c.b16 %v4196, %v4195
    %4213 = vmatpush.bf16.msra.mxu0 %v4204
    %4214 = vmatpush.bf16.msra.mxu0 %v4203
    %4215 = vmatpush.bf16.msra.mxu0 %v4202
    %4216 = vmatpush.bf16.msra.mxu0 %v4201
    %4217 = vmatpush.bf16.msra.mxu0 %v4200
    %4218 = vmatpush.bf16.msra.mxu0 %v4199
    %4219 = vmatpush.bf16.msra.mxu0 %v4198
    %4220 = vmatpush.bf16.msra.mxu0 %v4197
    %4221 = vmatmul.bf16.gmra.mxu0 %v4147
    %v4222 = vpop.f32.mrf.mxu0
    %v4223 = vadd.f32 0.0, %v4222
    %v4224 = vpop.f32.mrf.mxu0
    %v4225 = vadd.f32 0.0, %v4224
    %4226 = vdwg.mxu0
    %v4227 = vadd.f32 %v4143, %v4223
    %v4228 = vadd.f32 %v4144, %v4225
    %s4229 = scalar_lea.vmem [#allocation11], 4
    %v4230 = vld [vmem:[%s4229] sm:$0x1]
    %v4232 = vperm.slane %v4230, 0
    %v4234 = vadd.f32 %v4227, %v4232
    %v4235 = vadd.f32 %v4228, %v4232
    %v4236 = vld [vmem:[#allocation3 + $0x8] sm:$0xff]
    %v4237 = vld [vmem:[#allocation3 + $0x20] sm:$0xff]
    %v4238 = vadd.f32 %v4234, %v4236
    %v4239 = vadd.f32 %v4235, %v4237
    %v4240 = vmul.f32 %v4238, 0.2
    %v4241 = vmul.f32 %v4239, 0.2
    %v4242 = vmax.f32 %v4238, %v4240
    %v4243 = vmax.f32 %v4239, %v4241
    %4244 = vst [vmem:[#allocation3 + $0x8] sm:$0xff] %v4242
    %4245 = vst [vmem:[#allocation3 + $0x20] sm:$0xff] %v4243
    %v4246 = vld [vmem:[#allocation3 + $0x4] sm:$0xff]
    %v4247 = vld [vmem:[#allocation3 + $0x1c] sm:$0xff]
    %v4248 = vpack.c.bf16 %v4246, %v4246
    %v4249 = vpack.c.bf16 %v4247, %v4247
    %v4250 = vld [vmem:[#allocation3 + $0x5] sm:$0xff]
    %v4251 = vld [vmem:[#allocation3 + $0x1d] sm:$0xff]
    %v4252 = vpack.c.bf16 %v4250, %v4250
    %v4253 = vpack.c.bf16 %v4251, %v4251
    %v4258 = vunpack.c.l.b16 %v4248
    %v4259 = vunpack.c.l.b16 %v4252
    %v4260 = vunpack.c.l.b16 %v4249
    %v4261 = vunpack.c.l.b16 %v4253
    %s4262 = scalar_lea.vmem [#allocation4], 2880
    %v4263 = vld [vmem:[%s4262] sm:$0xf]
    %v4264 = vld [vmem:[%s4262 + $0x4] sm:$0xf]
    %v4265 = vld [vmem:[%s4262 + $0x8] sm:$0xf]
    %v4266 = vld [vmem:[%s4262 + $0xc] sm:$0xf]
    %v4267 = vld [vmem:[%s4262 + $0x10] sm:$0xf]
    %v4268 = vld [vmem:[%s4262 + $0x14] sm:$0xf]
    %v4269 = vld [vmem:[%s4262 + $0x18] sm:$0xf]
    %v4270 = vld [vmem:[%s4262 + $0x1c] sm:$0xf]
    %v4271 = vld [vmem:[%s4262 + $0x20] sm:$0xf]
    %v4272 = vld [vmem:[%s4262 + $0x24] sm:$0xf]
    %v4273 = vld [vmem:[%s4262 + $0x28] sm:$0xf]
    %v4274 = vld [vmem:[%s4262 + $0x2c] sm:$0xf]
    %v4275 = vld [vmem:[%s4262 + $0x30] sm:$0xf]
    %v4276 = vld [vmem:[%s4262 + $0x34] sm:$0xf]
    %v4277 = vld [vmem:[%s4262 + $0x38] sm:$0xf]
    %v4278 = vld [vmem:[%s4262 + $0x3c] sm:$0xf]
    %v4279 = vld [vmem:[%s4262 + $0x40] sm:$0xf]
    %v4280 = vld [vmem:[%s4262 + $0x44] sm:$0xf]
    %v4281 = vld [vmem:[%s4262 + $0x48] sm:$0xf]
    %v4282 = vld [vmem:[%s4262 + $0x4c] sm:$0xf]
    %v4283 = vld [vmem:[%s4262 + $0x50] sm:$0xf]
    %v4284 = vld [vmem:[%s4262 + $0x54] sm:$0xf]
    %v4285 = vld [vmem:[%s4262 + $0x58] sm:$0xf]
    %v4286 = vld [vmem:[%s4262 + $0x5c] sm:$0xf]
    %v4287 = vld [vmem:[%s4262 + $0x60] sm:$0xf]
    %v4288 = vld [vmem:[%s4262 + $0x64] sm:$0xf]
    %v4289 = vld [vmem:[%s4262 + $0x68] sm:$0xf]
    %v4290 = vld [vmem:[%s4262 + $0x6c] sm:$0xf]
    %v4291 = vld [vmem:[%s4262 + $0x70] sm:$0xf]
    %v4292 = vld [vmem:[%s4262 + $0x74] sm:$0xf]
    %v4293 = vld [vmem:[%s4262 + $0x78] sm:$0xf]
    %v4294 = vld [vmem:[%s4262 + $0x7c] sm:$0xf]
    %v4295 = vld [vmem:[#allocation3 + $0x6] sm:$0xff]
    %v4296 = vld [vmem:[#allocation3 + $0x1e] sm:$0xff]
    %v4297 = vpack.c.bf16 %v4295, %v4295
    %v4298 = vpack.c.bf16 %v4296, %v4296
    %v4299 = vld [vmem:[#allocation3 + $0x7] sm:$0xff]
    %v4300 = vld [vmem:[#allocation3 + $0x1f] sm:$0xff]
    %v4301 = vpack.c.bf16 %v4299, %v4299
    %v4302 = vpack.c.bf16 %v4300, %v4300
    %v4307 = vunpack.c.l.b16 %v4297
    %v4308 = vunpack.c.l.b16 %v4301
    %v4309 = vunpack.c.l.b16 %v4298
    %v4310 = vunpack.c.l.b16 %v4302
    %s4311 = scalar_lea.vmem [#allocation4], 3008
    %v4312 = vld [vmem:[%s4311] sm:$0xf]
    %v4313 = vld [vmem:[%s4311 + $0x4] sm:$0xf]
    %v4314 = vld [vmem:[%s4311 + $0x8] sm:$0xf]
    %v4315 = vld [vmem:[%s4311 + $0xc] sm:$0xf]
    %v4316 = vld [vmem:[%s4311 + $0x10] sm:$0xf]
    %v4317 = vld [vmem:[%s4311 + $0x14] sm:$0xf]
    %v4318 = vld [vmem:[%s4311 + $0x18] sm:$0xf]
    %v4319 = vld [vmem:[%s4311 + $0x1c] sm:$0xf]
    %v4320 = vld [vmem:[%s4311 + $0x20] sm:$0xf]
    %v4321 = vld [vmem:[%s4311 + $0x24] sm:$0xf]
    %v4322 = vld [vmem:[%s4311 + $0x28] sm:$0xf]
    %v4323 = vld [vmem:[%s4311 + $0x2c] sm:$0xf]
    %v4324 = vld [vmem:[%s4311 + $0x30] sm:$0xf]
    %v4325 = vld [vmem:[%s4311 + $0x34] sm:$0xf]
    %v4326 = vld [vmem:[%s4311 + $0x38] sm:$0xf]
    %v4327 = vld [vmem:[%s4311 + $0x3c] sm:$0xf]
    %v4328 = vld [vmem:[%s4311 + $0x40] sm:$0xf]
    %v4329 = vld [vmem:[%s4311 + $0x44] sm:$0xf]
    %v4330 = vld [vmem:[%s4311 + $0x48] sm:$0xf]
    %v4331 = vld [vmem:[%s4311 + $0x4c] sm:$0xf]
    %v4332 = vld [vmem:[%s4311 + $0x50] sm:$0xf]
    %v4333 = vld [vmem:[%s4311 + $0x54] sm:$0xf]
    %v4334 = vld [vmem:[%s4311 + $0x58] sm:$0xf]
    %v4335 = vld [vmem:[%s4311 + $0x5c] sm:$0xf]
    %v4336 = vld [vmem:[%s4311 + $0x60] sm:$0xf]
    %v4337 = vld [vmem:[%s4311 + $0x64] sm:$0xf]
    %v4338 = vld [vmem:[%s4311 + $0x68] sm:$0xf]
    %v4339 = vld [vmem:[%s4311 + $0x6c] sm:$0xf]
    %v4340 = vld [vmem:[%s4311 + $0x70] sm:$0xf]
    %v4341 = vld [vmem:[%s4311 + $0x74] sm:$0xf]
    %v4342 = vld [vmem:[%s4311 + $0x78] sm:$0xf]
    %v4343 = vld [vmem:[%s4311 + $0x7c] sm:$0xf]
    %v4344 = vpack.c.b16 %v4309, %v4307
    %v4345 = vpack.c.b16 %v4310, %v4308
    %v4380 = vunpack.c.l.b16 %v4312
    %v4381 = vunpack.c.l.b16 %v4313
    %v4382 = vunpack.c.l.b16 %v4314
    %v4383 = vunpack.c.l.b16 %v4315
    %v4384 = vunpack.c.l.b16 %v4316
    %v4385 = vunpack.c.l.b16 %v4317
    %v4386 = vunpack.c.l.b16 %v4318
    %v4387 = vunpack.c.l.b16 %v4319
    %v4388 = vunpack.c.l.b16 %v4320
    %v4389 = vunpack.c.l.b16 %v4321
    %v4390 = vunpack.c.l.b16 %v4322
    %v4391 = vunpack.c.l.b16 %v4323
    %v4392 = vunpack.c.l.b16 %v4324
    %v4393 = vunpack.c.l.b16 %v4325
    %v4394 = vunpack.c.l.b16 %v4326
    %v4395 = vunpack.c.l.b16 %v4327
    %v4396 = vunpack.c.l.b16 %v4328
    %v4397 = vunpack.c.l.b16 %v4329
    %v4398 = vunpack.c.l.b16 %v4330
    %v4399 = vunpack.c.l.b16 %v4331
    %v4400 = vunpack.c.l.b16 %v4332
    %v4401 = vunpack.c.l.b16 %v4333
    %v4402 = vunpack.c.l.b16 %v4334
    %v4403 = vunpack.c.l.b16 %v4335
    %v4404 = vunpack.c.l.b16 %v4336
    %v4405 = vunpack.c.l.b16 %v4337
    %v4406 = vunpack.c.l.b16 %v4338
    %v4407 = vunpack.c.l.b16 %v4339
    %v4408 = vunpack.c.l.b16 %v4340
    %v4409 = vunpack.c.l.b16 %v4341
    %v4410 = vunpack.c.l.b16 %v4342
    %v4411 = vunpack.c.l.b16 %v4343
    %v4412 = vpack.c.b16 %v4381, %v4380
    %v4413 = vpack.c.b16 %v4383, %v4382
    %v4414 = vpack.c.b16 %v4385, %v4384
    %v4415 = vpack.c.b16 %v4387, %v4386
    %v4416 = vpack.c.b16 %v4389, %v4388
    %v4417 = vpack.c.b16 %v4391, %v4390
    %v4418 = vpack.c.b16 %v4393, %v4392
    %v4419 = vpack.c.b16 %v4395, %v4394
    %v4420 = vpack.c.b16 %v4397, %v4396
    %v4421 = vpack.c.b16 %v4399, %v4398
    %v4422 = vpack.c.b16 %v4401, %v4400
    %v4423 = vpack.c.b16 %v4403, %v4402
    %v4424 = vpack.c.b16 %v4405, %v4404
    %v4425 = vpack.c.b16 %v4407, %v4406
    %v4426 = vpack.c.b16 %v4409, %v4408
    %v4427 = vpack.c.b16 %v4411, %v4410
    %4444 = vmatpush.bf16.msra.mxu0 %v4419
    %4445 = vmatpush.bf16.msra.mxu0 %v4418
    %4446 = vmatpush.bf16.msra.mxu0 %v4417
    %4447 = vmatpush.bf16.msra.mxu0 %v4416
    %4448 = vmatpush.bf16.msra.mxu0 %v4415
    %4449 = vmatpush.bf16.msra.mxu0 %v4414
    %4450 = vmatpush.bf16.msra.mxu0 %v4413
    %4451 = vmatpush.bf16.msra.mxu0 %v4412
    %4452 = vmatmul.bf16.gmra.mxu0 %v4344
    %v4453 = vpop.f32.mrf.mxu0
    %v4454 = vadd.f32 0.0, %v4453
    %v4455 = vpop.f32.mrf.mxu0
    %v4456 = vadd.f32 0.0, %v4455
    %4457 = vdwg.mxu0
    %4458 = vmatpush.bf16.msra.mxu0 %v4427
    %4459 = vmatpush.bf16.msra.mxu0 %v4426
    %4460 = vmatpush.bf16.msra.mxu0 %v4425
    %4461 = vmatpush.bf16.msra.mxu0 %v4424
    %4462 = vmatpush.bf16.msra.mxu0 %v4423
    %4463 = vmatpush.bf16.msra.mxu0 %v4422
    %4464 = vmatpush.bf16.msra.mxu0 %v4421
    %4465 = vmatpush.bf16.msra.mxu0 %v4420
    %4466 = vmatmul.bf16.gmra.mxu0 %v4345
    %v4467 = vpop.f32.mrf.mxu0
    %v4468 = vadd.f32 %v4454, %v4467
    %v4469 = vpop.f32.mrf.mxu0
    %v4470 = vadd.f32 %v4456, %v4469
    %4471 = vdwg.mxu0
    %v4472 = vpack.c.b16 %v4260, %v4258
    %v4473 = vpack.c.b16 %v4261, %v4259
    %v4508 = vunpack.c.l.b16 %v4263
    %v4509 = vunpack.c.l.b16 %v4264
    %v4510 = vunpack.c.l.b16 %v4265
    %v4511 = vunpack.c.l.b16 %v4266
    %v4512 = vunpack.c.l.b16 %v4267
    %v4513 = vunpack.c.l.b16 %v4268
    %v4514 = vunpack.c.l.b16 %v4269
    %v4515 = vunpack.c.l.b16 %v4270
    %v4516 = vunpack.c.l.b16 %v4271
    %v4517 = vunpack.c.l.b16 %v4272
    %v4518 = vunpack.c.l.b16 %v4273
    %v4519 = vunpack.c.l.b16 %v4274
    %v4520 = vunpack.c.l.b16 %v4275
    %v4521 = vunpack.c.l.b16 %v4276
    %v4522 = vunpack.c.l.b16 %v4277
    %v4523 = vunpack.c.l.b16 %v4278
    %v4524 = vunpack.c.l.b16 %v4279
    %v4525 = vunpack.c.l.b16 %v4280
    %v4526 = vunpack.c.l.b16 %v4281
    %v4527 = vunpack.c.l.b16 %v4282
    %v4528 = vunpack.c.l.b16 %v4283
    %v4529 = vunpack.c.l.b16 %v4284
    %v4530 = vunpack.c.l.b16 %v4285
    %v4531 = vunpack.c.l.b16 %v4286
    %v4532 = vunpack.c.l.b16 %v4287
    %v4533 = vunpack.c.l.b16 %v4288
    %v4534 = vunpack.c.l.b16 %v4289
    %v4535 = vunpack.c.l.b16 %v4290
    %v4536 = vunpack.c.l.b16 %v4291
    %v4537 = vunpack.c.l.b16 %v4292
    %v4538 = vunpack.c.l.b16 %v4293
    %v4539 = vunpack.c.l.b16 %v4294
    %v4540 = vpack.c.b16 %v4509, %v4508
    %v4541 = vpack.c.b16 %v4511, %v4510
    %v4542 = vpack.c.b16 %v4513, %v4512
    %v4543 = vpack.c.b16 %v4515, %v4514
    %v4544 = vpack.c.b16 %v4517, %v4516
    %v4545 = vpack.c.b16 %v4519, %v4518
    %v4546 = vpack.c.b16 %v4521, %v4520
    %v4547 = vpack.c.b16 %v4523, %v4522
    %v4548 = vpack.c.b16 %v4525, %v4524
    %v4549 = vpack.c.b16 %v4527, %v4526
    %v4550 = vpack.c.b16 %v4529, %v4528
    %v4551 = vpack.c.b16 %v4531, %v4530
    %v4552 = vpack.c.b16 %v4533, %v4532
    %v4553 = vpack.c.b16 %v4535, %v4534
    %v4554 = vpack.c.b16 %v4537, %v4536
    %v4555 = vpack.c.b16 %v4539, %v4538
    %4572 = vmatpush.bf16.msra.mxu0 %v4547
    %4573 = vmatpush.bf16.msra.mxu0 %v4546
    %4574 = vmatpush.bf16.msra.mxu0 %v4545
    %4575 = vmatpush.bf16.msra.mxu0 %v4544
    %4576 = vmatpush.bf16.msra.mxu0 %v4543
    %4577 = vmatpush.bf16.msra.mxu0 %v4542
    %4578 = vmatpush.bf16.msra.mxu0 %v4541
    %4579 = vmatpush.bf16.msra.mxu0 %v4540
    %4580 = vmatmul.bf16.gmra.mxu0 %v4472
    %v4581 = vpop.f32.mrf.mxu0
    %v4582 = vadd.f32 %v4468, %v4581
    %v4583 = vpop.f32.mrf.mxu0
    %v4584 = vadd.f32 %v4470, %v4583
    %4585 = vdwg.mxu0
    %4586 = vmatpush.bf16.msra.mxu0 %v4555
    %4587 = vmatpush.bf16.msra.mxu0 %v4554
    %4588 = vmatpush.bf16.msra.mxu0 %v4553
    %4589 = vmatpush.bf16.msra.mxu0 %v4552
    %4590 = vmatpush.bf16.msra.mxu0 %v4551
    %4591 = vmatpush.bf16.msra.mxu0 %v4550
    %4592 = vmatpush.bf16.msra.mxu0 %v4549
    %4593 = vmatpush.bf16.msra.mxu0 %v4548
    %4594 = vmatmul.bf16.gmra.mxu0 %v4473
    %v4595 = vpop.f32.mrf.mxu0
    %v4596 = vadd.f32 %v4582, %v4595
    %v4597 = vpop.f32.mrf.mxu0
    %v4598 = vadd.f32 %v4584, %v4597
    %4599 = vdwg.mxu0
    %v4600 = vld [vmem:[#allocation3 + $0x8] sm:$0xff]
    %v4601 = vld [vmem:[#allocation3 + $0x20] sm:$0xff]
    %v4602 = vpack.c.bf16 %v4600, %v4600
    %v4603 = vpack.c.bf16 %v4601, %v4601
    %v4604 = vld [vmem:[#allocation3 + $0x9] sm:$0xff]
    %v4605 = vld [vmem:[#allocation3 + $0x21] sm:$0xff]
    %v4606 = vpack.c.bf16 %v4604, %v4604
    %v4607 = vpack.c.bf16 %v4605, %v4605
    %v4612 = vunpack.c.l.b16 %v4602
    %v4613 = vunpack.c.l.b16 %v4606
    %v4614 = vunpack.c.l.b16 %v4603
    %v4615 = vunpack.c.l.b16 %v4607
    %s4616 = scalar_lea.vmem [#allocation4], 3136
    %v4617 = vld [vmem:[%s4616] sm:$0xf]
    %v4618 = vld [vmem:[%s4616 + $0x4] sm:$0xf]
    %v4619 = vld [vmem:[%s4616 + $0x8] sm:$0xf]
    %v4620 = vld [vmem:[%s4616 + $0xc] sm:$0xf]
    %v4621 = vld [vmem:[%s4616 + $0x10] sm:$0xf]
    %v4622 = vld [vmem:[%s4616 + $0x14] sm:$0xf]
    %v4623 = vld [vmem:[%s4616 + $0x18] sm:$0xf]
    %v4624 = vld [vmem:[%s4616 + $0x1c] sm:$0xf]
    %v4625 = vld [vmem:[%s4616 + $0x20] sm:$0xf]
    %v4626 = vld [vmem:[%s4616 + $0x24] sm:$0xf]
    %v4627 = vld [vmem:[%s4616 + $0x28] sm:$0xf]
    %v4628 = vld [vmem:[%s4616 + $0x2c] sm:$0xf]
    %v4629 = vld [vmem:[%s4616 + $0x30] sm:$0xf]
    %v4630 = vld [vmem:[%s4616 + $0x34] sm:$0xf]
    %v4631 = vld [vmem:[%s4616 + $0x38] sm:$0xf]
    %v4632 = vld [vmem:[%s4616 + $0x3c] sm:$0xf]
    %v4633 = vld [vmem:[%s4616 + $0x40] sm:$0xf]
    %v4634 = vld [vmem:[%s4616 + $0x44] sm:$0xf]
    %v4635 = vld [vmem:[%s4616 + $0x48] sm:$0xf]
    %v4636 = vld [vmem:[%s4616 + $0x4c] sm:$0xf]
    %v4637 = vld [vmem:[%s4616 + $0x50] sm:$0xf]
    %v4638 = vld [vmem:[%s4616 + $0x54] sm:$0xf]
    %v4639 = vld [vmem:[%s4616 + $0x58] sm:$0xf]
    %v4640 = vld [vmem:[%s4616 + $0x5c] sm:$0xf]
    %v4641 = vld [vmem:[%s4616 + $0x60] sm:$0xf]
    %v4642 = vld [vmem:[%s4616 + $0x64] sm:$0xf]
    %v4643 = vld [vmem:[%s4616 + $0x68] sm:$0xf]
    %v4644 = vld [vmem:[%s4616 + $0x6c] sm:$0xf]
    %v4645 = vld [vmem:[%s4616 + $0x70] sm:$0xf]
    %v4646 = vld [vmem:[%s4616 + $0x74] sm:$0xf]
    %v4647 = vld [vmem:[%s4616 + $0x78] sm:$0xf]
    %v4648 = vld [vmem:[%s4616 + $0x7c] sm:$0xf]
    %v4649 = vpack.c.b16 %v4614, %v4612
    %v4650 = vpack.c.b16 %v4615, %v4613
    %v4685 = vunpack.c.l.b16 %v4617
    %v4686 = vunpack.c.l.b16 %v4618
    %v4687 = vunpack.c.l.b16 %v4619
    %v4688 = vunpack.c.l.b16 %v4620
    %v4689 = vunpack.c.l.b16 %v4621
    %v4690 = vunpack.c.l.b16 %v4622
    %v4691 = vunpack.c.l.b16 %v4623
    %v4692 = vunpack.c.l.b16 %v4624
    %v4693 = vunpack.c.l.b16 %v4625
    %v4694 = vunpack.c.l.b16 %v4626
    %v4695 = vunpack.c.l.b16 %v4627
    %v4696 = vunpack.c.l.b16 %v4628
    %v4697 = vunpack.c.l.b16 %v4629
    %v4698 = vunpack.c.l.b16 %v4630
    %v4699 = vunpack.c.l.b16 %v4631
    %v4700 = vunpack.c.l.b16 %v4632
    %v4701 = vunpack.c.l.b16 %v4633
    %v4702 = vunpack.c.l.b16 %v4634
    %v4703 = vunpack.c.l.b16 %v4635
    %v4704 = vunpack.c.l.b16 %v4636
    %v4705 = vunpack.c.l.b16 %v4637
    %v4706 = vunpack.c.l.b16 %v4638
    %v4707 = vunpack.c.l.b16 %v4639
    %v4708 = vunpack.c.l.b16 %v4640
    %v4709 = vunpack.c.l.b16 %v4641
    %v4710 = vunpack.c.l.b16 %v4642
    %v4711 = vunpack.c.l.b16 %v4643
    %v4712 = vunpack.c.l.b16 %v4644
    %v4713 = vunpack.c.l.b16 %v4645
    %v4714 = vunpack.c.l.b16 %v4646
    %v4715 = vunpack.c.l.b16 %v4647
    %v4716 = vunpack.c.l.b16 %v4648
    %v4717 = vpack.c.b16 %v4686, %v4685
    %v4718 = vpack.c.b16 %v4688, %v4687
    %v4719 = vpack.c.b16 %v4690, %v4689
    %v4720 = vpack.c.b16 %v4692, %v4691
    %v4721 = vpack.c.b16 %v4694, %v4693
    %v4722 = vpack.c.b16 %v4696, %v4695
    %v4723 = vpack.c.b16 %v4698, %v4697
    %v4724 = vpack.c.b16 %v4700, %v4699
    %v4725 = vpack.c.b16 %v4702, %v4701
    %v4726 = vpack.c.b16 %v4704, %v4703
    %v4727 = vpack.c.b16 %v4706, %v4705
    %v4728 = vpack.c.b16 %v4708, %v4707
    %v4729 = vpack.c.b16 %v4710, %v4709
    %v4730 = vpack.c.b16 %v4712, %v4711
    %v4731 = vpack.c.b16 %v4714, %v4713
    %v4732 = vpack.c.b16 %v4716, %v4715
    %4749 = vmatpush.bf16.msra.mxu0 %v4724
    %4750 = vmatpush.bf16.msra.mxu0 %v4723
    %4751 = vmatpush.bf16.msra.mxu0 %v4722
    %4752 = vmatpush.bf16.msra.mxu0 %v4721
    %4753 = vmatpush.bf16.msra.mxu0 %v4720
    %4754 = vmatpush.bf16.msra.mxu0 %v4719
    %4755 = vmatpush.bf16.msra.mxu0 %v4718
    %4756 = vmatpush.bf16.msra.mxu0 %v4717
    %4757 = vmatmul.bf16.gmra.mxu0 %v4649
    %v4758 = vpop.f32.mrf.mxu0
    %v4759 = vadd.f32 0.0, %v4758
    %v4760 = vpop.f32.mrf.mxu0
    %v4761 = vadd.f32 0.0, %v4760
    %4762 = vdwg.mxu0
    %4763 = vmatpush.bf16.msra.mxu0 %v4732
    %4764 = vmatpush.bf16.msra.mxu0 %v4731
    %4765 = vmatpush.bf16.msra.mxu0 %v4730
    %4766 = vmatpush.bf16.msra.mxu0 %v4729
    %4767 = vmatpush.bf16.msra.mxu0 %v4728
    %4768 = vmatpush.bf16.msra.mxu0 %v4727
    %4769 = vmatpush.bf16.msra.mxu0 %v4726
    %4770 = vmatpush.bf16.msra.mxu0 %v4725
    %4771 = vmatmul.bf16.gmra.mxu0 %v4650
    %v4772 = vpop.f32.mrf.mxu0
    %v4773 = vadd.f32 %v4759, %v4772
    %v4774 = vpop.f32.mrf.mxu0
    %v4775 = vadd.f32 %v4761, %v4774
    %4776 = vdwg.mxu0
    %v4777 = vadd.f32 %v4596, %v4773
    %v4778 = vadd.f32 %v4598, %v4775
    %v4779 = vld [vmem:[#allocation3 + $0xa] sm:$0xff]
    %v4780 = vld [vmem:[#allocation3 + $0x22] sm:$0xff]
    %v4781 = vpack.c.bf16 %v4779, %v4779
    %v4782 = vpack.c.bf16 %v4780, %v4780
    %v4783 = vld [vmem:[#allocation3 + $0xb] sm:$0xff]
    %v4784 = vld [vmem:[#allocation3 + $0x23] sm:$0xff]
    %v4785 = vpack.c.bf16 %v4783, %v4783
    %v4786 = vpack.c.bf16 %v4784, %v4784
    %v4791 = vunpack.c.l.b16 %v4781
    %v4792 = vunpack.c.l.b16 %v4785
    %v4793 = vunpack.c.l.b16 %v4782
    %v4794 = vunpack.c.l.b16 %v4786
    %s4795 = scalar_lea.vmem [#allocation4], 3264
    %v4796 = vld [vmem:[%s4795] sm:$0xf]
    %v4797 = vld [vmem:[%s4795 + $0x4] sm:$0xf]
    %v4798 = vld [vmem:[%s4795 + $0x8] sm:$0xf]
    %v4799 = vld [vmem:[%s4795 + $0xc] sm:$0xf]
    %v4800 = vld [vmem:[%s4795 + $0x10] sm:$0xf]
    %v4801 = vld [vmem:[%s4795 + $0x14] sm:$0xf]
    %v4802 = vld [vmem:[%s4795 + $0x18] sm:$0xf]
    %v4803 = vld [vmem:[%s4795 + $0x1c] sm:$0xf]
    %v4804 = vld [vmem:[%s4795 + $0x20] sm:$0xf]
    %v4805 = vld [vmem:[%s4795 + $0x24] sm:$0xf]
    %v4806 = vld [vmem:[%s4795 + $0x28] sm:$0xf]
    %v4807 = vld [vmem:[%s4795 + $0x2c] sm:$0xf]
    %v4808 = vld [vmem:[%s4795 + $0x30] sm:$0xf]
    %v4809 = vld [vmem:[%s4795 + $0x34] sm:$0xf]
    %v4810 = vld [vmem:[%s4795 + $0x38] sm:$0xf]
    %v4811 = vld [vmem:[%s4795 + $0x3c] sm:$0xf]
    %v4812 = vld [vmem:[%s4795 + $0x40] sm:$0xf]
    %v4813 = vld [vmem:[%s4795 + $0x44] sm:$0xf]
    %v4814 = vld [vmem:[%s4795 + $0x48] sm:$0xf]
    %v4815 = vld [vmem:[%s4795 + $0x4c] sm:$0xf]
    %v4816 = vld [vmem:[%s4795 + $0x50] sm:$0xf]
    %v4817 = vld [vmem:[%s4795 + $0x54] sm:$0xf]
    %v4818 = vld [vmem:[%s4795 + $0x58] sm:$0xf]
    %v4819 = vld [vmem:[%s4795 + $0x5c] sm:$0xf]
    %v4820 = vld [vmem:[%s4795 + $0x60] sm:$0xf]
    %v4821 = vld [vmem:[%s4795 + $0x64] sm:$0xf]
    %v4822 = vld [vmem:[%s4795 + $0x68] sm:$0xf]
    %v4823 = vld [vmem:[%s4795 + $0x6c] sm:$0xf]
    %v4824 = vld [vmem:[%s4795 + $0x70] sm:$0xf]
    %v4825 = vld [vmem:[%s4795 + $0x74] sm:$0xf]
    %v4826 = vld [vmem:[%s4795 + $0x78] sm:$0xf]
    %v4827 = vld [vmem:[%s4795 + $0x7c] sm:$0xf]
    %v4828 = vpack.c.b16 %v4793, %v4791
    %v4829 = vpack.c.b16 %v4794, %v4792
    %v4864 = vunpack.c.l.b16 %v4796
    %v4865 = vunpack.c.l.b16 %v4797
    %v4866 = vunpack.c.l.b16 %v4798
    %v4867 = vunpack.c.l.b16 %v4799
    %v4868 = vunpack.c.l.b16 %v4800
    %v4869 = vunpack.c.l.b16 %v4801
    %v4870 = vunpack.c.l.b16 %v4802
    %v4871 = vunpack.c.l.b16 %v4803
    %v4872 = vunpack.c.l.b16 %v4804
    %v4873 = vunpack.c.l.b16 %v4805
    %v4874 = vunpack.c.l.b16 %v4806
    %v4875 = vunpack.c.l.b16 %v4807
    %v4876 = vunpack.c.l.b16 %v4808
    %v4877 = vunpack.c.l.b16 %v4809
    %v4878 = vunpack.c.l.b16 %v4810
    %v4879 = vunpack.c.l.b16 %v4811
    %v4880 = vunpack.c.l.b16 %v4812
    %v4881 = vunpack.c.l.b16 %v4813
    %v4882 = vunpack.c.l.b16 %v4814
    %v4883 = vunpack.c.l.b16 %v4815
    %v4884 = vunpack.c.l.b16 %v4816
    %v4885 = vunpack.c.l.b16 %v4817
    %v4886 = vunpack.c.l.b16 %v4818
    %v4887 = vunpack.c.l.b16 %v4819
    %v4888 = vunpack.c.l.b16 %v4820
    %v4889 = vunpack.c.l.b16 %v4821
    %v4890 = vunpack.c.l.b16 %v4822
    %v4891 = vunpack.c.l.b16 %v4823
    %v4892 = vunpack.c.l.b16 %v4824
    %v4893 = vunpack.c.l.b16 %v4825
    %v4894 = vunpack.c.l.b16 %v4826
    %v4895 = vunpack.c.l.b16 %v4827
    %v4896 = vpack.c.b16 %v4865, %v4864
    %v4897 = vpack.c.b16 %v4867, %v4866
    %v4898 = vpack.c.b16 %v4869, %v4868
    %v4899 = vpack.c.b16 %v4871, %v4870
    %v4900 = vpack.c.b16 %v4873, %v4872
    %v4901 = vpack.c.b16 %v4875, %v4874
    %v4902 = vpack.c.b16 %v4877, %v4876
    %v4903 = vpack.c.b16 %v4879, %v4878
    %v4904 = vpack.c.b16 %v4881, %v4880
    %v4905 = vpack.c.b16 %v4883, %v4882
    %v4906 = vpack.c.b16 %v4885, %v4884
    %v4907 = vpack.c.b16 %v4887, %v4886
    %v4908 = vpack.c.b16 %v4889, %v4888
    %v4909 = vpack.c.b16 %v4891, %v4890
    %v4910 = vpack.c.b16 %v4893, %v4892
    %v4911 = vpack.c.b16 %v4895, %v4894
    %4928 = vmatpush.bf16.msra.mxu0 %v4903
    %4929 = vmatpush.bf16.msra.mxu0 %v4902
    %4930 = vmatpush.bf16.msra.mxu0 %v4901
    %4931 = vmatpush.bf16.msra.mxu0 %v4900
    %4932 = vmatpush.bf16.msra.mxu0 %v4899
    %4933 = vmatpush.bf16.msra.mxu0 %v4898
    %4934 = vmatpush.bf16.msra.mxu0 %v4897
    %4935 = vmatpush.bf16.msra.mxu0 %v4896
    %4936 = vmatmul.bf16.gmra.mxu0 %v4828
    %v4937 = vpop.f32.mrf.mxu0
    %v4938 = vadd.f32 0.0, %v4937
    %v4939 = vpop.f32.mrf.mxu0
    %v4940 = vadd.f32 0.0, %v4939
    %4941 = vdwg.mxu0
    %4942 = vmatpush.bf16.msra.mxu0 %v4911
    %4943 = vmatpush.bf16.msra.mxu0 %v4910
    %4944 = vmatpush.bf16.msra.mxu0 %v4909
    %4945 = vmatpush.bf16.msra.mxu0 %v4908
    %4946 = vmatpush.bf16.msra.mxu0 %v4907
    %4947 = vmatpush.bf16.msra.mxu0 %v4906
    %4948 = vmatpush.bf16.msra.mxu0 %v4905
    %4949 = vmatpush.bf16.msra.mxu0 %v4904
    %4950 = vmatmul.bf16.gmra.mxu0 %v4829
    %v4951 = vpop.f32.mrf.mxu0
    %v4952 = vadd.f32 %v4938, %v4951
    %v4953 = vpop.f32.mrf.mxu0
    %v4954 = vadd.f32 %v4940, %v4953
    %4955 = vdwg.mxu0
    %v4956 = vadd.f32 %v4777, %v4952
    %v4957 = vadd.f32 %v4778, %v4954
    %v4958 = vld [vmem:[#allocation3 + $0xc] sm:$0xff]
    %v4959 = vld [vmem:[#allocation3 + $0x24] sm:$0xff]
    %v4960 = vpack.c.bf16 %v4959, %v4958
    %s4961 = scalar_lea.vmem [#allocation4], 3392
    %v4962 = vld [vmem:[%s4961] sm:$0xf]
    %v4963 = vld [vmem:[%s4961 + $0x4] sm:$0xf]
    %v4964 = vld [vmem:[%s4961 + $0x8] sm:$0xf]
    %v4965 = vld [vmem:[%s4961 + $0xc] sm:$0xf]
    %v4966 = vld [vmem:[%s4961 + $0x10] sm:$0xf]
    %v4967 = vld [vmem:[%s4961 + $0x14] sm:$0xf]
    %v4968 = vld [vmem:[%s4961 + $0x18] sm:$0xf]
    %v4969 = vld [vmem:[%s4961 + $0x1c] sm:$0xf]
    %v4970 = vld [vmem:[%s4961 + $0x20] sm:$0xf]
    %v4971 = vld [vmem:[%s4961 + $0x24] sm:$0xf]
    %v4972 = vld [vmem:[%s4961 + $0x28] sm:$0xf]
    %v4973 = vld [vmem:[%s4961 + $0x2c] sm:$0xf]
    %v4974 = vld [vmem:[%s4961 + $0x30] sm:$0xf]
    %v4975 = vld [vmem:[%s4961 + $0x34] sm:$0xf]
    %v4976 = vld [vmem:[%s4961 + $0x38] sm:$0xf]
    %v4977 = vld [vmem:[%s4961 + $0x3c] sm:$0xf]
    %v4994 = vunpack.c.l.b16 %v4962
    %v4995 = vunpack.c.l.b16 %v4963
    %v4996 = vunpack.c.l.b16 %v4964
    %v4997 = vunpack.c.l.b16 %v4965
    %v4998 = vunpack.c.l.b16 %v4966
    %v4999 = vunpack.c.l.b16 %v4967
    %v5000 = vunpack.c.l.b16 %v4968
    %v5001 = vunpack.c.l.b16 %v4969
    %v5002 = vunpack.c.l.b16 %v4970
    %v5003 = vunpack.c.l.b16 %v4971
    %v5004 = vunpack.c.l.b16 %v4972
    %v5005 = vunpack.c.l.b16 %v4973
    %v5006 = vunpack.c.l.b16 %v4974
    %v5007 = vunpack.c.l.b16 %v4975
    %v5008 = vunpack.c.l.b16 %v4976
    %v5009 = vunpack.c.l.b16 %v4977
    %v5010 = vpack.c.b16 %v4995, %v4994
    %v5011 = vpack.c.b16 %v4997, %v4996
    %v5012 = vpack.c.b16 %v4999, %v4998
    %v5013 = vpack.c.b16 %v5001, %v5000
    %v5014 = vpack.c.b16 %v5003, %v5002
    %v5015 = vpack.c.b16 %v5005, %v5004
    %v5016 = vpack.c.b16 %v5007, %v5006
    %v5017 = vpack.c.b16 %v5009, %v5008
    %5026 = vmatpush.bf16.msra.mxu0 %v5017
    %5027 = vmatpush.bf16.msra.mxu0 %v5016
    %5028 = vmatpush.bf16.msra.mxu0 %v5015
    %5029 = vmatpush.bf16.msra.mxu0 %v5014
    %5030 = vmatpush.bf16.msra.mxu0 %v5013
    %5031 = vmatpush.bf16.msra.mxu0 %v5012
    %5032 = vmatpush.bf16.msra.mxu0 %v5011
    %5033 = vmatpush.bf16.msra.mxu0 %v5010
    %5034 = vmatmul.bf16.gmra.mxu0 %v4960
    %v5035 = vpop.f32.mrf.mxu0
    %v5036 = vadd.f32 0.0, %v5035
    %v5037 = vpop.f32.mrf.mxu0
    %v5038 = vadd.f32 0.0, %v5037
    %5039 = vdwg.mxu0
    %v5040 = vadd.f32 %v4956, %v5036
    %v5041 = vadd.f32 %v4957, %v5038
    %s5042 = scalar_lea.vmem [#allocation11], 5
    %v5043 = vld [vmem:[%s5042] sm:$0x1]
    %v5045 = vperm.slane %v5043, 0
    %v5047 = vadd.f32 %v5040, %v5045
    %v5048 = vadd.f32 %v5041, %v5045
    %5049 = vst [vmem:[#allocation2 + $0x8] sm:$0xff] %v5047
    %5050 = vst [vmem:[#allocation2 + $0x20] sm:$0xff] %v5048
    %v5051 = vld [vmem:[#allocation2 + $0x4] sm:$0xff]
    %v5052 = vld [vmem:[#allocation2 + $0x1c] sm:$0xff]
    %v5053 = vpack.c.bf16 %v5051, %v5051
    %v5054 = vpack.c.bf16 %v5052, %v5052
    %v5055 = vld [vmem:[#allocation2 + $0x5] sm:$0xff]
    %v5056 = vld [vmem:[#allocation2 + $0x1d] sm:$0xff]
    %v5057 = vpack.c.bf16 %v5055, %v5055
    %v5058 = vpack.c.bf16 %v5056, %v5056
    %v5063 = vunpack.c.l.b16 %v5053
    %v5064 = vunpack.c.l.b16 %v5057
    %v5065 = vunpack.c.l.b16 %v5054
    %v5066 = vunpack.c.l.b16 %v5058
    %s5067 = scalar_lea.vmem [#allocation4], 3456
    %v5068 = vld [vmem:[%s5067] sm:$0xf]
    %v5069 = vld [vmem:[%s5067 + $0x4] sm:$0xf]
    %v5070 = vld [vmem:[%s5067 + $0x8] sm:$0xf]
    %v5071 = vld [vmem:[%s5067 + $0xc] sm:$0xf]
    %v5072 = vld [vmem:[%s5067 + $0x10] sm:$0xf]
    %v5073 = vld [vmem:[%s5067 + $0x14] sm:$0xf]
    %v5074 = vld [vmem:[%s5067 + $0x18] sm:$0xf]
    %v5075 = vld [vmem:[%s5067 + $0x1c] sm:$0xf]
    %v5076 = vld [vmem:[%s5067 + $0x20] sm:$0xf]
    %v5077 = vld [vmem:[%s5067 + $0x24] sm:$0xf]
    %v5078 = vld [vmem:[%s5067 + $0x28] sm:$0xf]
    %v5079 = vld [vmem:[%s5067 + $0x2c] sm:$0xf]
    %v5080 = vld [vmem:[%s5067 + $0x30] sm:$0xf]
    %v5081 = vld [vmem:[%s5067 + $0x34] sm:$0xf]
    %v5082 = vld [vmem:[%s5067 + $0x38] sm:$0xf]
    %v5083 = vld [vmem:[%s5067 + $0x3c] sm:$0xf]
    %v5084 = vld [vmem:[%s5067 + $0x40] sm:$0xf]
    %v5085 = vld [vmem:[%s5067 + $0x44] sm:$0xf]
    %v5086 = vld [vmem:[%s5067 + $0x48] sm:$0xf]
    %v5087 = vld [vmem:[%s5067 + $0x4c] sm:$0xf]
    %v5088 = vld [vmem:[%s5067 + $0x50] sm:$0xf]
    %v5089 = vld [vmem:[%s5067 + $0x54] sm:$0xf]
    %v5090 = vld [vmem:[%s5067 + $0x58] sm:$0xf]
    %v5091 = vld [vmem:[%s5067 + $0x5c] sm:$0xf]
    %v5092 = vld [vmem:[%s5067 + $0x60] sm:$0xf]
    %v5093 = vld [vmem:[%s5067 + $0x64] sm:$0xf]
    %v5094 = vld [vmem:[%s5067 + $0x68] sm:$0xf]
    %v5095 = vld [vmem:[%s5067 + $0x6c] sm:$0xf]
    %v5096 = vld [vmem:[%s5067 + $0x70] sm:$0xf]
    %v5097 = vld [vmem:[%s5067 + $0x74] sm:$0xf]
    %v5098 = vld [vmem:[%s5067 + $0x78] sm:$0xf]
    %v5099 = vld [vmem:[%s5067 + $0x7c] sm:$0xf]
    %v5100 = vld [vmem:[#allocation2 + $0x6] sm:$0xff]
    %v5101 = vld [vmem:[#allocation2 + $0x1e] sm:$0xff]
    %v5102 = vpack.c.bf16 %v5100, %v5100
    %v5103 = vpack.c.bf16 %v5101, %v5101
    %v5104 = vld [vmem:[#allocation2 + $0x7] sm:$0xff]
    %v5105 = vld [vmem:[#allocation2 + $0x1f] sm:$0xff]
    %v5106 = vpack.c.bf16 %v5104, %v5104
    %v5107 = vpack.c.bf16 %v5105, %v5105
    %v5112 = vunpack.c.l.b16 %v5102
    %v5113 = vunpack.c.l.b16 %v5106
    %v5114 = vunpack.c.l.b16 %v5103
    %v5115 = vunpack.c.l.b16 %v5107
    %s5116 = scalar_lea.vmem [#allocation4], 3584
    %v5117 = vld [vmem:[%s5116] sm:$0xf]
    %v5118 = vld [vmem:[%s5116 + $0x4] sm:$0xf]
    %v5119 = vld [vmem:[%s5116 + $0x8] sm:$0xf]
    %v5120 = vld [vmem:[%s5116 + $0xc] sm:$0xf]
    %v5121 = vld [vmem:[%s5116 + $0x10] sm:$0xf]
    %v5122 = vld [vmem:[%s5116 + $0x14] sm:$0xf]
    %v5123 = vld [vmem:[%s5116 + $0x18] sm:$0xf]
    %v5124 = vld [vmem:[%s5116 + $0x1c] sm:$0xf]
    %v5125 = vld [vmem:[%s5116 + $0x20] sm:$0xf]
    %v5126 = vld [vmem:[%s5116 + $0x24] sm:$0xf]
    %v5127 = vld [vmem:[%s5116 + $0x28] sm:$0xf]
    %v5128 = vld [vmem:[%s5116 + $0x2c] sm:$0xf]
    %v5129 = vld [vmem:[%s5116 + $0x30] sm:$0xf]
    %v5130 = vld [vmem:[%s5116 + $0x34] sm:$0xf]
    %v5131 = vld [vmem:[%s5116 + $0x38] sm:$0xf]
    %v5132 = vld [vmem:[%s5116 + $0x3c] sm:$0xf]
    %v5133 = vld [vmem:[%s5116 + $0x40] sm:$0xf]
    %v5134 = vld [vmem:[%s5116 + $0x44] sm:$0xf]
    %v5135 = vld [vmem:[%s5116 + $0x48] sm:$0xf]
    %v5136 = vld [vmem:[%s5116 + $0x4c] sm:$0xf]
    %v5137 = vld [vmem:[%s5116 + $0x50] sm:$0xf]
    %v5138 = vld [vmem:[%s5116 + $0x54] sm:$0xf]
    %v5139 = vld [vmem:[%s5116 + $0x58] sm:$0xf]
    %v5140 = vld [vmem:[%s5116 + $0x5c] sm:$0xf]
    %v5141 = vld [vmem:[%s5116 + $0x60] sm:$0xf]
    %v5142 = vld [vmem:[%s5116 + $0x64] sm:$0xf]
    %v5143 = vld [vmem:[%s5116 + $0x68] sm:$0xf]
    %v5144 = vld [vmem:[%s5116 + $0x6c] sm:$0xf]
    %v5145 = vld [vmem:[%s5116 + $0x70] sm:$0xf]
    %v5146 = vld [vmem:[%s5116 + $0x74] sm:$0xf]
    %v5147 = vld [vmem:[%s5116 + $0x78] sm:$0xf]
    %v5148 = vld [vmem:[%s5116 + $0x7c] sm:$0xf]
    %v5149 = vpack.c.b16 %v5114, %v5112
    %v5150 = vpack.c.b16 %v5115, %v5113
    %v5185 = vunpack.c.l.b16 %v5117
    %v5186 = vunpack.c.l.b16 %v5118
    %v5187 = vunpack.c.l.b16 %v5119
    %v5188 = vunpack.c.l.b16 %v5120
    %v5189 = vunpack.c.l.b16 %v5121
    %v5190 = vunpack.c.l.b16 %v5122
    %v5191 = vunpack.c.l.b16 %v5123
    %v5192 = vunpack.c.l.b16 %v5124
    %v5193 = vunpack.c.l.b16 %v5125
    %v5194 = vunpack.c.l.b16 %v5126
    %v5195 = vunpack.c.l.b16 %v5127
    %v5196 = vunpack.c.l.b16 %v5128
    %v5197 = vunpack.c.l.b16 %v5129
    %v5198 = vunpack.c.l.b16 %v5130
    %v5199 = vunpack.c.l.b16 %v5131
    %v5200 = vunpack.c.l.b16 %v5132
    %v5201 = vunpack.c.l.b16 %v5133
    %v5202 = vunpack.c.l.b16 %v5134
    %v5203 = vunpack.c.l.b16 %v5135
    %v5204 = vunpack.c.l.b16 %v5136
    %v5205 = vunpack.c.l.b16 %v5137
    %v5206 = vunpack.c.l.b16 %v5138
    %v5207 = vunpack.c.l.b16 %v5139
    %v5208 = vunpack.c.l.b16 %v5140
    %v5209 = vunpack.c.l.b16 %v5141
    %v5210 = vunpack.c.l.b16 %v5142
    %v5211 = vunpack.c.l.b16 %v5143
    %v5212 = vunpack.c.l.b16 %v5144
    %v5213 = vunpack.c.l.b16 %v5145
    %v5214 = vunpack.c.l.b16 %v5146
    %v5215 = vunpack.c.l.b16 %v5147
    %v5216 = vunpack.c.l.b16 %v5148
    %v5217 = vpack.c.b16 %v5186, %v5185
    %v5218 = vpack.c.b16 %v5188, %v5187
    %v5219 = vpack.c.b16 %v5190, %v5189
    %v5220 = vpack.c.b16 %v5192, %v5191
    %v5221 = vpack.c.b16 %v5194, %v5193
    %v5222 = vpack.c.b16 %v5196, %v5195
    %v5223 = vpack.c.b16 %v5198, %v5197
    %v5224 = vpack.c.b16 %v5200, %v5199
    %v5225 = vpack.c.b16 %v5202, %v5201
    %v5226 = vpack.c.b16 %v5204, %v5203
    %v5227 = vpack.c.b16 %v5206, %v5205
    %v5228 = vpack.c.b16 %v5208, %v5207
    %v5229 = vpack.c.b16 %v5210, %v5209
    %v5230 = vpack.c.b16 %v5212, %v5211
    %v5231 = vpack.c.b16 %v5214, %v5213
    %v5232 = vpack.c.b16 %v5216, %v5215
    %5249 = vmatpush.bf16.msra.mxu0 %v5224
    %5250 = vmatpush.bf16.msra.mxu0 %v5223
    %5251 = vmatpush.bf16.msra.mxu0 %v5222
    %5252 = vmatpush.bf16.msra.mxu0 %v5221
    %5253 = vmatpush.bf16.msra.mxu0 %v5220
    %5254 = vmatpush.bf16.msra.mxu0 %v5219
    %5255 = vmatpush.bf16.msra.mxu0 %v5218
    %5256 = vmatpush.bf16.msra.mxu0 %v5217
    %5257 = vmatmul.bf16.gmra.mxu0 %v5149
    %v5258 = vpop.f32.mrf.mxu0
    %v5259 = vadd.f32 0.0, %v5258
    %v5260 = vpop.f32.mrf.mxu0
    %v5261 = vadd.f32 0.0, %v5260
    %5262 = vdwg.mxu0
    %5263 = vmatpush.bf16.msra.mxu0 %v5232
    %5264 = vmatpush.bf16.msra.mxu0 %v5231
    %5265 = vmatpush.bf16.msra.mxu0 %v5230
    %5266 = vmatpush.bf16.msra.mxu0 %v5229
    %5267 = vmatpush.bf16.msra.mxu0 %v5228
    %5268 = vmatpush.bf16.msra.mxu0 %v5227
    %5269 = vmatpush.bf16.msra.mxu0 %v5226
    %5270 = vmatpush.bf16.msra.mxu0 %v5225
    %5271 = vmatmul.bf16.gmra.mxu0 %v5150
    %v5272 = vpop.f32.mrf.mxu0
    %v5273 = vadd.f32 %v5259, %v5272
    %v5274 = vpop.f32.mrf.mxu0
    %v5275 = vadd.f32 %v5261, %v5274
    %5276 = vdwg.mxu0
    %v5277 = vpack.c.b16 %v5065, %v5063
    %v5278 = vpack.c.b16 %v5066, %v5064
    %v5313 = vunpack.c.l.b16 %v5068
    %v5314 = vunpack.c.l.b16 %v5069
    %v5315 = vunpack.c.l.b16 %v5070
    %v5316 = vunpack.c.l.b16 %v5071
    %v5317 = vunpack.c.l.b16 %v5072
    %v5318 = vunpack.c.l.b16 %v5073
    %v5319 = vunpack.c.l.b16 %v5074
    %v5320 = vunpack.c.l.b16 %v5075
    %v5321 = vunpack.c.l.b16 %v5076
    %v5322 = vunpack.c.l.b16 %v5077
    %v5323 = vunpack.c.l.b16 %v5078
    %v5324 = vunpack.c.l.b16 %v5079
    %v5325 = vunpack.c.l.b16 %v5080
    %v5326 = vunpack.c.l.b16 %v5081
    %v5327 = vunpack.c.l.b16 %v5082
    %v5328 = vunpack.c.l.b16 %v5083
    %v5329 = vunpack.c.l.b16 %v5084
    %v5330 = vunpack.c.l.b16 %v5085
    %v5331 = vunpack.c.l.b16 %v5086
    %v5332 = vunpack.c.l.b16 %v5087
    %v5333 = vunpack.c.l.b16 %v5088
    %v5334 = vunpack.c.l.b16 %v5089
    %v5335 = vunpack.c.l.b16 %v5090
    %v5336 = vunpack.c.l.b16 %v5091
    %v5337 = vunpack.c.l.b16 %v5092
    %v5338 = vunpack.c.l.b16 %v5093
    %v5339 = vunpack.c.l.b16 %v5094
    %v5340 = vunpack.c.l.b16 %v5095
    %v5341 = vunpack.c.l.b16 %v5096
    %v5342 = vunpack.c.l.b16 %v5097
    %v5343 = vunpack.c.l.b16 %v5098
    %v5344 = vunpack.c.l.b16 %v5099
    %v5345 = vpack.c.b16 %v5314, %v5313
    %v5346 = vpack.c.b16 %v5316, %v5315
    %v5347 = vpack.c.b16 %v5318, %v5317
    %v5348 = vpack.c.b16 %v5320, %v5319
    %v5349 = vpack.c.b16 %v5322, %v5321
    %v5350 = vpack.c.b16 %v5324, %v5323
    %v5351 = vpack.c.b16 %v5326, %v5325
    %v5352 = vpack.c.b16 %v5328, %v5327
    %v5353 = vpack.c.b16 %v5330, %v5329
    %v5354 = vpack.c.b16 %v5332, %v5331
    %v5355 = vpack.c.b16 %v5334, %v5333
    %v5356 = vpack.c.b16 %v5336, %v5335
    %v5357 = vpack.c.b16 %v5338, %v5337
    %v5358 = vpack.c.b16 %v5340, %v5339
    %v5359 = vpack.c.b16 %v5342, %v5341
    %v5360 = vpack.c.b16 %v5344, %v5343
    %5377 = vmatpush.bf16.msra.mxu0 %v5352
    %5378 = vmatpush.bf16.msra.mxu0 %v5351
    %5379 = vmatpush.bf16.msra.mxu0 %v5350
    %5380 = vmatpush.bf16.msra.mxu0 %v5349
    %5381 = vmatpush.bf16.msra.mxu0 %v5348
    %5382 = vmatpush.bf16.msra.mxu0 %v5347
    %5383 = vmatpush.bf16.msra.mxu0 %v5346
    %5384 = vmatpush.bf16.msra.mxu0 %v5345
    %5385 = vmatmul.bf16.gmra.mxu0 %v5277
    %v5386 = vpop.f32.mrf.mxu0
    %v5387 = vadd.f32 %v5273, %v5386
    %v5388 = vpop.f32.mrf.mxu0
    %v5389 = vadd.f32 %v5275, %v5388
    %5390 = vdwg.mxu0
    %5391 = vmatpush.bf16.msra.mxu0 %v5360
    %5392 = vmatpush.bf16.msra.mxu0 %v5359
    %5393 = vmatpush.bf16.msra.mxu0 %v5358
    %5394 = vmatpush.bf16.msra.mxu0 %v5357
    %5395 = vmatpush.bf16.msra.mxu0 %v5356
    %5396 = vmatpush.bf16.msra.mxu0 %v5355
    %5397 = vmatpush.bf16.msra.mxu0 %v5354
    %5398 = vmatpush.bf16.msra.mxu0 %v5353
    %5399 = vmatmul.bf16.gmra.mxu0 %v5278
    %v5400 = vpop.f32.mrf.mxu0
    %v5401 = vadd.f32 %v5387, %v5400
    %v5402 = vpop.f32.mrf.mxu0
    %v5403 = vadd.f32 %v5389, %v5402
    %5404 = vdwg.mxu0
    %v5405 = vld [vmem:[#allocation2 + $0x8] sm:$0xff]
    %v5406 = vld [vmem:[#allocation2 + $0x20] sm:$0xff]
    %v5407 = vpack.c.bf16 %v5405, %v5405
    %v5408 = vpack.c.bf16 %v5406, %v5406
    %v5409 = vld [vmem:[#allocation2 + $0x9] sm:$0xff]
    %v5410 = vld [vmem:[#allocation2 + $0x21] sm:$0xff]
    %v5411 = vpack.c.bf16 %v5409, %v5409
    %v5412 = vpack.c.bf16 %v5410, %v5410
    %v5417 = vunpack.c.l.b16 %v5407
    %v5418 = vunpack.c.l.b16 %v5411
    %v5419 = vunpack.c.l.b16 %v5408
    %v5420 = vunpack.c.l.b16 %v5412
    %s5421 = scalar_lea.vmem [#allocation4], 3712
    %v5422 = vld [vmem:[%s5421] sm:$0xf]
    %v5423 = vld [vmem:[%s5421 + $0x4] sm:$0xf]
    %v5424 = vld [vmem:[%s5421 + $0x8] sm:$0xf]
    %v5425 = vld [vmem:[%s5421 + $0xc] sm:$0xf]
    %v5426 = vld [vmem:[%s5421 + $0x10] sm:$0xf]
    %v5427 = vld [vmem:[%s5421 + $0x14] sm:$0xf]
    %v5428 = vld [vmem:[%s5421 + $0x18] sm:$0xf]
    %v5429 = vld [vmem:[%s5421 + $0x1c] sm:$0xf]
    %v5430 = vld [vmem:[%s5421 + $0x20] sm:$0xf]
    %v5431 = vld [vmem:[%s5421 + $0x24] sm:$0xf]
    %v5432 = vld [vmem:[%s5421 + $0x28] sm:$0xf]
    %v5433 = vld [vmem:[%s5421 + $0x2c] sm:$0xf]
    %v5434 = vld [vmem:[%s5421 + $0x30] sm:$0xf]
    %v5435 = vld [vmem:[%s5421 + $0x34] sm:$0xf]
    %v5436 = vld [vmem:[%s5421 + $0x38] sm:$0xf]
    %v5437 = vld [vmem:[%s5421 + $0x3c] sm:$0xf]
    %v5438 = vld [vmem:[%s5421 + $0x40] sm:$0xf]
    %v5439 = vld [vmem:[%s5421 + $0x44] sm:$0xf]
    %v5440 = vld [vmem:[%s5421 + $0x48] sm:$0xf]
    %v5441 = vld [vmem:[%s5421 + $0x4c] sm:$0xf]
    %v5442 = vld [vmem:[%s5421 + $0x50] sm:$0xf]
    %v5443 = vld [vmem:[%s5421 + $0x54] sm:$0xf]
    %v5444 = vld [vmem:[%s5421 + $0x58] sm:$0xf]
    %v5445 = vld [vmem:[%s5421 + $0x5c] sm:$0xf]
    %v5446 = vld [vmem:[%s5421 + $0x60] sm:$0xf]
    %v5447 = vld [vmem:[%s5421 + $0x64] sm:$0xf]
    %v5448 = vld [vmem:[%s5421 + $0x68] sm:$0xf]
    %v5449 = vld [vmem:[%s5421 + $0x6c] sm:$0xf]
    %v5450 = vld [vmem:[%s5421 + $0x70] sm:$0xf]
    %v5451 = vld [vmem:[%s5421 + $0x74] sm:$0xf]
    %v5452 = vld [vmem:[%s5421 + $0x78] sm:$0xf]
    %v5453 = vld [vmem:[%s5421 + $0x7c] sm:$0xf]
    %v5454 = vpack.c.b16 %v5419, %v5417
    %v5455 = vpack.c.b16 %v5420, %v5418
    %v5490 = vunpack.c.l.b16 %v5422
    %v5491 = vunpack.c.l.b16 %v5423
    %v5492 = vunpack.c.l.b16 %v5424
    %v5493 = vunpack.c.l.b16 %v5425
    %v5494 = vunpack.c.l.b16 %v5426
    %v5495 = vunpack.c.l.b16 %v5427
    %v5496 = vunpack.c.l.b16 %v5428
    %v5497 = vunpack.c.l.b16 %v5429
    %v5498 = vunpack.c.l.b16 %v5430
    %v5499 = vunpack.c.l.b16 %v5431
    %v5500 = vunpack.c.l.b16 %v5432
    %v5501 = vunpack.c.l.b16 %v5433
    %v5502 = vunpack.c.l.b16 %v5434
    %v5503 = vunpack.c.l.b16 %v5435
    %v5504 = vunpack.c.l.b16 %v5436
    %v5505 = vunpack.c.l.b16 %v5437
    %v5506 = vunpack.c.l.b16 %v5438
    %v5507 = vunpack.c.l.b16 %v5439
    %v5508 = vunpack.c.l.b16 %v5440
    %v5509 = vunpack.c.l.b16 %v5441
    %v5510 = vunpack.c.l.b16 %v5442
    %v5511 = vunpack.c.l.b16 %v5443
    %v5512 = vunpack.c.l.b16 %v5444
    %v5513 = vunpack.c.l.b16 %v5445
    %v5514 = vunpack.c.l.b16 %v5446
    %v5515 = vunpack.c.l.b16 %v5447
    %v5516 = vunpack.c.l.b16 %v5448
    %v5517 = vunpack.c.l.b16 %v5449
    %v5518 = vunpack.c.l.b16 %v5450
    %v5519 = vunpack.c.l.b16 %v5451
    %v5520 = vunpack.c.l.b16 %v5452
    %v5521 = vunpack.c.l.b16 %v5453
    %v5522 = vpack.c.b16 %v5491, %v5490
    %v5523 = vpack.c.b16 %v5493, %v5492
    %v5524 = vpack.c.b16 %v5495, %v5494
    %v5525 = vpack.c.b16 %v5497, %v5496
    %v5526 = vpack.c.b16 %v5499, %v5498
    %v5527 = vpack.c.b16 %v5501, %v5500
    %v5528 = vpack.c.b16 %v5503, %v5502
    %v5529 = vpack.c.b16 %v5505, %v5504
    %v5530 = vpack.c.b16 %v5507, %v5506
    %v5531 = vpack.c.b16 %v5509, %v5508
    %v5532 = vpack.c.b16 %v5511, %v5510
    %v5533 = vpack.c.b16 %v5513, %v5512
    %v5534 = vpack.c.b16 %v5515, %v5514
    %v5535 = vpack.c.b16 %v5517, %v5516
    %v5536 = vpack.c.b16 %v5519, %v5518
    %v5537 = vpack.c.b16 %v5521, %v5520
    %5554 = vmatpush.bf16.msra.mxu0 %v5529
    %5555 = vmatpush.bf16.msra.mxu0 %v5528
    %5556 = vmatpush.bf16.msra.mxu0 %v5527
    %5557 = vmatpush.bf16.msra.mxu0 %v5526
    %5558 = vmatpush.bf16.msra.mxu0 %v5525
    %5559 = vmatpush.bf16.msra.mxu0 %v5524
    %5560 = vmatpush.bf16.msra.mxu0 %v5523
    %5561 = vmatpush.bf16.msra.mxu0 %v5522
    %5562 = vmatmul.bf16.gmra.mxu0 %v5454
    %v5563 = vpop.f32.mrf.mxu0
    %v5564 = vadd.f32 0.0, %v5563
    %v5565 = vpop.f32.mrf.mxu0
    %v5566 = vadd.f32 0.0, %v5565
    %5567 = vdwg.mxu0
    %5568 = vmatpush.bf16.msra.mxu0 %v5537
    %5569 = vmatpush.bf16.msra.mxu0 %v5536
    %5570 = vmatpush.bf16.msra.mxu0 %v5535
    %5571 = vmatpush.bf16.msra.mxu0 %v5534
    %5572 = vmatpush.bf16.msra.mxu0 %v5533
    %5573 = vmatpush.bf16.msra.mxu0 %v5532
    %5574 = vmatpush.bf16.msra.mxu0 %v5531
    %5575 = vmatpush.bf16.msra.mxu0 %v5530
    %5576 = vmatmul.bf16.gmra.mxu0 %v5455
    %v5577 = vpop.f32.mrf.mxu0
    %v5578 = vadd.f32 %v5564, %v5577
    %v5579 = vpop.f32.mrf.mxu0
    %v5580 = vadd.f32 %v5566, %v5579
    %5581 = vdwg.mxu0
    %v5582 = vadd.f32 %v5401, %v5578
    %v5583 = vadd.f32 %v5403, %v5580
    %v5584 = vld [vmem:[#allocation2 + $0xa] sm:$0xff]
    %v5585 = vld [vmem:[#allocation2 + $0x22] sm:$0xff]
    %v5586 = vpack.c.bf16 %v5584, %v5584
    %v5587 = vpack.c.bf16 %v5585, %v5585
    %v5588 = vld [vmem:[#allocation2 + $0xb] sm:$0xff]
    %v5589 = vld [vmem:[#allocation2 + $0x23] sm:$0xff]
    %v5590 = vpack.c.bf16 %v5588, %v5588
    %v5591 = vpack.c.bf16 %v5589, %v5589
    %v5596 = vunpack.c.l.b16 %v5586
    %v5597 = vunpack.c.l.b16 %v5590
    %v5598 = vunpack.c.l.b16 %v5587
    %v5599 = vunpack.c.l.b16 %v5591
    %s5600 = scalar_lea.vmem [#allocation4], 3840
    %v5601 = vld [vmem:[%s5600] sm:$0xf]
    %v5602 = vld [vmem:[%s5600 + $0x4] sm:$0xf]
    %v5603 = vld [vmem:[%s5600 + $0x8] sm:$0xf]
    %v5604 = vld [vmem:[%s5600 + $0xc] sm:$0xf]
    %v5605 = vld [vmem:[%s5600 + $0x10] sm:$0xf]
    %v5606 = vld [vmem:[%s5600 + $0x14] sm:$0xf]
    %v5607 = vld [vmem:[%s5600 + $0x18] sm:$0xf]
    %v5608 = vld [vmem:[%s5600 + $0x1c] sm:$0xf]
    %v5609 = vld [vmem:[%s5600 + $0x20] sm:$0xf]
    %v5610 = vld [vmem:[%s5600 + $0x24] sm:$0xf]
    %v5611 = vld [vmem:[%s5600 + $0x28] sm:$0xf]
    %v5612 = vld [vmem:[%s5600 + $0x2c] sm:$0xf]
    %v5613 = vld [vmem:[%s5600 + $0x30] sm:$0xf]
    %v5614 = vld [vmem:[%s5600 + $0x34] sm:$0xf]
    %v5615 = vld [vmem:[%s5600 + $0x38] sm:$0xf]
    %v5616 = vld [vmem:[%s5600 + $0x3c] sm:$0xf]
    %v5617 = vld [vmem:[%s5600 + $0x40] sm:$0xf]
    %v5618 = vld [vmem:[%s5600 + $0x44] sm:$0xf]
    %v5619 = vld [vmem:[%s5600 + $0x48] sm:$0xf]
    %v5620 = vld [vmem:[%s5600 + $0x4c] sm:$0xf]
    %v5621 = vld [vmem:[%s5600 + $0x50] sm:$0xf]
    %v5622 = vld [vmem:[%s5600 + $0x54] sm:$0xf]
    %v5623 = vld [vmem:[%s5600 + $0x58] sm:$0xf]
    %v5624 = vld [vmem:[%s5600 + $0x5c] sm:$0xf]
    %v5625 = vld [vmem:[%s5600 + $0x60] sm:$0xf]
    %v5626 = vld [vmem:[%s5600 + $0x64] sm:$0xf]
    %v5627 = vld [vmem:[%s5600 + $0x68] sm:$0xf]
    %v5628 = vld [vmem:[%s5600 + $0x6c] sm:$0xf]
    %v5629 = vld [vmem:[%s5600 + $0x70] sm:$0xf]
    %v5630 = vld [vmem:[%s5600 + $0x74] sm:$0xf]
    %v5631 = vld [vmem:[%s5600 + $0x78] sm:$0xf]
    %v5632 = vld [vmem:[%s5600 + $0x7c] sm:$0xf]
    %v5633 = vpack.c.b16 %v5598, %v5596
    %v5634 = vpack.c.b16 %v5599, %v5597
    %v5669 = vunpack.c.l.b16 %v5601
    %v5670 = vunpack.c.l.b16 %v5602
    %v5671 = vunpack.c.l.b16 %v5603
    %v5672 = vunpack.c.l.b16 %v5604
    %v5673 = vunpack.c.l.b16 %v5605
    %v5674 = vunpack.c.l.b16 %v5606
    %v5675 = vunpack.c.l.b16 %v5607
    %v5676 = vunpack.c.l.b16 %v5608
    %v5677 = vunpack.c.l.b16 %v5609
    %v5678 = vunpack.c.l.b16 %v5610
    %v5679 = vunpack.c.l.b16 %v5611
    %v5680 = vunpack.c.l.b16 %v5612
    %v5681 = vunpack.c.l.b16 %v5613
    %v5682 = vunpack.c.l.b16 %v5614
    %v5683 = vunpack.c.l.b16 %v5615
    %v5684 = vunpack.c.l.b16 %v5616
    %v5685 = vunpack.c.l.b16 %v5617
    %v5686 = vunpack.c.l.b16 %v5618
    %v5687 = vunpack.c.l.b16 %v5619
    %v5688 = vunpack.c.l.b16 %v5620
    %v5689 = vunpack.c.l.b16 %v5621
    %v5690 = vunpack.c.l.b16 %v5622
    %v5691 = vunpack.c.l.b16 %v5623
    %v5692 = vunpack.c.l.b16 %v5624
    %v5693 = vunpack.c.l.b16 %v5625
    %v5694 = vunpack.c.l.b16 %v5626
    %v5695 = vunpack.c.l.b16 %v5627
    %v5696 = vunpack.c.l.b16 %v5628
    %v5697 = vunpack.c.l.b16 %v5629
    %v5698 = vunpack.c.l.b16 %v5630
    %v5699 = vunpack.c.l.b16 %v5631
    %v5700 = vunpack.c.l.b16 %v5632
    %v5701 = vpack.c.b16 %v5670, %v5669
    %v5702 = vpack.c.b16 %v5672, %v5671
    %v5703 = vpack.c.b16 %v5674, %v5673
    %v5704 = vpack.c.b16 %v5676, %v5675
    %v5705 = vpack.c.b16 %v5678, %v5677
    %v5706 = vpack.c.b16 %v5680, %v5679
    %v5707 = vpack.c.b16 %v5682, %v5681
    %v5708 = vpack.c.b16 %v5684, %v5683
    %v5709 = vpack.c.b16 %v5686, %v5685
    %v5710 = vpack.c.b16 %v5688, %v5687
    %v5711 = vpack.c.b16 %v5690, %v5689
    %v5712 = vpack.c.b16 %v5692, %v5691
    %v5713 = vpack.c.b16 %v5694, %v5693
    %v5714 = vpack.c.b16 %v5696, %v5695
    %v5715 = vpack.c.b16 %v5698, %v5697
    %v5716 = vpack.c.b16 %v5700, %v5699
    %5733 = vmatpush.bf16.msra.mxu0 %v5708
    %5734 = vmatpush.bf16.msra.mxu0 %v5707
    %5735 = vmatpush.bf16.msra.mxu0 %v5706
    %5736 = vmatpush.bf16.msra.mxu0 %v5705
    %5737 = vmatpush.bf16.msra.mxu0 %v5704
    %5738 = vmatpush.bf16.msra.mxu0 %v5703
    %5739 = vmatpush.bf16.msra.mxu0 %v5702
    %5740 = vmatpush.bf16.msra.mxu0 %v5701
    %5741 = vmatmul.bf16.gmra.mxu0 %v5633
    %v5742 = vpop.f32.mrf.mxu0
    %v5743 = vadd.f32 0.0, %v5742
    %v5744 = vpop.f32.mrf.mxu0
    %v5745 = vadd.f32 0.0, %v5744
    %5746 = vdwg.mxu0
    %5747 = vmatpush.bf16.msra.mxu0 %v5716
    %5748 = vmatpush.bf16.msra.mxu0 %v5715
    %5749 = vmatpush.bf16.msra.mxu0 %v5714
    %5750 = vmatpush.bf16.msra.mxu0 %v5713
    %5751 = vmatpush.bf16.msra.mxu0 %v5712
    %5752 = vmatpush.bf16.msra.mxu0 %v5711
    %5753 = vmatpush.bf16.msra.mxu0 %v5710
    %5754 = vmatpush.bf16.msra.mxu0 %v5709
    %5755 = vmatmul.bf16.gmra.mxu0 %v5634
    %v5756 = vpop.f32.mrf.mxu0
    %v5757 = vadd.f32 %v5743, %v5756
    %v5758 = vpop.f32.mrf.mxu0
    %v5759 = vadd.f32 %v5745, %v5758
    %5760 = vdwg.mxu0
    %v5761 = vadd.f32 %v5582, %v5757
    %v5762 = vadd.f32 %v5583, %v5759
    %v5763 = vld [vmem:[#allocation2 + $0xc] sm:$0xff]
    %v5764 = vld [vmem:[#allocation2 + $0x24] sm:$0xff]
    %v5765 = vpack.c.bf16 %v5764, %v5763
    %s5766 = scalar_lea.vmem [#allocation4], 3968
    %v5767 = vld [vmem:[%s5766] sm:$0xf]
    %v5768 = vld [vmem:[%s5766 + $0x4] sm:$0xf]
    %v5769 = vld [vmem:[%s5766 + $0x8] sm:$0xf]
    %v5770 = vld [vmem:[%s5766 + $0xc] sm:$0xf]
    %v5771 = vld [vmem:[%s5766 + $0x10] sm:$0xf]
    %v5772 = vld [vmem:[%s5766 + $0x14] sm:$0xf]
    %v5773 = vld [vmem:[%s5766 + $0x18] sm:$0xf]
    %v5774 = vld [vmem:[%s5766 + $0x1c] sm:$0xf]
    %v5775 = vld [vmem:[%s5766 + $0x20] sm:$0xf]
    %v5776 = vld [vmem:[%s5766 + $0x24] sm:$0xf]
    %v5777 = vld [vmem:[%s5766 + $0x28] sm:$0xf]
    %v5778 = vld [vmem:[%s5766 + $0x2c] sm:$0xf]
    %v5779 = vld [vmem:[%s5766 + $0x30] sm:$0xf]
    %v5780 = vld [vmem:[%s5766 + $0x34] sm:$0xf]
    %v5781 = vld [vmem:[%s5766 + $0x38] sm:$0xf]
    %v5782 = vld [vmem:[%s5766 + $0x3c] sm:$0xf]
    %v5799 = vunpack.c.l.b16 %v5767
    %v5800 = vunpack.c.l.b16 %v5768
    %v5801 = vunpack.c.l.b16 %v5769
    %v5802 = vunpack.c.l.b16 %v5770
    %v5803 = vunpack.c.l.b16 %v5771
    %v5804 = vunpack.c.l.b16 %v5772
    %v5805 = vunpack.c.l.b16 %v5773
    %v5806 = vunpack.c.l.b16 %v5774
    %v5807 = vunpack.c.l.b16 %v5775
    %v5808 = vunpack.c.l.b16 %v5776
    %v5809 = vunpack.c.l.b16 %v5777
    %v5810 = vunpack.c.l.b16 %v5778
    %v5811 = vunpack.c.l.b16 %v5779
    %v5812 = vunpack.c.l.b16 %v5780
    %v5813 = vunpack.c.l.b16 %v5781
    %v5814 = vunpack.c.l.b16 %v5782
    %v5815 = vpack.c.b16 %v5800, %v5799
    %v5816 = vpack.c.b16 %v5802, %v5801
    %v5817 = vpack.c.b16 %v5804, %v5803
    %v5818 = vpack.c.b16 %v5806, %v5805
    %v5819 = vpack.c.b16 %v5808, %v5807
    %v5820 = vpack.c.b16 %v5810, %v5809
    %v5821 = vpack.c.b16 %v5812, %v5811
    %v5822 = vpack.c.b16 %v5814, %v5813
    %5831 = vmatpush.bf16.msra.mxu0 %v5822
    %5832 = vmatpush.bf16.msra.mxu0 %v5821
    %5833 = vmatpush.bf16.msra.mxu0 %v5820
    %5834 = vmatpush.bf16.msra.mxu0 %v5819
    %5835 = vmatpush.bf16.msra.mxu0 %v5818
    %5836 = vmatpush.bf16.msra.mxu0 %v5817
    %5837 = vmatpush.bf16.msra.mxu0 %v5816
    %5838 = vmatpush.bf16.msra.mxu0 %v5815
    %5839 = vmatmul.bf16.gmra.mxu0 %v5765
    %v5840 = vpop.f32.mrf.mxu0
    %v5841 = vadd.f32 0.0, %v5840
    %v5842 = vpop.f32.mrf.mxu0
    %v5843 = vadd.f32 0.0, %v5842
    %5844 = vdwg.mxu0
    %v5845 = vadd.f32 %v5761, %v5841
    %v5846 = vadd.f32 %v5762, %v5843
    %s5847 = scalar_lea.vmem [#allocation11], 6
    %v5848 = vld [vmem:[%s5847] sm:$0x1]
    %v5850 = vperm.slane %v5848, 0
    %v5852 = vadd.f32 %v5845, %v5850
    %v5853 = vadd.f32 %v5846, %v5850
    %v5854 = vmul.f32 %v5852, 0.2
    %v5855 = vmul.f32 %v5853, 0.2
    %v5856 = vmax.f32 %v5852, %v5854
    %v5857 = vmax.f32 %v5853, %v5855
    %5858 = vst [vmem:[#allocation3 + $0x8] sm:$0xff] %v5856
    %5859 = vst [vmem:[#allocation3 + $0x20] sm:$0xff] %v5857
    %v5860 = vld [vmem:[#allocation3 + $0x4] sm:$0xff]
    %v5861 = vld [vmem:[#allocation3 + $0x1c] sm:$0xff]
    %v5862 = vpack.c.bf16 %v5860, %v5860
    %v5863 = vpack.c.bf16 %v5861, %v5861
    %v5864 = vld [vmem:[#allocation3 + $0x5] sm:$0xff]
    %v5865 = vld [vmem:[#allocation3 + $0x1d] sm:$0xff]
    %v5866 = vpack.c.bf16 %v5864, %v5864
    %v5867 = vpack.c.bf16 %v5865, %v5865
    %v5872 = vunpack.c.l.b16 %v5862
    %v5873 = vunpack.c.l.b16 %v5866
    %v5874 = vunpack.c.l.b16 %v5863
    %v5875 = vunpack.c.l.b16 %v5867
    %s5876 = scalar_lea.vmem [#allocation4], 4032
    %v5877 = vld [vmem:[%s5876] sm:$0xf]
    %v5878 = vld [vmem:[%s5876 + $0x4] sm:$0xf]
    %v5879 = vld [vmem:[%s5876 + $0x8] sm:$0xf]
    %v5880 = vld [vmem:[%s5876 + $0xc] sm:$0xf]
    %v5881 = vld [vmem:[%s5876 + $0x10] sm:$0xf]
    %v5882 = vld [vmem:[%s5876 + $0x14] sm:$0xf]
    %v5883 = vld [vmem:[%s5876 + $0x18] sm:$0xf]
    %v5884 = vld [vmem:[%s5876 + $0x1c] sm:$0xf]
    %v5885 = vld [vmem:[%s5876 + $0x20] sm:$0xf]
    %v5886 = vld [vmem:[%s5876 + $0x24] sm:$0xf]
    %v5887 = vld [vmem:[%s5876 + $0x28] sm:$0xf]
    %v5888 = vld [vmem:[%s5876 + $0x2c] sm:$0xf]
    %v5889 = vld [vmem:[%s5876 + $0x30] sm:$0xf]
    %v5890 = vld [vmem:[%s5876 + $0x34] sm:$0xf]
    %v5891 = vld [vmem:[%s5876 + $0x38] sm:$0xf]
    %v5892 = vld [vmem:[%s5876 + $0x3c] sm:$0xf]
    %v5893 = vld [vmem:[%s5876 + $0x40] sm:$0xf]
    %v5894 = vld [vmem:[%s5876 + $0x44] sm:$0xf]
    %v5895 = vld [vmem:[%s5876 + $0x48] sm:$0xf]
    %v5896 = vld [vmem:[%s5876 + $0x4c] sm:$0xf]
    %v5897 = vld [vmem:[%s5876 + $0x50] sm:$0xf]
    %v5898 = vld [vmem:[%s5876 + $0x54] sm:$0xf]
    %v5899 = vld [vmem:[%s5876 + $0x58] sm:$0xf]
    %v5900 = vld [vmem:[%s5876 + $0x5c] sm:$0xf]
    %v5901 = vld [vmem:[%s5876 + $0x60] sm:$0xf]
    %v5902 = vld [vmem:[%s5876 + $0x64] sm:$0xf]
    %v5903 = vld [vmem:[%s5876 + $0x68] sm:$0xf]
    %v5904 = vld [vmem:[%s5876 + $0x6c] sm:$0xf]
    %v5905 = vld [vmem:[%s5876 + $0x70] sm:$0xf]
    %v5906 = vld [vmem:[%s5876 + $0x74] sm:$0xf]
    %v5907 = vld [vmem:[%s5876 + $0x78] sm:$0xf]
    %v5908 = vld [vmem:[%s5876 + $0x7c] sm:$0xf]
    %v5909 = vld [vmem:[#allocation3 + $0x6] sm:$0xff]
    %v5910 = vld [vmem:[#allocation3 + $0x1e] sm:$0xff]
    %v5911 = vpack.c.bf16 %v5909, %v5909
    %v5912 = vpack.c.bf16 %v5910, %v5910
    %v5913 = vld [vmem:[#allocation3 + $0x7] sm:$0xff]
    %v5914 = vld [vmem:[#allocation3 + $0x1f] sm:$0xff]
    %v5915 = vpack.c.bf16 %v5913, %v5913
    %v5916 = vpack.c.bf16 %v5914, %v5914
    %v5921 = vunpack.c.l.b16 %v5911
    %v5922 = vunpack.c.l.b16 %v5915
    %v5923 = vunpack.c.l.b16 %v5912
    %v5924 = vunpack.c.l.b16 %v5916
    %s5925 = scalar_lea.vmem [#allocation4], 4160
    %v5926 = vld [vmem:[%s5925] sm:$0xf]
    %v5927 = vld [vmem:[%s5925 + $0x4] sm:$0xf]
    %v5928 = vld [vmem:[%s5925 + $0x8] sm:$0xf]
    %v5929 = vld [vmem:[%s5925 + $0xc] sm:$0xf]
    %v5930 = vld [vmem:[%s5925 + $0x10] sm:$0xf]
    %v5931 = vld [vmem:[%s5925 + $0x14] sm:$0xf]
    %v5932 = vld [vmem:[%s5925 + $0x18] sm:$0xf]
    %v5933 = vld [vmem:[%s5925 + $0x1c] sm:$0xf]
    %v5934 = vld [vmem:[%s5925 + $0x20] sm:$0xf]
    %v5935 = vld [vmem:[%s5925 + $0x24] sm:$0xf]
    %v5936 = vld [vmem:[%s5925 + $0x28] sm:$0xf]
    %v5937 = vld [vmem:[%s5925 + $0x2c] sm:$0xf]
    %v5938 = vld [vmem:[%s5925 + $0x30] sm:$0xf]
    %v5939 = vld [vmem:[%s5925 + $0x34] sm:$0xf]
    %v5940 = vld [vmem:[%s5925 + $0x38] sm:$0xf]
    %v5941 = vld [vmem:[%s5925 + $0x3c] sm:$0xf]
    %v5942 = vld [vmem:[%s5925 + $0x40] sm:$0xf]
    %v5943 = vld [vmem:[%s5925 + $0x44] sm:$0xf]
    %v5944 = vld [vmem:[%s5925 + $0x48] sm:$0xf]
    %v5945 = vld [vmem:[%s5925 + $0x4c] sm:$0xf]
    %v5946 = vld [vmem:[%s5925 + $0x50] sm:$0xf]
    %v5947 = vld [vmem:[%s5925 + $0x54] sm:$0xf]
    %v5948 = vld [vmem:[%s5925 + $0x58] sm:$0xf]
    %v5949 = vld [vmem:[%s5925 + $0x5c] sm:$0xf]
    %v5950 = vld [vmem:[%s5925 + $0x60] sm:$0xf]
    %v5951 = vld [vmem:[%s5925 + $0x64] sm:$0xf]
    %v5952 = vld [vmem:[%s5925 + $0x68] sm:$0xf]
    %v5953 = vld [vmem:[%s5925 + $0x6c] sm:$0xf]
    %v5954 = vld [vmem:[%s5925 + $0x70] sm:$0xf]
    %v5955 = vld [vmem:[%s5925 + $0x74] sm:$0xf]
    %v5956 = vld [vmem:[%s5925 + $0x78] sm:$0xf]
    %v5957 = vld [vmem:[%s5925 + $0x7c] sm:$0xf]
    %v5958 = vpack.c.b16 %v5923, %v5921
    %v5959 = vpack.c.b16 %v5924, %v5922
    %v5994 = vunpack.c.l.b16 %v5926
    %v5995 = vunpack.c.l.b16 %v5927
    %v5996 = vunpack.c.l.b16 %v5928
    %v5997 = vunpack.c.l.b16 %v5929
    %v5998 = vunpack.c.l.b16 %v5930
    %v5999 = vunpack.c.l.b16 %v5931
    %v6000 = vunpack.c.l.b16 %v5932
    %v6001 = vunpack.c.l.b16 %v5933
    %v6002 = vunpack.c.l.b16 %v5934
    %v6003 = vunpack.c.l.b16 %v5935
    %v6004 = vunpack.c.l.b16 %v5936
    %v6005 = vunpack.c.l.b16 %v5937
    %v6006 = vunpack.c.l.b16 %v5938
    %v6007 = vunpack.c.l.b16 %v5939
    %v6008 = vunpack.c.l.b16 %v5940
    %v6009 = vunpack.c.l.b16 %v5941
    %v6010 = vunpack.c.l.b16 %v5942
    %v6011 = vunpack.c.l.b16 %v5943
    %v6012 = vunpack.c.l.b16 %v5944
    %v6013 = vunpack.c.l.b16 %v5945
    %v6014 = vunpack.c.l.b16 %v5946
    %v6015 = vunpack.c.l.b16 %v5947
    %v6016 = vunpack.c.l.b16 %v5948
    %v6017 = vunpack.c.l.b16 %v5949
    %v6018 = vunpack.c.l.b16 %v5950
    %v6019 = vunpack.c.l.b16 %v5951
    %v6020 = vunpack.c.l.b16 %v5952
    %v6021 = vunpack.c.l.b16 %v5953
    %v6022 = vunpack.c.l.b16 %v5954
    %v6023 = vunpack.c.l.b16 %v5955
    %v6024 = vunpack.c.l.b16 %v5956
    %v6025 = vunpack.c.l.b16 %v5957
    %v6026 = vpack.c.b16 %v5995, %v5994
    %v6027 = vpack.c.b16 %v5997, %v5996
    %v6028 = vpack.c.b16 %v5999, %v5998
    %v6029 = vpack.c.b16 %v6001, %v6000
    %v6030 = vpack.c.b16 %v6003, %v6002
    %v6031 = vpack.c.b16 %v6005, %v6004
    %v6032 = vpack.c.b16 %v6007, %v6006
    %v6033 = vpack.c.b16 %v6009, %v6008
    %v6034 = vpack.c.b16 %v6011, %v6010
    %v6035 = vpack.c.b16 %v6013, %v6012
    %v6036 = vpack.c.b16 %v6015, %v6014
    %v6037 = vpack.c.b16 %v6017, %v6016
    %v6038 = vpack.c.b16 %v6019, %v6018
    %v6039 = vpack.c.b16 %v6021, %v6020
    %v6040 = vpack.c.b16 %v6023, %v6022
    %v6041 = vpack.c.b16 %v6025, %v6024
    %6058 = vmatpush.bf16.msra.mxu0 %v6033
    %6059 = vmatpush.bf16.msra.mxu0 %v6032
    %6060 = vmatpush.bf16.msra.mxu0 %v6031
    %6061 = vmatpush.bf16.msra.mxu0 %v6030
    %6062 = vmatpush.bf16.msra.mxu0 %v6029
    %6063 = vmatpush.bf16.msra.mxu0 %v6028
    %6064 = vmatpush.bf16.msra.mxu0 %v6027
    %6065 = vmatpush.bf16.msra.mxu0 %v6026
    %6066 = vmatmul.bf16.gmra.mxu0 %v5958
    %v6067 = vpop.f32.mrf.mxu0
    %v6068 = vadd.f32 0.0, %v6067
    %v6069 = vpop.f32.mrf.mxu0
    %v6070 = vadd.f32 0.0, %v6069
    %6071 = vdwg.mxu0
    %6072 = vmatpush.bf16.msra.mxu0 %v6041
    %6073 = vmatpush.bf16.msra.mxu0 %v6040
    %6074 = vmatpush.bf16.msra.mxu0 %v6039
    %6075 = vmatpush.bf16.msra.mxu0 %v6038
    %6076 = vmatpush.bf16.msra.mxu0 %v6037
    %6077 = vmatpush.bf16.msra.mxu0 %v6036
    %6078 = vmatpush.bf16.msra.mxu0 %v6035
    %6079 = vmatpush.bf16.msra.mxu0 %v6034
    %6080 = vmatmul.bf16.gmra.mxu0 %v5959
    %v6081 = vpop.f32.mrf.mxu0
    %v6082 = vadd.f32 %v6068, %v6081
    %v6083 = vpop.f32.mrf.mxu0
    %v6084 = vadd.f32 %v6070, %v6083
    %6085 = vdwg.mxu0
    %v6086 = vpack.c.b16 %v5874, %v5872
    %v6087 = vpack.c.b16 %v5875, %v5873
    %v6122 = vunpack.c.l.b16 %v5877
    %v6123 = vunpack.c.l.b16 %v5878
    %v6124 = vunpack.c.l.b16 %v5879
    %v6125 = vunpack.c.l.b16 %v5880
    %v6126 = vunpack.c.l.b16 %v5881
    %v6127 = vunpack.c.l.b16 %v5882
    %v6128 = vunpack.c.l.b16 %v5883
    %v6129 = vunpack.c.l.b16 %v5884
    %v6130 = vunpack.c.l.b16 %v5885
    %v6131 = vunpack.c.l.b16 %v5886
    %v6132 = vunpack.c.l.b16 %v5887
    %v6133 = vunpack.c.l.b16 %v5888
    %v6134 = vunpack.c.l.b16 %v5889
    %v6135 = vunpack.c.l.b16 %v5890
    %v6136 = vunpack.c.l.b16 %v5891
    %v6137 = vunpack.c.l.b16 %v5892
    %v6138 = vunpack.c.l.b16 %v5893
    %v6139 = vunpack.c.l.b16 %v5894
    %v6140 = vunpack.c.l.b16 %v5895
    %v6141 = vunpack.c.l.b16 %v5896
    %v6142 = vunpack.c.l.b16 %v5897
    %v6143 = vunpack.c.l.b16 %v5898
    %v6144 = vunpack.c.l.b16 %v5899
    %v6145 = vunpack.c.l.b16 %v5900
    %v6146 = vunpack.c.l.b16 %v5901
    %v6147 = vunpack.c.l.b16 %v5902
    %v6148 = vunpack.c.l.b16 %v5903
    %v6149 = vunpack.c.l.b16 %v5904
    %v6150 = vunpack.c.l.b16 %v5905
    %v6151 = vunpack.c.l.b16 %v5906
    %v6152 = vunpack.c.l.b16 %v5907
    %v6153 = vunpack.c.l.b16 %v5908
    %v6154 = vpack.c.b16 %v6123, %v6122
    %v6155 = vpack.c.b16 %v6125, %v6124
    %v6156 = vpack.c.b16 %v6127, %v6126
    %v6157 = vpack.c.b16 %v6129, %v6128
    %v6158 = vpack.c.b16 %v6131, %v6130
    %v6159 = vpack.c.b16 %v6133, %v6132
    %v6160 = vpack.c.b16 %v6135, %v6134
    %v6161 = vpack.c.b16 %v6137, %v6136
    %v6162 = vpack.c.b16 %v6139, %v6138
    %v6163 = vpack.c.b16 %v6141, %v6140
    %v6164 = vpack.c.b16 %v6143, %v6142
    %v6165 = vpack.c.b16 %v6145, %v6144
    %v6166 = vpack.c.b16 %v6147, %v6146
    %v6167 = vpack.c.b16 %v6149, %v6148
    %v6168 = vpack.c.b16 %v6151, %v6150
    %v6169 = vpack.c.b16 %v6153, %v6152
    %6186 = vmatpush.bf16.msra.mxu0 %v6161
    %6187 = vmatpush.bf16.msra.mxu0 %v6160
    %6188 = vmatpush.bf16.msra.mxu0 %v6159
    %6189 = vmatpush.bf16.msra.mxu0 %v6158
    %6190 = vmatpush.bf16.msra.mxu0 %v6157
    %6191 = vmatpush.bf16.msra.mxu0 %v6156
    %6192 = vmatpush.bf16.msra.mxu0 %v6155
    %6193 = vmatpush.bf16.msra.mxu0 %v6154
    %6194 = vmatmul.bf16.gmra.mxu0 %v6086
    %v6195 = vpop.f32.mrf.mxu0
    %v6196 = vadd.f32 %v6082, %v6195
    %v6197 = vpop.f32.mrf.mxu0
    %v6198 = vadd.f32 %v6084, %v6197
    %6199 = vdwg.mxu0
    %6200 = vmatpush.bf16.msra.mxu0 %v6169
    %6201 = vmatpush.bf16.msra.mxu0 %v6168
    %6202 = vmatpush.bf16.msra.mxu0 %v6167
    %6203 = vmatpush.bf16.msra.mxu0 %v6166
    %6204 = vmatpush.bf16.msra.mxu0 %v6165
    %6205 = vmatpush.bf16.msra.mxu0 %v6164
    %6206 = vmatpush.bf16.msra.mxu0 %v6163
    %6207 = vmatpush.bf16.msra.mxu0 %v6162
    %6208 = vmatmul.bf16.gmra.mxu0 %v6087
    %v6209 = vpop.f32.mrf.mxu0
    %v6210 = vadd.f32 %v6196, %v6209
    %v6211 = vpop.f32.mrf.mxu0
    %v6212 = vadd.f32 %v6198, %v6211
    %6213 = vdwg.mxu0
    %v6214 = vld [vmem:[#allocation3 + $0x8] sm:$0xff]
    %v6215 = vld [vmem:[#allocation3 + $0x20] sm:$0xff]
    %v6216 = vpack.c.bf16 %v6214, %v6214
    %v6217 = vpack.c.bf16 %v6215, %v6215
    %v6218 = vld [vmem:[#allocation3 + $0x9] sm:$0xff]
    %v6219 = vld [vmem:[#allocation3 + $0x21] sm:$0xff]
    %v6220 = vpack.c.bf16 %v6218, %v6218
    %v6221 = vpack.c.bf16 %v6219, %v6219
    %v6226 = vunpack.c.l.b16 %v6216
    %v6227 = vunpack.c.l.b16 %v6220
    %v6228 = vunpack.c.l.b16 %v6217
    %v6229 = vunpack.c.l.b16 %v6221
    %s6230 = scalar_lea.vmem [#allocation4], 4288
    %v6231 = vld [vmem:[%s6230] sm:$0xf]
    %v6232 = vld [vmem:[%s6230 + $0x4] sm:$0xf]
    %v6233 = vld [vmem:[%s6230 + $0x8] sm:$0xf]
    %v6234 = vld [vmem:[%s6230 + $0xc] sm:$0xf]
    %v6235 = vld [vmem:[%s6230 + $0x10] sm:$0xf]
    %v6236 = vld [vmem:[%s6230 + $0x14] sm:$0xf]
    %v6237 = vld [vmem:[%s6230 + $0x18] sm:$0xf]
    %v6238 = vld [vmem:[%s6230 + $0x1c] sm:$0xf]
    %v6239 = vld [vmem:[%s6230 + $0x20] sm:$0xf]
    %v6240 = vld [vmem:[%s6230 + $0x24] sm:$0xf]
    %v6241 = vld [vmem:[%s6230 + $0x28] sm:$0xf]
    %v6242 = vld [vmem:[%s6230 + $0x2c] sm:$0xf]
    %v6243 = vld [vmem:[%s6230 + $0x30] sm:$0xf]
    %v6244 = vld [vmem:[%s6230 + $0x34] sm:$0xf]
    %v6245 = vld [vmem:[%s6230 + $0x38] sm:$0xf]
    %v6246 = vld [vmem:[%s6230 + $0x3c] sm:$0xf]
    %v6247 = vld [vmem:[%s6230 + $0x40] sm:$0xf]
    %v6248 = vld [vmem:[%s6230 + $0x44] sm:$0xf]
    %v6249 = vld [vmem:[%s6230 + $0x48] sm:$0xf]
    %v6250 = vld [vmem:[%s6230 + $0x4c] sm:$0xf]
    %v6251 = vld [vmem:[%s6230 + $0x50] sm:$0xf]
    %v6252 = vld [vmem:[%s6230 + $0x54] sm:$0xf]
    %v6253 = vld [vmem:[%s6230 + $0x58] sm:$0xf]
    %v6254 = vld [vmem:[%s6230 + $0x5c] sm:$0xf]
    %v6255 = vld [vmem:[%s6230 + $0x60] sm:$0xf]
    %v6256 = vld [vmem:[%s6230 + $0x64] sm:$0xf]
    %v6257 = vld [vmem:[%s6230 + $0x68] sm:$0xf]
    %v6258 = vld [vmem:[%s6230 + $0x6c] sm:$0xf]
    %v6259 = vld [vmem:[%s6230 + $0x70] sm:$0xf]
    %v6260 = vld [vmem:[%s6230 + $0x74] sm:$0xf]
    %v6261 = vld [vmem:[%s6230 + $0x78] sm:$0xf]
    %v6262 = vld [vmem:[%s6230 + $0x7c] sm:$0xf]
    %v6263 = vpack.c.b16 %v6228, %v6226
    %v6264 = vpack.c.b16 %v6229, %v6227
    %v6299 = vunpack.c.l.b16 %v6231
    %v6300 = vunpack.c.l.b16 %v6232
    %v6301 = vunpack.c.l.b16 %v6233
    %v6302 = vunpack.c.l.b16 %v6234
    %v6303 = vunpack.c.l.b16 %v6235
    %v6304 = vunpack.c.l.b16 %v6236
    %v6305 = vunpack.c.l.b16 %v6237
    %v6306 = vunpack.c.l.b16 %v6238
    %v6307 = vunpack.c.l.b16 %v6239
    %v6308 = vunpack.c.l.b16 %v6240
    %v6309 = vunpack.c.l.b16 %v6241
    %v6310 = vunpack.c.l.b16 %v6242
    %v6311 = vunpack.c.l.b16 %v6243
    %v6312 = vunpack.c.l.b16 %v6244
    %v6313 = vunpack.c.l.b16 %v6245
    %v6314 = vunpack.c.l.b16 %v6246
    %v6315 = vunpack.c.l.b16 %v6247
    %v6316 = vunpack.c.l.b16 %v6248
    %v6317 = vunpack.c.l.b16 %v6249
    %v6318 = vunpack.c.l.b16 %v6250
    %v6319 = vunpack.c.l.b16 %v6251
    %v6320 = vunpack.c.l.b16 %v6252
    %v6321 = vunpack.c.l.b16 %v6253
    %v6322 = vunpack.c.l.b16 %v6254
    %v6323 = vunpack.c.l.b16 %v6255
    %v6324 = vunpack.c.l.b16 %v6256
    %v6325 = vunpack.c.l.b16 %v6257
    %v6326 = vunpack.c.l.b16 %v6258
    %v6327 = vunpack.c.l.b16 %v6259
    %v6328 = vunpack.c.l.b16 %v6260
    %v6329 = vunpack.c.l.b16 %v6261
    %v6330 = vunpack.c.l.b16 %v6262
    %v6331 = vpack.c.b16 %v6300, %v6299
    %v6332 = vpack.c.b16 %v6302, %v6301
    %v6333 = vpack.c.b16 %v6304, %v6303
    %v6334 = vpack.c.b16 %v6306, %v6305
    %v6335 = vpack.c.b16 %v6308, %v6307
    %v6336 = vpack.c.b16 %v6310, %v6309
    %v6337 = vpack.c.b16 %v6312, %v6311
    %v6338 = vpack.c.b16 %v6314, %v6313
    %v6339 = vpack.c.b16 %v6316, %v6315
    %v6340 = vpack.c.b16 %v6318, %v6317
    %v6341 = vpack.c.b16 %v6320, %v6319
    %v6342 = vpack.c.b16 %v6322, %v6321
    %v6343 = vpack.c.b16 %v6324, %v6323
    %v6344 = vpack.c.b16 %v6326, %v6325
    %v6345 = vpack.c.b16 %v6328, %v6327
    %v6346 = vpack.c.b16 %v6330, %v6329
    %6363 = vmatpush.bf16.msra.mxu0 %v6338
    %6364 = vmatpush.bf16.msra.mxu0 %v6337
    %6365 = vmatpush.bf16.msra.mxu0 %v6336
    %6366 = vmatpush.bf16.msra.mxu0 %v6335
    %6367 = vmatpush.bf16.msra.mxu0 %v6334
    %6368 = vmatpush.bf16.msra.mxu0 %v6333
    %6369 = vmatpush.bf16.msra.mxu0 %v6332
    %6370 = vmatpush.bf16.msra.mxu0 %v6331
    %6371 = vmatmul.bf16.gmra.mxu0 %v6263
    %v6372 = vpop.f32.mrf.mxu0
    %v6373 = vadd.f32 0.0, %v6372
    %v6374 = vpop.f32.mrf.mxu0
    %v6375 = vadd.f32 0.0, %v6374
    %6376 = vdwg.mxu0
    %6377 = vmatpush.bf16.msra.mxu0 %v6346
    %6378 = vmatpush.bf16.msra.mxu0 %v6345
    %6379 = vmatpush.bf16.msra.mxu0 %v6344
    %6380 = vmatpush.bf16.msra.mxu0 %v6343
    %6381 = vmatpush.bf16.msra.mxu0 %v6342
    %6382 = vmatpush.bf16.msra.mxu0 %v6341
    %6383 = vmatpush.bf16.msra.mxu0 %v6340
    %6384 = vmatpush.bf16.msra.mxu0 %v6339
    %6385 = vmatmul.bf16.gmra.mxu0 %v6264
    %v6386 = vpop.f32.mrf.mxu0
    %v6387 = vadd.f32 %v6373, %v6386
    %v6388 = vpop.f32.mrf.mxu0
    %v6389 = vadd.f32 %v6375, %v6388
    %6390 = vdwg.mxu0
    %v6391 = vadd.f32 %v6210, %v6387
    %v6392 = vadd.f32 %v6212, %v6389
    %v6393 = vld [vmem:[#allocation3 + $0xa] sm:$0xff]
    %v6394 = vld [vmem:[#allocation3 + $0x22] sm:$0xff]
    %v6395 = vpack.c.bf16 %v6393, %v6393
    %v6396 = vpack.c.bf16 %v6394, %v6394
    %v6397 = vld [vmem:[#allocation3 + $0xb] sm:$0xff]
    %v6398 = vld [vmem:[#allocation3 + $0x23] sm:$0xff]
    %v6399 = vpack.c.bf16 %v6397, %v6397
    %v6400 = vpack.c.bf16 %v6398, %v6398
    %v6405 = vunpack.c.l.b16 %v6395
    %v6406 = vunpack.c.l.b16 %v6399
    %v6407 = vunpack.c.l.b16 %v6396
    %v6408 = vunpack.c.l.b16 %v6400
    %s6409 = scalar_lea.vmem [#allocation4], 4416
    %v6410 = vld [vmem:[%s6409] sm:$0xf]
    %v6411 = vld [vmem:[%s6409 + $0x4] sm:$0xf]
    %v6412 = vld [vmem:[%s6409 + $0x8] sm:$0xf]
    %v6413 = vld [vmem:[%s6409 + $0xc] sm:$0xf]
    %v6414 = vld [vmem:[%s6409 + $0x10] sm:$0xf]
    %v6415 = vld [vmem:[%s6409 + $0x14] sm:$0xf]
    %v6416 = vld [vmem:[%s6409 + $0x18] sm:$0xf]
    %v6417 = vld [vmem:[%s6409 + $0x1c] sm:$0xf]
    %v6418 = vld [vmem:[%s6409 + $0x20] sm:$0xf]
    %v6419 = vld [vmem:[%s6409 + $0x24] sm:$0xf]
    %v6420 = vld [vmem:[%s6409 + $0x28] sm:$0xf]
    %v6421 = vld [vmem:[%s6409 + $0x2c] sm:$0xf]
    %v6422 = vld [vmem:[%s6409 + $0x30] sm:$0xf]
    %v6423 = vld [vmem:[%s6409 + $0x34] sm:$0xf]
    %v6424 = vld [vmem:[%s6409 + $0x38] sm:$0xf]
    %v6425 = vld [vmem:[%s6409 + $0x3c] sm:$0xf]
    %v6426 = vld [vmem:[%s6409 + $0x40] sm:$0xf]
    %v6427 = vld [vmem:[%s6409 + $0x44] sm:$0xf]
    %v6428 = vld [vmem:[%s6409 + $0x48] sm:$0xf]
    %v6429 = vld [vmem:[%s6409 + $0x4c] sm:$0xf]
    %v6430 = vld [vmem:[%s6409 + $0x50] sm:$0xf]
    %v6431 = vld [vmem:[%s6409 + $0x54] sm:$0xf]
    %v6432 = vld [vmem:[%s6409 + $0x58] sm:$0xf]
    %v6433 = vld [vmem:[%s6409 + $0x5c] sm:$0xf]
    %v6434 = vld [vmem:[%s6409 + $0x60] sm:$0xf]
    %v6435 = vld [vmem:[%s6409 + $0x64] sm:$0xf]
    %v6436 = vld [vmem:[%s6409 + $0x68] sm:$0xf]
    %v6437 = vld [vmem:[%s6409 + $0x6c] sm:$0xf]
    %v6438 = vld [vmem:[%s6409 + $0x70] sm:$0xf]
    %v6439 = vld [vmem:[%s6409 + $0x74] sm:$0xf]
    %v6440 = vld [vmem:[%s6409 + $0x78] sm:$0xf]
    %v6441 = vld [vmem:[%s6409 + $0x7c] sm:$0xf]
    %v6442 = vpack.c.b16 %v6407, %v6405
    %v6443 = vpack.c.b16 %v6408, %v6406
    %v6478 = vunpack.c.l.b16 %v6410
    %v6479 = vunpack.c.l.b16 %v6411
    %v6480 = vunpack.c.l.b16 %v6412
    %v6481 = vunpack.c.l.b16 %v6413
    %v6482 = vunpack.c.l.b16 %v6414
    %v6483 = vunpack.c.l.b16 %v6415
    %v6484 = vunpack.c.l.b16 %v6416
    %v6485 = vunpack.c.l.b16 %v6417
    %v6486 = vunpack.c.l.b16 %v6418
    %v6487 = vunpack.c.l.b16 %v6419
    %v6488 = vunpack.c.l.b16 %v6420
    %v6489 = vunpack.c.l.b16 %v6421
    %v6490 = vunpack.c.l.b16 %v6422
    %v6491 = vunpack.c.l.b16 %v6423
    %v6492 = vunpack.c.l.b16 %v6424
    %v6493 = vunpack.c.l.b16 %v6425
    %v6494 = vunpack.c.l.b16 %v6426
    %v6495 = vunpack.c.l.b16 %v6427
    %v6496 = vunpack.c.l.b16 %v6428
    %v6497 = vunpack.c.l.b16 %v6429
    %v6498 = vunpack.c.l.b16 %v6430
    %v6499 = vunpack.c.l.b16 %v6431
    %v6500 = vunpack.c.l.b16 %v6432
    %v6501 = vunpack.c.l.b16 %v6433
    %v6502 = vunpack.c.l.b16 %v6434
    %v6503 = vunpack.c.l.b16 %v6435
    %v6504 = vunpack.c.l.b16 %v6436
    %v6505 = vunpack.c.l.b16 %v6437
    %v6506 = vunpack.c.l.b16 %v6438
    %v6507 = vunpack.c.l.b16 %v6439
    %v6508 = vunpack.c.l.b16 %v6440
    %v6509 = vunpack.c.l.b16 %v6441
    %v6510 = vpack.c.b16 %v6479, %v6478
    %v6511 = vpack.c.b16 %v6481, %v6480
    %v6512 = vpack.c.b16 %v6483, %v6482
    %v6513 = vpack.c.b16 %v6485, %v6484
    %v6514 = vpack.c.b16 %v6487, %v6486
    %v6515 = vpack.c.b16 %v6489, %v6488
    %v6516 = vpack.c.b16 %v6491, %v6490
    %v6517 = vpack.c.b16 %v6493, %v6492
    %v6518 = vpack.c.b16 %v6495, %v6494
    %v6519 = vpack.c.b16 %v6497, %v6496
    %v6520 = vpack.c.b16 %v6499, %v6498
    %v6521 = vpack.c.b16 %v6501, %v6500
    %v6522 = vpack.c.b16 %v6503, %v6502
    %v6523 = vpack.c.b16 %v6505, %v6504
    %v6524 = vpack.c.b16 %v6507, %v6506
    %v6525 = vpack.c.b16 %v6509, %v6508
    %6542 = vmatpush.bf16.msra.mxu0 %v6517
    %6543 = vmatpush.bf16.msra.mxu0 %v6516
    %6544 = vmatpush.bf16.msra.mxu0 %v6515
    %6545 = vmatpush.bf16.msra.mxu0 %v6514
    %6546 = vmatpush.bf16.msra.mxu0 %v6513
    %6547 = vmatpush.bf16.msra.mxu0 %v6512
    %6548 = vmatpush.bf16.msra.mxu0 %v6511
    %6549 = vmatpush.bf16.msra.mxu0 %v6510
    %6550 = vmatmul.bf16.gmra.mxu0 %v6442
    %v6551 = vpop.f32.mrf.mxu0
    %v6552 = vadd.f32 0.0, %v6551
    %v6553 = vpop.f32.mrf.mxu0
    %v6554 = vadd.f32 0.0, %v6553
    %6555 = vdwg.mxu0
    %6556 = vmatpush.bf16.msra.mxu0 %v6525
    %6557 = vmatpush.bf16.msra.mxu0 %v6524
    %6558 = vmatpush.bf16.msra.mxu0 %v6523
    %6559 = vmatpush.bf16.msra.mxu0 %v6522
    %6560 = vmatpush.bf16.msra.mxu0 %v6521
    %6561 = vmatpush.bf16.msra.mxu0 %v6520
    %6562 = vmatpush.bf16.msra.mxu0 %v6519
    %6563 = vmatpush.bf16.msra.mxu0 %v6518
    %6564 = vmatmul.bf16.gmra.mxu0 %v6443
    %v6565 = vpop.f32.mrf.mxu0
    %v6566 = vadd.f32 %v6552, %v6565
    %v6567 = vpop.f32.mrf.mxu0
    %v6568 = vadd.f32 %v6554, %v6567
    %6569 = vdwg.mxu0
    %v6570 = vadd.f32 %v6391, %v6566
    %v6571 = vadd.f32 %v6392, %v6568
    %v6572 = vld [vmem:[#allocation3 + $0xc] sm:$0xff]
    %v6573 = vld [vmem:[#allocation3 + $0x24] sm:$0xff]
    %v6574 = vpack.c.bf16 %v6573, %v6572
    %s6575 = scalar_lea.vmem [#allocation4], 4544
    %v6576 = vld [vmem:[%s6575] sm:$0xf]
    %v6577 = vld [vmem:[%s6575 + $0x4] sm:$0xf]
    %v6578 = vld [vmem:[%s6575 + $0x8] sm:$0xf]
    %v6579 = vld [vmem:[%s6575 + $0xc] sm:$0xf]
    %v6580 = vld [vmem:[%s6575 + $0x10] sm:$0xf]
    %v6581 = vld [vmem:[%s6575 + $0x14] sm:$0xf]
    %v6582 = vld [vmem:[%s6575 + $0x18] sm:$0xf]
    %v6583 = vld [vmem:[%s6575 + $0x1c] sm:$0xf]
    %v6584 = vld [vmem:[%s6575 + $0x20] sm:$0xf]
    %v6585 = vld [vmem:[%s6575 + $0x24] sm:$0xf]
    %v6586 = vld [vmem:[%s6575 + $0x28] sm:$0xf]
    %v6587 = vld [vmem:[%s6575 + $0x2c] sm:$0xf]
    %v6588 = vld [vmem:[%s6575 + $0x30] sm:$0xf]
    %v6589 = vld [vmem:[%s6575 + $0x34] sm:$0xf]
    %v6590 = vld [vmem:[%s6575 + $0x38] sm:$0xf]
    %v6591 = vld [vmem:[%s6575 + $0x3c] sm:$0xf]
    %v6608 = vunpack.c.l.b16 %v6576
    %v6609 = vunpack.c.l.b16 %v6577
    %v6610 = vunpack.c.l.b16 %v6578
    %v6611 = vunpack.c.l.b16 %v6579
    %v6612 = vunpack.c.l.b16 %v6580
    %v6613 = vunpack.c.l.b16 %v6581
    %v6614 = vunpack.c.l.b16 %v6582
    %v6615 = vunpack.c.l.b16 %v6583
    %v6616 = vunpack.c.l.b16 %v6584
    %v6617 = vunpack.c.l.b16 %v6585
    %v6618 = vunpack.c.l.b16 %v6586
    %v6619 = vunpack.c.l.b16 %v6587
    %v6620 = vunpack.c.l.b16 %v6588
    %v6621 = vunpack.c.l.b16 %v6589
    %v6622 = vunpack.c.l.b16 %v6590
    %v6623 = vunpack.c.l.b16 %v6591
    %v6624 = vpack.c.b16 %v6609, %v6608
    %v6625 = vpack.c.b16 %v6611, %v6610
    %v6626 = vpack.c.b16 %v6613, %v6612
    %v6627 = vpack.c.b16 %v6615, %v6614
    %v6628 = vpack.c.b16 %v6617, %v6616
    %v6629 = vpack.c.b16 %v6619, %v6618
    %v6630 = vpack.c.b16 %v6621, %v6620
    %v6631 = vpack.c.b16 %v6623, %v6622
    %6640 = vmatpush.bf16.msra.mxu0 %v6631
    %6641 = vmatpush.bf16.msra.mxu0 %v6630
    %6642 = vmatpush.bf16.msra.mxu0 %v6629
    %6643 = vmatpush.bf16.msra.mxu0 %v6628
    %6644 = vmatpush.bf16.msra.mxu0 %v6627
    %6645 = vmatpush.bf16.msra.mxu0 %v6626
    %6646 = vmatpush.bf16.msra.mxu0 %v6625
    %6647 = vmatpush.bf16.msra.mxu0 %v6624
    %6648 = vmatmul.bf16.gmra.mxu0 %v6574
    %v6649 = vpop.f32.mrf.mxu0
    %v6650 = vadd.f32 0.0, %v6649
    %v6651 = vpop.f32.mrf.mxu0
    %v6652 = vadd.f32 0.0, %v6651
    %6653 = vdwg.mxu0
    %v6654 = vadd.f32 %v6570, %v6650
    %v6655 = vadd.f32 %v6571, %v6652
    %s6656 = scalar_lea.vmem [#allocation11], 7
    %v6657 = vld [vmem:[%s6656] sm:$0x1]
    %v6659 = vperm.slane %v6657, 0
    %v6661 = vadd.f32 %v6654, %v6659
    %v6662 = vadd.f32 %v6655, %v6659
    %v6663 = vld [vmem:[#allocation2 + $0x8] sm:$0xff]
    %v6664 = vld [vmem:[#allocation2 + $0x20] sm:$0xff]
    %v6665 = vadd.f32 %v6661, %v6663
    %v6666 = vadd.f32 %v6662, %v6664
    %v6667 = vmul.f32 %v6665, 0.2
    %v6668 = vmul.f32 %v6666, 0.2
    %v6669 = vmax.f32 %v6665, %v6667
    %v6670 = vmax.f32 %v6666, %v6668
    %6671 = vst [vmem:[#allocation2 + $0x8] sm:$0xff] %v6669
    %6672 = vst [vmem:[#allocation2 + $0x20] sm:$0xff] %v6670
    %v6673 = vld [vmem:[#allocation2 + $0x4] sm:$0xff]
    %v6674 = vld [vmem:[#allocation2 + $0x1c] sm:$0xff]
    %v6675 = vpack.c.bf16 %v6673, %v6673
    %v6676 = vpack.c.bf16 %v6674, %v6674
    %v6677 = vld [vmem:[#allocation2 + $0x5] sm:$0xff]
    %v6678 = vld [vmem:[#allocation2 + $0x1d] sm:$0xff]
    %v6679 = vpack.c.bf16 %v6677, %v6677
    %v6680 = vpack.c.bf16 %v6678, %v6678
    %v6685 = vunpack.c.l.b16 %v6675
    %v6686 = vunpack.c.l.b16 %v6679
    %v6687 = vunpack.c.l.b16 %v6676
    %v6688 = vunpack.c.l.b16 %v6680
    %s6689 = scalar_lea.vmem [#allocation4], 4608
    %v6690 = vld [vmem:[%s6689] sm:$0xf]
    %v6691 = vld [vmem:[%s6689 + $0x4] sm:$0xf]
    %v6692 = vld [vmem:[%s6689 + $0x8] sm:$0xf]
    %v6693 = vld [vmem:[%s6689 + $0xc] sm:$0xf]
    %v6694 = vld [vmem:[%s6689 + $0x10] sm:$0xf]
    %v6695 = vld [vmem:[%s6689 + $0x14] sm:$0xf]
    %v6696 = vld [vmem:[%s6689 + $0x18] sm:$0xf]
    %v6697 = vld [vmem:[%s6689 + $0x1c] sm:$0xf]
    %v6698 = vld [vmem:[%s6689 + $0x20] sm:$0xf]
    %v6699 = vld [vmem:[%s6689 + $0x24] sm:$0xf]
    %v6700 = vld [vmem:[%s6689 + $0x28] sm:$0xf]
    %v6701 = vld [vmem:[%s6689 + $0x2c] sm:$0xf]
    %v6702 = vld [vmem:[%s6689 + $0x30] sm:$0xf]
    %v6703 = vld [vmem:[%s6689 + $0x34] sm:$0xf]
    %v6704 = vld [vmem:[%s6689 + $0x38] sm:$0xf]
    %v6705 = vld [vmem:[%s6689 + $0x3c] sm:$0xf]
    %v6706 = vld [vmem:[%s6689 + $0x40] sm:$0xf]
    %v6707 = vld [vmem:[%s6689 + $0x44] sm:$0xf]
    %v6708 = vld [vmem:[%s6689 + $0x48] sm:$0xf]
    %v6709 = vld [vmem:[%s6689 + $0x4c] sm:$0xf]
    %v6710 = vld [vmem:[%s6689 + $0x50] sm:$0xf]
    %v6711 = vld [vmem:[%s6689 + $0x54] sm:$0xf]
    %v6712 = vld [vmem:[%s6689 + $0x58] sm:$0xf]
    %v6713 = vld [vmem:[%s6689 + $0x5c] sm:$0xf]
    %v6714 = vld [vmem:[%s6689 + $0x60] sm:$0xf]
    %v6715 = vld [vmem:[%s6689 + $0x64] sm:$0xf]
    %v6716 = vld [vmem:[%s6689 + $0x68] sm:$0xf]
    %v6717 = vld [vmem:[%s6689 + $0x6c] sm:$0xf]
    %v6718 = vld [vmem:[%s6689 + $0x70] sm:$0xf]
    %v6719 = vld [vmem:[%s6689 + $0x74] sm:$0xf]
    %v6720 = vld [vmem:[%s6689 + $0x78] sm:$0xf]
    %v6721 = vld [vmem:[%s6689 + $0x7c] sm:$0xf]
    %v6722 = vld [vmem:[#allocation2 + $0x6] sm:$0xff]
    %v6723 = vld [vmem:[#allocation2 + $0x1e] sm:$0xff]
    %v6724 = vpack.c.bf16 %v6722, %v6722
    %v6725 = vpack.c.bf16 %v6723, %v6723
    %v6726 = vld [vmem:[#allocation2 + $0x7] sm:$0xff]
    %v6727 = vld [vmem:[#allocation2 + $0x1f] sm:$0xff]
    %v6728 = vpack.c.bf16 %v6726, %v6726
    %v6729 = vpack.c.bf16 %v6727, %v6727
    %v6734 = vunpack.c.l.b16 %v6724
    %v6735 = vunpack.c.l.b16 %v6728
    %v6736 = vunpack.c.l.b16 %v6725
    %v6737 = vunpack.c.l.b16 %v6729
    %s6738 = scalar_lea.vmem [#allocation4], 4736
    %v6739 = vld [vmem:[%s6738] sm:$0xf]
    %v6740 = vld [vmem:[%s6738 + $0x4] sm:$0xf]
    %v6741 = vld [vmem:[%s6738 + $0x8] sm:$0xf]
    %v6742 = vld [vmem:[%s6738 + $0xc] sm:$0xf]
    %v6743 = vld [vmem:[%s6738 + $0x10] sm:$0xf]
    %v6744 = vld [vmem:[%s6738 + $0x14] sm:$0xf]
    %v6745 = vld [vmem:[%s6738 + $0x18] sm:$0xf]
    %v6746 = vld [vmem:[%s6738 + $0x1c] sm:$0xf]
    %v6747 = vld [vmem:[%s6738 + $0x20] sm:$0xf]
    %v6748 = vld [vmem:[%s6738 + $0x24] sm:$0xf]
    %v6749 = vld [vmem:[%s6738 + $0x28] sm:$0xf]
    %v6750 = vld [vmem:[%s6738 + $0x2c] sm:$0xf]
    %v6751 = vld [vmem:[%s6738 + $0x30] sm:$0xf]
    %v6752 = vld [vmem:[%s6738 + $0x34] sm:$0xf]
    %v6753 = vld [vmem:[%s6738 + $0x38] sm:$0xf]
    %v6754 = vld [vmem:[%s6738 + $0x3c] sm:$0xf]
    %v6755 = vld [vmem:[%s6738 + $0x40] sm:$0xf]
    %v6756 = vld [vmem:[%s6738 + $0x44] sm:$0xf]
    %v6757 = vld [vmem:[%s6738 + $0x48] sm:$0xf]
    %v6758 = vld [vmem:[%s6738 + $0x4c] sm:$0xf]
    %v6759 = vld [vmem:[%s6738 + $0x50] sm:$0xf]
    %v6760 = vld [vmem:[%s6738 + $0x54] sm:$0xf]
    %v6761 = vld [vmem:[%s6738 + $0x58] sm:$0xf]
    %v6762 = vld [vmem:[%s6738 + $0x5c] sm:$0xf]
    %v6763 = vld [vmem:[%s6738 + $0x60] sm:$0xf]
    %v6764 = vld [vmem:[%s6738 + $0x64] sm:$0xf]
    %v6765 = vld [vmem:[%s6738 + $0x68] sm:$0xf]
    %v6766 = vld [vmem:[%s6738 + $0x6c] sm:$0xf]
    %v6767 = vld [vmem:[%s6738 + $0x70] sm:$0xf]
    %v6768 = vld [vmem:[%s6738 + $0x74] sm:$0xf]
    %v6769 = vld [vmem:[%s6738 + $0x78] sm:$0xf]
    %v6770 = vld [vmem:[%s6738 + $0x7c] sm:$0xf]
    %v6771 = vpack.c.b16 %v6736, %v6734
    %v6772 = vpack.c.b16 %v6737, %v6735
    %v6807 = vunpack.c.l.b16 %v6739
    %v6808 = vunpack.c.l.b16 %v6740
    %v6809 = vunpack.c.l.b16 %v6741
    %v6810 = vunpack.c.l.b16 %v6742
    %v6811 = vunpack.c.l.b16 %v6743
    %v6812 = vunpack.c.l.b16 %v6744
    %v6813 = vunpack.c.l.b16 %v6745
    %v6814 = vunpack.c.l.b16 %v6746
    %v6815 = vunpack.c.l.b16 %v6747
    %v6816 = vunpack.c.l.b16 %v6748
    %v6817 = vunpack.c.l.b16 %v6749
    %v6818 = vunpack.c.l.b16 %v6750
    %v6819 = vunpack.c.l.b16 %v6751
    %v6820 = vunpack.c.l.b16 %v6752
    %v6821 = vunpack.c.l.b16 %v6753
    %v6822 = vunpack.c.l.b16 %v6754
    %v6823 = vunpack.c.l.b16 %v6755
    %v6824 = vunpack.c.l.b16 %v6756
    %v6825 = vunpack.c.l.b16 %v6757
    %v6826 = vunpack.c.l.b16 %v6758
    %v6827 = vunpack.c.l.b16 %v6759
    %v6828 = vunpack.c.l.b16 %v6760
    %v6829 = vunpack.c.l.b16 %v6761
    %v6830 = vunpack.c.l.b16 %v6762
    %v6831 = vunpack.c.l.b16 %v6763
    %v6832 = vunpack.c.l.b16 %v6764
    %v6833 = vunpack.c.l.b16 %v6765
    %v6834 = vunpack.c.l.b16 %v6766
    %v6835 = vunpack.c.l.b16 %v6767
    %v6836 = vunpack.c.l.b16 %v6768
    %v6837 = vunpack.c.l.b16 %v6769
    %v6838 = vunpack.c.l.b16 %v6770
    %v6839 = vpack.c.b16 %v6808, %v6807
    %v6840 = vpack.c.b16 %v6810, %v6809
    %v6841 = vpack.c.b16 %v6812, %v6811
    %v6842 = vpack.c.b16 %v6814, %v6813
    %v6843 = vpack.c.b16 %v6816, %v6815
    %v6844 = vpack.c.b16 %v6818, %v6817
    %v6845 = vpack.c.b16 %v6820, %v6819
    %v6846 = vpack.c.b16 %v6822, %v6821
    %v6847 = vpack.c.b16 %v6824, %v6823
    %v6848 = vpack.c.b16 %v6826, %v6825
    %v6849 = vpack.c.b16 %v6828, %v6827
    %v6850 = vpack.c.b16 %v6830, %v6829
    %v6851 = vpack.c.b16 %v6832, %v6831
    %v6852 = vpack.c.b16 %v6834, %v6833
    %v6853 = vpack.c.b16 %v6836, %v6835
    %v6854 = vpack.c.b16 %v6838, %v6837
    %6871 = vmatpush.bf16.msra.mxu0 %v6846
    %6872 = vmatpush.bf16.msra.mxu0 %v6845
    %6873 = vmatpush.bf16.msra.mxu0 %v6844
    %6874 = vmatpush.bf16.msra.mxu0 %v6843
    %6875 = vmatpush.bf16.msra.mxu0 %v6842
    %6876 = vmatpush.bf16.msra.mxu0 %v6841
    %6877 = vmatpush.bf16.msra.mxu0 %v6840
    %6878 = vmatpush.bf16.msra.mxu0 %v6839
    %6879 = vmatmul.bf16.gmra.mxu0 %v6771
    %v6880 = vpop.f32.mrf.mxu0
    %v6881 = vadd.f32 0.0, %v6880
    %v6882 = vpop.f32.mrf.mxu0
    %v6883 = vadd.f32 0.0, %v6882
    %6884 = vdwg.mxu0
    %6885 = vmatpush.bf16.msra.mxu0 %v6854
    %6886 = vmatpush.bf16.msra.mxu0 %v6853
    %6887 = vmatpush.bf16.msra.mxu0 %v6852
    %6888 = vmatpush.bf16.msra.mxu0 %v6851
    %6889 = vmatpush.bf16.msra.mxu0 %v6850
    %6890 = vmatpush.bf16.msra.mxu0 %v6849
    %6891 = vmatpush.bf16.msra.mxu0 %v6848
    %6892 = vmatpush.bf16.msra.mxu0 %v6847
    %6893 = vmatmul.bf16.gmra.mxu0 %v6772
    %v6894 = vpop.f32.mrf.mxu0
    %v6895 = vadd.f32 %v6881, %v6894
    %v6896 = vpop.f32.mrf.mxu0
    %v6897 = vadd.f32 %v6883, %v6896
    %6898 = vdwg.mxu0
    %v6899 = vpack.c.b16 %v6687, %v6685
    %v6900 = vpack.c.b16 %v6688, %v6686
    %v6935 = vunpack.c.l.b16 %v6690
    %v6936 = vunpack.c.l.b16 %v6691
    %v6937 = vunpack.c.l.b16 %v6692
    %v6938 = vunpack.c.l.b16 %v6693
    %v6939 = vunpack.c.l.b16 %v6694
    %v6940 = vunpack.c.l.b16 %v6695
    %v6941 = vunpack.c.l.b16 %v6696
    %v6942 = vunpack.c.l.b16 %v6697
    %v6943 = vunpack.c.l.b16 %v6698
    %v6944 = vunpack.c.l.b16 %v6699
    %v6945 = vunpack.c.l.b16 %v6700
    %v6946 = vunpack.c.l.b16 %v6701
    %v6947 = vunpack.c.l.b16 %v6702
    %v6948 = vunpack.c.l.b16 %v6703
    %v6949 = vunpack.c.l.b16 %v6704
    %v6950 = vunpack.c.l.b16 %v6705
    %v6951 = vunpack.c.l.b16 %v6706
    %v6952 = vunpack.c.l.b16 %v6707
    %v6953 = vunpack.c.l.b16 %v6708
    %v6954 = vunpack.c.l.b16 %v6709
    %v6955 = vunpack.c.l.b16 %v6710
    %v6956 = vunpack.c.l.b16 %v6711
    %v6957 = vunpack.c.l.b16 %v6712
    %v6958 = vunpack.c.l.b16 %v6713
    %v6959 = vunpack.c.l.b16 %v6714
    %v6960 = vunpack.c.l.b16 %v6715
    %v6961 = vunpack.c.l.b16 %v6716
    %v6962 = vunpack.c.l.b16 %v6717
    %v6963 = vunpack.c.l.b16 %v6718
    %v6964 = vunpack.c.l.b16 %v6719
    %v6965 = vunpack.c.l.b16 %v6720
    %v6966 = vunpack.c.l.b16 %v6721
    %v6967 = vpack.c.b16 %v6936, %v6935
    %v6968 = vpack.c.b16 %v6938, %v6937
    %v6969 = vpack.c.b16 %v6940, %v6939
    %v6970 = vpack.c.b16 %v6942, %v6941
    %v6971 = vpack.c.b16 %v6944, %v6943
    %v6972 = vpack.c.b16 %v6946, %v6945
    %v6973 = vpack.c.b16 %v6948, %v6947
    %v6974 = vpack.c.b16 %v6950, %v6949
    %v6975 = vpack.c.b16 %v6952, %v6951
    %v6976 = vpack.c.b16 %v6954, %v6953
    %v6977 = vpack.c.b16 %v6956, %v6955
    %v6978 = vpack.c.b16 %v6958, %v6957
    %v6979 = vpack.c.b16 %v6960, %v6959
    %v6980 = vpack.c.b16 %v6962, %v6961
    %v6981 = vpack.c.b16 %v6964, %v6963
    %v6982 = vpack.c.b16 %v6966, %v6965
    %6999 = vmatpush.bf16.msra.mxu0 %v6974
    %7000 = vmatpush.bf16.msra.mxu0 %v6973
    %7001 = vmatpush.bf16.msra.mxu0 %v6972
    %7002 = vmatpush.bf16.msra.mxu0 %v6971
    %7003 = vmatpush.bf16.msra.mxu0 %v6970
    %7004 = vmatpush.bf16.msra.mxu0 %v6969
    %7005 = vmatpush.bf16.msra.mxu0 %v6968
    %7006 = vmatpush.bf16.msra.mxu0 %v6967
    %7007 = vmatmul.bf16.gmra.mxu0 %v6899
    %v7008 = vpop.f32.mrf.mxu0
    %v7009 = vadd.f32 %v6895, %v7008
    %v7010 = vpop.f32.mrf.mxu0
    %v7011 = vadd.f32 %v6897, %v7010
    %7012 = vdwg.mxu0
    %7013 = vmatpush.bf16.msra.mxu0 %v6982
    %7014 = vmatpush.bf16.msra.mxu0 %v6981
    %7015 = vmatpush.bf16.msra.mxu0 %v6980
    %7016 = vmatpush.bf16.msra.mxu0 %v6979
    %7017 = vmatpush.bf16.msra.mxu0 %v6978
    %7018 = vmatpush.bf16.msra.mxu0 %v6977
    %7019 = vmatpush.bf16.msra.mxu0 %v6976
    %7020 = vmatpush.bf16.msra.mxu0 %v6975
    %7021 = vmatmul.bf16.gmra.mxu0 %v6900
    %v7022 = vpop.f32.mrf.mxu0
    %v7023 = vadd.f32 %v7009, %v7022
    %v7024 = vpop.f32.mrf.mxu0
    %v7025 = vadd.f32 %v7011, %v7024
    %7026 = vdwg.mxu0
    %v7027 = vld [vmem:[#allocation2 + $0x8] sm:$0xff]
    %v7028 = vld [vmem:[#allocation2 + $0x20] sm:$0xff]
    %v7029 = vpack.c.bf16 %v7027, %v7027
    %v7030 = vpack.c.bf16 %v7028, %v7028
    %v7031 = vld [vmem:[#allocation2 + $0x9] sm:$0xff]
    %v7032 = vld [vmem:[#allocation2 + $0x21] sm:$0xff]
    %v7033 = vpack.c.bf16 %v7031, %v7031
    %v7034 = vpack.c.bf16 %v7032, %v7032
    %v7039 = vunpack.c.l.b16 %v7029
    %v7040 = vunpack.c.l.b16 %v7033
    %v7041 = vunpack.c.l.b16 %v7030
    %v7042 = vunpack.c.l.b16 %v7034
    %s7043 = scalar_lea.vmem [#allocation4], 4864
    %v7044 = vld [vmem:[%s7043] sm:$0xf]
    %v7045 = vld [vmem:[%s7043 + $0x4] sm:$0xf]
    %v7046 = vld [vmem:[%s7043 + $0x8] sm:$0xf]
    %v7047 = vld [vmem:[%s7043 + $0xc] sm:$0xf]
    %v7048 = vld [vmem:[%s7043 + $0x10] sm:$0xf]
    %v7049 = vld [vmem:[%s7043 + $0x14] sm:$0xf]
    %v7050 = vld [vmem:[%s7043 + $0x18] sm:$0xf]
    %v7051 = vld [vmem:[%s7043 + $0x1c] sm:$0xf]
    %v7052 = vld [vmem:[%s7043 + $0x20] sm:$0xf]
    %v7053 = vld [vmem:[%s7043 + $0x24] sm:$0xf]
    %v7054 = vld [vmem:[%s7043 + $0x28] sm:$0xf]
    %v7055 = vld [vmem:[%s7043 + $0x2c] sm:$0xf]
    %v7056 = vld [vmem:[%s7043 + $0x30] sm:$0xf]
    %v7057 = vld [vmem:[%s7043 + $0x34] sm:$0xf]
    %v7058 = vld [vmem:[%s7043 + $0x38] sm:$0xf]
    %v7059 = vld [vmem:[%s7043 + $0x3c] sm:$0xf]
    %v7060 = vld [vmem:[%s7043 + $0x40] sm:$0xf]
    %v7061 = vld [vmem:[%s7043 + $0x44] sm:$0xf]
    %v7062 = vld [vmem:[%s7043 + $0x48] sm:$0xf]
    %v7063 = vld [vmem:[%s7043 + $0x4c] sm:$0xf]
    %v7064 = vld [vmem:[%s7043 + $0x50] sm:$0xf]
    %v7065 = vld [vmem:[%s7043 + $0x54] sm:$0xf]
    %v7066 = vld [vmem:[%s7043 + $0x58] sm:$0xf]
    %v7067 = vld [vmem:[%s7043 + $0x5c] sm:$0xf]
    %v7068 = vld [vmem:[%s7043 + $0x60] sm:$0xf]
    %v7069 = vld [vmem:[%s7043 + $0x64] sm:$0xf]
    %v7070 = vld [vmem:[%s7043 + $0x68] sm:$0xf]
    %v7071 = vld [vmem:[%s7043 + $0x6c] sm:$0xf]
    %v7072 = vld [vmem:[%s7043 + $0x70] sm:$0xf]
    %v7073 = vld [vmem:[%s7043 + $0x74] sm:$0xf]
    %v7074 = vld [vmem:[%s7043 + $0x78] sm:$0xf]
    %v7075 = vld [vmem:[%s7043 + $0x7c] sm:$0xf]
    %v7076 = vpack.c.b16 %v7041, %v7039
    %v7077 = vpack.c.b16 %v7042, %v7040
    %v7112 = vunpack.c.l.b16 %v7044
    %v7113 = vunpack.c.l.b16 %v7045
    %v7114 = vunpack.c.l.b16 %v7046
    %v7115 = vunpack.c.l.b16 %v7047
    %v7116 = vunpack.c.l.b16 %v7048
    %v7117 = vunpack.c.l.b16 %v7049
    %v7118 = vunpack.c.l.b16 %v7050
    %v7119 = vunpack.c.l.b16 %v7051
    %v7120 = vunpack.c.l.b16 %v7052
    %v7121 = vunpack.c.l.b16 %v7053
    %v7122 = vunpack.c.l.b16 %v7054
    %v7123 = vunpack.c.l.b16 %v7055
    %v7124 = vunpack.c.l.b16 %v7056
    %v7125 = vunpack.c.l.b16 %v7057
    %v7126 = vunpack.c.l.b16 %v7058
    %v7127 = vunpack.c.l.b16 %v7059
    %v7128 = vunpack.c.l.b16 %v7060
    %v7129 = vunpack.c.l.b16 %v7061
    %v7130 = vunpack.c.l.b16 %v7062
    %v7131 = vunpack.c.l.b16 %v7063
    %v7132 = vunpack.c.l.b16 %v7064
    %v7133 = vunpack.c.l.b16 %v7065
    %v7134 = vunpack.c.l.b16 %v7066
    %v7135 = vunpack.c.l.b16 %v7067
    %v7136 = vunpack.c.l.b16 %v7068
    %v7137 = vunpack.c.l.b16 %v7069
    %v7138 = vunpack.c.l.b16 %v7070
    %v7139 = vunpack.c.l.b16 %v7071
    %v7140 = vunpack.c.l.b16 %v7072
    %v7141 = vunpack.c.l.b16 %v7073
    %v7142 = vunpack.c.l.b16 %v7074
    %v7143 = vunpack.c.l.b16 %v7075
    %v7144 = vpack.c.b16 %v7113, %v7112
    %v7145 = vpack.c.b16 %v7115, %v7114
    %v7146 = vpack.c.b16 %v7117, %v7116
    %v7147 = vpack.c.b16 %v7119, %v7118
    %v7148 = vpack.c.b16 %v7121, %v7120
    %v7149 = vpack.c.b16 %v7123, %v7122
    %v7150 = vpack.c.b16 %v7125, %v7124
    %v7151 = vpack.c.b16 %v7127, %v7126
    %v7152 = vpack.c.b16 %v7129, %v7128
    %v7153 = vpack.c.b16 %v7131, %v7130
    %v7154 = vpack.c.b16 %v7133, %v7132
    %v7155 = vpack.c.b16 %v7135, %v7134
    %v7156 = vpack.c.b16 %v7137, %v7136
    %v7157 = vpack.c.b16 %v7139, %v7138
    %v7158 = vpack.c.b16 %v7141, %v7140
    %v7159 = vpack.c.b16 %v7143, %v7142
    %7176 = vmatpush.bf16.msra.mxu0 %v7151
    %7177 = vmatpush.bf16.msra.mxu0 %v7150
    %7178 = vmatpush.bf16.msra.mxu0 %v7149
    %7179 = vmatpush.bf16.msra.mxu0 %v7148
    %7180 = vmatpush.bf16.msra.mxu0 %v7147
    %7181 = vmatpush.bf16.msra.mxu0 %v7146
    %7182 = vmatpush.bf16.msra.mxu0 %v7145
    %7183 = vmatpush.bf16.msra.mxu0 %v7144
    %7184 = vmatmul.bf16.gmra.mxu0 %v7076
    %v7185 = vpop.f32.mrf.mxu0
    %v7186 = vadd.f32 0.0, %v7185
    %v7187 = vpop.f32.mrf.mxu0
    %v7188 = vadd.f32 0.0, %v7187
    %7189 = vdwg.mxu0
    %7190 = vmatpush.bf16.msra.mxu0 %v7159
    %7191 = vmatpush.bf16.msra.mxu0 %v7158
    %7192 = vmatpush.bf16.msra.mxu0 %v7157
    %7193 = vmatpush.bf16.msra.mxu0 %v7156
    %7194 = vmatpush.bf16.msra.mxu0 %v7155
    %7195 = vmatpush.bf16.msra.mxu0 %v7154
    %7196 = vmatpush.bf16.msra.mxu0 %v7153
    %7197 = vmatpush.bf16.msra.mxu0 %v7152
    %7198 = vmatmul.bf16.gmra.mxu0 %v7077
    %v7199 = vpop.f32.mrf.mxu0
    %v7200 = vadd.f32 %v7186, %v7199
    %v7201 = vpop.f32.mrf.mxu0
    %v7202 = vadd.f32 %v7188, %v7201
    %7203 = vdwg.mxu0
    %v7204 = vadd.f32 %v7023, %v7200
    %v7205 = vadd.f32 %v7025, %v7202
    %v7206 = vld [vmem:[#allocation2 + $0xa] sm:$0xff]
    %v7207 = vld [vmem:[#allocation2 + $0x22] sm:$0xff]
    %v7208 = vpack.c.bf16 %v7206, %v7206
    %v7209 = vpack.c.bf16 %v7207, %v7207
    %v7210 = vld [vmem:[#allocation2 + $0xb] sm:$0xff]
    %v7211 = vld [vmem:[#allocation2 + $0x23] sm:$0xff]
    %v7212 = vpack.c.bf16 %v7210, %v7210
    %v7213 = vpack.c.bf16 %v7211, %v7211
    %v7218 = vunpack.c.l.b16 %v7208
    %v7219 = vunpack.c.l.b16 %v7212
    %v7220 = vunpack.c.l.b16 %v7209
    %v7221 = vunpack.c.l.b16 %v7213
    %s7222 = scalar_lea.vmem [#allocation4], 4992
    %v7223 = vld [vmem:[%s7222] sm:$0xf]
    %v7224 = vld [vmem:[%s7222 + $0x4] sm:$0xf]
    %v7225 = vld [vmem:[%s7222 + $0x8] sm:$0xf]
    %v7226 = vld [vmem:[%s7222 + $0xc] sm:$0xf]
    %v7227 = vld [vmem:[%s7222 + $0x10] sm:$0xf]
    %v7228 = vld [vmem:[%s7222 + $0x14] sm:$0xf]
    %v7229 = vld [vmem:[%s7222 + $0x18] sm:$0xf]
    %v7230 = vld [vmem:[%s7222 + $0x1c] sm:$0xf]
    %v7231 = vld [vmem:[%s7222 + $0x20] sm:$0xf]
    %v7232 = vld [vmem:[%s7222 + $0x24] sm:$0xf]
    %v7233 = vld [vmem:[%s7222 + $0x28] sm:$0xf]
    %v7234 = vld [vmem:[%s7222 + $0x2c] sm:$0xf]
    %v7235 = vld [vmem:[%s7222 + $0x30] sm:$0xf]
    %v7236 = vld [vmem:[%s7222 + $0x34] sm:$0xf]
    %v7237 = vld [vmem:[%s7222 + $0x38] sm:$0xf]
    %v7238 = vld [vmem:[%s7222 + $0x3c] sm:$0xf]
    %v7239 = vld [vmem:[%s7222 + $0x40] sm:$0xf]
    %v7240 = vld [vmem:[%s7222 + $0x44] sm:$0xf]
    %v7241 = vld [vmem:[%s7222 + $0x48] sm:$0xf]
    %v7242 = vld [vmem:[%s7222 + $0x4c] sm:$0xf]
    %v7243 = vld [vmem:[%s7222 + $0x50] sm:$0xf]
    %v7244 = vld [vmem:[%s7222 + $0x54] sm:$0xf]
    %v7245 = vld [vmem:[%s7222 + $0x58] sm:$0xf]
    %v7246 = vld [vmem:[%s7222 + $0x5c] sm:$0xf]
    %v7247 = vld [vmem:[%s7222 + $0x60] sm:$0xf]
    %v7248 = vld [vmem:[%s7222 + $0x64] sm:$0xf]
    %v7249 = vld [vmem:[%s7222 + $0x68] sm:$0xf]
    %v7250 = vld [vmem:[%s7222 + $0x6c] sm:$0xf]
    %v7251 = vld [vmem:[%s7222 + $0x70] sm:$0xf]
    %v7252 = vld [vmem:[%s7222 + $0x74] sm:$0xf]
    %v7253 = vld [vmem:[%s7222 + $0x78] sm:$0xf]
    %v7254 = vld [vmem:[%s7222 + $0x7c] sm:$0xf]
    %v7255 = vpack.c.b16 %v7220, %v7218
    %v7256 = vpack.c.b16 %v7221, %v7219
    %v7291 = vunpack.c.l.b16 %v7223
    %v7292 = vunpack.c.l.b16 %v7224
    %v7293 = vunpack.c.l.b16 %v7225
    %v7294 = vunpack.c.l.b16 %v7226
    %v7295 = vunpack.c.l.b16 %v7227
    %v7296 = vunpack.c.l.b16 %v7228
    %v7297 = vunpack.c.l.b16 %v7229
    %v7298 = vunpack.c.l.b16 %v7230
    %v7299 = vunpack.c.l.b16 %v7231
    %v7300 = vunpack.c.l.b16 %v7232
    %v7301 = vunpack.c.l.b16 %v7233
    %v7302 = vunpack.c.l.b16 %v7234
    %v7303 = vunpack.c.l.b16 %v7235
    %v7304 = vunpack.c.l.b16 %v7236
    %v7305 = vunpack.c.l.b16 %v7237
    %v7306 = vunpack.c.l.b16 %v7238
    %v7307 = vunpack.c.l.b16 %v7239
    %v7308 = vunpack.c.l.b16 %v7240
    %v7309 = vunpack.c.l.b16 %v7241
    %v7310 = vunpack.c.l.b16 %v7242
    %v7311 = vunpack.c.l.b16 %v7243
    %v7312 = vunpack.c.l.b16 %v7244
    %v7313 = vunpack.c.l.b16 %v7245
    %v7314 = vunpack.c.l.b16 %v7246
    %v7315 = vunpack.c.l.b16 %v7247
    %v7316 = vunpack.c.l.b16 %v7248
    %v7317 = vunpack.c.l.b16 %v7249
    %v7318 = vunpack.c.l.b16 %v7250
    %v7319 = vunpack.c.l.b16 %v7251
    %v7320 = vunpack.c.l.b16 %v7252
    %v7321 = vunpack.c.l.b16 %v7253
    %v7322 = vunpack.c.l.b16 %v7254
    %v7323 = vpack.c.b16 %v7292, %v7291
    %v7324 = vpack.c.b16 %v7294, %v7293
    %v7325 = vpack.c.b16 %v7296, %v7295
    %v7326 = vpack.c.b16 %v7298, %v7297
    %v7327 = vpack.c.b16 %v7300, %v7299
    %v7328 = vpack.c.b16 %v7302, %v7301
    %v7329 = vpack.c.b16 %v7304, %v7303
    %v7330 = vpack.c.b16 %v7306, %v7305
    %v7331 = vpack.c.b16 %v7308, %v7307
    %v7332 = vpack.c.b16 %v7310, %v7309
    %v7333 = vpack.c.b16 %v7312, %v7311
    %v7334 = vpack.c.b16 %v7314, %v7313
    %v7335 = vpack.c.b16 %v7316, %v7315
    %v7336 = vpack.c.b16 %v7318, %v7317
    %v7337 = vpack.c.b16 %v7320, %v7319
    %v7338 = vpack.c.b16 %v7322, %v7321
    %7355 = vmatpush.bf16.msra.mxu0 %v7330
    %7356 = vmatpush.bf16.msra.mxu0 %v7329
    %7357 = vmatpush.bf16.msra.mxu0 %v7328
    %7358 = vmatpush.bf16.msra.mxu0 %v7327
    %7359 = vmatpush.bf16.msra.mxu0 %v7326
    %7360 = vmatpush.bf16.msra.mxu0 %v7325
    %7361 = vmatpush.bf16.msra.mxu0 %v7324
    %7362 = vmatpush.bf16.msra.mxu0 %v7323
    %7363 = vmatmul.bf16.gmra.mxu0 %v7255
    %v7364 = vpop.f32.mrf.mxu0
    %v7365 = vadd.f32 0.0, %v7364
    %v7366 = vpop.f32.mrf.mxu0
    %v7367 = vadd.f32 0.0, %v7366
    %7368 = vdwg.mxu0
    %7369 = vmatpush.bf16.msra.mxu0 %v7338
    %7370 = vmatpush.bf16.msra.mxu0 %v7337
    %7371 = vmatpush.bf16.msra.mxu0 %v7336
    %7372 = vmatpush.bf16.msra.mxu0 %v7335
    %7373 = vmatpush.bf16.msra.mxu0 %v7334
    %7374 = vmatpush.bf16.msra.mxu0 %v7333
    %7375 = vmatpush.bf16.msra.mxu0 %v7332
    %7376 = vmatpush.bf16.msra.mxu0 %v7331
    %7377 = vmatmul.bf16.gmra.mxu0 %v7256
    %v7378 = vpop.f32.mrf.mxu0
    %v7379 = vadd.f32 %v7365, %v7378
    %v7380 = vpop.f32.mrf.mxu0
    %v7381 = vadd.f32 %v7367, %v7380
    %7382 = vdwg.mxu0
    %v7383 = vadd.f32 %v7204, %v7379
    %v7384 = vadd.f32 %v7205, %v7381
    %v7385 = vld [vmem:[#allocation2 + $0xc] sm:$0xff]
    %v7386 = vld [vmem:[#allocation2 + $0x24] sm:$0xff]
    %v7387 = vpack.c.bf16 %v7386, %v7385
    %s7388 = scalar_lea.vmem [#allocation4], 5120
    %v7389 = vld [vmem:[%s7388] sm:$0xf]
    %v7390 = vld [vmem:[%s7388 + $0x4] sm:$0xf]
    %v7391 = vld [vmem:[%s7388 + $0x8] sm:$0xf]
    %v7392 = vld [vmem:[%s7388 + $0xc] sm:$0xf]
    %v7393 = vld [vmem:[%s7388 + $0x10] sm:$0xf]
    %v7394 = vld [vmem:[%s7388 + $0x14] sm:$0xf]
    %v7395 = vld [vmem:[%s7388 + $0x18] sm:$0xf]
    %v7396 = vld [vmem:[%s7388 + $0x1c] sm:$0xf]
    %v7397 = vld [vmem:[%s7388 + $0x20] sm:$0xf]
    %v7398 = vld [vmem:[%s7388 + $0x24] sm:$0xf]
    %v7399 = vld [vmem:[%s7388 + $0x28] sm:$0xf]
    %v7400 = vld [vmem:[%s7388 + $0x2c] sm:$0xf]
    %v7401 = vld [vmem:[%s7388 + $0x30] sm:$0xf]
    %v7402 = vld [vmem:[%s7388 + $0x34] sm:$0xf]
    %v7403 = vld [vmem:[%s7388 + $0x38] sm:$0xf]
    %v7404 = vld [vmem:[%s7388 + $0x3c] sm:$0xf]
    %v7421 = vunpack.c.l.b16 %v7389
    %v7422 = vunpack.c.l.b16 %v7390
    %v7423 = vunpack.c.l.b16 %v7391
    %v7424 = vunpack.c.l.b16 %v7392
    %v7425 = vunpack.c.l.b16 %v7393
    %v7426 = vunpack.c.l.b16 %v7394
    %v7427 = vunpack.c.l.b16 %v7395
    %v7428 = vunpack.c.l.b16 %v7396
    %v7429 = vunpack.c.l.b16 %v7397
    %v7430 = vunpack.c.l.b16 %v7398
    %v7431 = vunpack.c.l.b16 %v7399
    %v7432 = vunpack.c.l.b16 %v7400
    %v7433 = vunpack.c.l.b16 %v7401
    %v7434 = vunpack.c.l.b16 %v7402
    %v7435 = vunpack.c.l.b16 %v7403
    %v7436 = vunpack.c.l.b16 %v7404
    %v7437 = vpack.c.b16 %v7422, %v7421
    %v7438 = vpack.c.b16 %v7424, %v7423
    %v7439 = vpack.c.b16 %v7426, %v7425
    %v7440 = vpack.c.b16 %v7428, %v7427
    %v7441 = vpack.c.b16 %v7430, %v7429
    %v7442 = vpack.c.b16 %v7432, %v7431
    %v7443 = vpack.c.b16 %v7434, %v7433
    %v7444 = vpack.c.b16 %v7436, %v7435
    %7453 = vmatpush.bf16.msra.mxu0 %v7444
    %7454 = vmatpush.bf16.msra.mxu0 %v7443
    %7455 = vmatpush.bf16.msra.mxu0 %v7442
    %7456 = vmatpush.bf16.msra.mxu0 %v7441
    %7457 = vmatpush.bf16.msra.mxu0 %v7440
    %7458 = vmatpush.bf16.msra.mxu0 %v7439
    %7459 = vmatpush.bf16.msra.mxu0 %v7438
    %7460 = vmatpush.bf16.msra.mxu0 %v7437
    %7461 = vmatmul.bf16.gmra.mxu0 %v7387
    %v7462 = vpop.f32.mrf.mxu0
    %v7463 = vadd.f32 0.0, %v7462
    %v7464 = vpop.f32.mrf.mxu0
    %v7465 = vadd.f32 0.0, %v7464
    %7466 = vdwg.mxu0
    %v7467 = vadd.f32 %v7383, %v7463
    %v7468 = vadd.f32 %v7384, %v7465
    %s7469 = scalar_lea.vmem [#allocation11], 8
    %v7470 = vld [vmem:[%s7469] sm:$0x1]
    %v7472 = vperm.slane %v7470, 0
    %v7474 = vadd.f32 %v7467, %v7472
    %v7475 = vadd.f32 %v7468, %v7472
    %7476 = vst [vmem:[#allocation3 + $0x8] sm:$0xff] %v7474
    %7477 = vst [vmem:[#allocation3 + $0x20] sm:$0xff] %v7475
    %v7478 = vld [vmem:[#allocation3 + $0x4] sm:$0xff]
    %v7479 = vld [vmem:[#allocation3 + $0x1c] sm:$0xff]
    %v7480 = vpack.c.bf16 %v7478, %v7478
    %v7481 = vpack.c.bf16 %v7479, %v7479
    %v7482 = vld [vmem:[#allocation3 + $0x5] sm:$0xff]
    %v7483 = vld [vmem:[#allocation3 + $0x1d] sm:$0xff]
    %v7484 = vpack.c.bf16 %v7482, %v7482
    %v7485 = vpack.c.bf16 %v7483, %v7483
    %v7490 = vunpack.c.l.b16 %v7480
    %v7491 = vunpack.c.l.b16 %v7484
    %v7492 = vunpack.c.l.b16 %v7481
    %v7493 = vunpack.c.l.b16 %v7485
    %s7494 = scalar_lea.vmem [#allocation4], 5184
    %v7495 = vld [vmem:[%s7494] sm:$0xf]
    %v7496 = vld [vmem:[%s7494 + $0x4] sm:$0xf]
    %v7497 = vld [vmem:[%s7494 + $0x8] sm:$0xf]
    %v7498 = vld [vmem:[%s7494 + $0xc] sm:$0xf]
    %v7499 = vld [vmem:[%s7494 + $0x10] sm:$0xf]
    %v7500 = vld [vmem:[%s7494 + $0x14] sm:$0xf]
    %v7501 = vld [vmem:[%s7494 + $0x18] sm:$0xf]
    %v7502 = vld [vmem:[%s7494 + $0x1c] sm:$0xf]
    %v7503 = vld [vmem:[%s7494 + $0x20] sm:$0xf]
    %v7504 = vld [vmem:[%s7494 + $0x24] sm:$0xf]
    %v7505 = vld [vmem:[%s7494 + $0x28] sm:$0xf]
    %v7506 = vld [vmem:[%s7494 + $0x2c] sm:$0xf]
    %v7507 = vld [vmem:[%s7494 + $0x30] sm:$0xf]
    %v7508 = vld [vmem:[%s7494 + $0x34] sm:$0xf]
    %v7509 = vld [vmem:[%s7494 + $0x38] sm:$0xf]
    %v7510 = vld [vmem:[%s7494 + $0x3c] sm:$0xf]
    %v7511 = vld [vmem:[%s7494 + $0x40] sm:$0xf]
    %v7512 = vld [vmem:[%s7494 + $0x44] sm:$0xf]
    %v7513 = vld [vmem:[%s7494 + $0x48] sm:$0xf]
    %v7514 = vld [vmem:[%s7494 + $0x4c] sm:$0xf]
    %v7515 = vld [vmem:[%s7494 + $0x50] sm:$0xf]
    %v7516 = vld [vmem:[%s7494 + $0x54] sm:$0xf]
    %v7517 = vld [vmem:[%s7494 + $0x58] sm:$0xf]
    %v7518 = vld [vmem:[%s7494 + $0x5c] sm:$0xf]
    %v7519 = vld [vmem:[%s7494 + $0x60] sm:$0xf]
    %v7520 = vld [vmem:[%s7494 + $0x64] sm:$0xf]
    %v7521 = vld [vmem:[%s7494 + $0x68] sm:$0xf]
    %v7522 = vld [vmem:[%s7494 + $0x6c] sm:$0xf]
    %v7523 = vld [vmem:[%s7494 + $0x70] sm:$0xf]
    %v7524 = vld [vmem:[%s7494 + $0x74] sm:$0xf]
    %v7525 = vld [vmem:[%s7494 + $0x78] sm:$0xf]
    %v7526 = vld [vmem:[%s7494 + $0x7c] sm:$0xf]
    %v7527 = vld [vmem:[#allocation3 + $0x6] sm:$0xff]
    %v7528 = vld [vmem:[#allocation3 + $0x1e] sm:$0xff]
    %v7529 = vpack.c.bf16 %v7527, %v7527
    %v7530 = vpack.c.bf16 %v7528, %v7528
    %v7531 = vld [vmem:[#allocation3 + $0x7] sm:$0xff]
    %v7532 = vld [vmem:[#allocation3 + $0x1f] sm:$0xff]
    %v7533 = vpack.c.bf16 %v7531, %v7531
    %v7534 = vpack.c.bf16 %v7532, %v7532
    %v7539 = vunpack.c.l.b16 %v7529
    %v7540 = vunpack.c.l.b16 %v7533
    %v7541 = vunpack.c.l.b16 %v7530
    %v7542 = vunpack.c.l.b16 %v7534
    %s7543 = scalar_lea.vmem [#allocation4], 5312
    %v7544 = vld [vmem:[%s7543] sm:$0xf]
    %v7545 = vld [vmem:[%s7543 + $0x4] sm:$0xf]
    %v7546 = vld [vmem:[%s7543 + $0x8] sm:$0xf]
    %v7547 = vld [vmem:[%s7543 + $0xc] sm:$0xf]
    %v7548 = vld [vmem:[%s7543 + $0x10] sm:$0xf]
    %v7549 = vld [vmem:[%s7543 + $0x14] sm:$0xf]
    %v7550 = vld [vmem:[%s7543 + $0x18] sm:$0xf]
    %v7551 = vld [vmem:[%s7543 + $0x1c] sm:$0xf]
    %v7552 = vld [vmem:[%s7543 + $0x20] sm:$0xf]
    %v7553 = vld [vmem:[%s7543 + $0x24] sm:$0xf]
    %v7554 = vld [vmem:[%s7543 + $0x28] sm:$0xf]
    %v7555 = vld [vmem:[%s7543 + $0x2c] sm:$0xf]
    %v7556 = vld [vmem:[%s7543 + $0x30] sm:$0xf]
    %v7557 = vld [vmem:[%s7543 + $0x34] sm:$0xf]
    %v7558 = vld [vmem:[%s7543 + $0x38] sm:$0xf]
    %v7559 = vld [vmem:[%s7543 + $0x3c] sm:$0xf]
    %v7560 = vld [vmem:[%s7543 + $0x40] sm:$0xf]
    %v7561 = vld [vmem:[%s7543 + $0x44] sm:$0xf]
    %v7562 = vld [vmem:[%s7543 + $0x48] sm:$0xf]
    %v7563 = vld [vmem:[%s7543 + $0x4c] sm:$0xf]
    %v7564 = vld [vmem:[%s7543 + $0x50] sm:$0xf]
    %v7565 = vld [vmem:[%s7543 + $0x54] sm:$0xf]
    %v7566 = vld [vmem:[%s7543 + $0x58] sm:$0xf]
    %v7567 = vld [vmem:[%s7543 + $0x5c] sm:$0xf]
    %v7568 = vld [vmem:[%s7543 + $0x60] sm:$0xf]
    %v7569 = vld [vmem:[%s7543 + $0x64] sm:$0xf]
    %v7570 = vld [vmem:[%s7543 + $0x68] sm:$0xf]
    %v7571 = vld [vmem:[%s7543 + $0x6c] sm:$0xf]
    %v7572 = vld [vmem:[%s7543 + $0x70] sm:$0xf]
    %v7573 = vld [vmem:[%s7543 + $0x74] sm:$0xf]
    %v7574 = vld [vmem:[%s7543 + $0x78] sm:$0xf]
    %v7575 = vld [vmem:[%s7543 + $0x7c] sm:$0xf]
    %v7576 = vpack.c.b16 %v7541, %v7539
    %v7577 = vpack.c.b16 %v7542, %v7540
    %v7612 = vunpack.c.l.b16 %v7544
    %v7613 = vunpack.c.l.b16 %v7545
    %v7614 = vunpack.c.l.b16 %v7546
    %v7615 = vunpack.c.l.b16 %v7547
    %v7616 = vunpack.c.l.b16 %v7548
    %v7617 = vunpack.c.l.b16 %v7549
    %v7618 = vunpack.c.l.b16 %v7550
    %v7619 = vunpack.c.l.b16 %v7551
    %v7620 = vunpack.c.l.b16 %v7552
    %v7621 = vunpack.c.l.b16 %v7553
    %v7622 = vunpack.c.l.b16 %v7554
    %v7623 = vunpack.c.l.b16 %v7555
    %v7624 = vunpack.c.l.b16 %v7556
    %v7625 = vunpack.c.l.b16 %v7557
    %v7626 = vunpack.c.l.b16 %v7558
    %v7627 = vunpack.c.l.b16 %v7559
    %v7628 = vunpack.c.l.b16 %v7560
    %v7629 = vunpack.c.l.b16 %v7561
    %v7630 = vunpack.c.l.b16 %v7562
    %v7631 = vunpack.c.l.b16 %v7563
    %v7632 = vunpack.c.l.b16 %v7564
    %v7633 = vunpack.c.l.b16 %v7565
    %v7634 = vunpack.c.l.b16 %v7566
    %v7635 = vunpack.c.l.b16 %v7567
    %v7636 = vunpack.c.l.b16 %v7568
    %v7637 = vunpack.c.l.b16 %v7569
    %v7638 = vunpack.c.l.b16 %v7570
    %v7639 = vunpack.c.l.b16 %v7571
    %v7640 = vunpack.c.l.b16 %v7572
    %v7641 = vunpack.c.l.b16 %v7573
    %v7642 = vunpack.c.l.b16 %v7574
    %v7643 = vunpack.c.l.b16 %v7575
    %v7644 = vpack.c.b16 %v7613, %v7612
    %v7645 = vpack.c.b16 %v7615, %v7614
    %v7646 = vpack.c.b16 %v7617, %v7616
    %v7647 = vpack.c.b16 %v7619, %v7618
    %v7648 = vpack.c.b16 %v7621, %v7620
    %v7649 = vpack.c.b16 %v7623, %v7622
    %v7650 = vpack.c.b16 %v7625, %v7624
    %v7651 = vpack.c.b16 %v7627, %v7626
    %v7652 = vpack.c.b16 %v7629, %v7628
    %v7653 = vpack.c.b16 %v7631, %v7630
    %v7654 = vpack.c.b16 %v7633, %v7632
    %v7655 = vpack.c.b16 %v7635, %v7634
    %v7656 = vpack.c.b16 %v7637, %v7636
    %v7657 = vpack.c.b16 %v7639, %v7638
    %v7658 = vpack.c.b16 %v7641, %v7640
    %v7659 = vpack.c.b16 %v7643, %v7642
    %7676 = vmatpush.bf16.msra.mxu0 %v7651
    %7677 = vmatpush.bf16.msra.mxu0 %v7650
    %7678 = vmatpush.bf16.msra.mxu0 %v7649
    %7679 = vmatpush.bf16.msra.mxu0 %v7648
    %7680 = vmatpush.bf16.msra.mxu0 %v7647
    %7681 = vmatpush.bf16.msra.mxu0 %v7646
    %7682 = vmatpush.bf16.msra.mxu0 %v7645
    %7683 = vmatpush.bf16.msra.mxu0 %v7644
    %7684 = vmatmul.bf16.gmra.mxu0 %v7576
    %v7685 = vpop.f32.mrf.mxu0
    %v7686 = vadd.f32 0.0, %v7685
    %v7687 = vpop.f32.mrf.mxu0
    %v7688 = vadd.f32 0.0, %v7687
    %7689 = vdwg.mxu0
    %7690 = vmatpush.bf16.msra.mxu0 %v7659
    %7691 = vmatpush.bf16.msra.mxu0 %v7658
    %7692 = vmatpush.bf16.msra.mxu0 %v7657
    %7693 = vmatpush.bf16.msra.mxu0 %v7656
    %7694 = vmatpush.bf16.msra.mxu0 %v7655
    %7695 = vmatpush.bf16.msra.mxu0 %v7654
    %7696 = vmatpush.bf16.msra.mxu0 %v7653
    %7697 = vmatpush.bf16.msra.mxu0 %v7652
    %7698 = vmatmul.bf16.gmra.mxu0 %v7577
    %v7699 = vpop.f32.mrf.mxu0
    %v7700 = vadd.f32 %v7686, %v7699
    %v7701 = vpop.f32.mrf.mxu0
    %v7702 = vadd.f32 %v7688, %v7701
    %7703 = vdwg.mxu0
    %v7704 = vpack.c.b16 %v7492, %v7490
    %v7705 = vpack.c.b16 %v7493, %v7491
    %v7740 = vunpack.c.l.b16 %v7495
    %v7741 = vunpack.c.l.b16 %v7496
    %v7742 = vunpack.c.l.b16 %v7497
    %v7743 = vunpack.c.l.b16 %v7498
    %v7744 = vunpack.c.l.b16 %v7499
    %v7745 = vunpack.c.l.b16 %v7500
    %v7746 = vunpack.c.l.b16 %v7501
    %v7747 = vunpack.c.l.b16 %v7502
    %v7748 = vunpack.c.l.b16 %v7503
    %v7749 = vunpack.c.l.b16 %v7504
    %v7750 = vunpack.c.l.b16 %v7505
    %v7751 = vunpack.c.l.b16 %v7506
    %v7752 = vunpack.c.l.b16 %v7507
    %v7753 = vunpack.c.l.b16 %v7508
    %v7754 = vunpack.c.l.b16 %v7509
    %v7755 = vunpack.c.l.b16 %v7510
    %v7756 = vunpack.c.l.b16 %v7511
    %v7757 = vunpack.c.l.b16 %v7512
    %v7758 = vunpack.c.l.b16 %v7513
    %v7759 = vunpack.c.l.b16 %v7514
    %v7760 = vunpack.c.l.b16 %v7515
    %v7761 = vunpack.c.l.b16 %v7516
    %v7762 = vunpack.c.l.b16 %v7517
    %v7763 = vunpack.c.l.b16 %v7518
    %v7764 = vunpack.c.l.b16 %v7519
    %v7765 = vunpack.c.l.b16 %v7520
    %v7766 = vunpack.c.l.b16 %v7521
    %v7767 = vunpack.c.l.b16 %v7522
    %v7768 = vunpack.c.l.b16 %v7523
    %v7769 = vunpack.c.l.b16 %v7524
    %v7770 = vunpack.c.l.b16 %v7525
    %v7771 = vunpack.c.l.b16 %v7526
    %v7772 = vpack.c.b16 %v7741, %v7740
    %v7773 = vpack.c.b16 %v7743, %v7742
    %v7774 = vpack.c.b16 %v7745, %v7744
    %v7775 = vpack.c.b16 %v7747, %v7746
    %v7776 = vpack.c.b16 %v7749, %v7748
    %v7777 = vpack.c.b16 %v7751, %v7750
    %v7778 = vpack.c.b16 %v7753, %v7752
    %v7779 = vpack.c.b16 %v7755, %v7754
    %v7780 = vpack.c.b16 %v7757, %v7756
    %v7781 = vpack.c.b16 %v7759, %v7758
    %v7782 = vpack.c.b16 %v7761, %v7760
    %v7783 = vpack.c.b16 %v7763, %v7762
    %v7784 = vpack.c.b16 %v7765, %v7764
    %v7785 = vpack.c.b16 %v7767, %v7766
    %v7786 = vpack.c.b16 %v7769, %v7768
    %v7787 = vpack.c.b16 %v7771, %v7770
    %7804 = vmatpush.bf16.msra.mxu0 %v7779
    %7805 = vmatpush.bf16.msra.mxu0 %v7778
    %7806 = vmatpush.bf16.msra.mxu0 %v7777
    %7807 = vmatpush.bf16.msra.mxu0 %v7776
    %7808 = vmatpush.bf16.msra.mxu0 %v7775
    %7809 = vmatpush.bf16.msra.mxu0 %v7774
    %7810 = vmatpush.bf16.msra.mxu0 %v7773
    %7811 = vmatpush.bf16.msra.mxu0 %v7772
    %7812 = vmatmul.bf16.gmra.mxu0 %v7704
    %v7813 = vpop.f32.mrf.mxu0
    %v7814 = vadd.f32 %v7700, %v7813
    %v7815 = vpop.f32.mrf.mxu0
    %v7816 = vadd.f32 %v7702, %v7815
    %7817 = vdwg.mxu0
    %7818 = vmatpush.bf16.msra.mxu0 %v7787
    %7819 = vmatpush.bf16.msra.mxu0 %v7786
    %7820 = vmatpush.bf16.msra.mxu0 %v7785
    %7821 = vmatpush.bf16.msra.mxu0 %v7784
    %7822 = vmatpush.bf16.msra.mxu0 %v7783
    %7823 = vmatpush.bf16.msra.mxu0 %v7782
    %7824 = vmatpush.bf16.msra.mxu0 %v7781
    %7825 = vmatpush.bf16.msra.mxu0 %v7780
    %7826 = vmatmul.bf16.gmra.mxu0 %v7705
    %v7827 = vpop.f32.mrf.mxu0
    %v7828 = vadd.f32 %v7814, %v7827
    %v7829 = vpop.f32.mrf.mxu0
    %v7830 = vadd.f32 %v7816, %v7829
    %7831 = vdwg.mxu0
    %v7832 = vld [vmem:[#allocation3 + $0x8] sm:$0xff]
    %v7833 = vld [vmem:[#allocation3 + $0x20] sm:$0xff]
    %v7834 = vpack.c.bf16 %v7832, %v7832
    %v7835 = vpack.c.bf16 %v7833, %v7833
    %v7836 = vld [vmem:[#allocation3 + $0x9] sm:$0xff]
    %v7837 = vld [vmem:[#allocation3 + $0x21] sm:$0xff]
    %v7838 = vpack.c.bf16 %v7836, %v7836
    %v7839 = vpack.c.bf16 %v7837, %v7837
    %v7844 = vunpack.c.l.b16 %v7834
    %v7845 = vunpack.c.l.b16 %v7838
    %v7846 = vunpack.c.l.b16 %v7835
    %v7847 = vunpack.c.l.b16 %v7839
    %s7848 = scalar_lea.vmem [#allocation4], 5440
    %v7849 = vld [vmem:[%s7848] sm:$0xf]
    %v7850 = vld [vmem:[%s7848 + $0x4] sm:$0xf]
    %v7851 = vld [vmem:[%s7848 + $0x8] sm:$0xf]
    %v7852 = vld [vmem:[%s7848 + $0xc] sm:$0xf]
    %v7853 = vld [vmem:[%s7848 + $0x10] sm:$0xf]
    %v7854 = vld [vmem:[%s7848 + $0x14] sm:$0xf]
    %v7855 = vld [vmem:[%s7848 + $0x18] sm:$0xf]
    %v7856 = vld [vmem:[%s7848 + $0x1c] sm:$0xf]
    %v7857 = vld [vmem:[%s7848 + $0x20] sm:$0xf]
    %v7858 = vld [vmem:[%s7848 + $0x24] sm:$0xf]
    %v7859 = vld [vmem:[%s7848 + $0x28] sm:$0xf]
    %v7860 = vld [vmem:[%s7848 + $0x2c] sm:$0xf]
    %v7861 = vld [vmem:[%s7848 + $0x30] sm:$0xf]
    %v7862 = vld [vmem:[%s7848 + $0x34] sm:$0xf]
    %v7863 = vld [vmem:[%s7848 + $0x38] sm:$0xf]
    %v7864 = vld [vmem:[%s7848 + $0x3c] sm:$0xf]
    %v7865 = vld [vmem:[%s7848 + $0x40] sm:$0xf]
    %v7866 = vld [vmem:[%s7848 + $0x44] sm:$0xf]
    %v7867 = vld [vmem:[%s7848 + $0x48] sm:$0xf]
    %v7868 = vld [vmem:[%s7848 + $0x4c] sm:$0xf]
    %v7869 = vld [vmem:[%s7848 + $0x50] sm:$0xf]
    %v7870 = vld [vmem:[%s7848 + $0x54] sm:$0xf]
    %v7871 = vld [vmem:[%s7848 + $0x58] sm:$0xf]
    %v7872 = vld [vmem:[%s7848 + $0x5c] sm:$0xf]
    %v7873 = vld [vmem:[%s7848 + $0x60] sm:$0xf]
    %v7874 = vld [vmem:[%s7848 + $0x64] sm:$0xf]
    %v7875 = vld [vmem:[%s7848 + $0x68] sm:$0xf]
    %v7876 = vld [vmem:[%s7848 + $0x6c] sm:$0xf]
    %v7877 = vld [vmem:[%s7848 + $0x70] sm:$0xf]
    %v7878 = vld [vmem:[%s7848 + $0x74] sm:$0xf]
    %v7879 = vld [vmem:[%s7848 + $0x78] sm:$0xf]
    %v7880 = vld [vmem:[%s7848 + $0x7c] sm:$0xf]
    %v7881 = vpack.c.b16 %v7846, %v7844
    %v7882 = vpack.c.b16 %v7847, %v7845
    %v7917 = vunpack.c.l.b16 %v7849
    %v7918 = vunpack.c.l.b16 %v7850
    %v7919 = vunpack.c.l.b16 %v7851
    %v7920 = vunpack.c.l.b16 %v7852
    %v7921 = vunpack.c.l.b16 %v7853
    %v7922 = vunpack.c.l.b16 %v7854
    %v7923 = vunpack.c.l.b16 %v7855
    %v7924 = vunpack.c.l.b16 %v7856
    %v7925 = vunpack.c.l.b16 %v7857
    %v7926 = vunpack.c.l.b16 %v7858
    %v7927 = vunpack.c.l.b16 %v7859
    %v7928 = vunpack.c.l.b16 %v7860
    %v7929 = vunpack.c.l.b16 %v7861
    %v7930 = vunpack.c.l.b16 %v7862
    %v7931 = vunpack.c.l.b16 %v7863
    %v7932 = vunpack.c.l.b16 %v7864
    %v7933 = vunpack.c.l.b16 %v7865
    %v7934 = vunpack.c.l.b16 %v7866
    %v7935 = vunpack.c.l.b16 %v7867
    %v7936 = vunpack.c.l.b16 %v7868
    %v7937 = vunpack.c.l.b16 %v7869
    %v7938 = vunpack.c.l.b16 %v7870
    %v7939 = vunpack.c.l.b16 %v7871
    %v7940 = vunpack.c.l.b16 %v7872
    %v7941 = vunpack.c.l.b16 %v7873
    %v7942 = vunpack.c.l.b16 %v7874
    %v7943 = vunpack.c.l.b16 %v7875
    %v7944 = vunpack.c.l.b16 %v7876
    %v7945 = vunpack.c.l.b16 %v7877
    %v7946 = vunpack.c.l.b16 %v7878
    %v7947 = vunpack.c.l.b16 %v7879
    %v7948 = vunpack.c.l.b16 %v7880
    %v7949 = vpack.c.b16 %v7918, %v7917
    %v7950 = vpack.c.b16 %v7920, %v7919
    %v7951 = vpack.c.b16 %v7922, %v7921
    %v7952 = vpack.c.b16 %v7924, %v7923
    %v7953 = vpack.c.b16 %v7926, %v7925
    %v7954 = vpack.c.b16 %v7928, %v7927
    %v7955 = vpack.c.b16 %v7930, %v7929
    %v7956 = vpack.c.b16 %v7932, %v7931
    %v7957 = vpack.c.b16 %v7934, %v7933
    %v7958 = vpack.c.b16 %v7936, %v7935
    %v7959 = vpack.c.b16 %v7938, %v7937
    %v7960 = vpack.c.b16 %v7940, %v7939
    %v7961 = vpack.c.b16 %v7942, %v7941
    %v7962 = vpack.c.b16 %v7944, %v7943
    %v7963 = vpack.c.b16 %v7946, %v7945
    %v7964 = vpack.c.b16 %v7948, %v7947
    %7981 = vmatpush.bf16.msra.mxu0 %v7956
    %7982 = vmatpush.bf16.msra.mxu0 %v7955
    %7983 = vmatpush.bf16.msra.mxu0 %v7954
    %7984 = vmatpush.bf16.msra.mxu0 %v7953
    %7985 = vmatpush.bf16.msra.mxu0 %v7952
    %7986 = vmatpush.bf16.msra.mxu0 %v7951
    %7987 = vmatpush.bf16.msra.mxu0 %v7950
    %7988 = vmatpush.bf16.msra.mxu0 %v7949
    %7989 = vmatmul.bf16.gmra.mxu0 %v7881
    %v7990 = vpop.f32.mrf.mxu0
    %v7991 = vadd.f32 0.0, %v7990
    %v7992 = vpop.f32.mrf.mxu0
    %v7993 = vadd.f32 0.0, %v7992
    %7994 = vdwg.mxu0
    %7995 = vmatpush.bf16.msra.mxu0 %v7964
    %7996 = vmatpush.bf16.msra.mxu0 %v7963
    %7997 = vmatpush.bf16.msra.mxu0 %v7962
    %7998 = vmatpush.bf16.msra.mxu0 %v7961
    %7999 = vmatpush.bf16.msra.mxu0 %v7960
    %8000 = vmatpush.bf16.msra.mxu0 %v7959
    %8001 = vmatpush.bf16.msra.mxu0 %v7958
    %8002 = vmatpush.bf16.msra.mxu0 %v7957
    %8003 = vmatmul.bf16.gmra.mxu0 %v7882
    %v8004 = vpop.f32.mrf.mxu0
    %v8005 = vadd.f32 %v7991, %v8004
    %v8006 = vpop.f32.mrf.mxu0
    %v8007 = vadd.f32 %v7993, %v8006
    %8008 = vdwg.mxu0
    %v8009 = vadd.f32 %v7828, %v8005
    %v8010 = vadd.f32 %v7830, %v8007
    %v8011 = vld [vmem:[#allocation3 + $0xa] sm:$0xff]
    %v8012 = vld [vmem:[#allocation3 + $0x22] sm:$0xff]
    %v8013 = vpack.c.bf16 %v8011, %v8011
    %v8014 = vpack.c.bf16 %v8012, %v8012
    %v8015 = vld [vmem:[#allocation3 + $0xb] sm:$0xff]
    %v8016 = vld [vmem:[#allocation3 + $0x23] sm:$0xff]
    %v8017 = vpack.c.bf16 %v8015, %v8015
    %v8018 = vpack.c.bf16 %v8016, %v8016
    %v8023 = vunpack.c.l.b16 %v8013
    %v8024 = vunpack.c.l.b16 %v8017
    %v8025 = vunpack.c.l.b16 %v8014
    %v8026 = vunpack.c.l.b16 %v8018
    %s8027 = scalar_lea.vmem [#allocation4], 5568
    %v8028 = vld [vmem:[%s8027] sm:$0xf]
    %v8029 = vld [vmem:[%s8027 + $0x4] sm:$0xf]
    %v8030 = vld [vmem:[%s8027 + $0x8] sm:$0xf]
    %v8031 = vld [vmem:[%s8027 + $0xc] sm:$0xf]
    %v8032 = vld [vmem:[%s8027 + $0x10] sm:$0xf]
    %v8033 = vld [vmem:[%s8027 + $0x14] sm:$0xf]
    %v8034 = vld [vmem:[%s8027 + $0x18] sm:$0xf]
    %v8035 = vld [vmem:[%s8027 + $0x1c] sm:$0xf]
    %v8036 = vld [vmem:[%s8027 + $0x20] sm:$0xf]
    %v8037 = vld [vmem:[%s8027 + $0x24] sm:$0xf]
    %v8038 = vld [vmem:[%s8027 + $0x28] sm:$0xf]
    %v8039 = vld [vmem:[%s8027 + $0x2c] sm:$0xf]
    %v8040 = vld [vmem:[%s8027 + $0x30] sm:$0xf]
    %v8041 = vld [vmem:[%s8027 + $0x34] sm:$0xf]
    %v8042 = vld [vmem:[%s8027 + $0x38] sm:$0xf]
    %v8043 = vld [vmem:[%s8027 + $0x3c] sm:$0xf]
    %v8044 = vld [vmem:[%s8027 + $0x40] sm:$0xf]
    %v8045 = vld [vmem:[%s8027 + $0x44] sm:$0xf]
    %v8046 = vld [vmem:[%s8027 + $0x48] sm:$0xf]
    %v8047 = vld [vmem:[%s8027 + $0x4c] sm:$0xf]
    %v8048 = vld [vmem:[%s8027 + $0x50] sm:$0xf]
    %v8049 = vld [vmem:[%s8027 + $0x54] sm:$0xf]
    %v8050 = vld [vmem:[%s8027 + $0x58] sm:$0xf]
    %v8051 = vld [vmem:[%s8027 + $0x5c] sm:$0xf]
    %v8052 = vld [vmem:[%s8027 + $0x60] sm:$0xf]
    %v8053 = vld [vmem:[%s8027 + $0x64] sm:$0xf]
    %v8054 = vld [vmem:[%s8027 + $0x68] sm:$0xf]
    %v8055 = vld [vmem:[%s8027 + $0x6c] sm:$0xf]
    %v8056 = vld [vmem:[%s8027 + $0x70] sm:$0xf]
    %v8057 = vld [vmem:[%s8027 + $0x74] sm:$0xf]
    %v8058 = vld [vmem:[%s8027 + $0x78] sm:$0xf]
    %v8059 = vld [vmem:[%s8027 + $0x7c] sm:$0xf]
    %v8060 = vpack.c.b16 %v8025, %v8023
    %v8061 = vpack.c.b16 %v8026, %v8024
    %v8096 = vunpack.c.l.b16 %v8028
    %v8097 = vunpack.c.l.b16 %v8029
    %v8098 = vunpack.c.l.b16 %v8030
    %v8099 = vunpack.c.l.b16 %v8031
    %v8100 = vunpack.c.l.b16 %v8032
    %v8101 = vunpack.c.l.b16 %v8033
    %v8102 = vunpack.c.l.b16 %v8034
    %v8103 = vunpack.c.l.b16 %v8035
    %v8104 = vunpack.c.l.b16 %v8036
    %v8105 = vunpack.c.l.b16 %v8037
    %v8106 = vunpack.c.l.b16 %v8038
    %v8107 = vunpack.c.l.b16 %v8039
    %v8108 = vunpack.c.l.b16 %v8040
    %v8109 = vunpack.c.l.b16 %v8041
    %v8110 = vunpack.c.l.b16 %v8042
    %v8111 = vunpack.c.l.b16 %v8043
    %v8112 = vunpack.c.l.b16 %v8044
    %v8113 = vunpack.c.l.b16 %v8045
    %v8114 = vunpack.c.l.b16 %v8046
    %v8115 = vunpack.c.l.b16 %v8047
    %v8116 = vunpack.c.l.b16 %v8048
    %v8117 = vunpack.c.l.b16 %v8049
    %v8118 = vunpack.c.l.b16 %v8050
    %v8119 = vunpack.c.l.b16 %v8051
    %v8120 = vunpack.c.l.b16 %v8052
    %v8121 = vunpack.c.l.b16 %v8053
    %v8122 = vunpack.c.l.b16 %v8054
    %v8123 = vunpack.c.l.b16 %v8055
    %v8124 = vunpack.c.l.b16 %v8056
    %v8125 = vunpack.c.l.b16 %v8057
    %v8126 = vunpack.c.l.b16 %v8058
    %v8127 = vunpack.c.l.b16 %v8059
    %v8128 = vpack.c.b16 %v8097, %v8096
    %v8129 = vpack.c.b16 %v8099, %v8098
    %v8130 = vpack.c.b16 %v8101, %v8100
    %v8131 = vpack.c.b16 %v8103, %v8102
    %v8132 = vpack.c.b16 %v8105, %v8104
    %v8133 = vpack.c.b16 %v8107, %v8106
    %v8134 = vpack.c.b16 %v8109, %v8108
    %v8135 = vpack.c.b16 %v8111, %v8110
    %v8136 = vpack.c.b16 %v8113, %v8112
    %v8137 = vpack.c.b16 %v8115, %v8114
    %v8138 = vpack.c.b16 %v8117, %v8116
    %v8139 = vpack.c.b16 %v8119, %v8118
    %v8140 = vpack.c.b16 %v8121, %v8120
    %v8141 = vpack.c.b16 %v8123, %v8122
    %v8142 = vpack.c.b16 %v8125, %v8124
    %v8143 = vpack.c.b16 %v8127, %v8126
    %8160 = vmatpush.bf16.msra.mxu0 %v8135
    %8161 = vmatpush.bf16.msra.mxu0 %v8134
    %8162 = vmatpush.bf16.msra.mxu0 %v8133
    %8163 = vmatpush.bf16.msra.mxu0 %v8132
    %8164 = vmatpush.bf16.msra.mxu0 %v8131
    %8165 = vmatpush.bf16.msra.mxu0 %v8130
    %8166 = vmatpush.bf16.msra.mxu0 %v8129
    %8167 = vmatpush.bf16.msra.mxu0 %v8128
    %8168 = vmatmul.bf16.gmra.mxu0 %v8060
    %v8169 = vpop.f32.mrf.mxu0
    %v8170 = vadd.f32 0.0, %v8169
    %v8171 = vpop.f32.mrf.mxu0
    %v8172 = vadd.f32 0.0, %v8171
    %8173 = vdwg.mxu0
    %8174 = vmatpush.bf16.msra.mxu0 %v8143
    %8175 = vmatpush.bf16.msra.mxu0 %v8142
    %8176 = vmatpush.bf16.msra.mxu0 %v8141
    %8177 = vmatpush.bf16.msra.mxu0 %v8140
    %8178 = vmatpush.bf16.msra.mxu0 %v8139
    %8179 = vmatpush.bf16.msra.mxu0 %v8138
    %8180 = vmatpush.bf16.msra.mxu0 %v8137
    %8181 = vmatpush.bf16.msra.mxu0 %v8136
    %8182 = vmatmul.bf16.gmra.mxu0 %v8061
    %v8183 = vpop.f32.mrf.mxu0
    %v8184 = vadd.f32 %v8170, %v8183
    %v8185 = vpop.f32.mrf.mxu0
    %v8186 = vadd.f32 %v8172, %v8185
    %8187 = vdwg.mxu0
    %v8188 = vadd.f32 %v8009, %v8184
    %v8189 = vadd.f32 %v8010, %v8186
    %v8190 = vld [vmem:[#allocation3 + $0xc] sm:$0xff]
    %v8191 = vld [vmem:[#allocation3 + $0x24] sm:$0xff]
    %v8192 = vpack.c.bf16 %v8191, %v8190
    %s8193 = scalar_lea.vmem [#allocation4], 5696
    %v8194 = vld [vmem:[%s8193] sm:$0xf]
    %v8195 = vld [vmem:[%s8193 + $0x4] sm:$0xf]
    %v8196 = vld [vmem:[%s8193 + $0x8] sm:$0xf]
    %v8197 = vld [vmem:[%s8193 + $0xc] sm:$0xf]
    %v8198 = vld [vmem:[%s8193 + $0x10] sm:$0xf]
    %v8199 = vld [vmem:[%s8193 + $0x14] sm:$0xf]
    %v8200 = vld [vmem:[%s8193 + $0x18] sm:$0xf]
    %v8201 = vld [vmem:[%s8193 + $0x1c] sm:$0xf]
    %v8202 = vld [vmem:[%s8193 + $0x20] sm:$0xf]
    %v8203 = vld [vmem:[%s8193 + $0x24] sm:$0xf]
    %v8204 = vld [vmem:[%s8193 + $0x28] sm:$0xf]
    %v8205 = vld [vmem:[%s8193 + $0x2c] sm:$0xf]
    %v8206 = vld [vmem:[%s8193 + $0x30] sm:$0xf]
    %v8207 = vld [vmem:[%s8193 + $0x34] sm:$0xf]
    %v8208 = vld [vmem:[%s8193 + $0x38] sm:$0xf]
    %v8209 = vld [vmem:[%s8193 + $0x3c] sm:$0xf]
    %v8226 = vunpack.c.l.b16 %v8194
    %v8227 = vunpack.c.l.b16 %v8195
    %v8228 = vunpack.c.l.b16 %v8196
    %v8229 = vunpack.c.l.b16 %v8197
    %v8230 = vunpack.c.l.b16 %v8198
    %v8231 = vunpack.c.l.b16 %v8199
    %v8232 = vunpack.c.l.b16 %v8200
    %v8233 = vunpack.c.l.b16 %v8201
    %v8234 = vunpack.c.l.b16 %v8202
    %v8235 = vunpack.c.l.b16 %v8203
    %v8236 = vunpack.c.l.b16 %v8204
    %v8237 = vunpack.c.l.b16 %v8205
    %v8238 = vunpack.c.l.b16 %v8206
    %v8239 = vunpack.c.l.b16 %v8207
    %v8240 = vunpack.c.l.b16 %v8208
    %v8241 = vunpack.c.l.b16 %v8209
    %v8242 = vpack.c.b16 %v8227, %v8226
    %v8243 = vpack.c.b16 %v8229, %v8228
    %v8244 = vpack.c.b16 %v8231, %v8230
    %v8245 = vpack.c.b16 %v8233, %v8232
    %v8246 = vpack.c.b16 %v8235, %v8234
    %v8247 = vpack.c.b16 %v8237, %v8236
    %v8248 = vpack.c.b16 %v8239, %v8238
    %v8249 = vpack.c.b16 %v8241, %v8240
    %8258 = vmatpush.bf16.msra.mxu0 %v8249
    %8259 = vmatpush.bf16.msra.mxu0 %v8248
    %8260 = vmatpush.bf16.msra.mxu0 %v8247
    %8261 = vmatpush.bf16.msra.mxu0 %v8246
    %8262 = vmatpush.bf16.msra.mxu0 %v8245
    %8263 = vmatpush.bf16.msra.mxu0 %v8244
    %8264 = vmatpush.bf16.msra.mxu0 %v8243
    %8265 = vmatpush.bf16.msra.mxu0 %v8242
    %8266 = vmatmul.bf16.gmra.mxu0 %v8192
    %v8267 = vpop.f32.mrf.mxu0
    %v8268 = vadd.f32 0.0, %v8267
    %v8269 = vpop.f32.mrf.mxu0
    %v8270 = vadd.f32 0.0, %v8269
    %8271 = vdwg.mxu0
    %v8272 = vadd.f32 %v8188, %v8268
    %v8273 = vadd.f32 %v8189, %v8270
    %s8274 = scalar_lea.vmem [#allocation11], 9
    %v8275 = vld [vmem:[%s8274] sm:$0x1]
    %v8277 = vperm.slane %v8275, 0
    %v8279 = vadd.f32 %v8272, %v8277
    %v8280 = vadd.f32 %v8273, %v8277
    %v8281 = vmul.f32 %v8279, 0.2
    %v8282 = vmul.f32 %v8280, 0.2
    %v8283 = vmax.f32 %v8279, %v8281
    %v8284 = vmax.f32 %v8280, %v8282
    %8285 = vst [vmem:[#allocation2 + $0x8] sm:$0xff] %v8283
    %8286 = vst [vmem:[#allocation2 + $0x20] sm:$0xff] %v8284
    %v8287 = vld [vmem:[#allocation2 + $0x4] sm:$0xff]
    %v8288 = vld [vmem:[#allocation2 + $0x1c] sm:$0xff]
    %v8289 = vpack.c.bf16 %v8287, %v8287
    %v8290 = vpack.c.bf16 %v8288, %v8288
    %v8291 = vld [vmem:[#allocation2 + $0x5] sm:$0xff]
    %v8292 = vld [vmem:[#allocation2 + $0x1d] sm:$0xff]
    %v8293 = vpack.c.bf16 %v8291, %v8291
    %v8294 = vpack.c.bf16 %v8292, %v8292
    %v8299 = vunpack.c.l.b16 %v8289
    %v8300 = vunpack.c.l.b16 %v8293
    %v8301 = vunpack.c.l.b16 %v8290
    %v8302 = vunpack.c.l.b16 %v8294
    %s8303 = scalar_lea.vmem [#allocation4], 5760
    %v8304 = vld [vmem:[%s8303] sm:$0xf]
    %v8305 = vld [vmem:[%s8303 + $0x4] sm:$0xf]
    %v8306 = vld [vmem:[%s8303 + $0x8] sm:$0xf]
    %v8307 = vld [vmem:[%s8303 + $0xc] sm:$0xf]
    %v8308 = vld [vmem:[%s8303 + $0x10] sm:$0xf]
    %v8309 = vld [vmem:[%s8303 + $0x14] sm:$0xf]
    %v8310 = vld [vmem:[%s8303 + $0x18] sm:$0xf]
    %v8311 = vld [vmem:[%s8303 + $0x1c] sm:$0xf]
    %v8312 = vld [vmem:[%s8303 + $0x20] sm:$0xf]
    %v8313 = vld [vmem:[%s8303 + $0x24] sm:$0xf]
    %v8314 = vld [vmem:[%s8303 + $0x28] sm:$0xf]
    %v8315 = vld [vmem:[%s8303 + $0x2c] sm:$0xf]
    %v8316 = vld [vmem:[%s8303 + $0x30] sm:$0xf]
    %v8317 = vld [vmem:[%s8303 + $0x34] sm:$0xf]
    %v8318 = vld [vmem:[%s8303 + $0x38] sm:$0xf]
    %v8319 = vld [vmem:[%s8303 + $0x3c] sm:$0xf]
    %v8320 = vld [vmem:[%s8303 + $0x40] sm:$0xf]
    %v8321 = vld [vmem:[%s8303 + $0x44] sm:$0xf]
    %v8322 = vld [vmem:[%s8303 + $0x48] sm:$0xf]
    %v8323 = vld [vmem:[%s8303 + $0x4c] sm:$0xf]
    %v8324 = vld [vmem:[%s8303 + $0x50] sm:$0xf]
    %v8325 = vld [vmem:[%s8303 + $0x54] sm:$0xf]
    %v8326 = vld [vmem:[%s8303 + $0x58] sm:$0xf]
    %v8327 = vld [vmem:[%s8303 + $0x5c] sm:$0xf]
    %v8328 = vld [vmem:[%s8303 + $0x60] sm:$0xf]
    %v8329 = vld [vmem:[%s8303 + $0x64] sm:$0xf]
    %v8330 = vld [vmem:[%s8303 + $0x68] sm:$0xf]
    %v8331 = vld [vmem:[%s8303 + $0x6c] sm:$0xf]
    %v8332 = vld [vmem:[%s8303 + $0x70] sm:$0xf]
    %v8333 = vld [vmem:[%s8303 + $0x74] sm:$0xf]
    %v8334 = vld [vmem:[%s8303 + $0x78] sm:$0xf]
    %v8335 = vld [vmem:[%s8303 + $0x7c] sm:$0xf]
    %v8336 = vld [vmem:[#allocation2 + $0x6] sm:$0xff]
    %v8337 = vld [vmem:[#allocation2 + $0x1e] sm:$0xff]
    %v8338 = vpack.c.bf16 %v8336, %v8336
    %v8339 = vpack.c.bf16 %v8337, %v8337
    %v8340 = vld [vmem:[#allocation2 + $0x7] sm:$0xff]
    %v8341 = vld [vmem:[#allocation2 + $0x1f] sm:$0xff]
    %v8342 = vpack.c.bf16 %v8340, %v8340
    %v8343 = vpack.c.bf16 %v8341, %v8341
    %v8348 = vunpack.c.l.b16 %v8338
    %v8349 = vunpack.c.l.b16 %v8342
    %v8350 = vunpack.c.l.b16 %v8339
    %v8351 = vunpack.c.l.b16 %v8343
    %s8352 = scalar_lea.vmem [#allocation4], 5888
    %v8353 = vld [vmem:[%s8352] sm:$0xf]
    %v8354 = vld [vmem:[%s8352 + $0x4] sm:$0xf]
    %v8355 = vld [vmem:[%s8352 + $0x8] sm:$0xf]
    %v8356 = vld [vmem:[%s8352 + $0xc] sm:$0xf]
    %v8357 = vld [vmem:[%s8352 + $0x10] sm:$0xf]
    %v8358 = vld [vmem:[%s8352 + $0x14] sm:$0xf]
    %v8359 = vld [vmem:[%s8352 + $0x18] sm:$0xf]
    %v8360 = vld [vmem:[%s8352 + $0x1c] sm:$0xf]
    %v8361 = vld [vmem:[%s8352 + $0x20] sm:$0xf]
    %v8362 = vld [vmem:[%s8352 + $0x24] sm:$0xf]
    %v8363 = vld [vmem:[%s8352 + $0x28] sm:$0xf]
    %v8364 = vld [vmem:[%s8352 + $0x2c] sm:$0xf]
    %v8365 = vld [vmem:[%s8352 + $0x30] sm:$0xf]
    %v8366 = vld [vmem:[%s8352 + $0x34] sm:$0xf]
    %v8367 = vld [vmem:[%s8352 + $0x38] sm:$0xf]
    %v8368 = vld [vmem:[%s8352 + $0x3c] sm:$0xf]
    %v8369 = vld [vmem:[%s8352 + $0x40] sm:$0xf]
    %v8370 = vld [vmem:[%s8352 + $0x44] sm:$0xf]
    %v8371 = vld [vmem:[%s8352 + $0x48] sm:$0xf]
    %v8372 = vld [vmem:[%s8352 + $0x4c] sm:$0xf]
    %v8373 = vld [vmem:[%s8352 + $0x50] sm:$0xf]
    %v8374 = vld [vmem:[%s8352 + $0x54] sm:$0xf]
    %v8375 = vld [vmem:[%s8352 + $0x58] sm:$0xf]
    %v8376 = vld [vmem:[%s8352 + $0x5c] sm:$0xf]
    %v8377 = vld [vmem:[%s8352 + $0x60] sm:$0xf]
    %v8378 = vld [vmem:[%s8352 + $0x64] sm:$0xf]
    %v8379 = vld [vmem:[%s8352 + $0x68] sm:$0xf]
    %v8380 = vld [vmem:[%s8352 + $0x6c] sm:$0xf]
    %v8381 = vld [vmem:[%s8352 + $0x70] sm:$0xf]
    %v8382 = vld [vmem:[%s8352 + $0x74] sm:$0xf]
    %v8383 = vld [vmem:[%s8352 + $0x78] sm:$0xf]
    %v8384 = vld [vmem:[%s8352 + $0x7c] sm:$0xf]
    %v8385 = vpack.c.b16 %v8350, %v8348
    %v8386 = vpack.c.b16 %v8351, %v8349
    %v8421 = vunpack.c.l.b16 %v8353
    %v8422 = vunpack.c.l.b16 %v8354
    %v8423 = vunpack.c.l.b16 %v8355
    %v8424 = vunpack.c.l.b16 %v8356
    %v8425 = vunpack.c.l.b16 %v8357
    %v8426 = vunpack.c.l.b16 %v8358
    %v8427 = vunpack.c.l.b16 %v8359
    %v8428 = vunpack.c.l.b16 %v8360
    %v8429 = vunpack.c.l.b16 %v8361
    %v8430 = vunpack.c.l.b16 %v8362
    %v8431 = vunpack.c.l.b16 %v8363
    %v8432 = vunpack.c.l.b16 %v8364
    %v8433 = vunpack.c.l.b16 %v8365
    %v8434 = vunpack.c.l.b16 %v8366
    %v8435 = vunpack.c.l.b16 %v8367
    %v8436 = vunpack.c.l.b16 %v8368
    %v8437 = vunpack.c.l.b16 %v8369
    %v8438 = vunpack.c.l.b16 %v8370
    %v8439 = vunpack.c.l.b16 %v8371
    %v8440 = vunpack.c.l.b16 %v8372
    %v8441 = vunpack.c.l.b16 %v8373
    %v8442 = vunpack.c.l.b16 %v8374
    %v8443 = vunpack.c.l.b16 %v8375
    %v8444 = vunpack.c.l.b16 %v8376
    %v8445 = vunpack.c.l.b16 %v8377
    %v8446 = vunpack.c.l.b16 %v8378
    %v8447 = vunpack.c.l.b16 %v8379
    %v8448 = vunpack.c.l.b16 %v8380
    %v8449 = vunpack.c.l.b16 %v8381
    %v8450 = vunpack.c.l.b16 %v8382
    %v8451 = vunpack.c.l.b16 %v8383
    %v8452 = vunpack.c.l.b16 %v8384
    %v8453 = vpack.c.b16 %v8422, %v8421
    %v8454 = vpack.c.b16 %v8424, %v8423
    %v8455 = vpack.c.b16 %v8426, %v8425
    %v8456 = vpack.c.b16 %v8428, %v8427
    %v8457 = vpack.c.b16 %v8430, %v8429
    %v8458 = vpack.c.b16 %v8432, %v8431
    %v8459 = vpack.c.b16 %v8434, %v8433
    %v8460 = vpack.c.b16 %v8436, %v8435
    %v8461 = vpack.c.b16 %v8438, %v8437
    %v8462 = vpack.c.b16 %v8440, %v8439
    %v8463 = vpack.c.b16 %v8442, %v8441
    %v8464 = vpack.c.b16 %v8444, %v8443
    %v8465 = vpack.c.b16 %v8446, %v8445
    %v8466 = vpack.c.b16 %v8448, %v8447
    %v8467 = vpack.c.b16 %v8450, %v8449
    %v8468 = vpack.c.b16 %v8452, %v8451
    %8485 = vmatpush.bf16.msra.mxu0 %v8460
    %8486 = vmatpush.bf16.msra.mxu0 %v8459
    %8487 = vmatpush.bf16.msra.mxu0 %v8458
    %8488 = vmatpush.bf16.msra.mxu0 %v8457
    %8489 = vmatpush.bf16.msra.mxu0 %v8456
    %8490 = vmatpush.bf16.msra.mxu0 %v8455
    %8491 = vmatpush.bf16.msra.mxu0 %v8454
    %8492 = vmatpush.bf16.msra.mxu0 %v8453
    %8493 = vmatmul.bf16.gmra.mxu0 %v8385
    %v8494 = vpop.f32.mrf.mxu0
    %v8495 = vadd.f32 0.0, %v8494
    %v8496 = vpop.f32.mrf.mxu0
    %v8497 = vadd.f32 0.0, %v8496
    %8498 = vdwg.mxu0
    %8499 = vmatpush.bf16.msra.mxu0 %v8468
    %8500 = vmatpush.bf16.msra.mxu0 %v8467
    %8501 = vmatpush.bf16.msra.mxu0 %v8466
    %8502 = vmatpush.bf16.msra.mxu0 %v8465
    %8503 = vmatpush.bf16.msra.mxu0 %v8464
    %8504 = vmatpush.bf16.msra.mxu0 %v8463
    %8505 = vmatpush.bf16.msra.mxu0 %v8462
    %8506 = vmatpush.bf16.msra.mxu0 %v8461
    %8507 = vmatmul.bf16.gmra.mxu0 %v8386
    %v8508 = vpop.f32.mrf.mxu0
    %v8509 = vadd.f32 %v8495, %v8508
    %v8510 = vpop.f32.mrf.mxu0
    %v8511 = vadd.f32 %v8497, %v8510
    %8512 = vdwg.mxu0
    %v8513 = vpack.c.b16 %v8301, %v8299
    %v8514 = vpack.c.b16 %v8302, %v8300
    %v8549 = vunpack.c.l.b16 %v8304
    %v8550 = vunpack.c.l.b16 %v8305
    %v8551 = vunpack.c.l.b16 %v8306
    %v8552 = vunpack.c.l.b16 %v8307
    %v8553 = vunpack.c.l.b16 %v8308
    %v8554 = vunpack.c.l.b16 %v8309
    %v8555 = vunpack.c.l.b16 %v8310
    %v8556 = vunpack.c.l.b16 %v8311
    %v8557 = vunpack.c.l.b16 %v8312
    %v8558 = vunpack.c.l.b16 %v8313
    %v8559 = vunpack.c.l.b16 %v8314
    %v8560 = vunpack.c.l.b16 %v8315
    %v8561 = vunpack.c.l.b16 %v8316
    %v8562 = vunpack.c.l.b16 %v8317
    %v8563 = vunpack.c.l.b16 %v8318
    %v8564 = vunpack.c.l.b16 %v8319
    %v8565 = vunpack.c.l.b16 %v8320
    %v8566 = vunpack.c.l.b16 %v8321
    %v8567 = vunpack.c.l.b16 %v8322
    %v8568 = vunpack.c.l.b16 %v8323
    %v8569 = vunpack.c.l.b16 %v8324
    %v8570 = vunpack.c.l.b16 %v8325
    %v8571 = vunpack.c.l.b16 %v8326
    %v8572 = vunpack.c.l.b16 %v8327
    %v8573 = vunpack.c.l.b16 %v8328
    %v8574 = vunpack.c.l.b16 %v8329
    %v8575 = vunpack.c.l.b16 %v8330
    %v8576 = vunpack.c.l.b16 %v8331
    %v8577 = vunpack.c.l.b16 %v8332
    %v8578 = vunpack.c.l.b16 %v8333
    %v8579 = vunpack.c.l.b16 %v8334
    %v8580 = vunpack.c.l.b16 %v8335
    %v8581 = vpack.c.b16 %v8550, %v8549
    %v8582 = vpack.c.b16 %v8552, %v8551
    %v8583 = vpack.c.b16 %v8554, %v8553
    %v8584 = vpack.c.b16 %v8556, %v8555
    %v8585 = vpack.c.b16 %v8558, %v8557
    %v8586 = vpack.c.b16 %v8560, %v8559
    %v8587 = vpack.c.b16 %v8562, %v8561
    %v8588 = vpack.c.b16 %v8564, %v8563
    %v8589 = vpack.c.b16 %v8566, %v8565
    %v8590 = vpack.c.b16 %v8568, %v8567
    %v8591 = vpack.c.b16 %v8570, %v8569
    %v8592 = vpack.c.b16 %v8572, %v8571
    %v8593 = vpack.c.b16 %v8574, %v8573
    %v8594 = vpack.c.b16 %v8576, %v8575
    %v8595 = vpack.c.b16 %v8578, %v8577
    %v8596 = vpack.c.b16 %v8580, %v8579
    %8613 = vmatpush.bf16.msra.mxu0 %v8588
    %8614 = vmatpush.bf16.msra.mxu0 %v8587
    %8615 = vmatpush.bf16.msra.mxu0 %v8586
    %8616 = vmatpush.bf16.msra.mxu0 %v8585
    %8617 = vmatpush.bf16.msra.mxu0 %v8584
    %8618 = vmatpush.bf16.msra.mxu0 %v8583
    %8619 = vmatpush.bf16.msra.mxu0 %v8582
    %8620 = vmatpush.bf16.msra.mxu0 %v8581
    %8621 = vmatmul.bf16.gmra.mxu0 %v8513
    %v8622 = vpop.f32.mrf.mxu0
    %v8623 = vadd.f32 %v8509, %v8622
    %v8624 = vpop.f32.mrf.mxu0
    %v8625 = vadd.f32 %v8511, %v8624
    %8626 = vdwg.mxu0
    %8627 = vmatpush.bf16.msra.mxu0 %v8596
    %8628 = vmatpush.bf16.msra.mxu0 %v8595
    %8629 = vmatpush.bf16.msra.mxu0 %v8594
    %8630 = vmatpush.bf16.msra.mxu0 %v8593
    %8631 = vmatpush.bf16.msra.mxu0 %v8592
    %8632 = vmatpush.bf16.msra.mxu0 %v8591
    %8633 = vmatpush.bf16.msra.mxu0 %v8590
    %8634 = vmatpush.bf16.msra.mxu0 %v8589
    %8635 = vmatmul.bf16.gmra.mxu0 %v8514
    %v8636 = vpop.f32.mrf.mxu0
    %v8637 = vadd.f32 %v8623, %v8636
    %v8638 = vpop.f32.mrf.mxu0
    %v8639 = vadd.f32 %v8625, %v8638
    %8640 = vdwg.mxu0
    %v8641 = vld [vmem:[#allocation2 + $0x8] sm:$0xff]
    %v8642 = vld [vmem:[#allocation2 + $0x20] sm:$0xff]
    %v8643 = vpack.c.bf16 %v8641, %v8641
    %v8644 = vpack.c.bf16 %v8642, %v8642
    %v8645 = vld [vmem:[#allocation2 + $0x9] sm:$0xff]
    %v8646 = vld [vmem:[#allocation2 + $0x21] sm:$0xff]
    %v8647 = vpack.c.bf16 %v8645, %v8645
    %v8648 = vpack.c.bf16 %v8646, %v8646
    %v8653 = vunpack.c.l.b16 %v8643
    %v8654 = vunpack.c.l.b16 %v8647
    %v8655 = vunpack.c.l.b16 %v8644
    %v8656 = vunpack.c.l.b16 %v8648
    %s8657 = scalar_lea.vmem [#allocation4], 6016
    %v8658 = vld [vmem:[%s8657] sm:$0xf]
    %v8659 = vld [vmem:[%s8657 + $0x4] sm:$0xf]
    %v8660 = vld [vmem:[%s8657 + $0x8] sm:$0xf]
    %v8661 = vld [vmem:[%s8657 + $0xc] sm:$0xf]
    %v8662 = vld [vmem:[%s8657 + $0x10] sm:$0xf]
    %v8663 = vld [vmem:[%s8657 + $0x14] sm:$0xf]
    %v8664 = vld [vmem:[%s8657 + $0x18] sm:$0xf]
    %v8665 = vld [vmem:[%s8657 + $0x1c] sm:$0xf]
    %v8666 = vld [vmem:[%s8657 + $0x20] sm:$0xf]
    %v8667 = vld [vmem:[%s8657 + $0x24] sm:$0xf]
    %v8668 = vld [vmem:[%s8657 + $0x28] sm:$0xf]
    %v8669 = vld [vmem:[%s8657 + $0x2c] sm:$0xf]
    %v8670 = vld [vmem:[%s8657 + $0x30] sm:$0xf]
    %v8671 = vld [vmem:[%s8657 + $0x34] sm:$0xf]
    %v8672 = vld [vmem:[%s8657 + $0x38] sm:$0xf]
    %v8673 = vld [vmem:[%s8657 + $0x3c] sm:$0xf]
    %v8674 = vld [vmem:[%s8657 + $0x40] sm:$0xf]
    %v8675 = vld [vmem:[%s8657 + $0x44] sm:$0xf]
    %v8676 = vld [vmem:[%s8657 + $0x48] sm:$0xf]
    %v8677 = vld [vmem:[%s8657 + $0x4c] sm:$0xf]
    %v8678 = vld [vmem:[%s8657 + $0x50] sm:$0xf]
    %v8679 = vld [vmem:[%s8657 + $0x54] sm:$0xf]
    %v8680 = vld [vmem:[%s8657 + $0x58] sm:$0xf]
    %v8681 = vld [vmem:[%s8657 + $0x5c] sm:$0xf]
    %v8682 = vld [vmem:[%s8657 + $0x60] sm:$0xf]
    %v8683 = vld [vmem:[%s8657 + $0x64] sm:$0xf]
    %v8684 = vld [vmem:[%s8657 + $0x68] sm:$0xf]
    %v8685 = vld [vmem:[%s8657 + $0x6c] sm:$0xf]
    %v8686 = vld [vmem:[%s8657 + $0x70] sm:$0xf]
    %v8687 = vld [vmem:[%s8657 + $0x74] sm:$0xf]
    %v8688 = vld [vmem:[%s8657 + $0x78] sm:$0xf]
    %v8689 = vld [vmem:[%s8657 + $0x7c] sm:$0xf]
    %v8690 = vpack.c.b16 %v8655, %v8653
    %v8691 = vpack.c.b16 %v8656, %v8654
    %v8726 = vunpack.c.l.b16 %v8658
    %v8727 = vunpack.c.l.b16 %v8659
    %v8728 = vunpack.c.l.b16 %v8660
    %v8729 = vunpack.c.l.b16 %v8661
    %v8730 = vunpack.c.l.b16 %v8662
    %v8731 = vunpack.c.l.b16 %v8663
    %v8732 = vunpack.c.l.b16 %v8664
    %v8733 = vunpack.c.l.b16 %v8665
    %v8734 = vunpack.c.l.b16 %v8666
    %v8735 = vunpack.c.l.b16 %v8667
    %v8736 = vunpack.c.l.b16 %v8668
    %v8737 = vunpack.c.l.b16 %v8669
    %v8738 = vunpack.c.l.b16 %v8670
    %v8739 = vunpack.c.l.b16 %v8671
    %v8740 = vunpack.c.l.b16 %v8672
    %v8741 = vunpack.c.l.b16 %v8673
    %v8742 = vunpack.c.l.b16 %v8674
    %v8743 = vunpack.c.l.b16 %v8675
    %v8744 = vunpack.c.l.b16 %v8676
    %v8745 = vunpack.c.l.b16 %v8677
    %v8746 = vunpack.c.l.b16 %v8678
    %v8747 = vunpack.c.l.b16 %v8679
    %v8748 = vunpack.c.l.b16 %v8680
    %v8749 = vunpack.c.l.b16 %v8681
    %v8750 = vunpack.c.l.b16 %v8682
    %v8751 = vunpack.c.l.b16 %v8683
    %v8752 = vunpack.c.l.b16 %v8684
    %v8753 = vunpack.c.l.b16 %v8685
    %v8754 = vunpack.c.l.b16 %v8686
    %v8755 = vunpack.c.l.b16 %v8687
    %v8756 = vunpack.c.l.b16 %v8688
    %v8757 = vunpack.c.l.b16 %v8689
    %v8758 = vpack.c.b16 %v8727, %v8726
    %v8759 = vpack.c.b16 %v8729, %v8728
    %v8760 = vpack.c.b16 %v8731, %v8730
    %v8761 = vpack.c.b16 %v8733, %v8732
    %v8762 = vpack.c.b16 %v8735, %v8734
    %v8763 = vpack.c.b16 %v8737, %v8736
    %v8764 = vpack.c.b16 %v8739, %v8738
    %v8765 = vpack.c.b16 %v8741, %v8740
    %v8766 = vpack.c.b16 %v8743, %v8742
    %v8767 = vpack.c.b16 %v8745, %v8744
    %v8768 = vpack.c.b16 %v8747, %v8746
    %v8769 = vpack.c.b16 %v8749, %v8748
    %v8770 = vpack.c.b16 %v8751, %v8750
    %v8771 = vpack.c.b16 %v8753, %v8752
    %v8772 = vpack.c.b16 %v8755, %v8754
    %v8773 = vpack.c.b16 %v8757, %v8756
    %8790 = vmatpush.bf16.msra.mxu0 %v8765
    %8791 = vmatpush.bf16.msra.mxu0 %v8764
    %8792 = vmatpush.bf16.msra.mxu0 %v8763
    %8793 = vmatpush.bf16.msra.mxu0 %v8762
    %8794 = vmatpush.bf16.msra.mxu0 %v8761
    %8795 = vmatpush.bf16.msra.mxu0 %v8760
    %8796 = vmatpush.bf16.msra.mxu0 %v8759
    %8797 = vmatpush.bf16.msra.mxu0 %v8758
    %8798 = vmatmul.bf16.gmra.mxu0 %v8690
    %v8799 = vpop.f32.mrf.mxu0
    %v8800 = vadd.f32 0.0, %v8799
    %v8801 = vpop.f32.mrf.mxu0
    %v8802 = vadd.f32 0.0, %v8801
    %8803 = vdwg.mxu0
    %8804 = vmatpush.bf16.msra.mxu0 %v8773
    %8805 = vmatpush.bf16.msra.mxu0 %v8772
    %8806 = vmatpush.bf16.msra.mxu0 %v8771
    %8807 = vmatpush.bf16.msra.mxu0 %v8770
    %8808 = vmatpush.bf16.msra.mxu0 %v8769
    %8809 = vmatpush.bf16.msra.mxu0 %v8768
    %8810 = vmatpush.bf16.msra.mxu0 %v8767
    %8811 = vmatpush.bf16.msra.mxu0 %v8766
    %8812 = vmatmul.bf16.gmra.mxu0 %v8691
    %v8813 = vpop.f32.mrf.mxu0
    %v8814 = vadd.f32 %v8800, %v8813
    %v8815 = vpop.f32.mrf.mxu0
    %v8816 = vadd.f32 %v8802, %v8815
    %8817 = vdwg.mxu0
    %v8818 = vadd.f32 %v8637, %v8814
    %v8819 = vadd.f32 %v8639, %v8816
    %v8820 = vld [vmem:[#allocation2 + $0xa] sm:$0xff]
    %v8821 = vld [vmem:[#allocation2 + $0x22] sm:$0xff]
    %v8822 = vpack.c.bf16 %v8820, %v8820
    %v8823 = vpack.c.bf16 %v8821, %v8821
    %v8824 = vld [vmem:[#allocation2 + $0xb] sm:$0xff]
    %v8825 = vld [vmem:[#allocation2 + $0x23] sm:$0xff]
    %v8826 = vpack.c.bf16 %v8824, %v8824
    %v8827 = vpack.c.bf16 %v8825, %v8825
    %v8832 = vunpack.c.l.b16 %v8822
    %v8833 = vunpack.c.l.b16 %v8826
    %v8834 = vunpack.c.l.b16 %v8823
    %v8835 = vunpack.c.l.b16 %v8827
    %s8836 = scalar_lea.vmem [#allocation4], 6144
    %v8837 = vld [vmem:[%s8836] sm:$0xf]
    %v8838 = vld [vmem:[%s8836 + $0x4] sm:$0xf]
    %v8839 = vld [vmem:[%s8836 + $0x8] sm:$0xf]
    %v8840 = vld [vmem:[%s8836 + $0xc] sm:$0xf]
    %v8841 = vld [vmem:[%s8836 + $0x10] sm:$0xf]
    %v8842 = vld [vmem:[%s8836 + $0x14] sm:$0xf]
    %v8843 = vld [vmem:[%s8836 + $0x18] sm:$0xf]
    %v8844 = vld [vmem:[%s8836 + $0x1c] sm:$0xf]
    %v8845 = vld [vmem:[%s8836 + $0x20] sm:$0xf]
    %v8846 = vld [vmem:[%s8836 + $0x24] sm:$0xf]
    %v8847 = vld [vmem:[%s8836 + $0x28] sm:$0xf]
    %v8848 = vld [vmem:[%s8836 + $0x2c] sm:$0xf]
    %v8849 = vld [vmem:[%s8836 + $0x30] sm:$0xf]
    %v8850 = vld [vmem:[%s8836 + $0x34] sm:$0xf]
    %v8851 = vld [vmem:[%s8836 + $0x38] sm:$0xf]
    %v8852 = vld [vmem:[%s8836 + $0x3c] sm:$0xf]
    %v8853 = vld [vmem:[%s8836 + $0x40] sm:$0xf]
    %v8854 = vld [vmem:[%s8836 + $0x44] sm:$0xf]
    %v8855 = vld [vmem:[%s8836 + $0x48] sm:$0xf]
    %v8856 = vld [vmem:[%s8836 + $0x4c] sm:$0xf]
    %v8857 = vld [vmem:[%s8836 + $0x50] sm:$0xf]
    %v8858 = vld [vmem:[%s8836 + $0x54] sm:$0xf]
    %v8859 = vld [vmem:[%s8836 + $0x58] sm:$0xf]
    %v8860 = vld [vmem:[%s8836 + $0x5c] sm:$0xf]
    %v8861 = vld [vmem:[%s8836 + $0x60] sm:$0xf]
    %v8862 = vld [vmem:[%s8836 + $0x64] sm:$0xf]
    %v8863 = vld [vmem:[%s8836 + $0x68] sm:$0xf]
    %v8864 = vld [vmem:[%s8836 + $0x6c] sm:$0xf]
    %v8865 = vld [vmem:[%s8836 + $0x70] sm:$0xf]
    %v8866 = vld [vmem:[%s8836 + $0x74] sm:$0xf]
    %v8867 = vld [vmem:[%s8836 + $0x78] sm:$0xf]
    %v8868 = vld [vmem:[%s8836 + $0x7c] sm:$0xf]
    %v8869 = vpack.c.b16 %v8834, %v8832
    %v8870 = vpack.c.b16 %v8835, %v8833
    %v8905 = vunpack.c.l.b16 %v8837
    %v8906 = vunpack.c.l.b16 %v8838
    %v8907 = vunpack.c.l.b16 %v8839
    %v8908 = vunpack.c.l.b16 %v8840
    %v8909 = vunpack.c.l.b16 %v8841
    %v8910 = vunpack.c.l.b16 %v8842
    %v8911 = vunpack.c.l.b16 %v8843
    %v8912 = vunpack.c.l.b16 %v8844
    %v8913 = vunpack.c.l.b16 %v8845
    %v8914 = vunpack.c.l.b16 %v8846
    %v8915 = vunpack.c.l.b16 %v8847
    %v8916 = vunpack.c.l.b16 %v8848
    %v8917 = vunpack.c.l.b16 %v8849
    %v8918 = vunpack.c.l.b16 %v8850
    %v8919 = vunpack.c.l.b16 %v8851
    %v8920 = vunpack.c.l.b16 %v8852
    %v8921 = vunpack.c.l.b16 %v8853
    %v8922 = vunpack.c.l.b16 %v8854
    %v8923 = vunpack.c.l.b16 %v8855
    %v8924 = vunpack.c.l.b16 %v8856
    %v8925 = vunpack.c.l.b16 %v8857
    %v8926 = vunpack.c.l.b16 %v8858
    %v8927 = vunpack.c.l.b16 %v8859
    %v8928 = vunpack.c.l.b16 %v8860
    %v8929 = vunpack.c.l.b16 %v8861
    %v8930 = vunpack.c.l.b16 %v8862
    %v8931 = vunpack.c.l.b16 %v8863
    %v8932 = vunpack.c.l.b16 %v8864
    %v8933 = vunpack.c.l.b16 %v8865
    %v8934 = vunpack.c.l.b16 %v8866
    %v8935 = vunpack.c.l.b16 %v8867
    %v8936 = vunpack.c.l.b16 %v8868
    %v8937 = vpack.c.b16 %v8906, %v8905
    %v8938 = vpack.c.b16 %v8908, %v8907
    %v8939 = vpack.c.b16 %v8910, %v8909
    %v8940 = vpack.c.b16 %v8912, %v8911
    %v8941 = vpack.c.b16 %v8914, %v8913
    %v8942 = vpack.c.b16 %v8916, %v8915
    %v8943 = vpack.c.b16 %v8918, %v8917
    %v8944 = vpack.c.b16 %v8920, %v8919
    %v8945 = vpack.c.b16 %v8922, %v8921
    %v8946 = vpack.c.b16 %v8924, %v8923
    %v8947 = vpack.c.b16 %v8926, %v8925
    %v8948 = vpack.c.b16 %v8928, %v8927
    %v8949 = vpack.c.b16 %v8930, %v8929
    %v8950 = vpack.c.b16 %v8932, %v8931
    %v8951 = vpack.c.b16 %v8934, %v8933
    %v8952 = vpack.c.b16 %v8936, %v8935
    %8969 = vmatpush.bf16.msra.mxu0 %v8944
    %8970 = vmatpush.bf16.msra.mxu0 %v8943
    %8971 = vmatpush.bf16.msra.mxu0 %v8942
    %8972 = vmatpush.bf16.msra.mxu0 %v8941
    %8973 = vmatpush.bf16.msra.mxu0 %v8940
    %8974 = vmatpush.bf16.msra.mxu0 %v8939
    %8975 = vmatpush.bf16.msra.mxu0 %v8938
    %8976 = vmatpush.bf16.msra.mxu0 %v8937
    %8977 = vmatmul.bf16.gmra.mxu0 %v8869
    %v8978 = vpop.f32.mrf.mxu0
    %v8979 = vadd.f32 0.0, %v8978
    %v8980 = vpop.f32.mrf.mxu0
    %v8981 = vadd.f32 0.0, %v8980
    %8982 = vdwg.mxu0
    %8983 = vmatpush.bf16.msra.mxu0 %v8952
    %8984 = vmatpush.bf16.msra.mxu0 %v8951
    %8985 = vmatpush.bf16.msra.mxu0 %v8950
    %8986 = vmatpush.bf16.msra.mxu0 %v8949
    %8987 = vmatpush.bf16.msra.mxu0 %v8948
    %8988 = vmatpush.bf16.msra.mxu0 %v8947
    %8989 = vmatpush.bf16.msra.mxu0 %v8946
    %8990 = vmatpush.bf16.msra.mxu0 %v8945
    %8991 = vmatmul.bf16.gmra.mxu0 %v8870
    %v8992 = vpop.f32.mrf.mxu0
    %v8993 = vadd.f32 %v8979, %v8992
    %v8994 = vpop.f32.mrf.mxu0
    %v8995 = vadd.f32 %v8981, %v8994
    %8996 = vdwg.mxu0
    %v8997 = vadd.f32 %v8818, %v8993
    %v8998 = vadd.f32 %v8819, %v8995
    %v8999 = vld [vmem:[#allocation2 + $0xc] sm:$0xff]
    %v9000 = vld [vmem:[#allocation2 + $0x24] sm:$0xff]
    %v9001 = vpack.c.bf16 %v9000, %v8999
    %s9002 = scalar_lea.vmem [#allocation4], 6272
    %v9003 = vld [vmem:[%s9002] sm:$0xf]
    %v9004 = vld [vmem:[%s9002 + $0x4] sm:$0xf]
    %v9005 = vld [vmem:[%s9002 + $0x8] sm:$0xf]
    %v9006 = vld [vmem:[%s9002 + $0xc] sm:$0xf]
    %v9007 = vld [vmem:[%s9002 + $0x10] sm:$0xf]
    %v9008 = vld [vmem:[%s9002 + $0x14] sm:$0xf]
    %v9009 = vld [vmem:[%s9002 + $0x18] sm:$0xf]
    %v9010 = vld [vmem:[%s9002 + $0x1c] sm:$0xf]
    %v9011 = vld [vmem:[%s9002 + $0x20] sm:$0xf]
    %v9012 = vld [vmem:[%s9002 + $0x24] sm:$0xf]
    %v9013 = vld [vmem:[%s9002 + $0x28] sm:$0xf]
    %v9014 = vld [vmem:[%s9002 + $0x2c] sm:$0xf]
    %v9015 = vld [vmem:[%s9002 + $0x30] sm:$0xf]
    %v9016 = vld [vmem:[%s9002 + $0x34] sm:$0xf]
    %v9017 = vld [vmem:[%s9002 + $0x38] sm:$0xf]
    %v9018 = vld [vmem:[%s9002 + $0x3c] sm:$0xf]
    %v9035 = vunpack.c.l.b16 %v9003
    %v9036 = vunpack.c.l.b16 %v9004
    %v9037 = vunpack.c.l.b16 %v9005
    %v9038 = vunpack.c.l.b16 %v9006
    %v9039 = vunpack.c.l.b16 %v9007
    %v9040 = vunpack.c.l.b16 %v9008
    %v9041 = vunpack.c.l.b16 %v9009
    %v9042 = vunpack.c.l.b16 %v9010
    %v9043 = vunpack.c.l.b16 %v9011
    %v9044 = vunpack.c.l.b16 %v9012
    %v9045 = vunpack.c.l.b16 %v9013
    %v9046 = vunpack.c.l.b16 %v9014
    %v9047 = vunpack.c.l.b16 %v9015
    %v9048 = vunpack.c.l.b16 %v9016
    %v9049 = vunpack.c.l.b16 %v9017
    %v9050 = vunpack.c.l.b16 %v9018
    %v9051 = vpack.c.b16 %v9036, %v9035
    %v9052 = vpack.c.b16 %v9038, %v9037
    %v9053 = vpack.c.b16 %v9040, %v9039
    %v9054 = vpack.c.b16 %v9042, %v9041
    %v9055 = vpack.c.b16 %v9044, %v9043
    %v9056 = vpack.c.b16 %v9046, %v9045
    %v9057 = vpack.c.b16 %v9048, %v9047
    %v9058 = vpack.c.b16 %v9050, %v9049
    %9067 = vmatpush.bf16.msra.mxu0 %v9058
    %9068 = vmatpush.bf16.msra.mxu0 %v9057
    %9069 = vmatpush.bf16.msra.mxu0 %v9056
    %9070 = vmatpush.bf16.msra.mxu0 %v9055
    %9071 = vmatpush.bf16.msra.mxu0 %v9054
    %9072 = vmatpush.bf16.msra.mxu0 %v9053
    %9073 = vmatpush.bf16.msra.mxu0 %v9052
    %9074 = vmatpush.bf16.msra.mxu0 %v9051
    %9075 = vmatmul.bf16.gmra.mxu0 %v9001
    %v9076 = vpop.f32.mrf.mxu0
    %v9077 = vadd.f32 0.0, %v9076
    %v9078 = vpop.f32.mrf.mxu0
    %v9079 = vadd.f32 0.0, %v9078
    %9080 = vdwg.mxu0
    %v9081 = vadd.f32 %v8997, %v9077
    %v9082 = vadd.f32 %v8998, %v9079
    %s9083 = scalar_lea.vmem [#allocation11], 10
    %v9084 = vld [vmem:[%s9083] sm:$0x1]
    %v9086 = vperm.slane %v9084, 0
    %v9088 = vadd.f32 %v9081, %v9086
    %v9089 = vadd.f32 %v9082, %v9086
    %v9090 = vld [vmem:[#allocation3 + $0x8] sm:$0xff]
    %v9091 = vld [vmem:[#allocation3 + $0x20] sm:$0xff]
    %v9092 = vadd.f32 %v9088, %v9090
    %v9093 = vadd.f32 %v9089, %v9091
    %v9094 = vmul.f32 %v9092, 0.2
    %v9095 = vmul.f32 %v9093, 0.2
    %v9096 = vmax.f32 %v9092, %v9094
    %v9097 = vmax.f32 %v9093, %v9095
    %9098 = vst [vmem:[#allocation3 + $0x8] sm:$0xff] %v9096
    %9099 = vst [vmem:[#allocation3 + $0x20] sm:$0xff] %v9097
    %v9100 = vld [vmem:[#allocation3 + $0x8] sm:$0xff]
    %v9101 = vld [vmem:[#allocation3 + $0x20] sm:$0xff]
    %v9102 = vld [vmem:[#allocation12] sm:$0xff]
    %v9103 = vmul.f32 %v9100, %v9102
    %v9104 = vmul.f32 %v9101, %v9102
    %9105 = vadd.xlane.f32.xlu0 %v9103
    %v9106 = vpop.xlane.xlu0 %9105
    %9107 = vadd.xlane.f32.xlu0 %v9104
    %v9108 = vpop.xlane.xlu0 %9107
    %v9111 = vlaneseq
    %v9112 = vand.u32 %v9111, 127
    %v9113 = vperm.slane %v9106, %v9112
    %v9114 = vperm.slane %v9108, %v9112
    %vm9115 = vcmask 1041409
    %v9116 = vsel %vm9115, %v9114, %v9113
    %vm9118 = vcmask 58368
    %v9119 = vsel %vm9118, %v9116, 0.0
    %9120 = vadd.xlane.f32.xlu0 %v9119
    %v9121 = vpop.xlane.xlu0 %9120
    %v9122 = vld [vmem:[#allocation6] sm:$0x1]
    %v9124 = vperm.slane %v9122, 0
    %v9126 = vadd.f32 %v9121, %v9124
    %vm9127 = vcmask 1024
    %9128 = vst.msk [vmem:[%s7] sm:$0x3] %vm9127, %v9126
    // Predicated region
    $region46: #{disc_forward.1} parent=1 // pred_check
      _
    $region47: #{disc_forward.1} parent=1 // pred_check_branch
      %9130 = sbr.rel (0) target = $region49
    $region48: #{disc_forward.1} parent=1 // pred_region
      _
    $region49: #{disc_forward.1} parent=1 // pred_fallthru
      _
    // Predicated region
    $region50: #{disc_forward.1} parent=1 // pred_check
      _
    $region51: #{disc_forward.1} parent=1 // pred_check_branch
      %9132 = sbr.rel (0) target = $region53
    $region52: #{disc_forward.1} parent=1 // pred_region
      _
    $region53: #{disc_forward.1} parent=1 // pred_fallthru
      _
    %9133 = vsyncpa [#allocation8], 1
    %9134 = vsyncpa [#allocation10], 1
    %9135 = vsyncpa [#allocation13], 1
  %9136 = vsyncmov [#allocation5]
  %s9137 = vpop.sfrf %9136
  %p9138 = scmp.eq.s32.totalorder %s9137, 0
  %p9139 = pneg %p9138
  %9141 = shalt.err (%p9139)

</llo_original>
